<compile_context>
chip_gen: v6e
topology: v6e:2x2x1
jax: 0.10.0
libtpu: 0.0.40
codegen_flags: <defaults>
</compile_context>

<pallas_src>
import jax
import jax.numpy as jnp
from jax.experimental import pallas as pl
from jax.experimental.pallas import tpu as pltpu

# ---- module hyper-parameters (from model_interleave.py) ----
N_HEAD = 6
HEAD_SIZE = 64
N_EMBD = N_HEAD * HEAD_SIZE        # 384
LN_EPS = 1e-5
NEG_INF = -1e30


def _layernorm(x, gamma, beta):
    # PyTorch LayerNorm: biased variance over last dim, eps inside sqrt.
    mu = jnp.mean(x, axis=-1, keepdims=True)
    var = jnp.mean((x - mu) * (x - mu), axis=-1, keepdims=True)
    return (x - mu) * jax.lax.rsqrt(var + LN_EPS) * gamma + beta


def block_kernel(x_ref,
                 wqkv_ref, wp_ref, bp_ref,
                 w1_ref, b1_ref, w2_ref, b2_ref,
                 g1_ref, be1_ref, g2_ref, be2_ref,
                 o_ref,
                 attn_ref):
    # One grid step == Bb batch elements; all big matmuls run on M = Bb*T rows.
    Bb, T, C = x_ref.shape
    M = Bb * T
    hs = HEAD_SIZE
    nh = N_HEAD

    x = x_ref[...].reshape(M, C)                       # (M, C) f32

    # ---------------- ln1 + fused QKV projection ----------------
    h = _layernorm(x, g1_ref[...], be1_ref[...]).astype(jnp.bfloat16)
    qkv = jnp.dot(h, wqkv_ref[...],
                  preferred_element_type=jnp.float32)  # (M, 3C) f32 acc

    q3 = qkv[:, 0 * C:1 * C].reshape(Bb, T, C).astype(jnp.bfloat16)
    k3 = qkv[:, 1 * C:2 * C].reshape(Bb, T, C).astype(jnp.bfloat16)
    v3 = qkv[:, 2 * C:3 * C].reshape(Bb, T, C).astype(jnp.bfloat16)

    # ---------------- multi-head causal self-attention ----------------
    # Stack heads into the batch axis (head-major: rows [hd*Bb:(hd+1)*Bb]
    # belong to head hd) so all heads share one einsum / one softmax.
    def stack_heads(a):
        return jnp.concatenate(
            [a[:, :, hd * hs:(hd + 1) * hs] for hd in range(nh)], axis=0)

    qh = stack_heads(q3)                               # (nh*Bb, T, hs) bf16
    kh = stack_heads(k3)
    vh = stack_heads(v3)

    # NOTE: PyTorch Head scales by C**-0.5 where C = n_embd (not head_size).
    scale = 1.0 / (C ** 0.5)

    s = jnp.einsum('bqd,bkd->bqk', qh, kh,
                   preferred_element_type=jnp.float32) * scale   # (nh*Bb, T, T)

    row = jax.lax.broadcasted_iota(jnp.int32, (T, T), 0)
    col = jax.lax.broadcasted_iota(jnp.int32, (T, T), 1)
    s = jnp.where((col <= row)[None, :, :], s, NEG_INF)

    s = s - jnp.max(s, axis=-1, keepdims=True)
    p = jnp.exp(s)
    # approx reciprocal (EUP): ~1e-3 rel error; acceptable vs 2e-2 tolerance.
    p = p * pl.reciprocal(jnp.sum(p, axis=-1, keepdims=True), approx=True)
    # dropout on attention weights: identity in eval mode
    oh = jnp.einsum('bqk,bkd->bqd', p.astype(jnp.bfloat16), vh,
                    preferred_element_type=jnp.float32)          # (nh*Bb, T, hs)

    # Re-pack head outputs into an (M, C) VMEM scratch (lane slots), then do
    # ONE full-K projection matmul instead of six K=64 matmuls + f32 adds.
    for hd in range(nh):
        attn_ref[:, hd * hs:(hd + 1) * hs] = (
            oh[hd * Bb:(hd + 1) * Bb].reshape(M, hs).astype(jnp.bfloat16))

    sa = jnp.dot(attn_ref[...], wp_ref[...],
                 preferred_element_type=jnp.float32) + bp_ref[...]
    # dropout after projection: identity in eval mode
    x1 = x + sa                                        # residual 1 (f32)

    # ---------------- ln2 + feed-forward ----------------
    h2 = _layernorm(x1, g2_ref[...], be2_ref[...]).astype(jnp.bfloat16)
    ff = jnp.dot(h2, w1_ref[...],
                 preferred_element_type=jnp.float32) + b1_ref[...]
    ff = jnp.maximum(ff, 0.0).astype(jnp.bfloat16)     # ReLU
    ff = jnp.dot(ff, w2_ref[...],
                 preferred_element_type=jnp.float32) + b2_ref[...]
    # dropout after MLP: identity in eval mode
    o_ref[...] = (x1 + ff).reshape(Bb, T, C)           # residual 2


def _cdiv(a, b):
    return -(-a // b)


def _grid_and_bb(B, T, target_rows=512):
    """Choose (grid, Bb) with Bb*T ~ target_rows, grid >= 2 when B >= 2,
    and minimal batch padding (pad <= grid - 1 sequences)."""
    cap = max(1, target_rows // max(T, 1))   # max sequences per step
    grid = _cdiv(B, cap)
    if B >= 2:
        grid = max(grid, 2)                  # keep both v7x TensorCores busy
    bb = _cdiv(B, grid)
    return grid, bb


def block_forward(x, params, *, target_rows=512):
    B, T, C = x.shape
    H4 = 4 * C

    grid_b, Bb = _grid_and_bb(B, T, target_rows)
    B_pad = grid_b * Bb
    if B_pad != B:
        # pad whole sequences; padded rows are computed but never read back
        x = jnp.pad(x, ((0, B_pad - B), (0, 0), (0, 0)))
    M = Bb * T

    def full(shape):
        return pl.BlockSpec(shape, lambda b: tuple(0 for _ in shape))

    in_specs = [
        pl.BlockSpec((Bb, T, C), lambda b: (b, 0, 0)),   # x
        full((C, 3 * C)),                                # wqkv (bf16)
        full((C, C)), full((1, C)),                      # wp (bf16), bp (f32)
        full((C, H4)), full((1, H4)),                    # w1 (bf16), b1 (f32)
        full((H4, C)), full((1, C)),                     # w2 (bf16), b2 (f32)
        full((1, C)), full((1, C)),                      # ln1 gamma, beta
        full((1, C)), full((1, C)),                      # ln2 gamma, beta
    ]
    out_spec = pl.BlockSpec((Bb, T, C), lambda b: (b, 0, 0))

    out = pl.pallas_call(
        block_kernel,
        out_shape=jax.ShapeDtypeStruct((B_pad, T, C), jnp.float32),
        grid_spec=pltpu.PrefetchScalarGridSpec(
            num_scalar_prefetch=0,
            grid=(grid_b,),
            in_specs=in_specs,
            out_specs=out_spec,
            scratch_shapes=[pltpu.VMEM((M, C), jnp.bfloat16)],   # head re-pack
        ),
        compiler_params=pltpu.CompilerParams(
            dimension_semantics=("parallel",),
            vmem_limit_bytes=32 << 20,   # actual need << 32 MiB; fits v7x VMEM
        ),
    )(x, params["wqkv"], params["wp"], params["bp"],
      params["w1"], params["b1"], params["w2"], params["b2"],
      params["g1"], params["be1"], params["g2"], params["be2"])

    return out[:B] if B_pad != B else out


def block_reference(x, p):
    """Pure-JAX f32 reference of the same forward pass (sanity check)."""
    B, T, C = x.shape

    def ln(v, g, b):
        mu = jnp.mean(v, axis=-1, keepdims=True)
        var = jnp.mean((v - mu) ** 2, axis=-1, keepdims=True)
        return (v - mu) / jnp.sqrt(var + LN_EPS) * g + b

    wqkv = p["wqkv"].astype(jnp.float32)
    wq, wk, wv = wqkv[:, :C], wqkv[:, C:2 * C], wqkv[:, 2 * C:]

    h = ln(x, p["g1"], p["be1"])
    q = (h @ wq).reshape(B, T, N_HEAD, HEAD_SIZE).transpose(0, 2, 1, 3)
    k = (h @ wk).reshape(B, T, N_HEAD, HEAD_SIZE).transpose(0, 2, 1, 3)
    v = (h @ wv).reshape(B, T, N_HEAD, HEAD_SIZE).transpose(0, 2, 1, 3)
    s = jnp.einsum("bhqd,bhkd->bhqk", q, k) * (C ** -0.5)
    mask = jnp.tril(jnp.ones((T, T), dtype=bool))
    s = jnp.where(mask, s, -jnp.inf)
    w = jax.nn.softmax(s, axis=-1)
    att = jnp.einsum("bhqk,bhkd->bhqd", w, v).transpose(0, 2, 1, 3).reshape(B, T, C)
    x1 = x + att @ p["wp"].astype(jnp.float32) + p["bp"]
    h2 = ln(x1, p["g2"], p["be2"])
    ff = jnp.maximum(h2 @ p["w1"].astype(jnp.float32) + p["b1"], 0.0)
    ff = ff @ p["w2"].astype(jnp.float32) + p["b2"]
    return x1 + ff


def init_params(key, C=N_EMBD):
    H4 = 4 * C
    ks = jax.random.split(key, 10)
    s = 0.02
    bf = jnp.bfloat16
    return {
        # matmul weights stored in bf16 (halves weight DMA traffic)
        "wqkv": (jax.random.normal(ks[0], (C, 3 * C), jnp.float32) * s).astype(bf),
        "wp":   (jax.random.normal(ks[1], (C, C), jnp.float32) * s).astype(bf),
        "w1":   (jax.random.normal(ks[2], (C, H4), jnp.float32) * s).astype(bf),
        "w2":   (jax.random.normal(ks[3], (H4, C), jnp.float32) * s).astype(bf),
        # biases and LN params stay f32
        "bp":   jax.random.normal(ks[4], (1, C), jnp.float32) * s,
        "b1":   jax.random.normal(ks[5], (1, H4), jnp.float32) * s,
        "b2":   jax.random.normal(ks[6], (1, C), jnp.float32) * s,
        "g1":   1.0 + jax.random.normal(ks[7], (1, C), jnp.float32) * 0.1,
        "be1":  jax.random.normal(ks[8], (1, C), jnp.float32) * 0.1,
        "g2":   1.0 + jax.random.normal(ks[9], (1, C), jnp.float32) * 0.1,
        "be2":  jnp.zeros((1, C), jnp.float32),
    }


if __name__ == "__main__":
    key = jax.random.PRNGKey(0)
    kx, kp = jax.random.split(key)

    B, T, C = 2, 16, N_EMBD          # small batch/seq; embedding fixed by module
    x = jax.random.normal(kx, (B, T, C), jnp.float32)
    params = init_params(kp)

    out = jax.block_until_ready(block_forward(x, params))
    ref = block_reference(x, params)

    assert out.shape == (B, T, C)
    # bf16 matmul operands with f32 accumulation -> slightly looser tolerance
    assert jnp.allclose(out, ref, rtol=2e-2, atol=2e-2), "mismatch vs reference"

    print("KERNEL_OK")
</pallas_src>

<mosaic_0001>
module attributes {stable_mosaic.version = 11 : i64} {
  func.func @block_kernel(%arg0: i32, %arg1: memref<1x16x384xf32, #tpu.memory_space<vmem>>, %arg2: memref<384x1152xbf16, #tpu.memory_space<vmem>>, %arg3: memref<384x384xbf16, #tpu.memory_space<vmem>>, %arg4: memref<1x384xf32, #tpu.memory_space<vmem>>, %arg5: memref<384x1536xbf16, #tpu.memory_space<vmem>>, %arg6: memref<1x1536xf32, #tpu.memory_space<vmem>>, %arg7: memref<1536x384xbf16, #tpu.memory_space<vmem>>, %arg8: memref<1x384xf32, #tpu.memory_space<vmem>>, %arg9: memref<1x384xf32, #tpu.memory_space<vmem>>, %arg10: memref<1x384xf32, #tpu.memory_space<vmem>>, %arg11: memref<1x384xf32, #tpu.memory_space<vmem>>, %arg12: memref<1x384xf32, #tpu.memory_space<vmem>>, %arg13: memref<1x16x384xf32, #tpu.memory_space<vmem>>, %arg14: memref<16x384xbf16, #tpu.memory_space<vmem>>) attributes {dimension_semantics = [#tpu.dimension_semantics<parallel>], iteration_bounds = array<i64: 2>, scalar_prefetch = 0 : i64, scratch_operands = 1 : i64, tpu.core_type = #tpu.core_type<tc>, window_params = [{transform_indices = @transform_0, window_bounds = array<i64: 1, 16, 384>}, {pipeline_mode = #tpu.pipeline_mode<synchronous>, transform_indices = @transform_1, window_bounds = array<i64: 384, 1152>}, {pipeline_mode = #tpu.pipeline_mode<synchronous>, transform_indices = @transform_2, window_bounds = array<i64: 384, 384>}, {pipeline_mode = #tpu.pipeline_mode<synchronous>, transform_indices = @transform_3, window_bounds = array<i64: 1, 384>}, {pipeline_mode = #tpu.pipeline_mode<synchronous>, transform_indices = @transform_4, window_bounds = array<i64: 384, 1536>}, {pipeline_mode = #tpu.pipeline_mode<synchronous>, transform_indices = @transform_5, window_bounds = array<i64: 1, 1536>}, {pipeline_mode = #tpu.pipeline_mode<synchronous>, transform_indices = @transform_6, window_bounds = array<i64: 1536, 384>}, {pipeline_mode = #tpu.pipeline_mode<synchronous>, transform_indices = @transform_7, window_bounds = array<i64: 1, 384>}, {pipeline_mode = #tpu.pipeline_mode<synchronous>, transform_indices = @transform_8, window_bounds = array<i64: 1, 384>}, {pipeline_mode = #tpu.pipeline_mode<synchronous>, transform_indices = @transform_9, window_bounds = array<i64: 1, 384>}, {pipeline_mode = #tpu.pipeline_mode<synchronous>, transform_indices = @transform_10, window_bounds = array<i64: 1, 384>}, {pipeline_mode = #tpu.pipeline_mode<synchronous>, transform_indices = @transform_11, window_bounds = array<i64: 1, 384>}, {transform_indices = @transform_12, window_bounds = array<i64: 1, 16, 384>}]} {
    %c0 = arith.constant 0 : index
    %c0_0 = arith.constant 0 : index
    %c0_1 = arith.constant 0 : index
    %0 = vector.load %arg1[%c0, %c0_0, %c0_1] : memref<1x16x384xf32, #tpu.memory_space<vmem>>, vector<1x16x384xf32>
    %1 = vector.shape_cast %0 : vector<1x16x384xf32> to vector<16x384xf32>
    %c0_2 = arith.constant 0 : index
    %c0_3 = arith.constant 0 : index
    %2 = vector.load %arg9[%c0_2, %c0_3] : memref<1x384xf32, #tpu.memory_space<vmem>>, vector<1x384xf32>
    %c0_4 = arith.constant 0 : index
    %c0_5 = arith.constant 0 : index
    %3 = vector.load %arg10[%c0_4, %c0_5] : memref<1x384xf32, #tpu.memory_space<vmem>>, vector<1x384xf32>
    %cst = arith.constant dense<0.000000e+00> : vector<16xf32>
    %4 = vector.multi_reduction <add>, %1, %cst [1] : vector<16x384xf32> to vector<16xf32>
    %5 = vector.shape_cast %4 : vector<16xf32> to vector<16x1xf32>
    %cst_6 = arith.constant 3.840000e+02 : f32
    %6 = vector.broadcast %cst_6 : f32 to vector<16x1xf32>
    %7 = arith.divf %5, %6 : vector<16x1xf32>
    %8 = vector.broadcast %7 : vector<16x1xf32> to vector<16x384xf32>
    %9 = arith.subf %1, %8 : vector<16x384xf32>
    %10 = vector.broadcast %7 : vector<16x1xf32> to vector<16x384xf32>
    %11 = arith.subf %1, %10 : vector<16x384xf32>
    %12 = arith.mulf %9, %11 : vector<16x384xf32>
    %cst_7 = arith.constant dense<0.000000e+00> : vector<16xf32>
    %13 = vector.multi_reduction <add>, %12, %cst_7 [1] : vector<16x384xf32> to vector<16xf32>
    %14 = vector.shape_cast %13 : vector<16xf32> to vector<16x1xf32>
    %cst_8 = arith.constant 3.840000e+02 : f32
    %15 = vector.broadcast %cst_8 : f32 to vector<16x1xf32>
    %16 = arith.divf %14, %15 : vector<16x1xf32>
    %17 = vector.broadcast %7 : vector<16x1xf32> to vector<16x384xf32>
    %18 = arith.subf %1, %17 : vector<16x384xf32>
    %cst_9 = arith.constant 9.99999974E-6 : f32
    %19 = vector.broadcast %cst_9 : f32 to vector<16x1xf32>
    %20 = arith.addf %16, %19 : vector<16x1xf32>
    %21 = math.rsqrt %20 : vector<16x1xf32>
    %22 = vector.broadcast %21 : vector<16x1xf32> to vector<16x384xf32>
    %23 = arith.mulf %18, %22 : vector<16x384xf32>
    %24 = vector.broadcast %2 : vector<1x384xf32> to vector<16x384xf32>
    %25 = arith.mulf %23, %24 : vector<16x384xf32>
    %26 = vector.broadcast %3 : vector<1x384xf32> to vector<16x384xf32>
    %27 = arith.addf %25, %26 : vector<16x384xf32>
    %28 = arith.truncf %27 : vector<16x384xf32> to vector<16x384xbf16>
    %c0_10 = arith.constant 0 : index
    %c0_11 = arith.constant 0 : index
    %29 = vector.load %arg2[%c0_10, %c0_11] : memref<384x1152xbf16, #tpu.memory_space<vmem>>, vector<384x1152xbf16>
    %cst_12 = arith.constant dense<0.000000e+00> : vector<16x1152xf32>
    %30 = tpu.matmul %28, %29, %cst_12 {dimension_numbers = #tpu.dot_dimension_numbers<[1], [0], [0], [1], [0, 0, 1, 1], [], []>} : vector<16x384xbf16>, vector<384x1152xbf16>, vector<16x1152xf32> -> vector<16x1152xf32>
    %31 = vector.extract_strided_slice %30 {offsets = [0, 0], sizes = [16, 384], strides = [1, 1]} : vector<16x1152xf32> to vector<16x384xf32>
    %32 = vector.shape_cast %31 : vector<16x384xf32> to vector<1x16x384xf32>
    %33 = arith.truncf %32 : vector<1x16x384xf32> to vector<1x16x384xbf16>
    %34 = vector.extract_strided_slice %30 {offsets = [0, 384], sizes = [16, 384], strides = [1, 1]} : vector<16x1152xf32> to vector<16x384xf32>
    %35 = vector.shape_cast %34 : vector<16x384xf32> to vector<1x16x384xf32>
    %36 = arith.truncf %35 : vector<1x16x384xf32> to vector<1x16x384xbf16>
    %37 = vector.extract_strided_slice %30 {offsets = [0, 768], sizes = [16, 384], strides = [1, 1]} : vector<16x1152xf32> to vector<16x384xf32>
    %38 = vector.shape_cast %37 : vector<16x384xf32> to vector<1x16x384xf32>
    %39 = arith.truncf %38 : vector<1x16x384xf32> to vector<1x16x384xbf16>
    %40 = vector.extract_strided_slice %33 {offsets = [0, 0, 0], sizes = [1, 16, 64], strides = [1, 1, 1]} : vector<1x16x384xbf16> to vector<1x16x64xbf16>
    %41 = vector.extract_strided_slice %33 {offsets = [0, 0, 64], sizes = [1, 16, 64], strides = [1, 1, 1]} : vector<1x16x384xbf16> to vector<1x16x64xbf16>
    %42 = vector.extract_strided_slice %33 {offsets = [0, 0, 128], sizes = [1, 16, 64], strides = [1, 1, 1]} : vector<1x16x384xbf16> to vector<1x16x64xbf16>
    %43 = vector.extract_strided_slice %33 {offsets = [0, 0, 192], sizes = [1, 16, 64], strides = [1, 1, 1]} : vector<1x16x384xbf16> to vector<1x16x64xbf16>
    %44 = vector.extract_strided_slice %33 {offsets = [0, 0, 256], sizes = [1, 16, 64], strides = [1, 1, 1]} : vector<1x16x384xbf16> to vector<1x16x64xbf16>
    %45 = vector.extract_strided_slice %33 {offsets = [0, 0, 320], sizes = [1, 16, 64], strides = [1, 1, 1]} : vector<1x16x384xbf16> to vector<1x16x64xbf16>
    %46 = tpu.concatenate %40, %41, %42, %43, %44, %45 in 0 : vector<1x16x64xbf16>, vector<1x16x64xbf16>, vector<1x16x64xbf16>, vector<1x16x64xbf16>, vector<1x16x64xbf16>, vector<1x16x64xbf16> -> vector<6x16x64xbf16>
    %47 = vector.extract_strided_slice %36 {offsets = [0, 0, 0], sizes = [1, 16, 64], strides = [1, 1, 1]} : vector<1x16x384xbf16> to vector<1x16x64xbf16>
    %48 = vector.extract_strided_slice %36 {offsets = [0, 0, 64], sizes = [1, 16, 64], strides = [1, 1, 1]} : vector<1x16x384xbf16> to vector<1x16x64xbf16>
    %49 = vector.extract_strided_slice %36 {offsets = [0, 0, 128], sizes = [1, 16, 64], strides = [1, 1, 1]} : vector<1x16x384xbf16> to vector<1x16x64xbf16>
    %50 = vector.extract_strided_slice %36 {offsets = [0, 0, 192], sizes = [1, 16, 64], strides = [1, 1, 1]} : vector<1x16x384xbf16> to vector<1x16x64xbf16>
    %51 = vector.extract_strided_slice %36 {offsets = [0, 0, 256], sizes = [1, 16, 64], strides = [1, 1, 1]} : vector<1x16x384xbf16> to vector<1x16x64xbf16>
    %52 = vector.extract_strided_slice %36 {offsets = [0, 0, 320], sizes = [1, 16, 64], strides = [1, 1, 1]} : vector<1x16x384xbf16> to vector<1x16x64xbf16>
    %53 = tpu.concatenate %47, %48, %49, %50, %51, %52 in 0 : vector<1x16x64xbf16>, vector<1x16x64xbf16>, vector<1x16x64xbf16>, vector<1x16x64xbf16>, vector<1x16x64xbf16>, vector<1x16x64xbf16> -> vector<6x16x64xbf16>
    %54 = vector.extract_strided_slice %39 {offsets = [0, 0, 0], sizes = [1, 16, 64], strides = [1, 1, 1]} : vector<1x16x384xbf16> to vector<1x16x64xbf16>
    %55 = vector.extract_strided_slice %39 {offsets = [0, 0, 64], sizes = [1, 16, 64], strides = [1, 1, 1]} : vector<1x16x384xbf16> to vector<1x16x64xbf16>
    %56 = vector.extract_strided_slice %39 {offsets = [0, 0, 128], sizes = [1, 16, 64], strides = [1, 1, 1]} : vector<1x16x384xbf16> to vector<1x16x64xbf16>
    %57 = vector.extract_strided_slice %39 {offsets = [0, 0, 192], sizes = [1, 16, 64], strides = [1, 1, 1]} : vector<1x16x384xbf16> to vector<1x16x64xbf16>
    %58 = vector.extract_strided_slice %39 {offsets = [0, 0, 256], sizes = [1, 16, 64], strides = [1, 1, 1]} : vector<1x16x384xbf16> to vector<1x16x64xbf16>
    %59 = vector.extract_strided_slice %39 {offsets = [0, 0, 320], sizes = [1, 16, 64], strides = [1, 1, 1]} : vector<1x16x384xbf16> to vector<1x16x64xbf16>
    %60 = tpu.concatenate %54, %55, %56, %57, %58, %59 in 0 : vector<1x16x64xbf16>, vector<1x16x64xbf16>, vector<1x16x64xbf16>, vector<1x16x64xbf16>, vector<1x16x64xbf16>, vector<1x16x64xbf16> -> vector<6x16x64xbf16>
    "tpu.trace_start"() <{level = 10 : i32, message = "bqd,bkd->bqk"}> : () -> ()
    %cst_13 = arith.constant dense<0.000000e+00> : vector<6x16x16xf32>
    %61 = tpu.matmul %46, %53, %cst_13 {dimension_numbers = #tpu.dot_dimension_numbers<[2], [2], [1], [1], [0, 0, 0, 1, 1, 1], [0], [0]>} : vector<6x16x64xbf16>, vector<6x16x64xbf16>, vector<6x16x16xf32> -> vector<6x16x16xf32>
    "tpu.trace_stop"() : () -> ()
    %cst_14 = arith.constant 0.0510310382 : f32
    %62 = vector.broadcast %cst_14 : f32 to vector<6x16x16xf32>
    %63 = arith.mulf %61, %62 : vector<6x16x16xf32>
    %64 = tpu.iota {dimensions = array<i32: 0>} : vector<16x16xi32>
    %65 = tpu.iota {dimensions = array<i32: 1>} : vector<16x16xi32>
    %66 = arith.cmpi sle, %65, %64 : vector<16x16xi32>
    %67 = vector.shape_cast %66 : vector<16x16xi1> to vector<1x16x16xi1>
    %cst_15 = arith.constant -1.000000e+30 : f32
    %68 = vector.shape_cast %67 : vector<1x16x16xi1> to vector<1x16x16xi1>
    %69 = vector.broadcast %68 : vector<1x16x16xi1> to vector<6x16x16xi1>
    %70 = vector.broadcast %cst_15 : f32 to vector<6x16x16xf32>
    %71 = arith.select %69, %63, %70 : vector<6x16x16xi1>, vector<6x16x16xf32>
    %cst_16 = arith.constant dense<0xFF800000> : vector<6x16xf32>
    %72 = vector.multi_reduction <maximumf>, %71, %cst_16 [2] : vector<6x16x16xf32> to vector<6x16xf32>
    %73 = vector.shape_cast %72 : vector<6x16xf32> to vector<6x16x1xf32>
    %74 = vector.broadcast %73 : vector<6x16x1xf32> to vector<6x16x16xf32>
    %75 = arith.subf %71, %74 : vector<6x16x16xf32>
    %76 = math.exp %75 : vector<6x16x16xf32>
    %cst_17 = arith.constant dense<0.000000e+00> : vector<6x16xf32>
    %77 = vector.multi_reduction <add>, %76, %cst_17 [2] : vector<6x16x16xf32> to vector<6x16xf32>
    %78 = vector.shape_cast %77 : vector<6x16xf32> to vector<6x16x1xf32>
    %79 = tpu.reciprocal %78 {approx = true} : vector<6x16x1xf32> -> vector<6x16x1xf32>
    %80 = vector.broadcast %79 : vector<6x16x1xf32> to vector<6x16x16xf32>
    %81 = arith.mulf %76, %80 : vector<6x16x16xf32>
    %82 = arith.truncf %81 : vector<6x16x16xf32> to vector<6x16x16xbf16>
    "tpu.trace_start"() <{level = 10 : i32, message = "bqk,bkd->bqd"}> : () -> ()
    %cst_18 = arith.constant dense<0.000000e+00> : vector<6x16x64xf32>
    %83 = tpu.matmul %82, %60, %cst_18 {dimension_numbers = #tpu.dot_dimension_numbers<[2], [1], [1], [2], [0, 0, 0, 1, 1, 2], [0], [0]>} : vector<6x16x16xbf16>, vector<6x16x64xbf16>, vector<6x16x64xf32> -> vector<6x16x64xf32>
    "tpu.trace_stop"() : () -> ()
    %84 = vector.extract_strided_slice %83 {offsets = [0, 0, 0], sizes = [1, 16, 64], strides = [1, 1, 1]} : vector<6x16x64xf32> to vector<1x16x64xf32>
    %85 = vector.shape_cast %84 : vector<1x16x64xf32> to vector<16x64xf32>
    %86 = arith.truncf %85 : vector<16x64xf32> to vector<16x64xbf16>
    %c0_19 = arith.constant 0 : index
    %c0_20 = arith.constant 0 : index
    %87 = vector.load %arg14[%c0_19, %c0_20] : memref<16x384xbf16, #tpu.memory_space<vmem>>, vector<16x64xbf16>
    tpu.vector_store %arg14[%c0_19, %c0_20], %86 {strides = array<i32>} : memref<16x384xbf16, #tpu.memory_space<vmem>>, vector<16x64xbf16>,
    %88 = vector.extract_strided_slice %83 {offsets = [1, 0, 0], sizes = [1, 16, 64], strides = [1, 1, 1]} : vector<6x16x64xf32> to vector<1x16x64xf32>
    %89 = vector.shape_cast %88 : vector<1x16x64xf32> to vector<16x64xf32>
    %90 = arith.truncf %89 : vector<16x64xf32> to vector<16x64xbf16>
    %c0_21 = arith.constant 0 : index
    %c64 = arith.constant 64 : index
    %91 = vector.load %arg14[%c0_21, %c64] : memref<16x384xbf16, #tpu.memory_space<vmem>>, vector<16x64xbf16>
    tpu.vector_store %arg14[%c0_21, %c64], %90 {strides = array<i32>} : memref<16x384xbf16, #tpu.memory_space<vmem>>, vector<16x64xbf16>,
    %92 = vector.extract_strided_slice %83 {offsets = [2, 0, 0], sizes = [1, 16, 64], strides = [1, 1, 1]} : vector<6x16x64xf32> to vector<1x16x64xf32>
    %93 = vector.shape_cast %92 : vector<1x16x64xf32> to vector<16x64xf32>
    %94 = arith.truncf %93 : vector<16x64xf32> to vector<16x64xbf16>
    %c0_22 = arith.constant 0 : index
    %c128 = arith.constant 128 : index
    %95 = vector.load %arg14[%c0_22, %c128] : memref<16x384xbf16, #tpu.memory_space<vmem>>, vector<16x64xbf16>
    tpu.vector_store %arg14[%c0_22, %c128], %94 {strides = array<i32>} : memref<16x384xbf16, #tpu.memory_space<vmem>>, vector<16x64xbf16>,
    %96 = vector.extract_strided_slice %83 {offsets = [3, 0, 0], sizes = [1, 16, 64], strides = [1, 1, 1]} : vector<6x16x64xf32> to vector<1x16x64xf32>
    %97 = vector.shape_cast %96 : vector<1x16x64xf32> to vector<16x64xf32>
    %98 = arith.truncf %97 : vector<16x64xf32> to vector<16x64xbf16>
    %c0_23 = arith.constant 0 : index
    %c192 = arith.constant 192 : index
    %99 = vector.load %arg14[%c0_23, %c192] : memref<16x384xbf16, #tpu.memory_space<vmem>>, vector<16x64xbf16>
    tpu.vector_store %arg14[%c0_23, %c192], %98 {strides = array<i32>} : memref<16x384xbf16, #tpu.memory_space<vmem>>, vector<16x64xbf16>,
    %100 = vector.extract_strided_slice %83 {offsets = [4, 0, 0], sizes = [1, 16, 64], strides = [1, 1, 1]} : vector<6x16x64xf32> to vector<1x16x64xf32>
    %101 = vector.shape_cast %100 : vector<1x16x64xf32> to vector<16x64xf32>
    %102 = arith.truncf %101 : vector<16x64xf32> to vector<16x64xbf16>
    %c0_24 = arith.constant 0 : index
    %c256 = arith.constant 256 : index
    %103 = vector.load %arg14[%c0_24, %c256] : memref<16x384xbf16, #tpu.memory_space<vmem>>, vector<16x64xbf16>
    tpu.vector_store %arg14[%c0_24, %c256], %102 {strides = array<i32>} : memref<16x384xbf16, #tpu.memory_space<vmem>>, vector<16x64xbf16>,
    %104 = vector.extract_strided_slice %83 {offsets = [5, 0, 0], sizes = [1, 16, 64], strides = [1, 1, 1]} : vector<6x16x64xf32> to vector<1x16x64xf32>
    %105 = vector.shape_cast %104 : vector<1x16x64xf32> to vector<16x64xf32>
    %106 = arith.truncf %105 : vector<16x64xf32> to vector<16x64xbf16>
    %c0_25 = arith.constant 0 : index
    %c320 = arith.constant 320 : index
    %107 = vector.load %arg14[%c0_25, %c320] : memref<16x384xbf16, #tpu.memory_space<vmem>>, vector<16x64xbf16>
    tpu.vector_store %arg14[%c0_25, %c320], %106 {strides = array<i32>} : memref<16x384xbf16, #tpu.memory_space<vmem>>, vector<16x64xbf16>,
    %c0_26 = arith.constant 0 : index
    %c0_27 = arith.constant 0 : index
    %108 = vector.load %arg14[%c0_26, %c0_27] : memref<16x384xbf16, #tpu.memory_space<vmem>>, vector<16x384xbf16>
    %c0_28 = arith.constant 0 : index
    %c0_29 = arith.constant 0 : index
    %109 = vector.load %arg3[%c0_28, %c0_29] : memref<384x384xbf16, #tpu.memory_space<vmem>>, vector<384x384xbf16>
    %cst_30 = arith.constant dense<0.000000e+00> : vector<16x384xf32>
    %110 = tpu.matmul %108, %109, %cst_30 {dimension_numbers = #tpu.dot_dimension_numbers<[1], [0], [0], [1], [0, 0, 1, 1], [], []>} : vector<16x384xbf16>, vector<384x384xbf16>, vector<16x384xf32> -> vector<16x384xf32>
    %c0_31 = arith.constant 0 : index
    %c0_32 = arith.constant 0 : index
    %111 = vector.load %arg4[%c0_31, %c0_32] : memref<1x384xf32, #tpu.memory_space<vmem>>, vector<1x384xf32>
    %112 = vector.broadcast %111 : vector<1x384xf32> to vector<16x384xf32>
    %113 = arith.addf %110, %112 : vector<16x384xf32>
    %114 = arith.addf %1, %113 : vector<16x384xf32>
    %c0_33 = arith.constant 0 : index
    %c0_34 = arith.constant 0 : index
    %115 = vector.load %arg11[%c0_33, %c0_34] : memref<1x384xf32, #tpu.memory_space<vmem>>, vector<1x384xf32>
    %c0_35 = arith.constant 0 : index
    %c0_36 = arith.constant 0 : index
    %116 = vector.load %arg12[%c0_35, %c0_36] : memref<1x384xf32, #tpu.memory_space<vmem>>, vector<1x384xf32>
    %cst_37 = arith.constant dense<0.000000e+00> : vector<16xf32>
    %117 = vector.multi_reduction <add>, %114, %cst_37 [1] : vector<16x384xf32> to vector<16xf32>
    %118 = vector.shape_cast %117 : vector<16xf32> to vector<16x1xf32>
    %cst_38 = arith.constant 3.840000e+02 : f32
    %119 = vector.broadcast %cst_38 : f32 to vector<16x1xf32>
    %120 = arith.divf %118, %119 : vector<16x1xf32>
    %121 = vector.broadcast %120 : vector<16x1xf32> to vector<16x384xf32>
    %122 = arith.subf %114, %121 : vector<16x384xf32>
    %123 = vector.broadcast %120 : vector<16x1xf32> to vector<16x384xf32>
    %124 = arith.subf %114, %123 : vector<16x384xf32>
    %125 = arith.mulf %122, %124 : vector<16x384xf32>
    %cst_39 = arith.constant dense<0.000000e+00> : vector<16xf32>
    %126 = vector.multi_reduction <add>, %125, %cst_39 [1] : vector<16x384xf32> to vector<16xf32>
    %127 = vector.shape_cast %126 : vector<16xf32> to vector<16x1xf32>
    %cst_40 = arith.constant 3.840000e+02 : f32
    %128 = vector.broadcast %cst_40 : f32 to vector<16x1xf32>
    %129 = arith.divf %127, %128 : vector<16x1xf32>
    %130 = vector.broadcast %120 : vector<16x1xf32> to vector<16x384xf32>
    %131 = arith.subf %114, %130 : vector<16x384xf32>
    %cst_41 = arith.constant 9.99999974E-6 : f32
    %132 = vector.broadcast %cst_41 : f32 to vector<16x1xf32>
    %133 = arith.addf %129, %132 : vector<16x1xf32>
    %134 = math.rsqrt %133 : vector<16x1xf32>
    %135 = vector.broadcast %134 : vector<16x1xf32> to vector<16x384xf32>
    %136 = arith.mulf %131, %135 : vector<16x384xf32>
    %137 = vector.broadcast %115 : vector<1x384xf32> to vector<16x384xf32>
    %138 = arith.mulf %136, %137 : vector<16x384xf32>
    %139 = vector.broadcast %116 : vector<1x384xf32> to vector<16x384xf32>
    %140 = arith.addf %138, %139 : vector<16x384xf32>
    %141 = arith.truncf %140 : vector<16x384xf32> to vector<16x384xbf16>
    %c0_42 = arith.constant 0 : index
    %c0_43 = arith.constant 0 : index
    %142 = vector.load %arg5[%c0_42, %c0_43] : memref<384x1536xbf16, #tpu.memory_space<vmem>>, vector<384x1536xbf16>
    %cst_44 = arith.constant dense<0.000000e+00> : vector<16x1536xf32>
    %143 = tpu.matmul %141, %142, %cst_44 {dimension_numbers = #tpu.dot_dimension_numbers<[1], [0], [0], [1], [0, 0, 1, 1], [], []>} : vector<16x384xbf16>, vector<384x1536xbf16>, vector<16x1536xf32> -> vector<16x1536xf32>
    %c0_45 = arith.constant 0 : index
    %c0_46 = arith.constant 0 : index
    %144 = vector.load %arg6[%c0_45, %c0_46] : memref<1x1536xf32, #tpu.memory_space<vmem>>, vector<1x1536xf32>
    %145 = vector.broadcast %144 : vector<1x1536xf32> to vector<16x1536xf32>
    %146 = arith.addf %143, %145 : vector<16x1536xf32>
    %cst_47 = arith.constant 0.000000e+00 : f32
    %147 = vector.broadcast %cst_47 : f32 to vector<16x1536xf32>
    %148 = arith.maximumf %146, %147 : vector<16x1536xf32>
    %149 = arith.truncf %148 : vector<16x1536xf32> to vector<16x1536xbf16>
    %c0_48 = arith.constant 0 : index
    %c0_49 = arith.constant 0 : index
    %150 = vector.load %arg7[%c0_48, %c0_49] : memref<1536x384xbf16, #tpu.memory_space<vmem>>, vector<1536x384xbf16>
    %cst_50 = arith.constant dense<0.000000e+00> : vector<16x384xf32>
    %151 = tpu.matmul %149, %150, %cst_50 {dimension_numbers = #tpu.dot_dimension_numbers<[1], [0], [0], [1], [0, 0, 1, 1], [], []>} : vector<16x1536xbf16>, vector<1536x384xbf16>, vector<16x384xf32> -> vector<16x384xf32>
    %c0_51 = arith.constant 0 : index
    %c0_52 = arith.constant 0 : index
    %152 = vector.load %arg8[%c0_51, %c0_52] : memref<1x384xf32, #tpu.memory_space<vmem>>, vector<1x384xf32>
    %153 = vector.broadcast %152 : vector<1x384xf32> to vector<16x384xf32>
    %154 = arith.addf %151, %153 : vector<16x384xf32>
    %155 = arith.addf %114, %154 : vector<16x384xf32>
    %156 = vector.shape_cast %155 : vector<16x384xf32> to vector<1x16x384xf32>
    %c0_53 = arith.constant 0 : index
    %c0_54 = arith.constant 0 : index
    %c0_55 = arith.constant 0 : index
    %157 = vector.load %arg13[%c0_53, %c0_54, %c0_55] : memref<1x16x384xf32, #tpu.memory_space<vmem>>, vector<1x16x384xf32>
    tpu.vector_store %arg13[%c0_53, %c0_54, %c0_55], %156 {strides = array<i32>} : memref<1x16x384xf32, #tpu.memory_space<vmem>>, vector<1x16x384xf32>,
    return
  }
  func.func @transform_0(%arg0: i32) -> (i32, i32, i32) {
    %c0_i32 = arith.constant 0 : i32
    %c0_i32_0 = arith.constant 0 : i32
    %c0_i32_1 = arith.constant 0 : i32
    return %arg0, %c0_i32, %c0_i32_0 : i32, i32, i32
  }
  func.func @transform_1(%arg0: i32) -> (i32, i32) {
    %c0_i32 = arith.constant 0 : i32
    %c0_i32_0 = arith.constant 0 : i32
    %c0_i32_1 = arith.constant 0 : i32
    return %c0_i32, %c0_i32_0 : i32, i32
  }
  func.func @transform_2(%arg0: i32) -> (i32, i32) {
    %c0_i32 = arith.constant 0 : i32
    %c0_i32_0 = arith.constant 0 : i32
    %c0_i32_1 = arith.constant 0 : i32
    return %c0_i32, %c0_i32_0 : i32, i32
  }
  func.func @transform_3(%arg0: i32) -> (i32, i32) {
    %c0_i32 = arith.constant 0 : i32
    %c0_i32_0 = arith.constant 0 : i32
    %c0_i32_1 = arith.constant 0 : i32
    return %c0_i32, %c0_i32_0 : i32, i32
  }
  func.func @transform_4(%arg0: i32) -> (i32, i32) {
    %c0_i32 = arith.constant 0 : i32
    %c0_i32_0 = arith.constant 0 : i32
    %c0_i32_1 = arith.constant 0 : i32
    return %c0_i32, %c0_i32_0 : i32, i32
  }
  func.func @transform_5(%arg0: i32) -> (i32, i32) {
    %c0_i32 = arith.constant 0 : i32
    %c0_i32_0 = arith.constant 0 : i32
    %c0_i32_1 = arith.constant 0 : i32
    return %c0_i32, %c0_i32_0 : i32, i32
  }
  func.func @transform_6(%arg0: i32) -> (i32, i32) {
    %c0_i32 = arith.constant 0 : i32
    %c0_i32_0 = arith.constant 0 : i32
    %c0_i32_1 = arith.constant 0 : i32
    return %c0_i32, %c0_i32_0 : i32, i32
  }
  func.func @transform_7(%arg0: i32) -> (i32, i32) {
    %c0_i32 = arith.constant 0 : i32
    %c0_i32_0 = arith.constant 0 : i32
    %c0_i32_1 = arith.constant 0 : i32
    return %c0_i32, %c0_i32_0 : i32, i32
  }
  func.func @transform_8(%arg0: i32) -> (i32, i32) {
    %c0_i32 = arith.constant 0 : i32
    %c0_i32_0 = arith.constant 0 : i32
    %c0_i32_1 = arith.constant 0 : i32
    return %c0_i32, %c0_i32_0 : i32, i32
  }
  func.func @transform_9(%arg0: i32) -> (i32, i32) {
    %c0_i32 = arith.constant 0 : i32
    %c0_i32_0 = arith.constant 0 : i32
    %c0_i32_1 = arith.constant 0 : i32
    return %c0_i32, %c0_i32_0 : i32, i32
  }
  func.func @transform_10(%arg0: i32) -> (i32, i32) {
    %c0_i32 = arith.constant 0 : i32
    %c0_i32_0 = arith.constant 0 : i32
    %c0_i32_1 = arith.constant 0 : i32
    return %c0_i32, %c0_i32_0 : i32, i32
  }
  func.func @transform_11(%arg0: i32) -> (i32, i32) {
    %c0_i32 = arith.constant 0 : i32
    %c0_i32_0 = arith.constant 0 : i32
    %c0_i32_1 = arith.constant 0 : i32
    return %c0_i32, %c0_i32_0 : i32, i32
  }
  func.func @transform_12(%arg0: i32) -> (i32, i32, i32) {
    %c0_i32 = arith.constant 0 : i32
    %c0_i32_0 = arith.constant 0 : i32
    %c0_i32_1 = arith.constant 0 : i32
    return %arg0, %c0_i32, %c0_i32_0 : i32, i32, i32
  }
}

</mosaic_0001>

<llo_original>
// kernel: tpu_custom_call.1
$region0: #{tpu_custom_call.1}
  #allocation0 [shape = 'u32[]', space=smem, size = 0x4, offset = 0x4, fixed_abs, tag = 'smem constant byte address 0x4 - core index']
  #allocation1 [shape = 'u32[144,128]{1,0:T(1,128)}', space=vmem, size = 0x12000, scoped, tag = 'internal scratch']
  #allocation2 [shape = 'bf16[16,384]{1,0:T(8,128)(2,1)}', space=vmem, size = 0x3000, scoped, tag = 'scratch operand']
  %s0 = inlined_call_operand.hbm [shape: f32[2,16,384], index: 0, kind: input, shape index: {}]
  %s1 = inlined_call_operand.hbm [shape: bf16[384,1152], index: 1, kind: input, shape index: {}]
  %s2 = inlined_call_operand.hbm [shape: bf16[384,384], index: 2, kind: input, shape index: {}]
  %s3 = inlined_call_operand.hbm [shape: f32[1,384], index: 3, kind: input, shape index: {}]
  %s4 = inlined_call_operand.hbm [shape: bf16[384,1536], index: 4, kind: input, shape index: {}]
  %s5 = inlined_call_operand.hbm [shape: f32[1,1536], index: 5, kind: input, shape index: {}]
  %s6 = inlined_call_operand.hbm [shape: bf16[1536,384], index: 6, kind: input, shape index: {}]
  %s7 = inlined_call_operand.hbm [shape: f32[1,384], index: 7, kind: input, shape index: {}]
  %s8 = inlined_call_operand.hbm [shape: f32[1,384], index: 8, kind: input, shape index: {}]
  %s9 = inlined_call_operand.hbm [shape: f32[1,384], index: 9, kind: input, shape index: {}]
  %s10 = inlined_call_operand.hbm [shape: f32[1,384], index: 10, kind: input, shape index: {}]
  %s11 = inlined_call_operand.hbm [shape: f32[1,384], index: 11, kind: input, shape index: {}]
  %s12 = inlined_call_operand.hbm [shape: f32[2,16,384], index: 12, kind: output, shape index: {}]
  %s13 = sld [smem:[#allocation0]]
  $region129: #{tpu_custom_call.1} parent=0
    _
  %s15 = ssub.s32 1, %s13
  %s16 = scalar_select 0, %s15, %s13
  $region1: #{tpu_custom_call.1} parent=0
    #allocation3 [shape = 'u8[49152]{0}', space=vmem, size = 0xc000, scoped, tag = 'input window, operand 0']
    #allocation4 [shape = 's32[2]{0}', space=sflag, size = 0x8, scoped, tag = 'scoped memory for tpu_custom_call.1']
    #allocation5 [shape = 's32[2]{0}', space=sflag, size = 0x8, scoped, tag = 'scoped memory for tpu_custom_call.1']
    #allocation6 [shape = 'u8[884736]{0}', space=vmem, size = 0xd8000, scoped, tag = 'input window, operand 1, single buffered']
    #allocation7 [shape = 's32[1]{0}', space=sflag, size = 0x4, scoped, tag = 'scoped memory for tpu_custom_call.1']
    #allocation8 [shape = 'u8[294912]{0}', space=vmem, size = 0x48000, scoped, tag = 'input window, operand 2, single buffered']
    #allocation9 [shape = 'u8[1536]{0}', space=vmem, size = 0x800, scoped, tag = 'input window, operand 3, single buffered']
    #allocation10 [shape = 's32[1]{0}', space=sflag, size = 0x4, scoped, tag = 'scoped memory for tpu_custom_call.1']
    #allocation11 [shape = 'u8[1179648]{0}', space=vmem, size = 0x120000, scoped, tag = 'input window, operand 4, single buffered']
    #allocation12 [shape = 'u8[6144]{0}', space=vmem, size = 0x1800, scoped, tag = 'input window, operand 5, single buffered']
    #allocation13 [shape = 's32[1]{0}', space=sflag, size = 0x4, scoped, tag = 'scoped memory for tpu_custom_call.1']
    #allocation14 [shape = 'u8[1179648]{0}', space=vmem, size = 0x120000, scoped, tag = 'input window, operand 6, single buffered']
    #allocation15 [shape = 'u8[1536]{0}', space=vmem, size = 0x800, scoped, tag = 'input window, operand 7, single buffered']
    #allocation16 [shape = 's32[1]{0}', space=sflag, size = 0x4, scoped, tag = 'scoped memory for tpu_custom_call.1']
    #allocation17 [shape = 'u8[1536]{0}', space=vmem, size = 0x800, scoped, tag = 'input window, operand 8, single buffered']
    #allocation18 [shape = 'u8[1536]{0}', space=vmem, size = 0x800, scoped, tag = 'input window, operand 9, single buffered']
    #allocation19 [shape = 's32[1]{0}', space=sflag, size = 0x4, scoped, tag = 'scoped memory for tpu_custom_call.1']
    #allocation20 [shape = 'u8[1536]{0}', space=vmem, size = 0x800, scoped, tag = 'input window, operand 10, single buffered']
    #allocation21 [shape = 'u8[1536]{0}', space=vmem, size = 0x800, scoped, tag = 'input window, operand 11, single buffered']
    #allocation22 [shape = 's32[1]{0}', space=sflag, size = 0x4, scoped, tag = 'scoped memory for tpu_custom_call.1']
    #allocation23 [shape = 'u8[49152]{0}', space=vmem, size = 0xc000, scoped, tag = 'output window, operand 0']
    %17 = vsyncpa [#allocation4], 0
    %s18 = scalar_lea.sflag [#allocation4], 1
    %19 = vsyncpa %s18, 0
    %20 = vsyncpa [#allocation7], 0
    %21 = vsyncpa [#allocation10], 0
    %22 = vsyncpa [#allocation13], 0
    %23 = vsyncpa [#allocation16], 0
    %24 = vsyncpa [#allocation19], 0
    %25 = vsyncpa [#allocation22], 0
    %26 = vsyncpa [#allocation5], 0
    %s27 = scalar_lea.sflag [#allocation5], 1
    %28 = vsyncpa %s27, 0
    loop: start=0, step=1, limit=4
    $region2: #{tpu_custom_call.1} parent=1 // loop_pre_header
      _
    $region3: #{tpu_custom_call.1} parent=1 // loop_header
      %s30 = sphi 0, %s34
      %p31 = scmp.ge.s32.totalorder %s30, 4
      %s40 = sphi 0, %s42
      %s43 = sphi 0, %s40
      %s44 = sphi 0, %s43
      %s60 = sphi 0, %s44
      %s64 = sphi 0, %s64
      %s66 = sphi 0, %s64
      %s67 = sphi 0, %s66
      %s81 = sphi 0, %s67
      %s85 = sphi 0, %s85
      %s87 = sphi 0, %s85
      %s88 = sphi 0, %s87
      %s102 = sphi 0, %s88
      %s106 = sphi 0, %s106
      %s108 = sphi 0, %s106
      %s109 = sphi 0, %s108
      %s123 = sphi 0, %s109
      %s127 = sphi 0, %s127
      %s129 = sphi 0, %s127
      %s130 = sphi 0, %s129
      %s144 = sphi 0, %s130
      %s148 = sphi 0, %s148
      %s150 = sphi 0, %s148
      %s151 = sphi 0, %s150
      %s165 = sphi 0, %s151
      %s169 = sphi 0, %s169
      %s171 = sphi 0, %s169
      %s172 = sphi 0, %s171
      %s186 = sphi 0, %s172
      %s190 = sphi 0, %s190
      %s192 = sphi 0, %s190
      %s193 = sphi 0, %s192
      %s207 = sphi 0, %s193
      %s211 = sphi 0, %s211
      %s213 = sphi 0, %s211
      %s214 = sphi 0, %s213
      %s228 = sphi 0, %s214
      %s232 = sphi 0, %s232
      %s234 = sphi 0, %s232
      %s235 = sphi 0, %s234
      %s249 = sphi 0, %s235
      %s253 = sphi 0, %s253
      %s255 = sphi 0, %s253
      %s256 = sphi 0, %s255
      %s270 = sphi 0, %s256
      %s274 = sphi 0, %s274
      %s276 = sphi 0, %s274
      %s277 = sphi 0, %s276
      %s291 = sphi 0, %s277
      %s297 = sphi 0, %s299
      %s300 = sphi 0, %s297
      %s301 = sphi 0, %s300
      %s317 = sphi 0, %s301
    $region4: #{tpu_custom_call.1} parent=1 // loop_header_branch
      %33 = sbr.rel (%p31) target = $region8
    $region5: #{tpu_custom_call.1} parent=1 // loop_body
      %s35 = ssub.s32 %s30, 1
      %s36 = ssub.s32 %s30, 2
      %s37 = sadd.s32 %s30, 1
      %s38 = ssub.s32 %s30, %s37
      %p39 = scmp.eq.s32.totalorder %s38, 0
      %s41 = sadd.s32 %s40, 1
      %s42 = scalar_select %p39, %s40, %s41
      %p45 = pneg %p39
      %p46 = scmp.eq.s32.totalorder %s30, 1
      %p47 = por %p45, %p46
      %p48 = scmp.ne.s32.totalorder %s40, %s43
      %p49 = scmp.eq.s32.totalorder %s30, 0
      %p50 = por %p48, %p49
      %p51 = scmp.ne.s32.totalorder %s40, %s43
      %p52 = scmp.eq.s32.totalorder %s35, 1
      %p53 = por %p51, %p52
      %p54 = scmp.ne.s32.totalorder %s43, %s44
      %p55 = scmp.eq.s32.totalorder %s35, 0
      %p56 = por %p54, %p55
      %p57 = scmp.ne.s32.totalorder %s43, %s44
      %p58 = scmp.eq.s32.totalorder %s36, 1
      %p59 = por %p57, %p58
      %p61 = scmp.ne.s32.totalorder %s44, %s60
      %p62 = scmp.eq.s32.totalorder %s36, 0
      %p63 = por %p61, %p62
      %s65 = sadd.s32 %s64, 1
      %p68 = scmp.eq.s32.totalorder %s30, 1
      %p69 = scmp.ne.s32.totalorder %s64, %s66
      %p70 = scmp.eq.s32.totalorder %s30, 0
      %p71 = por %p69, %p70
      %p72 = scmp.ne.s32.totalorder %s64, %s66
      %p73 = scmp.eq.s32.totalorder %s35, 1
      %p74 = por %p72, %p73
      %p75 = scmp.ne.s32.totalorder %s66, %s67
      %p76 = scmp.eq.s32.totalorder %s35, 0
      %p77 = por %p75, %p76
      %p78 = scmp.ne.s32.totalorder %s66, %s67
      %p79 = scmp.eq.s32.totalorder %s36, 1
      %p80 = por %p78, %p79
      %p82 = scmp.ne.s32.totalorder %s67, %s81
      %p83 = scmp.eq.s32.totalorder %s36, 0
      %p84 = por %p82, %p83
      %s86 = sadd.s32 %s85, 1
      %p89 = scmp.eq.s32.totalorder %s30, 1
      %p90 = scmp.ne.s32.totalorder %s85, %s87
      %p91 = scmp.eq.s32.totalorder %s30, 0
      %p92 = por %p90, %p91
      %p93 = scmp.ne.s32.totalorder %s85, %s87
      %p94 = scmp.eq.s32.totalorder %s35, 1
      %p95 = por %p93, %p94
      %p96 = scmp.ne.s32.totalorder %s87, %s88
      %p97 = scmp.eq.s32.totalorder %s35, 0
      %p98 = por %p96, %p97
      %p99 = scmp.ne.s32.totalorder %s87, %s88
      %p100 = scmp.eq.s32.totalorder %s36, 1
      %p101 = por %p99, %p100
      %p103 = scmp.ne.s32.totalorder %s88, %s102
      %p104 = scmp.eq.s32.totalorder %s36, 0
      %p105 = por %p103, %p104
      %s107 = sadd.s32 %s106, 1
      %p110 = scmp.eq.s32.totalorder %s30, 1
      %p111 = scmp.ne.s32.totalorder %s106, %s108
      %p112 = scmp.eq.s32.totalorder %s30, 0
      %p113 = por %p111, %p112
      %p114 = scmp.ne.s32.totalorder %s106, %s108
      %p115 = scmp.eq.s32.totalorder %s35, 1
      %p116 = por %p114, %p115
      %p117 = scmp.ne.s32.totalorder %s108, %s109
      %p118 = scmp.eq.s32.totalorder %s35, 0
      %p119 = por %p117, %p118
      %p120 = scmp.ne.s32.totalorder %s108, %s109
      %p121 = scmp.eq.s32.totalorder %s36, 1
      %p122 = por %p120, %p121
      %p124 = scmp.ne.s32.totalorder %s109, %s123
      %p125 = scmp.eq.s32.totalorder %s36, 0
      %p126 = por %p124, %p125
      %s128 = sadd.s32 %s127, 1
      %p131 = scmp.eq.s32.totalorder %s30, 1
      %p132 = scmp.ne.s32.totalorder %s127, %s129
      %p133 = scmp.eq.s32.totalorder %s30, 0
      %p134 = por %p132, %p133
      %p135 = scmp.ne.s32.totalorder %s127, %s129
      %p136 = scmp.eq.s32.totalorder %s35, 1
      %p137 = por %p135, %p136
      %p138 = scmp.ne.s32.totalorder %s129, %s130
      %p139 = scmp.eq.s32.totalorder %s35, 0
      %p140 = por %p138, %p139
      %p141 = scmp.ne.s32.totalorder %s129, %s130
      %p142 = scmp.eq.s32.totalorder %s36, 1
      %p143 = por %p141, %p142
      %p145 = scmp.ne.s32.totalorder %s130, %s144
      %p146 = scmp.eq.s32.totalorder %s36, 0
      %p147 = por %p145, %p146
      %s149 = sadd.s32 %s148, 1
      %p152 = scmp.eq.s32.totalorder %s30, 1
      %p153 = scmp.ne.s32.totalorder %s148, %s150
      %p154 = scmp.eq.s32.totalorder %s30, 0
      %p155 = por %p153, %p154
      %p156 = scmp.ne.s32.totalorder %s148, %s150
      %p157 = scmp.eq.s32.totalorder %s35, 1
      %p158 = por %p156, %p157
      %p159 = scmp.ne.s32.totalorder %s150, %s151
      %p160 = scmp.eq.s32.totalorder %s35, 0
      %p161 = por %p159, %p160
      %p162 = scmp.ne.s32.totalorder %s150, %s151
      %p163 = scmp.eq.s32.totalorder %s36, 1
      %p164 = por %p162, %p163
      %p166 = scmp.ne.s32.totalorder %s151, %s165
      %p167 = scmp.eq.s32.totalorder %s36, 0
      %p168 = por %p166, %p167
      %s170 = sadd.s32 %s169, 1
      %p173 = scmp.eq.s32.totalorder %s30, 1
      %p174 = scmp.ne.s32.totalorder %s169, %s171
      %p175 = scmp.eq.s32.totalorder %s30, 0
      %p176 = por %p174, %p175
      %p177 = scmp.ne.s32.totalorder %s169, %s171
      %p178 = scmp.eq.s32.totalorder %s35, 1
      %p179 = por %p177, %p178
      %p180 = scmp.ne.s32.totalorder %s171, %s172
      %p181 = scmp.eq.s32.totalorder %s35, 0
      %p182 = por %p180, %p181
      %p183 = scmp.ne.s32.totalorder %s171, %s172
      %p184 = scmp.eq.s32.totalorder %s36, 1
      %p185 = por %p183, %p184
      %p187 = scmp.ne.s32.totalorder %s172, %s186
      %p188 = scmp.eq.s32.totalorder %s36, 0
      %p189 = por %p187, %p188
      %s191 = sadd.s32 %s190, 1
      %p194 = scmp.eq.s32.totalorder %s30, 1
      %p195 = scmp.ne.s32.totalorder %s190, %s192
      %p196 = scmp.eq.s32.totalorder %s30, 0
      %p197 = por %p195, %p196
      %p198 = scmp.ne.s32.totalorder %s190, %s192
      %p199 = scmp.eq.s32.totalorder %s35, 1
      %p200 = por %p198, %p199
      %p201 = scmp.ne.s32.totalorder %s192, %s193
      %p202 = scmp.eq.s32.totalorder %s35, 0
      %p203 = por %p201, %p202
      %p204 = scmp.ne.s32.totalorder %s192, %s193
      %p205 = scmp.eq.s32.totalorder %s36, 1
      %p206 = por %p204, %p205
      %p208 = scmp.ne.s32.totalorder %s193, %s207
      %p209 = scmp.eq.s32.totalorder %s36, 0
      %p210 = por %p208, %p209
      %s212 = sadd.s32 %s211, 1
      %p215 = scmp.eq.s32.totalorder %s30, 1
      %p216 = scmp.ne.s32.totalorder %s211, %s213
      %p217 = scmp.eq.s32.totalorder %s30, 0
      %p218 = por %p216, %p217
      %p219 = scmp.ne.s32.totalorder %s211, %s213
      %p220 = scmp.eq.s32.totalorder %s35, 1
      %p221 = por %p219, %p220
      %p222 = scmp.ne.s32.totalorder %s213, %s214
      %p223 = scmp.eq.s32.totalorder %s35, 0
      %p224 = por %p222, %p223
      %p225 = scmp.ne.s32.totalorder %s213, %s214
      %p226 = scmp.eq.s32.totalorder %s36, 1
      %p227 = por %p225, %p226
      %p229 = scmp.ne.s32.totalorder %s214, %s228
      %p230 = scmp.eq.s32.totalorder %s36, 0
      %p231 = por %p229, %p230
      %s233 = sadd.s32 %s232, 1
      %p236 = scmp.eq.s32.totalorder %s30, 1
      %p237 = scmp.ne.s32.totalorder %s232, %s234
      %p238 = scmp.eq.s32.totalorder %s30, 0
      %p239 = por %p237, %p238
      %p240 = scmp.ne.s32.totalorder %s232, %s234
      %p241 = scmp.eq.s32.totalorder %s35, 1
      %p242 = por %p240, %p241
      %p243 = scmp.ne.s32.totalorder %s234, %s235
      %p244 = scmp.eq.s32.totalorder %s35, 0
      %p245 = por %p243, %p244
      %p246 = scmp.ne.s32.totalorder %s234, %s235
      %p247 = scmp.eq.s32.totalorder %s36, 1
      %p248 = por %p246, %p247
      %p250 = scmp.ne.s32.totalorder %s235, %s249
      %p251 = scmp.eq.s32.totalorder %s36, 0
      %p252 = por %p250, %p251
      %s254 = sadd.s32 %s253, 1
      %p257 = scmp.eq.s32.totalorder %s30, 1
      %p258 = scmp.ne.s32.totalorder %s253, %s255
      %p259 = scmp.eq.s32.totalorder %s30, 0
      %p260 = por %p258, %p259
      %p261 = scmp.ne.s32.totalorder %s253, %s255
      %p262 = scmp.eq.s32.totalorder %s35, 1
      %p263 = por %p261, %p262
      %p264 = scmp.ne.s32.totalorder %s255, %s256
      %p265 = scmp.eq.s32.totalorder %s35, 0
      %p266 = por %p264, %p265
      %p267 = scmp.ne.s32.totalorder %s255, %s256
      %p268 = scmp.eq.s32.totalorder %s36, 1
      %p269 = por %p267, %p268
      %p271 = scmp.ne.s32.totalorder %s256, %s270
      %p272 = scmp.eq.s32.totalorder %s36, 0
      %p273 = por %p271, %p272
      %s275 = sadd.s32 %s274, 1
      %p278 = scmp.eq.s32.totalorder %s30, 1
      %p279 = scmp.ne.s32.totalorder %s274, %s276
      %p280 = scmp.eq.s32.totalorder %s30, 0
      %p281 = por %p279, %p280
      %p282 = scmp.ne.s32.totalorder %s274, %s276
      %p283 = scmp.eq.s32.totalorder %s35, 1
      %p284 = por %p282, %p283
      %p285 = scmp.ne.s32.totalorder %s276, %s277
      %p286 = scmp.eq.s32.totalorder %s35, 0
      %p287 = por %p285, %p286
      %p288 = scmp.ne.s32.totalorder %s276, %s277
      %p289 = scmp.eq.s32.totalorder %s36, 1
      %p290 = por %p288, %p289
      %p292 = scmp.ne.s32.totalorder %s277, %s291
      %p293 = scmp.eq.s32.totalorder %s36, 0
      %p294 = por %p292, %p293
      %s295 = ssub.s32 %s30, %s37
      %p296 = scmp.eq.s32.totalorder %s295, 0
      %s298 = sadd.s32 %s297, 1
      %s299 = scalar_select %p296, %s297, %s298
      %p302 = pneg %p296
      %p303 = scmp.eq.s32.totalorder %s30, 1
      %p304 = por %p302, %p303
      %p305 = scmp.ne.s32.totalorder %s297, %s300
      %p306 = scmp.eq.s32.totalorder %s30, 0
      %p307 = por %p305, %p306
      %p308 = scmp.ne.s32.totalorder %s297, %s300
      %p309 = scmp.eq.s32.totalorder %s35, 1
      %p310 = por %p308, %p309
      %p311 = scmp.ne.s32.totalorder %s300, %s301
      %p312 = scmp.eq.s32.totalorder %s35, 0
      %p313 = por %p311, %p312
      %p314 = scmp.ne.s32.totalorder %s300, %s301
      %p315 = scmp.eq.s32.totalorder %s36, 1
      %p316 = por %p314, %p315
      %p318 = scmp.ne.s32.totalorder %s301, %s317
      %p319 = scmp.eq.s32.totalorder %s36, 0
      %p320 = por %p318, %p319
      %p321 = scmp.le.s32.totalorder 1, %s30
      %p322 = scmp.lt.s32.totalorder %s30, 3
      %p323 = pnand %p321, %p322
      %p324 = pneg %p323
      // Predicated region
      $region9: #{tpu_custom_call.1} parent=5 // pred_check
        _
      $region10: #{tpu_custom_call.1} parent=5 // pred_check_branch
        %326 = sbr.rel (%p323) target = $region12
      $region11: #{tpu_custom_call.1} parent=5 // pred_region
        %s327 = ssub.s32 %s30, 1
        // Predicated region
        $region13: #{tpu_custom_call.1} parent=11 // pred_check
          %p328 = pneg %p77
        $region14: #{tpu_custom_call.1} parent=11 // pred_check_branch
          %330 = sbr.rel (%p328) target = $region16
        $region15: #{tpu_custom_call.1} parent=11 // pred_region
          %s332 = ssub.s32 27648, 27648
          %333 = vsyncadd [#allocation7], %s332
          %s334 = sshll.u32 [#allocation6], 4
          %s335 = int_to_ptr.vmem [resolvable:$true] %s334
          %340 = dma.hbm_to_vmem [thread:$0]  %s1, 27648, %s335, [#allocation7], 576, 576, 36
        $region16: #{tpu_custom_call.1} parent=11 // pred_fallthru
          _
        // Predicated region
        $region17: #{tpu_custom_call.1} parent=11 // pred_check
          %p341 = pneg %p98
        $region18: #{tpu_custom_call.1} parent=11 // pred_check_branch
          %343 = sbr.rel (%p341) target = $region20
        $region19: #{tpu_custom_call.1} parent=11 // pred_region
          %s345 = ssub.s32 9216, 9216
          %346 = vsyncadd [#allocation7], %s345
          %s347 = sshll.u32 [#allocation8], 4
          %s348 = int_to_ptr.vmem [resolvable:$true] %s347
          %353 = dma.hbm_to_vmem [thread:$0]  %s2, 9216, %s348, [#allocation7], 192, 192, 12
        $region20: #{tpu_custom_call.1} parent=11 // pred_fallthru
          _
        // Predicated region
        $region21: #{tpu_custom_call.1} parent=11 // pred_check
          %p354 = pneg %p119
        $region22: #{tpu_custom_call.1} parent=11 // pred_check_branch
          %356 = sbr.rel (%p354) target = $region24
        $region23: #{tpu_custom_call.1} parent=11 // pred_region
          %s358 = ssub.s32 48, 48
          %359 = vsyncadd [#allocation10], %s358
          %s361 = sshll.u32 [#allocation9], 4
          %s362 = int_to_ptr.vmem [resolvable:$true] %s361
          %364 = dma.hbm_to_vmem [thread:$0]  %s3, 48, %s362, [#allocation10]
        $region24: #{tpu_custom_call.1} parent=11 // pred_fallthru
          _
        // Predicated region
        $region25: #{tpu_custom_call.1} parent=11 // pred_check
          %p365 = pneg %p140
        $region26: #{tpu_custom_call.1} parent=11 // pred_check_branch
          %367 = sbr.rel (%p365) target = $region28
        $region27: #{tpu_custom_call.1} parent=11 // pred_region
          %s369 = ssub.s32 36864, 36864
          %370 = vsyncadd [#allocation10], %s369
          %s371 = sshll.u32 [#allocation11], 4
          %s372 = int_to_ptr.vmem [resolvable:$true] %s371
          %377 = dma.hbm_to_vmem [thread:$0]  %s4, 36864, %s372, [#allocation10], 768, 768, 48
        $region28: #{tpu_custom_call.1} parent=11 // pred_fallthru
          _
        // Predicated region
        $region29: #{tpu_custom_call.1} parent=11 // pred_check
          %p378 = pneg %p161
        $region30: #{tpu_custom_call.1} parent=11 // pred_check_branch
          %380 = sbr.rel (%p378) target = $region32
        $region31: #{tpu_custom_call.1} parent=11 // pred_region
          %s382 = ssub.s32 192, 192
          %383 = vsyncadd [#allocation13], %s382
          %s385 = sshll.u32 [#allocation12], 4
          %s386 = int_to_ptr.vmem [resolvable:$true] %s385
          %388 = dma.hbm_to_vmem [thread:$0]  %s5, 192, %s386, [#allocation13]
        $region32: #{tpu_custom_call.1} parent=11 // pred_fallthru
          _
        // Predicated region
        $region33: #{tpu_custom_call.1} parent=11 // pred_check
          %p389 = pneg %p182
        $region34: #{tpu_custom_call.1} parent=11 // pred_check_branch
          %391 = sbr.rel (%p389) target = $region36
        $region35: #{tpu_custom_call.1} parent=11 // pred_region
          %s393 = ssub.s32 36864, 36864
          %394 = vsyncadd [#allocation13], %s393
          %s395 = sshll.u32 [#allocation14], 4
          %s396 = int_to_ptr.vmem [resolvable:$true] %s395
          %401 = dma.hbm_to_vmem [thread:$0]  %s6, 36864, %s396, [#allocation13], 192, 192, 12
        $region36: #{tpu_custom_call.1} parent=11 // pred_fallthru
          _
        // Predicated region
        $region37: #{tpu_custom_call.1} parent=11 // pred_check
          %p402 = pneg %p203
        $region38: #{tpu_custom_call.1} parent=11 // pred_check_branch
          %404 = sbr.rel (%p402) target = $region40
        $region39: #{tpu_custom_call.1} parent=11 // pred_region
          %s406 = ssub.s32 48, 48
          %407 = vsyncadd [#allocation16], %s406
          %s409 = sshll.u32 [#allocation15], 4
          %s410 = int_to_ptr.vmem [resolvable:$true] %s409
          %412 = dma.hbm_to_vmem [thread:$0]  %s7, 48, %s410, [#allocation16]
        $region40: #{tpu_custom_call.1} parent=11 // pred_fallthru
          _
        // Predicated region
        $region41: #{tpu_custom_call.1} parent=11 // pred_check
          %p413 = pneg %p224
        $region42: #{tpu_custom_call.1} parent=11 // pred_check_branch
          %415 = sbr.rel (%p413) target = $region44
        $region43: #{tpu_custom_call.1} parent=11 // pred_region
          %s417 = ssub.s32 48, 48
          %418 = vsyncadd [#allocation16], %s417
          %s420 = sshll.u32 [#allocation17], 4
          %s421 = int_to_ptr.vmem [resolvable:$true] %s420
          %423 = dma.hbm_to_vmem [thread:$0]  %s8, 48, %s421, [#allocation16]
        $region44: #{tpu_custom_call.1} parent=11 // pred_fallthru
          _
        // Predicated region
        $region45: #{tpu_custom_call.1} parent=11 // pred_check
          %p424 = pneg %p245
        $region46: #{tpu_custom_call.1} parent=11 // pred_check_branch
          %426 = sbr.rel (%p424) target = $region48
        $region47: #{tpu_custom_call.1} parent=11 // pred_region
          %s428 = ssub.s32 48, 48
          %429 = vsyncadd [#allocation19], %s428
          %s431 = sshll.u32 [#allocation18], 4
          %s432 = int_to_ptr.vmem [resolvable:$true] %s431
          %434 = dma.hbm_to_vmem [thread:$0]  %s9, 48, %s432, [#allocation19]
        $region48: #{tpu_custom_call.1} parent=11 // pred_fallthru
          _
        // Predicated region
        $region49: #{tpu_custom_call.1} parent=11 // pred_check
          %p435 = pneg %p266
        $region50: #{tpu_custom_call.1} parent=11 // pred_check_branch
          %437 = sbr.rel (%p435) target = $region52
        $region51: #{tpu_custom_call.1} parent=11 // pred_region
          %s439 = ssub.s32 48, 48
          %440 = vsyncadd [#allocation19], %s439
          %s442 = sshll.u32 [#allocation20], 4
          %s443 = int_to_ptr.vmem [resolvable:$true] %s442
          %445 = dma.hbm_to_vmem [thread:$0]  %s10, 48, %s443, [#allocation19]
        $region52: #{tpu_custom_call.1} parent=11 // pred_fallthru
          _
        // Predicated region
        $region53: #{tpu_custom_call.1} parent=11 // pred_check
          %p446 = pneg %p287
        $region54: #{tpu_custom_call.1} parent=11 // pred_check_branch
          %448 = sbr.rel (%p446) target = $region56
        $region55: #{tpu_custom_call.1} parent=11 // pred_region
          %s450 = ssub.s32 48, 48
          %451 = vsyncadd [#allocation22], %s450
          %s453 = sshll.u32 [#allocation21], 4
          %s454 = int_to_ptr.vmem [resolvable:$true] %s453
          %456 = dma.hbm_to_vmem [thread:$0]  %s11, 48, %s454, [#allocation22]
        $region56: #{tpu_custom_call.1} parent=11 // pred_fallthru
          _
      $region12: #{tpu_custom_call.1} parent=5 // pred_fallthru
        _
      %p457 = scmp.lt.s32.totalorder %s30, 2
      // Predicated region
      $region57: #{tpu_custom_call.1} parent=5 // pred_check
        %p458 = pneg %p457
      $region58: #{tpu_custom_call.1} parent=5 // pred_check_branch
        %460 = sbr.rel (%p458) target = $region60
      $region59: #{tpu_custom_call.1} parent=5 // pred_region
        // Predicated region
        $region61: #{tpu_custom_call.1} parent=59 // pred_check
          %p461 = pneg %p50
        $region62: #{tpu_custom_call.1} parent=59 // pred_check_branch
          %463 = sbr.rel (%p461) target = $region64
        $region63: #{tpu_custom_call.1} parent=59 // pred_region
          %s464 = sand.u32 %s40, 1
          %s465 = scalar_lea.sflag [#allocation4], %s464
          %s466 = sand.u32 %s40, 1
          %s467 = smul.addr %s466, 48
          %s468 = scalar_lea.vmem [#allocation3], %s467
          %s470 = ssub.s32 768, 768
          %471 = vsyncadd %s465, %s470
          %s472 = smul.addr %s30, 6
          %s473 = smul.addr %s472, 128
          %s474 = scalar_lea.hbm %s0, %s473
          %s475 = sshll.u32 %s468, 4
          %s476 = int_to_ptr.vmem [resolvable:$true] %s475
          %481 = dma.hbm_to_vmem [thread:$0]  %s474, 768, %s476, %s465, 384, 384, 24
        $region64: #{tpu_custom_call.1} parent=59 // pred_fallthru
          _
      $region60: #{tpu_custom_call.1} parent=5 // pred_fallthru
        _
      %p482 = scmp.le.s32.totalorder 1, %s30
      %p483 = scmp.lt.s32.totalorder %s30, 3
      %p484 = pnand %p482, %p483
      %p485 = pneg %p484
      // Predicated region
      $region65: #{tpu_custom_call.1} parent=5 // pred_check
        _
      $region66: #{tpu_custom_call.1} parent=5 // pred_check_branch
        %487 = sbr.rel (%p484) target = $region68
      $region67: #{tpu_custom_call.1} parent=5 // pred_region
        %s488 = ssub.s32 %s30, 1
        %s489 = sand.u32 %s43, 1
        %s490 = scalar_lea.sflag [#allocation4], %s489
        %s491 = sand.u32 %s43, 1
        %s492 = smul.addr %s491, 48
        %s493 = scalar_lea.vmem [#allocation3], %s492
        // Predicated region
        $region69: #{tpu_custom_call.1} parent=67 // pred_check
          %p494 = pneg %p56
        $region70: #{tpu_custom_call.1} parent=67 // pred_check_branch
          %496 = sbr.rel (%p494) target = $region72
        $region71: #{tpu_custom_call.1} parent=67 // pred_region
          %497 = dma.done %s490, 768
        $region72: #{tpu_custom_call.1} parent=67 // pred_fallthru
          _
        // Predicated region
        $region73: #{tpu_custom_call.1} parent=67 // pred_check
          %p498 = pneg %p77
        $region74: #{tpu_custom_call.1} parent=67 // pred_check_branch
          %500 = sbr.rel (%p498) target = $region76
        $region75: #{tpu_custom_call.1} parent=67 // pred_region
          %501 = dma.done [#allocation7], 27648
        $region76: #{tpu_custom_call.1} parent=67 // pred_fallthru
          _
        // Predicated region
        $region77: #{tpu_custom_call.1} parent=67 // pred_check
          %p502 = pneg %p98
        $region78: #{tpu_custom_call.1} parent=67 // pred_check_branch
          %504 = sbr.rel (%p502) target = $region80
        $region79: #{tpu_custom_call.1} parent=67 // pred_region
          %505 = dma.done [#allocation7], 9216
        $region80: #{tpu_custom_call.1} parent=67 // pred_fallthru
          _
        // Predicated region
        $region81: #{tpu_custom_call.1} parent=67 // pred_check
          %p506 = pneg %p119
        $region82: #{tpu_custom_call.1} parent=67 // pred_check_branch
          %508 = sbr.rel (%p506) target = $region84
        $region83: #{tpu_custom_call.1} parent=67 // pred_region
          %509 = dma.done [#allocation10], 48
        $region84: #{tpu_custom_call.1} parent=67 // pred_fallthru
          _
        // Predicated region
        $region85: #{tpu_custom_call.1} parent=67 // pred_check
          %p510 = pneg %p140
        $region86: #{tpu_custom_call.1} parent=67 // pred_check_branch
          %512 = sbr.rel (%p510) target = $region88
        $region87: #{tpu_custom_call.1} parent=67 // pred_region
          %513 = dma.done [#allocation10], 36864
        $region88: #{tpu_custom_call.1} parent=67 // pred_fallthru
          _
        // Predicated region
        $region89: #{tpu_custom_call.1} parent=67 // pred_check
          %p514 = pneg %p161
        $region90: #{tpu_custom_call.1} parent=67 // pred_check_branch
          %516 = sbr.rel (%p514) target = $region92
        $region91: #{tpu_custom_call.1} parent=67 // pred_region
          %517 = dma.done [#allocation13], 192
        $region92: #{tpu_custom_call.1} parent=67 // pred_fallthru
          _
        // Predicated region
        $region93: #{tpu_custom_call.1} parent=67 // pred_check
          %p518 = pneg %p182
        $region94: #{tpu_custom_call.1} parent=67 // pred_check_branch
          %520 = sbr.rel (%p518) target = $region96
        $region95: #{tpu_custom_call.1} parent=67 // pred_region
          %521 = dma.done [#allocation13], 36864
        $region96: #{tpu_custom_call.1} parent=67 // pred_fallthru
          _
        // Predicated region
        $region97: #{tpu_custom_call.1} parent=67 // pred_check
          %p522 = pneg %p203
        $region98: #{tpu_custom_call.1} parent=67 // pred_check_branch
          %524 = sbr.rel (%p522) target = $region100
        $region99: #{tpu_custom_call.1} parent=67 // pred_region
          %525 = dma.done [#allocation16], 48
        $region100: #{tpu_custom_call.1} parent=67 // pred_fallthru
          _
        // Predicated region
        $region101: #{tpu_custom_call.1} parent=67 // pred_check
          %p526 = pneg %p224
        $region102: #{tpu_custom_call.1} parent=67 // pred_check_branch
          %528 = sbr.rel (%p526) target = $region104
        $region103: #{tpu_custom_call.1} parent=67 // pred_region
          %529 = dma.done [#allocation16], 48
        $region104: #{tpu_custom_call.1} parent=67 // pred_fallthru
          _
        // Predicated region
        $region105: #{tpu_custom_call.1} parent=67 // pred_check
          %p530 = pneg %p245
        $region106: #{tpu_custom_call.1} parent=67 // pred_check_branch
          %532 = sbr.rel (%p530) target = $region108
        $region107: #{tpu_custom_call.1} parent=67 // pred_region
          %533 = dma.done [#allocation19], 48
        $region108: #{tpu_custom_call.1} parent=67 // pred_fallthru
          _
        // Predicated region
        $region109: #{tpu_custom_call.1} parent=67 // pred_check
          %p534 = pneg %p266
        $region110: #{tpu_custom_call.1} parent=67 // pred_check_branch
          %536 = sbr.rel (%p534) target = $region112
        $region111: #{tpu_custom_call.1} parent=67 // pred_region
          %537 = dma.done [#allocation19], 48
        $region112: #{tpu_custom_call.1} parent=67 // pred_fallthru
          _
        // Predicated region
        $region113: #{tpu_custom_call.1} parent=67 // pred_check
          %p538 = pneg %p287
        $region114: #{tpu_custom_call.1} parent=67 // pred_check_branch
          %540 = sbr.rel (%p538) target = $region116
        $region115: #{tpu_custom_call.1} parent=67 // pred_region
          %541 = dma.done [#allocation22], 48
        $region116: #{tpu_custom_call.1} parent=67 // pred_fallthru
          _
        %s542 = sand.u32 %s43, 1
        %s543 = scalar_lea.sflag [#allocation4], %s542
        %s544 = sand.u32 %s43, 1
        %s545 = smul.addr %s544, 48
        %s546 = scalar_lea.vmem [#allocation3], %s545
        %p547 = pneg %p56
        %p548 = pneg %p53
        %p549 = pneg %p77
        %p550 = pneg %p74
        %p551 = pneg %p98
        %p552 = pneg %p95
        %p553 = pneg %p119
        %p554 = pneg %p116
        %p555 = pneg %p140
        %p556 = pneg %p137
        %p557 = pneg %p161
        %p558 = pneg %p158
        %p559 = pneg %p182
        %p560 = pneg %p179
        %p561 = pneg %p203
        %p562 = pneg %p200
        %p563 = pneg %p224
        %p564 = pneg %p221
        %p565 = pneg %p245
        %p566 = pneg %p242
        %p567 = pneg %p266
        %p568 = pneg %p263
        %p569 = pneg %p287
        %p570 = pneg %p284
        %p571 = pneg %p313
        %p572 = pneg %p310
        %s573 = sand.u32 %s300, 1
        %s574 = scalar_lea.sflag [#allocation5], %s573
        %s575 = sand.u32 %s300, 1
        %s576 = smul.addr %s575, 48
        %s577 = scalar_lea.vmem [#allocation23], %s576
        %v579 = vld [vmem:[%s493] sm:$0xff]
        %v580 = vld [vmem:[%s493 + $0x8] sm:$0xff]
        %v581 = vld [vmem:[%s493 + $0x10] sm:$0xff]
        %v582 = vld [vmem:[%s493 + $0x18] sm:$0xff]
        %v583 = vld [vmem:[%s493 + $0x20] sm:$0xff]
        %v584 = vld [vmem:[%s493 + $0x28] sm:$0xff]
        %v585 = vld [vmem:[#allocation17] sm:$0x7]
        %v586 = vld [vmem:[#allocation18] sm:$0x7]
        %v587 = vadd.f32 %v579, %v580
        %v588 = vadd.f32 %v587, %v581
        %589 = vadd.xlane.f32.xlu0 %v588
        %v590 = vpop.xlane.xlu0 %589
        %v591 = vadd.f32 %v582, %v583
        %v592 = vadd.f32 %v591, %v584
        %593 = vadd.xlane.f32.xlu0 %v592
        %v594 = vpop.xlane.xlu0 %593
        %v595 = vrcp.pop 384.0
        %v596 = vmul.f32 %v590, %v595
        %v597 = vmul.f32 %v594, %v595
        %v598 = vsub.f32 %v579, %v596
        %v599 = vsub.f32 %v580, %v596
        %v600 = vsub.f32 %v581, %v596
        %v601 = vsub.f32 %v582, %v597
        %v602 = vsub.f32 %v583, %v597
        %v603 = vsub.f32 %v584, %v597
        %v604 = vmul.f32 %v598, %v598
        %v605 = vmul.f32 %v599, %v599
        %v606 = vmul.f32 %v600, %v600
        %v607 = vmul.f32 %v601, %v601
        %v608 = vmul.f32 %v602, %v602
        %v609 = vmul.f32 %v603, %v603
        %v610 = vadd.f32 %v604, %v605
        %v611 = vadd.f32 %v610, %v606
        %612 = vadd.xlane.f32.xlu0 %v611
        %v613 = vpop.xlane.xlu0 %612
        %v614 = vadd.f32 %v607, %v608
        %v615 = vadd.f32 %v614, %v609
        %616 = vadd.xlane.f32.xlu0 %v615
        %v617 = vpop.xlane.xlu0 %616
        %v618 = vmul.f32 %v613, %v595
        %v619 = vmul.f32 %v617, %v595
        %v620 = vadd.f32 %v618, 1e-05
        %v621 = vadd.f32 %v619, 1e-05
        %v622 = vrsqrt.pop %v620
        %v623 = vrsqrt.pop %v621
        %v624 = vmul.f32 %v598, %v622
        %v625 = vmul.f32 %v599, %v622
        %v626 = vmul.f32 %v600, %v622
        %v627 = vmul.f32 %v601, %v623
        %v628 = vmul.f32 %v602, %v623
        %v629 = vmul.f32 %v603, %v623
        %v631 = vlaneseq
        %v632 = vshrl.u32 %v631, 7
        %v633 = vsub.s32 0, %v632
        %v634 = vrot.slane %v585, %v633
        %v635 = vlaneseq
        %v636 = vshrl.u32 %v635, 7
        %v637 = vsub.s32 1, %v636
        %v638 = vrot.slane %v585, %v637
        %v639 = vlaneseq
        %v640 = vshrl.u32 %v639, 7
        %v641 = vsub.s32 2, %v640
        %v642 = vrot.slane %v585, %v641
        %v646 = vmul.f32 %v624, %v634
        %v647 = vmul.f32 %v625, %v638
        %v648 = vmul.f32 %v626, %v642
        %v649 = vmul.f32 %v627, %v634
        %v650 = vmul.f32 %v628, %v638
        %v651 = vmul.f32 %v629, %v642
        %v653 = vlaneseq
        %v654 = vshrl.u32 %v653, 7
        %v655 = vsub.s32 0, %v654
        %v656 = vrot.slane %v586, %v655
        %v657 = vlaneseq
        %v658 = vshrl.u32 %v657, 7
        %v659 = vsub.s32 1, %v658
        %v660 = vrot.slane %v586, %v659
        %v661 = vlaneseq
        %v662 = vshrl.u32 %v661, 7
        %v663 = vsub.s32 2, %v662
        %v664 = vrot.slane %v586, %v663
        %v668 = vadd.f32 %v646, %v656
        %v669 = vadd.f32 %v647, %v660
        %v670 = vadd.f32 %v648, %v664
        %v671 = vadd.f32 %v649, %v656
        %v672 = vadd.f32 %v650, %v660
        %v673 = vadd.f32 %v651, %v664
        %v674 = vpack.c.bf16 %v671, %v668
        %v675 = vpack.c.bf16 %v672, %v669
        %v676 = vpack.c.bf16 %v673, %v670
        %v677 = vld [vmem:[#allocation6] sm:$0xff]
        %v678 = vld [vmem:[#allocation6 + $0x8] sm:$0xff]
        %v679 = vld [vmem:[#allocation6 + $0x10] sm:$0xff]
        %v680 = vld [vmem:[#allocation6 + $0x18] sm:$0xff]
        %v681 = vld [vmem:[#allocation6 + $0x20] sm:$0xf]
        %v682 = vld [vmem:[#allocation6 + $0x24] sm:$0xff]
        %v683 = vld [vmem:[#allocation6 + $0x2c] sm:$0xff]
        %v684 = vld [vmem:[#allocation6 + $0x34] sm:$0xff]
        %v685 = vld [vmem:[#allocation6 + $0x3c] sm:$0xff]
        %v686 = vld [vmem:[#allocation6 + $0x44] sm:$0xf]
        %v687 = vld [vmem:[#allocation6 + $0x48] sm:$0xff]
        %v688 = vld [vmem:[#allocation6 + $0x50] sm:$0xff]
        %v689 = vld [vmem:[#allocation6 + $0x58] sm:$0xff]
        %v690 = vld [vmem:[#allocation6 + $0x60] sm:$0xff]
        %v691 = vld [vmem:[#allocation6 + $0x68] sm:$0xf]
        %v692 = vld [vmem:[#allocation6 + $0x6c] sm:$0xff]
        %v693 = vld [vmem:[#allocation6 + $0x74] sm:$0xff]
        %v694 = vld [vmem:[#allocation6 + $0x7c] sm:$0xff]
        %v695 = vld [vmem:[#allocation6 + $0x84] sm:$0xff]
        %v696 = vld [vmem:[#allocation6 + $0x8c] sm:$0xf]
        %v697 = vld [vmem:[#allocation6 + $0x90] sm:$0xff]
        %v698 = vld [vmem:[#allocation6 + $0x98] sm:$0xff]
        %v699 = vld [vmem:[#allocation6 + $0xa0] sm:$0xff]
        %v700 = vld [vmem:[#allocation6 + $0xa8] sm:$0xff]
        %v701 = vld [vmem:[#allocation6 + $0xb0] sm:$0xf]
        %v702 = vld [vmem:[#allocation6 + $0xb4] sm:$0xff]
        %v703 = vld [vmem:[#allocation6 + $0xbc] sm:$0xff]
        %v704 = vld [vmem:[#allocation6 + $0xc4] sm:$0xff]
        %v705 = vld [vmem:[#allocation6 + $0xcc] sm:$0xff]
        %v706 = vld [vmem:[#allocation6 + $0xd4] sm:$0xf]
        %v707 = vld [vmem:[#allocation6 + $0xd8] sm:$0xff]
        %v708 = vld [vmem:[#allocation6 + $0xe0] sm:$0xff]
        %v709 = vld [vmem:[#allocation6 + $0xe8] sm:$0xff]
        %v710 = vld [vmem:[#allocation6 + $0xf0] sm:$0xff]
        %v711 = vld [vmem:[#allocation6 + $0xf8] sm:$0xf]
        %v712 = vld [vmem:[#allocation6 + $0xfc] sm:$0xff]
        %v713 = vld [vmem:[#allocation6 + $0x104] sm:$0xff]
        %v714 = vld [vmem:[#allocation6 + $0x10c] sm:$0xff]
        %v715 = vld [vmem:[#allocation6 + $0x114] sm:$0xff]
        %v716 = vld [vmem:[#allocation6 + $0x11c] sm:$0xf]
        %v717 = vld [vmem:[#allocation6 + $0x120] sm:$0xff]
        %v718 = vld [vmem:[#allocation6 + $0x128] sm:$0xff]
        %v719 = vld [vmem:[#allocation6 + $0x130] sm:$0xff]
        %v720 = vld [vmem:[#allocation6 + $0x138] sm:$0xff]
        %v721 = vld [vmem:[#allocation6 + $0x140] sm:$0xf]
        %v722 = vld [vmem:[#allocation6 + $0x144] sm:$0xff]
        %v723 = vld [vmem:[#allocation6 + $0x14c] sm:$0xff]
        %v724 = vld [vmem:[#allocation6 + $0x154] sm:$0xff]
        %v725 = vld [vmem:[#allocation6 + $0x15c] sm:$0xff]
        %v726 = vld [vmem:[#allocation6 + $0x164] sm:$0xf]
        %v727 = vld [vmem:[#allocation6 + $0x168] sm:$0xff]
        %v728 = vld [vmem:[#allocation6 + $0x170] sm:$0xff]
        %v729 = vld [vmem:[#allocation6 + $0x178] sm:$0xff]
        %v730 = vld [vmem:[#allocation6 + $0x180] sm:$0xff]
        %v731 = vld [vmem:[#allocation6 + $0x188] sm:$0xf]
        %v732 = vld [vmem:[#allocation6 + $0x18c] sm:$0xff]
        %v733 = vld [vmem:[#allocation6 + $0x194] sm:$0xff]
        %v734 = vld [vmem:[#allocation6 + $0x19c] sm:$0xff]
        %v735 = vld [vmem:[#allocation6 + $0x1a4] sm:$0xff]
        %v736 = vld [vmem:[#allocation6 + $0x1ac] sm:$0xf]
        %v737 = vld [vmem:[#allocation6 + $0x1b0] sm:$0xff]
        %v738 = vld [vmem:[#allocation6 + $0x1b8] sm:$0xff]
        %v739 = vld [vmem:[#allocation6 + $0x1c0] sm:$0xff]
        %v740 = vld [vmem:[#allocation6 + $0x1c8] sm:$0xff]
        %v741 = vld [vmem:[#allocation6 + $0x1d0] sm:$0xf]
        %v742 = vld [vmem:[#allocation6 + $0x1d4] sm:$0xff]
        %v743 = vld [vmem:[#allocation6 + $0x1dc] sm:$0xff]
        %v744 = vld [vmem:[#allocation6 + $0x1e4] sm:$0xff]
        %v745 = vld [vmem:[#allocation6 + $0x1ec] sm:$0xff]
        %v746 = vld [vmem:[#allocation6 + $0x1f4] sm:$0xf]
        %v747 = vld [vmem:[#allocation6 + $0x1f8] sm:$0xff]
        %v748 = vld [vmem:[#allocation6 + $0x200] sm:$0xff]
        %v749 = vld [vmem:[#allocation6 + $0x208] sm:$0xff]
        %v750 = vld [vmem:[#allocation6 + $0x210] sm:$0xff]
        %v751 = vld [vmem:[#allocation6 + $0x218] sm:$0xf]
        %v752 = vld [vmem:[#allocation6 + $0x21c] sm:$0xff]
        %v753 = vld [vmem:[#allocation6 + $0x224] sm:$0xff]
        %v754 = vld [vmem:[#allocation6 + $0x22c] sm:$0xff]
        %v755 = vld [vmem:[#allocation6 + $0x234] sm:$0xff]
        %v756 = vld [vmem:[#allocation6 + $0x23c] sm:$0xf]
        %v757 = vld [vmem:[#allocation6 + $0x240] sm:$0xff]
        %v758 = vld [vmem:[#allocation6 + $0x248] sm:$0xff]
        %v759 = vld [vmem:[#allocation6 + $0x250] sm:$0xff]
        %v760 = vld [vmem:[#allocation6 + $0x258] sm:$0xff]
        %v761 = vld [vmem:[#allocation6 + $0x260] sm:$0xf]
        %v762 = vld [vmem:[#allocation6 + $0x264] sm:$0xff]
        %v763 = vld [vmem:[#allocation6 + $0x26c] sm:$0xff]
        %v764 = vld [vmem:[#allocation6 + $0x274] sm:$0xff]
        %v765 = vld [vmem:[#allocation6 + $0x27c] sm:$0xff]
        %v766 = vld [vmem:[#allocation6 + $0x284] sm:$0xf]
        %v767 = vld [vmem:[#allocation6 + $0x288] sm:$0xff]
        %v768 = vld [vmem:[#allocation6 + $0x290] sm:$0xff]
        %v769 = vld [vmem:[#allocation6 + $0x298] sm:$0xff]
        %v770 = vld [vmem:[#allocation6 + $0x2a0] sm:$0xff]
        %v771 = vld [vmem:[#allocation6 + $0x2a8] sm:$0xf]
        %v772 = vld [vmem:[#allocation6 + $0x2ac] sm:$0xff]
        %v773 = vld [vmem:[#allocation6 + $0x2b4] sm:$0xff]
        %v774 = vld [vmem:[#allocation6 + $0x2bc] sm:$0xff]
        %v775 = vld [vmem:[#allocation6 + $0x2c4] sm:$0xff]
        %v776 = vld [vmem:[#allocation6 + $0x2cc] sm:$0xf]
        %v777 = vld [vmem:[#allocation6 + $0x2d0] sm:$0xff]
        %v778 = vld [vmem:[#allocation6 + $0x2d8] sm:$0xff]
        %v779 = vld [vmem:[#allocation6 + $0x2e0] sm:$0xff]
        %v780 = vld [vmem:[#allocation6 + $0x2e8] sm:$0xff]
        %v781 = vld [vmem:[#allocation6 + $0x2f0] sm:$0xf]
        %v782 = vld [vmem:[#allocation6 + $0x2f4] sm:$0xff]
        %v783 = vld [vmem:[#allocation6 + $0x2fc] sm:$0xff]
        %v784 = vld [vmem:[#allocation6 + $0x304] sm:$0xff]
        %v785 = vld [vmem:[#allocation6 + $0x30c] sm:$0xff]
        %v786 = vld [vmem:[#allocation6 + $0x314] sm:$0xf]
        %v787 = vld [vmem:[#allocation6 + $0x318] sm:$0xff]
        %v788 = vld [vmem:[#allocation6 + $0x320] sm:$0xff]
        %v789 = vld [vmem:[#allocation6 + $0x328] sm:$0xff]
        %v790 = vld [vmem:[#allocation6 + $0x330] sm:$0xff]
        %v791 = vld [vmem:[#allocation6 + $0x338] sm:$0xf]
        %v792 = vld [vmem:[#allocation6 + $0x33c] sm:$0xff]
        %v793 = vld [vmem:[#allocation6 + $0x344] sm:$0xff]
        %v794 = vld [vmem:[#allocation6 + $0x34c] sm:$0xff]
        %v795 = vld [vmem:[#allocation6 + $0x354] sm:$0xff]
        %v796 = vld [vmem:[#allocation6 + $0x35c] sm:$0xf]
        %v797 = vld [vmem:[#allocation6 + $0x360] sm:$0xff]
        %v798 = vld [vmem:[#allocation6 + $0x368] sm:$0xff]
        %v799 = vld [vmem:[#allocation6 + $0x370] sm:$0xff]
        %v800 = vld [vmem:[#allocation6 + $0x378] sm:$0xff]
        %v801 = vld [vmem:[#allocation6 + $0x380] sm:$0xf]
        %v802 = vld [vmem:[#allocation6 + $0x384] sm:$0xff]
        %v803 = vld [vmem:[#allocation6 + $0x38c] sm:$0xff]
        %v804 = vld [vmem:[#allocation6 + $0x394] sm:$0xff]
        %v805 = vld [vmem:[#allocation6 + $0x39c] sm:$0xff]
        %v806 = vld [vmem:[#allocation6 + $0x3a4] sm:$0xf]
        %v807 = vld [vmem:[#allocation6 + $0x3a8] sm:$0xff]
        %v808 = vld [vmem:[#allocation6 + $0x3b0] sm:$0xff]
        %v809 = vld [vmem:[#allocation6 + $0x3b8] sm:$0xff]
        %v810 = vld [vmem:[#allocation6 + $0x3c0] sm:$0xff]
        %v811 = vld [vmem:[#allocation6 + $0x3c8] sm:$0xf]
        %v812 = vld [vmem:[#allocation6 + $0x3cc] sm:$0xff]
        %v813 = vld [vmem:[#allocation6 + $0x3d4] sm:$0xff]
        %v814 = vld [vmem:[#allocation6 + $0x3dc] sm:$0xff]
        %v815 = vld [vmem:[#allocation6 + $0x3e4] sm:$0xff]
        %v816 = vld [vmem:[#allocation6 + $0x3ec] sm:$0xf]
        %v817 = vld [vmem:[#allocation6 + $0x3f0] sm:$0xff]
        %v818 = vld [vmem:[#allocation6 + $0x3f8] sm:$0xff]
        %v819 = vld [vmem:[#allocation6 + $0x400] sm:$0xff]
        %v820 = vld [vmem:[#allocation6 + $0x408] sm:$0xff]
        %v821 = vld [vmem:[#allocation6 + $0x410] sm:$0xf]
        %v822 = vld [vmem:[#allocation6 + $0x414] sm:$0xff]
        %v823 = vld [vmem:[#allocation6 + $0x41c] sm:$0xff]
        %v824 = vld [vmem:[#allocation6 + $0x424] sm:$0xff]
        %v825 = vld [vmem:[#allocation6 + $0x42c] sm:$0xff]
        %v826 = vld [vmem:[#allocation6 + $0x434] sm:$0xf]
        %v827 = vld [vmem:[#allocation6 + $0x438] sm:$0xff]
        %v828 = vld [vmem:[#allocation6 + $0x440] sm:$0xff]
        %v829 = vld [vmem:[#allocation6 + $0x448] sm:$0xff]
        %v830 = vld [vmem:[#allocation6 + $0x450] sm:$0xff]
        %v831 = vld [vmem:[#allocation6 + $0x458] sm:$0xf]
        %v832 = vld [vmem:[#allocation6 + $0x45c] sm:$0xff]
        %v833 = vld [vmem:[#allocation6 + $0x464] sm:$0xff]
        %v834 = vld [vmem:[#allocation6 + $0x46c] sm:$0xff]
        %v835 = vld [vmem:[#allocation6 + $0x474] sm:$0xff]
        %v836 = vld [vmem:[#allocation6 + $0x47c] sm:$0xf]
        %v837 = vld [vmem:[#allocation6 + $0x480] sm:$0xff]
        %v838 = vld [vmem:[#allocation6 + $0x488] sm:$0xff]
        %v839 = vld [vmem:[#allocation6 + $0x490] sm:$0xff]
        %v840 = vld [vmem:[#allocation6 + $0x498] sm:$0xff]
        %v841 = vld [vmem:[#allocation6 + $0x4a0] sm:$0xf]
        %v842 = vld [vmem:[#allocation6 + $0x4a4] sm:$0xff]
        %v843 = vld [vmem:[#allocation6 + $0x4ac] sm:$0xff]
        %v844 = vld [vmem:[#allocation6 + $0x4b4] sm:$0xff]
        %v845 = vld [vmem:[#allocation6 + $0x4bc] sm:$0xff]
        %v846 = vld [vmem:[#allocation6 + $0x4c4] sm:$0xf]
        %v847 = vld [vmem:[#allocation6 + $0x4c8] sm:$0xff]
        %v848 = vld [vmem:[#allocation6 + $0x4d0] sm:$0xff]
        %v849 = vld [vmem:[#allocation6 + $0x4d8] sm:$0xff]
        %v850 = vld [vmem:[#allocation6 + $0x4e0] sm:$0xff]
        %v851 = vld [vmem:[#allocation6 + $0x4e8] sm:$0xf]
        %v852 = vld [vmem:[#allocation6 + $0x4ec] sm:$0xff]
        %v853 = vld [vmem:[#allocation6 + $0x4f4] sm:$0xff]
        %v854 = vld [vmem:[#allocation6 + $0x4fc] sm:$0xff]
        %v855 = vld [vmem:[#allocation6 + $0x504] sm:$0xff]
        %v856 = vld [vmem:[#allocation6 + $0x50c] sm:$0xf]
        %v857 = vld [vmem:[#allocation6 + $0x510] sm:$0xff]
        %v858 = vld [vmem:[#allocation6 + $0x518] sm:$0xff]
        %v859 = vld [vmem:[#allocation6 + $0x520] sm:$0xff]
        %v860 = vld [vmem:[#allocation6 + $0x528] sm:$0xff]
        %v861 = vld [vmem:[#allocation6 + $0x530] sm:$0xf]
        %v862 = vld [vmem:[#allocation6 + $0x534] sm:$0xff]
        %v863 = vld [vmem:[#allocation6 + $0x53c] sm:$0xff]
        %v864 = vld [vmem:[#allocation6 + $0x544] sm:$0xff]
        %v865 = vld [vmem:[#allocation6 + $0x54c] sm:$0xff]
        %v866 = vld [vmem:[#allocation6 + $0x554] sm:$0xf]
        %v867 = vld [vmem:[#allocation6 + $0x558] sm:$0xff]
        %v868 = vld [vmem:[#allocation6 + $0x560] sm:$0xff]
        %v869 = vld [vmem:[#allocation6 + $0x568] sm:$0xff]
        %v870 = vld [vmem:[#allocation6 + $0x570] sm:$0xff]
        %v871 = vld [vmem:[#allocation6 + $0x578] sm:$0xf]
        %v872 = vld [vmem:[#allocation6 + $0x57c] sm:$0xff]
        %v873 = vld [vmem:[#allocation6 + $0x584] sm:$0xff]
        %v874 = vld [vmem:[#allocation6 + $0x58c] sm:$0xff]
        %v875 = vld [vmem:[#allocation6 + $0x594] sm:$0xff]
        %v876 = vld [vmem:[#allocation6 + $0x59c] sm:$0xf]
        %v877 = vld [vmem:[#allocation6 + $0x5a0] sm:$0xff]
        %v878 = vld [vmem:[#allocation6 + $0x5a8] sm:$0xff]
        %v879 = vld [vmem:[#allocation6 + $0x5b0] sm:$0xff]
        %v880 = vld [vmem:[#allocation6 + $0x5b8] sm:$0xff]
        %v881 = vld [vmem:[#allocation6 + $0x5c0] sm:$0xf]
        %v882 = vld [vmem:[#allocation6 + $0x5c4] sm:$0xff]
        %v883 = vld [vmem:[#allocation6 + $0x5cc] sm:$0xff]
        %v884 = vld [vmem:[#allocation6 + $0x5d4] sm:$0xff]
        %v885 = vld [vmem:[#allocation6 + $0x5dc] sm:$0xff]
        %v886 = vld [vmem:[#allocation6 + $0x5e4] sm:$0xf]
        %v887 = vld [vmem:[#allocation6 + $0x5e8] sm:$0xff]
        %v888 = vld [vmem:[#allocation6 + $0x5f0] sm:$0xff]
        %v889 = vld [vmem:[#allocation6 + $0x5f8] sm:$0xff]
        %v890 = vld [vmem:[#allocation6 + $0x600] sm:$0xff]
        %v891 = vld [vmem:[#allocation6 + $0x608] sm:$0xf]
        %v892 = vld [vmem:[#allocation6 + $0x60c] sm:$0xff]
        %v893 = vld [vmem:[#allocation6 + $0x614] sm:$0xff]
        %v894 = vld [vmem:[#allocation6 + $0x61c] sm:$0xff]
        %v895 = vld [vmem:[#allocation6 + $0x624] sm:$0xff]
        %v896 = vld [vmem:[#allocation6 + $0x62c] sm:$0xf]
        %v897 = vld [vmem:[#allocation6 + $0x630] sm:$0xff]
        %v898 = vld [vmem:[#allocation6 + $0x638] sm:$0xff]
        %v899 = vld [vmem:[#allocation6 + $0x640] sm:$0xff]
        %v900 = vld [vmem:[#allocation6 + $0x648] sm:$0xff]
        %v901 = vld [vmem:[#allocation6 + $0x650] sm:$0xf]
        %v902 = vld [vmem:[#allocation6 + $0x654] sm:$0xff]
        %v903 = vld [vmem:[#allocation6 + $0x65c] sm:$0xff]
        %v904 = vld [vmem:[#allocation6 + $0x664] sm:$0xff]
        %v905 = vld [vmem:[#allocation6 + $0x66c] sm:$0xff]
        %v906 = vld [vmem:[#allocation6 + $0x674] sm:$0xf]
        %v907 = vld [vmem:[#allocation6 + $0x678] sm:$0xff]
        %v908 = vld [vmem:[#allocation6 + $0x680] sm:$0xff]
        %v909 = vld [vmem:[#allocation6 + $0x688] sm:$0xff]
        %v910 = vld [vmem:[#allocation6 + $0x690] sm:$0xff]
        %v911 = vld [vmem:[#allocation6 + $0x698] sm:$0xf]
        %v912 = vld [vmem:[#allocation6 + $0x69c] sm:$0xff]
        %v913 = vld [vmem:[#allocation6 + $0x6a4] sm:$0xff]
        %v914 = vld [vmem:[#allocation6 + $0x6ac] sm:$0xff]
        %v915 = vld [vmem:[#allocation6 + $0x6b4] sm:$0xff]
        %v916 = vld [vmem:[#allocation6 + $0x6bc] sm:$0xf]
        %v1157 = vunpack.c.l.b16 %v677
        %v1158 = vunpack.c.h.b16 %v677
        %v1159 = vunpack.c.l.b16 %v678
        %v1160 = vunpack.c.h.b16 %v678
        %v1161 = vunpack.c.l.b16 %v679
        %v1162 = vunpack.c.h.b16 %v679
        %v1163 = vunpack.c.l.b16 %v680
        %v1164 = vunpack.c.h.b16 %v680
        %v1165 = vunpack.c.l.b16 %v681
        %v1166 = vunpack.c.l.b16 %v682
        %v1167 = vunpack.c.h.b16 %v682
        %v1168 = vunpack.c.l.b16 %v683
        %v1169 = vunpack.c.h.b16 %v683
        %v1170 = vunpack.c.l.b16 %v684
        %v1171 = vunpack.c.h.b16 %v684
        %v1172 = vunpack.c.l.b16 %v685
        %v1173 = vunpack.c.h.b16 %v685
        %v1174 = vunpack.c.l.b16 %v686
        %v1175 = vunpack.c.l.b16 %v687
        %v1176 = vunpack.c.h.b16 %v687
        %v1177 = vunpack.c.l.b16 %v688
        %v1178 = vunpack.c.h.b16 %v688
        %v1179 = vunpack.c.l.b16 %v689
        %v1180 = vunpack.c.h.b16 %v689
        %v1181 = vunpack.c.l.b16 %v690
        %v1182 = vunpack.c.h.b16 %v690
        %v1183 = vunpack.c.l.b16 %v691
        %v1184 = vunpack.c.l.b16 %v692
        %v1185 = vunpack.c.h.b16 %v692
        %v1186 = vunpack.c.l.b16 %v693
        %v1187 = vunpack.c.h.b16 %v693
        %v1188 = vunpack.c.l.b16 %v694
        %v1189 = vunpack.c.h.b16 %v694
        %v1190 = vunpack.c.l.b16 %v695
        %v1191 = vunpack.c.h.b16 %v695
        %v1192 = vunpack.c.l.b16 %v696
        %v1193 = vunpack.c.l.b16 %v697
        %v1194 = vunpack.c.h.b16 %v697
        %v1195 = vunpack.c.l.b16 %v698
        %v1196 = vunpack.c.h.b16 %v698
        %v1197 = vunpack.c.l.b16 %v699
        %v1198 = vunpack.c.h.b16 %v699
        %v1199 = vunpack.c.l.b16 %v700
        %v1200 = vunpack.c.h.b16 %v700
        %v1201 = vunpack.c.l.b16 %v701
        %v1202 = vunpack.c.l.b16 %v702
        %v1203 = vunpack.c.h.b16 %v702
        %v1204 = vunpack.c.l.b16 %v703
        %v1205 = vunpack.c.h.b16 %v703
        %v1206 = vunpack.c.l.b16 %v704
        %v1207 = vunpack.c.h.b16 %v704
        %v1208 = vunpack.c.l.b16 %v705
        %v1209 = vunpack.c.h.b16 %v705
        %v1210 = vunpack.c.l.b16 %v706
        %v1211 = vunpack.c.l.b16 %v707
        %v1212 = vunpack.c.h.b16 %v707
        %v1213 = vunpack.c.l.b16 %v708
        %v1214 = vunpack.c.h.b16 %v708
        %v1215 = vunpack.c.l.b16 %v709
        %v1216 = vunpack.c.h.b16 %v709
        %v1217 = vunpack.c.l.b16 %v710
        %v1218 = vunpack.c.h.b16 %v710
        %v1219 = vunpack.c.l.b16 %v711
        %v1220 = vunpack.c.l.b16 %v712
        %v1221 = vunpack.c.h.b16 %v712
        %v1222 = vunpack.c.l.b16 %v713
        %v1223 = vunpack.c.h.b16 %v713
        %v1224 = vunpack.c.l.b16 %v714
        %v1225 = vunpack.c.h.b16 %v714
        %v1226 = vunpack.c.l.b16 %v715
        %v1227 = vunpack.c.h.b16 %v715
        %v1228 = vunpack.c.l.b16 %v716
        %v1229 = vunpack.c.l.b16 %v717
        %v1230 = vunpack.c.h.b16 %v717
        %v1231 = vunpack.c.l.b16 %v718
        %v1232 = vunpack.c.h.b16 %v718
        %v1233 = vunpack.c.l.b16 %v719
        %v1234 = vunpack.c.h.b16 %v719
        %v1235 = vunpack.c.l.b16 %v720
        %v1236 = vunpack.c.h.b16 %v720
        %v1237 = vunpack.c.l.b16 %v721
        %v1238 = vunpack.c.l.b16 %v722
        %v1239 = vunpack.c.h.b16 %v722
        %v1240 = vunpack.c.l.b16 %v723
        %v1241 = vunpack.c.h.b16 %v723
        %v1242 = vunpack.c.l.b16 %v724
        %v1243 = vunpack.c.h.b16 %v724
        %v1244 = vunpack.c.l.b16 %v725
        %v1245 = vunpack.c.h.b16 %v725
        %v1246 = vunpack.c.l.b16 %v726
        %v1247 = vunpack.c.l.b16 %v727
        %v1248 = vunpack.c.h.b16 %v727
        %v1249 = vunpack.c.l.b16 %v728
        %v1250 = vunpack.c.h.b16 %v728
        %v1251 = vunpack.c.l.b16 %v729
        %v1252 = vunpack.c.h.b16 %v729
        %v1253 = vunpack.c.l.b16 %v730
        %v1254 = vunpack.c.h.b16 %v730
        %v1255 = vunpack.c.l.b16 %v731
        %v1256 = vunpack.c.l.b16 %v732
        %v1257 = vunpack.c.h.b16 %v732
        %v1258 = vunpack.c.l.b16 %v733
        %v1259 = vunpack.c.h.b16 %v733
        %v1260 = vunpack.c.l.b16 %v734
        %v1261 = vunpack.c.h.b16 %v734
        %v1262 = vunpack.c.l.b16 %v735
        %v1263 = vunpack.c.h.b16 %v735
        %v1264 = vunpack.c.l.b16 %v736
        %v1265 = vunpack.c.l.b16 %v737
        %v1266 = vunpack.c.h.b16 %v737
        %v1267 = vunpack.c.l.b16 %v738
        %v1268 = vunpack.c.h.b16 %v738
        %v1269 = vunpack.c.l.b16 %v739
        %v1270 = vunpack.c.h.b16 %v739
        %v1271 = vunpack.c.l.b16 %v740
        %v1272 = vunpack.c.h.b16 %v740
        %v1273 = vunpack.c.l.b16 %v741
        %v1274 = vunpack.c.l.b16 %v742
        %v1275 = vunpack.c.h.b16 %v742
        %v1276 = vunpack.c.l.b16 %v743
        %v1277 = vunpack.c.h.b16 %v743
        %v1278 = vunpack.c.l.b16 %v744
        %v1279 = vunpack.c.h.b16 %v744
        %v1280 = vunpack.c.l.b16 %v745
        %v1281 = vunpack.c.h.b16 %v745
        %v1282 = vunpack.c.l.b16 %v746
        %v1283 = vunpack.c.l.b16 %v747
        %v1284 = vunpack.c.h.b16 %v747
        %v1285 = vunpack.c.l.b16 %v748
        %v1286 = vunpack.c.h.b16 %v748
        %v1287 = vunpack.c.l.b16 %v749
        %v1288 = vunpack.c.h.b16 %v749
        %v1289 = vunpack.c.l.b16 %v750
        %v1290 = vunpack.c.h.b16 %v750
        %v1291 = vunpack.c.l.b16 %v751
        %v1292 = vunpack.c.l.b16 %v752
        %v1293 = vunpack.c.h.b16 %v752
        %v1294 = vunpack.c.l.b16 %v753
        %v1295 = vunpack.c.h.b16 %v753
        %v1296 = vunpack.c.l.b16 %v754
        %v1297 = vunpack.c.h.b16 %v754
        %v1298 = vunpack.c.l.b16 %v755
        %v1299 = vunpack.c.h.b16 %v755
        %v1300 = vunpack.c.l.b16 %v756
        %v1301 = vunpack.c.l.b16 %v757
        %v1302 = vunpack.c.h.b16 %v757
        %v1303 = vunpack.c.l.b16 %v758
        %v1304 = vunpack.c.h.b16 %v758
        %v1305 = vunpack.c.l.b16 %v759
        %v1306 = vunpack.c.h.b16 %v759
        %v1307 = vunpack.c.l.b16 %v760
        %v1308 = vunpack.c.h.b16 %v760
        %v1309 = vunpack.c.l.b16 %v761
        %v1310 = vunpack.c.l.b16 %v762
        %v1311 = vunpack.c.h.b16 %v762
        %v1312 = vunpack.c.l.b16 %v763
        %v1313 = vunpack.c.h.b16 %v763
        %v1314 = vunpack.c.l.b16 %v764
        %v1315 = vunpack.c.h.b16 %v764
        %v1316 = vunpack.c.l.b16 %v765
        %v1317 = vunpack.c.h.b16 %v765
        %v1318 = vunpack.c.l.b16 %v766
        %v1319 = vunpack.c.l.b16 %v767
        %v1320 = vunpack.c.h.b16 %v767
        %v1321 = vunpack.c.l.b16 %v768
        %v1322 = vunpack.c.h.b16 %v768
        %v1323 = vunpack.c.l.b16 %v769
        %v1324 = vunpack.c.h.b16 %v769
        %v1325 = vunpack.c.l.b16 %v770
        %v1326 = vunpack.c.h.b16 %v770
        %v1327 = vunpack.c.l.b16 %v771
        %v1328 = vunpack.c.l.b16 %v772
        %v1329 = vunpack.c.h.b16 %v772
        %v1330 = vunpack.c.l.b16 %v773
        %v1331 = vunpack.c.h.b16 %v773
        %v1332 = vunpack.c.l.b16 %v774
        %v1333 = vunpack.c.h.b16 %v774
        %v1334 = vunpack.c.l.b16 %v775
        %v1335 = vunpack.c.h.b16 %v775
        %v1336 = vunpack.c.l.b16 %v776
        %v1337 = vunpack.c.l.b16 %v777
        %v1338 = vunpack.c.h.b16 %v777
        %v1339 = vunpack.c.l.b16 %v778
        %v1340 = vunpack.c.h.b16 %v778
        %v1341 = vunpack.c.l.b16 %v779
        %v1342 = vunpack.c.h.b16 %v779
        %v1343 = vunpack.c.l.b16 %v780
        %v1344 = vunpack.c.h.b16 %v780
        %v1345 = vunpack.c.l.b16 %v781
        %v1346 = vunpack.c.l.b16 %v782
        %v1347 = vunpack.c.h.b16 %v782
        %v1348 = vunpack.c.l.b16 %v783
        %v1349 = vunpack.c.h.b16 %v783
        %v1350 = vunpack.c.l.b16 %v784
        %v1351 = vunpack.c.h.b16 %v784
        %v1352 = vunpack.c.l.b16 %v785
        %v1353 = vunpack.c.h.b16 %v785
        %v1354 = vunpack.c.l.b16 %v786
        %v1355 = vunpack.c.l.b16 %v787
        %v1356 = vunpack.c.h.b16 %v787
        %v1357 = vunpack.c.l.b16 %v788
        %v1358 = vunpack.c.h.b16 %v788
        %v1359 = vunpack.c.l.b16 %v789
        %v1360 = vunpack.c.h.b16 %v789
        %v1361 = vunpack.c.l.b16 %v790
        %v1362 = vunpack.c.h.b16 %v790
        %v1363 = vunpack.c.l.b16 %v791
        %v1364 = vunpack.c.l.b16 %v792
        %v1365 = vunpack.c.h.b16 %v792
        %v1366 = vunpack.c.l.b16 %v793
        %v1367 = vunpack.c.h.b16 %v793
        %v1368 = vunpack.c.l.b16 %v794
        %v1369 = vunpack.c.h.b16 %v794
        %v1370 = vunpack.c.l.b16 %v795
        %v1371 = vunpack.c.h.b16 %v795
        %v1372 = vunpack.c.l.b16 %v796
        %v1373 = vunpack.c.l.b16 %v797
        %v1374 = vunpack.c.h.b16 %v797
        %v1375 = vunpack.c.l.b16 %v798
        %v1376 = vunpack.c.h.b16 %v798
        %v1377 = vunpack.c.l.b16 %v799
        %v1378 = vunpack.c.h.b16 %v799
        %v1379 = vunpack.c.l.b16 %v800
        %v1380 = vunpack.c.h.b16 %v800
        %v1381 = vunpack.c.l.b16 %v801
        %v1382 = vunpack.c.l.b16 %v802
        %v1383 = vunpack.c.h.b16 %v802
        %v1384 = vunpack.c.l.b16 %v803
        %v1385 = vunpack.c.h.b16 %v803
        %v1386 = vunpack.c.l.b16 %v804
        %v1387 = vunpack.c.h.b16 %v804
        %v1388 = vunpack.c.l.b16 %v805
        %v1389 = vunpack.c.h.b16 %v805
        %v1390 = vunpack.c.l.b16 %v806
        %v1391 = vunpack.c.l.b16 %v807
        %v1392 = vunpack.c.h.b16 %v807
        %v1393 = vunpack.c.l.b16 %v808
        %v1394 = vunpack.c.h.b16 %v808
        %v1395 = vunpack.c.l.b16 %v809
        %v1396 = vunpack.c.h.b16 %v809
        %v1397 = vunpack.c.l.b16 %v810
        %v1398 = vunpack.c.h.b16 %v810
        %v1399 = vunpack.c.l.b16 %v811
        %v1400 = vunpack.c.l.b16 %v812
        %v1401 = vunpack.c.h.b16 %v812
        %v1402 = vunpack.c.l.b16 %v813
        %v1403 = vunpack.c.h.b16 %v813
        %v1404 = vunpack.c.l.b16 %v814
        %v1405 = vunpack.c.h.b16 %v814
        %v1406 = vunpack.c.l.b16 %v815
        %v1407 = vunpack.c.h.b16 %v815
        %v1408 = vunpack.c.l.b16 %v816
        %v1409 = vunpack.c.l.b16 %v817
        %v1410 = vunpack.c.h.b16 %v817
        %v1411 = vunpack.c.l.b16 %v818
        %v1412 = vunpack.c.h.b16 %v818
        %v1413 = vunpack.c.l.b16 %v819
        %v1414 = vunpack.c.h.b16 %v819
        %v1415 = vunpack.c.l.b16 %v820
        %v1416 = vunpack.c.h.b16 %v820
        %v1417 = vunpack.c.l.b16 %v821
        %v1418 = vunpack.c.l.b16 %v822
        %v1419 = vunpack.c.h.b16 %v822
        %v1420 = vunpack.c.l.b16 %v823
        %v1421 = vunpack.c.h.b16 %v823
        %v1422 = vunpack.c.l.b16 %v824
        %v1423 = vunpack.c.h.b16 %v824
        %v1424 = vunpack.c.l.b16 %v825
        %v1425 = vunpack.c.h.b16 %v825
        %v1426 = vunpack.c.l.b16 %v826
        %v1427 = vunpack.c.l.b16 %v827
        %v1428 = vunpack.c.h.b16 %v827
        %v1429 = vunpack.c.l.b16 %v828
        %v1430 = vunpack.c.h.b16 %v828
        %v1431 = vunpack.c.l.b16 %v829
        %v1432 = vunpack.c.h.b16 %v829
        %v1433 = vunpack.c.l.b16 %v830
        %v1434 = vunpack.c.h.b16 %v830
        %v1435 = vunpack.c.l.b16 %v831
        %v1436 = vunpack.c.l.b16 %v832
        %v1437 = vunpack.c.h.b16 %v832
        %v1438 = vunpack.c.l.b16 %v833
        %v1439 = vunpack.c.h.b16 %v833
        %v1440 = vunpack.c.l.b16 %v834
        %v1441 = vunpack.c.h.b16 %v834
        %v1442 = vunpack.c.l.b16 %v835
        %v1443 = vunpack.c.h.b16 %v835
        %v1444 = vunpack.c.l.b16 %v836
        %v1445 = vunpack.c.l.b16 %v837
        %v1446 = vunpack.c.h.b16 %v837
        %v1447 = vunpack.c.l.b16 %v838
        %v1448 = vunpack.c.h.b16 %v838
        %v1449 = vunpack.c.l.b16 %v839
        %v1450 = vunpack.c.h.b16 %v839
        %v1451 = vunpack.c.l.b16 %v840
        %v1452 = vunpack.c.h.b16 %v840
        %v1453 = vunpack.c.l.b16 %v841
        %v1454 = vunpack.c.l.b16 %v842
        %v1455 = vunpack.c.h.b16 %v842
        %v1456 = vunpack.c.l.b16 %v843
        %v1457 = vunpack.c.h.b16 %v843
        %v1458 = vunpack.c.l.b16 %v844
        %v1459 = vunpack.c.h.b16 %v844
        %v1460 = vunpack.c.l.b16 %v845
        %v1461 = vunpack.c.h.b16 %v845
        %v1462 = vunpack.c.l.b16 %v846
        %v1463 = vunpack.c.l.b16 %v847
        %v1464 = vunpack.c.h.b16 %v847
        %v1465 = vunpack.c.l.b16 %v848
        %v1466 = vunpack.c.h.b16 %v848
        %v1467 = vunpack.c.l.b16 %v849
        %v1468 = vunpack.c.h.b16 %v849
        %v1469 = vunpack.c.l.b16 %v850
        %v1470 = vunpack.c.h.b16 %v850
        %v1471 = vunpack.c.l.b16 %v851
        %v1472 = vunpack.c.l.b16 %v852
        %v1473 = vunpack.c.h.b16 %v852
        %v1474 = vunpack.c.l.b16 %v853
        %v1475 = vunpack.c.h.b16 %v853
        %v1476 = vunpack.c.l.b16 %v854
        %v1477 = vunpack.c.h.b16 %v854
        %v1478 = vunpack.c.l.b16 %v855
        %v1479 = vunpack.c.h.b16 %v855
        %v1480 = vunpack.c.l.b16 %v856
        %v1481 = vunpack.c.l.b16 %v857
        %v1482 = vunpack.c.h.b16 %v857
        %v1483 = vunpack.c.l.b16 %v858
        %v1484 = vunpack.c.h.b16 %v858
        %v1485 = vunpack.c.l.b16 %v859
        %v1486 = vunpack.c.h.b16 %v859
        %v1487 = vunpack.c.l.b16 %v860
        %v1488 = vunpack.c.h.b16 %v860
        %v1489 = vunpack.c.l.b16 %v861
        %v1490 = vunpack.c.l.b16 %v862
        %v1491 = vunpack.c.h.b16 %v862
        %v1492 = vunpack.c.l.b16 %v863
        %v1493 = vunpack.c.h.b16 %v863
        %v1494 = vunpack.c.l.b16 %v864
        %v1495 = vunpack.c.h.b16 %v864
        %v1496 = vunpack.c.l.b16 %v865
        %v1497 = vunpack.c.h.b16 %v865
        %v1498 = vunpack.c.l.b16 %v866
        %v1499 = vunpack.c.l.b16 %v867
        %v1500 = vunpack.c.h.b16 %v867
        %v1501 = vunpack.c.l.b16 %v868
        %v1502 = vunpack.c.h.b16 %v868
        %v1503 = vunpack.c.l.b16 %v869
        %v1504 = vunpack.c.h.b16 %v869
        %v1505 = vunpack.c.l.b16 %v870
        %v1506 = vunpack.c.h.b16 %v870
        %v1507 = vunpack.c.l.b16 %v871
        %v1508 = vunpack.c.l.b16 %v872
        %v1509 = vunpack.c.h.b16 %v872
        %v1510 = vunpack.c.l.b16 %v873
        %v1511 = vunpack.c.h.b16 %v873
        %v1512 = vunpack.c.l.b16 %v874
        %v1513 = vunpack.c.h.b16 %v874
        %v1514 = vunpack.c.l.b16 %v875
        %v1515 = vunpack.c.h.b16 %v875
        %v1516 = vunpack.c.l.b16 %v876
        %v1517 = vunpack.c.l.b16 %v877
        %v1518 = vunpack.c.h.b16 %v877
        %v1519 = vunpack.c.l.b16 %v878
        %v1520 = vunpack.c.h.b16 %v878
        %v1521 = vunpack.c.l.b16 %v879
        %v1522 = vunpack.c.h.b16 %v879
        %v1523 = vunpack.c.l.b16 %v880
        %v1524 = vunpack.c.h.b16 %v880
        %v1525 = vunpack.c.l.b16 %v881
        %v1526 = vunpack.c.l.b16 %v882
        %v1527 = vunpack.c.h.b16 %v882
        %v1528 = vunpack.c.l.b16 %v883
        %v1529 = vunpack.c.h.b16 %v883
        %v1530 = vunpack.c.l.b16 %v884
        %v1531 = vunpack.c.h.b16 %v884
        %v1532 = vunpack.c.l.b16 %v885
        %v1533 = vunpack.c.h.b16 %v885
        %v1534 = vunpack.c.l.b16 %v886
        %v1535 = vunpack.c.l.b16 %v887
        %v1536 = vunpack.c.h.b16 %v887
        %v1537 = vunpack.c.l.b16 %v888
        %v1538 = vunpack.c.h.b16 %v888
        %v1539 = vunpack.c.l.b16 %v889
        %v1540 = vunpack.c.h.b16 %v889
        %v1541 = vunpack.c.l.b16 %v890
        %v1542 = vunpack.c.h.b16 %v890
        %v1543 = vunpack.c.l.b16 %v891
        %v1544 = vunpack.c.l.b16 %v892
        %v1545 = vunpack.c.h.b16 %v892
        %v1546 = vunpack.c.l.b16 %v893
        %v1547 = vunpack.c.h.b16 %v893
        %v1548 = vunpack.c.l.b16 %v894
        %v1549 = vunpack.c.h.b16 %v894
        %v1550 = vunpack.c.l.b16 %v895
        %v1551 = vunpack.c.h.b16 %v895
        %v1552 = vunpack.c.l.b16 %v896
        %v1553 = vunpack.c.l.b16 %v897
        %v1554 = vunpack.c.h.b16 %v897
        %v1555 = vunpack.c.l.b16 %v898
        %v1556 = vunpack.c.h.b16 %v898
        %v1557 = vunpack.c.l.b16 %v899
        %v1558 = vunpack.c.h.b16 %v899
        %v1559 = vunpack.c.l.b16 %v900
        %v1560 = vunpack.c.h.b16 %v900
        %v1561 = vunpack.c.l.b16 %v901
        %v1562 = vunpack.c.l.b16 %v902
        %v1563 = vunpack.c.h.b16 %v902
        %v1564 = vunpack.c.l.b16 %v903
        %v1565 = vunpack.c.h.b16 %v903
        %v1566 = vunpack.c.l.b16 %v904
        %v1567 = vunpack.c.h.b16 %v904
        %v1568 = vunpack.c.l.b16 %v905
        %v1569 = vunpack.c.h.b16 %v905
        %v1570 = vunpack.c.l.b16 %v906
        %v1571 = vunpack.c.l.b16 %v907
        %v1572 = vunpack.c.h.b16 %v907
        %v1573 = vunpack.c.l.b16 %v908
        %v1574 = vunpack.c.h.b16 %v908
        %v1575 = vunpack.c.l.b16 %v909
        %v1576 = vunpack.c.h.b16 %v909
        %v1577 = vunpack.c.l.b16 %v910
        %v1578 = vunpack.c.h.b16 %v910
        %v1579 = vunpack.c.l.b16 %v911
        %v1580 = vunpack.c.l.b16 %v912
        %v1581 = vunpack.c.h.b16 %v912
        %v1582 = vunpack.c.l.b16 %v913
        %v1583 = vunpack.c.h.b16 %v913
        %v1584 = vunpack.c.l.b16 %v914
        %v1585 = vunpack.c.h.b16 %v914
        %v1586 = vunpack.c.l.b16 %v915
        %v1587 = vunpack.c.h.b16 %v915
        %v1588 = vunpack.c.l.b16 %v916
        %v1589 = vpack.c.b16 %v1166, %v1157
        %v1590 = vpack.c.b16 %v1167, %v1158
        %v1591 = vpack.c.b16 %v1168, %v1159
        %v1592 = vpack.c.b16 %v1169, %v1160
        %v1593 = vpack.c.b16 %v1170, %v1161
        %v1594 = vpack.c.b16 %v1171, %v1162
        %v1595 = vpack.c.b16 %v1172, %v1163
        %v1596 = vpack.c.b16 %v1173, %v1164
        %v1597 = vpack.c.b16 %v1174, %v1165
        %v1598 = vpack.c.b16 %v1184, %v1175
        %v1599 = vpack.c.b16 %v1185, %v1176
        %v1600 = vpack.c.b16 %v1186, %v1177
        %v1601 = vpack.c.b16 %v1187, %v1178
        %v1602 = vpack.c.b16 %v1188, %v1179
        %v1603 = vpack.c.b16 %v1189, %v1180
        %v1604 = vpack.c.b16 %v1190, %v1181
        %v1605 = vpack.c.b16 %v1191, %v1182
        %v1606 = vpack.c.b16 %v1192, %v1183
        %v1607 = vpack.c.b16 %v1202, %v1193
        %v1608 = vpack.c.b16 %v1203, %v1194
        %v1609 = vpack.c.b16 %v1204, %v1195
        %v1610 = vpack.c.b16 %v1205, %v1196
        %v1611 = vpack.c.b16 %v1206, %v1197
        %v1612 = vpack.c.b16 %v1207, %v1198
        %v1613 = vpack.c.b16 %v1208, %v1199
        %v1614 = vpack.c.b16 %v1209, %v1200
        %v1615 = vpack.c.b16 %v1210, %v1201
        %v1616 = vpack.c.b16 %v1220, %v1211
        %v1617 = vpack.c.b16 %v1221, %v1212
        %v1618 = vpack.c.b16 %v1222, %v1213
        %v1619 = vpack.c.b16 %v1223, %v1214
        %v1620 = vpack.c.b16 %v1224, %v1215
        %v1621 = vpack.c.b16 %v1225, %v1216
        %v1622 = vpack.c.b16 %v1226, %v1217
        %v1623 = vpack.c.b16 %v1227, %v1218
        %v1624 = vpack.c.b16 %v1228, %v1219
        %v1625 = vpack.c.b16 %v1238, %v1229
        %v1626 = vpack.c.b16 %v1239, %v1230
        %v1627 = vpack.c.b16 %v1240, %v1231
        %v1628 = vpack.c.b16 %v1241, %v1232
        %v1629 = vpack.c.b16 %v1242, %v1233
        %v1630 = vpack.c.b16 %v1243, %v1234
        %v1631 = vpack.c.b16 %v1244, %v1235
        %v1632 = vpack.c.b16 %v1245, %v1236
        %v1633 = vpack.c.b16 %v1246, %v1237
        %v1634 = vpack.c.b16 %v1256, %v1247
        %v1635 = vpack.c.b16 %v1257, %v1248
        %v1636 = vpack.c.b16 %v1258, %v1249
        %v1637 = vpack.c.b16 %v1259, %v1250
        %v1638 = vpack.c.b16 %v1260, %v1251
        %v1639 = vpack.c.b16 %v1261, %v1252
        %v1640 = vpack.c.b16 %v1262, %v1253
        %v1641 = vpack.c.b16 %v1263, %v1254
        %v1642 = vpack.c.b16 %v1264, %v1255
        %v1643 = vpack.c.b16 %v1274, %v1265
        %v1644 = vpack.c.b16 %v1275, %v1266
        %v1645 = vpack.c.b16 %v1276, %v1267
        %v1646 = vpack.c.b16 %v1277, %v1268
        %v1647 = vpack.c.b16 %v1278, %v1269
        %v1648 = vpack.c.b16 %v1279, %v1270
        %v1649 = vpack.c.b16 %v1280, %v1271
        %v1650 = vpack.c.b16 %v1281, %v1272
        %v1651 = vpack.c.b16 %v1282, %v1273
        %v1652 = vpack.c.b16 %v1292, %v1283
        %v1653 = vpack.c.b16 %v1293, %v1284
        %v1654 = vpack.c.b16 %v1294, %v1285
        %v1655 = vpack.c.b16 %v1295, %v1286
        %v1656 = vpack.c.b16 %v1296, %v1287
        %v1657 = vpack.c.b16 %v1297, %v1288
        %v1658 = vpack.c.b16 %v1298, %v1289
        %v1659 = vpack.c.b16 %v1299, %v1290
        %v1660 = vpack.c.b16 %v1300, %v1291
        %v1661 = vpack.c.b16 %v1310, %v1301
        %v1662 = vpack.c.b16 %v1311, %v1302
        %v1663 = vpack.c.b16 %v1312, %v1303
        %v1664 = vpack.c.b16 %v1313, %v1304
        %v1665 = vpack.c.b16 %v1314, %v1305
        %v1666 = vpack.c.b16 %v1315, %v1306
        %v1667 = vpack.c.b16 %v1316, %v1307
        %v1668 = vpack.c.b16 %v1317, %v1308
        %v1669 = vpack.c.b16 %v1318, %v1309
        %v1670 = vpack.c.b16 %v1328, %v1319
        %v1671 = vpack.c.b16 %v1329, %v1320
        %v1672 = vpack.c.b16 %v1330, %v1321
        %v1673 = vpack.c.b16 %v1331, %v1322
        %v1674 = vpack.c.b16 %v1332, %v1323
        %v1675 = vpack.c.b16 %v1333, %v1324
        %v1676 = vpack.c.b16 %v1334, %v1325
        %v1677 = vpack.c.b16 %v1335, %v1326
        %v1678 = vpack.c.b16 %v1336, %v1327
        %v1679 = vpack.c.b16 %v1346, %v1337
        %v1680 = vpack.c.b16 %v1347, %v1338
        %v1681 = vpack.c.b16 %v1348, %v1339
        %v1682 = vpack.c.b16 %v1349, %v1340
        %v1683 = vpack.c.b16 %v1350, %v1341
        %v1684 = vpack.c.b16 %v1351, %v1342
        %v1685 = vpack.c.b16 %v1352, %v1343
        %v1686 = vpack.c.b16 %v1353, %v1344
        %v1687 = vpack.c.b16 %v1354, %v1345
        %v1688 = vpack.c.b16 %v1364, %v1355
        %v1689 = vpack.c.b16 %v1365, %v1356
        %v1690 = vpack.c.b16 %v1366, %v1357
        %v1691 = vpack.c.b16 %v1367, %v1358
        %v1692 = vpack.c.b16 %v1368, %v1359
        %v1693 = vpack.c.b16 %v1369, %v1360
        %v1694 = vpack.c.b16 %v1370, %v1361
        %v1695 = vpack.c.b16 %v1371, %v1362
        %v1696 = vpack.c.b16 %v1372, %v1363
        %v1697 = vpack.c.b16 %v1382, %v1373
        %v1698 = vpack.c.b16 %v1383, %v1374
        %v1699 = vpack.c.b16 %v1384, %v1375
        %v1700 = vpack.c.b16 %v1385, %v1376
        %v1701 = vpack.c.b16 %v1386, %v1377
        %v1702 = vpack.c.b16 %v1387, %v1378
        %v1703 = vpack.c.b16 %v1388, %v1379
        %v1704 = vpack.c.b16 %v1389, %v1380
        %v1705 = vpack.c.b16 %v1390, %v1381
        %v1706 = vpack.c.b16 %v1400, %v1391
        %v1707 = vpack.c.b16 %v1401, %v1392
        %v1708 = vpack.c.b16 %v1402, %v1393
        %v1709 = vpack.c.b16 %v1403, %v1394
        %v1710 = vpack.c.b16 %v1404, %v1395
        %v1711 = vpack.c.b16 %v1405, %v1396
        %v1712 = vpack.c.b16 %v1406, %v1397
        %v1713 = vpack.c.b16 %v1407, %v1398
        %v1714 = vpack.c.b16 %v1408, %v1399
        %v1715 = vpack.c.b16 %v1418, %v1409
        %v1716 = vpack.c.b16 %v1419, %v1410
        %v1717 = vpack.c.b16 %v1420, %v1411
        %v1718 = vpack.c.b16 %v1421, %v1412
        %v1719 = vpack.c.b16 %v1422, %v1413
        %v1720 = vpack.c.b16 %v1423, %v1414
        %v1721 = vpack.c.b16 %v1424, %v1415
        %v1722 = vpack.c.b16 %v1425, %v1416
        %v1723 = vpack.c.b16 %v1426, %v1417
        %v1724 = vpack.c.b16 %v1436, %v1427
        %v1725 = vpack.c.b16 %v1437, %v1428
        %v1726 = vpack.c.b16 %v1438, %v1429
        %v1727 = vpack.c.b16 %v1439, %v1430
        %v1728 = vpack.c.b16 %v1440, %v1431
        %v1729 = vpack.c.b16 %v1441, %v1432
        %v1730 = vpack.c.b16 %v1442, %v1433
        %v1731 = vpack.c.b16 %v1443, %v1434
        %v1732 = vpack.c.b16 %v1444, %v1435
        %v1733 = vpack.c.b16 %v1454, %v1445
        %v1734 = vpack.c.b16 %v1455, %v1446
        %v1735 = vpack.c.b16 %v1456, %v1447
        %v1736 = vpack.c.b16 %v1457, %v1448
        %v1737 = vpack.c.b16 %v1458, %v1449
        %v1738 = vpack.c.b16 %v1459, %v1450
        %v1739 = vpack.c.b16 %v1460, %v1451
        %v1740 = vpack.c.b16 %v1461, %v1452
        %v1741 = vpack.c.b16 %v1462, %v1453
        %v1742 = vpack.c.b16 %v1472, %v1463
        %v1743 = vpack.c.b16 %v1473, %v1464
        %v1744 = vpack.c.b16 %v1474, %v1465
        %v1745 = vpack.c.b16 %v1475, %v1466
        %v1746 = vpack.c.b16 %v1476, %v1467
        %v1747 = vpack.c.b16 %v1477, %v1468
        %v1748 = vpack.c.b16 %v1478, %v1469
        %v1749 = vpack.c.b16 %v1479, %v1470
        %v1750 = vpack.c.b16 %v1480, %v1471
        %v1751 = vpack.c.b16 %v1490, %v1481
        %v1752 = vpack.c.b16 %v1491, %v1482
        %v1753 = vpack.c.b16 %v1492, %v1483
        %v1754 = vpack.c.b16 %v1493, %v1484
        %v1755 = vpack.c.b16 %v1494, %v1485
        %v1756 = vpack.c.b16 %v1495, %v1486
        %v1757 = vpack.c.b16 %v1496, %v1487
        %v1758 = vpack.c.b16 %v1497, %v1488
        %v1759 = vpack.c.b16 %v1498, %v1489
        %v1760 = vpack.c.b16 %v1508, %v1499
        %v1761 = vpack.c.b16 %v1509, %v1500
        %v1762 = vpack.c.b16 %v1510, %v1501
        %v1763 = vpack.c.b16 %v1511, %v1502
        %v1764 = vpack.c.b16 %v1512, %v1503
        %v1765 = vpack.c.b16 %v1513, %v1504
        %v1766 = vpack.c.b16 %v1514, %v1505
        %v1767 = vpack.c.b16 %v1515, %v1506
        %v1768 = vpack.c.b16 %v1516, %v1507
        %v1769 = vpack.c.b16 %v1526, %v1517
        %v1770 = vpack.c.b16 %v1527, %v1518
        %v1771 = vpack.c.b16 %v1528, %v1519
        %v1772 = vpack.c.b16 %v1529, %v1520
        %v1773 = vpack.c.b16 %v1530, %v1521
        %v1774 = vpack.c.b16 %v1531, %v1522
        %v1775 = vpack.c.b16 %v1532, %v1523
        %v1776 = vpack.c.b16 %v1533, %v1524
        %v1777 = vpack.c.b16 %v1534, %v1525
        %v1778 = vpack.c.b16 %v1544, %v1535
        %v1779 = vpack.c.b16 %v1545, %v1536
        %v1780 = vpack.c.b16 %v1546, %v1537
        %v1781 = vpack.c.b16 %v1547, %v1538
        %v1782 = vpack.c.b16 %v1548, %v1539
        %v1783 = vpack.c.b16 %v1549, %v1540
        %v1784 = vpack.c.b16 %v1550, %v1541
        %v1785 = vpack.c.b16 %v1551, %v1542
        %v1786 = vpack.c.b16 %v1552, %v1543
        %v1787 = vpack.c.b16 %v1562, %v1553
        %v1788 = vpack.c.b16 %v1563, %v1554
        %v1789 = vpack.c.b16 %v1564, %v1555
        %v1790 = vpack.c.b16 %v1565, %v1556
        %v1791 = vpack.c.b16 %v1566, %v1557
        %v1792 = vpack.c.b16 %v1567, %v1558
        %v1793 = vpack.c.b16 %v1568, %v1559
        %v1794 = vpack.c.b16 %v1569, %v1560
        %v1795 = vpack.c.b16 %v1570, %v1561
        %v1796 = vpack.c.b16 %v1580, %v1571
        %v1797 = vpack.c.b16 %v1581, %v1572
        %v1798 = vpack.c.b16 %v1582, %v1573
        %v1799 = vpack.c.b16 %v1583, %v1574
        %v1800 = vpack.c.b16 %v1584, %v1575
        %v1801 = vpack.c.b16 %v1585, %v1576
        %v1802 = vpack.c.b16 %v1586, %v1577
        %v1803 = vpack.c.b16 %v1587, %v1578
        %v1804 = vpack.c.b16 %v1588, %v1579
        %2021 = vmatprep.subr.bf16.mxu0 %v1653
        %2022 = vmatpush1.bf16.msra.mxu0 %v1652
        %2023 = vmatprep.subr.bf16.mxu0 %v1644
        %2024 = vmatpush1.bf16.msra.mxu0 %v1643
        %2025 = vmatprep.subr.bf16.mxu0 %v1635
        %2026 = vmatpush1.bf16.msra.mxu0 %v1634
        %2027 = vmatprep.subr.bf16.mxu0 %v1626
        %2028 = vmatpush1.bf16.msra.mxu0 %v1625
        %2029 = vmatprep.subr.bf16.mxu0 %v1617
        %2030 = vmatpush1.bf16.msra.mxu0 %v1616
        %2031 = vmatprep.subr.bf16.mxu0 %v1608
        %2032 = vmatpush1.bf16.msra.mxu0 %v1607
        %2033 = vmatprep.subr.bf16.mxu0 %v1599
        %2034 = vmatpush1.bf16.msra.mxu0 %v1598
        %2035 = vmatprep.subr.bf16.mxu0 %v1590
        %2036 = vmatpush1.bf16.msra.mxu0 %v1589
        %2037 = vmatprep.subr.bf16.mxu0 %v1725
        %2038 = vmatpush2.bf16.msra.mxu0 %v1724
        %2039 = vmatprep.subr.bf16.mxu0 %v1716
        %2040 = vmatpush2.bf16.msra.mxu0 %v1715
        %2041 = vmatprep.subr.bf16.mxu0 %v1707
        %2042 = vmatpush2.bf16.msra.mxu0 %v1706
        %2043 = vmatprep.subr.bf16.mxu0 %v1698
        %2044 = vmatpush2.bf16.msra.mxu0 %v1697
        %2045 = vmatprep.subr.bf16.mxu0 %v1689
        %2046 = vmatpush2.bf16.msra.mxu0 %v1688
        %2047 = vmatprep.subr.bf16.mxu0 %v1680
        %2048 = vmatpush2.bf16.msra.mxu0 %v1679
        %2049 = vmatprep.subr.bf16.mxu0 %v1671
        %2050 = vmatpush2.bf16.msra.mxu0 %v1670
        %2051 = vmatprep.subr.bf16.mxu0 %v1662
        %2052 = vmatpush2.bf16.msra.mxu0 %v1661
        %2053 = vmatprep.mubr.bf16.mxu0 %v675
        %2054 = vmatmul.mubr.bf16.gmra.mxu0 %v674
        %v2055 = vpop.f32.mrf.mxu0
        %v2056 = vadd.f32 0.0, %v2055
        %v2057 = vpop.f32.mrf.mxu0
        %v2058 = vadd.f32 0.0, %v2057
        %v2059 = vpop.f32.mrf.mxu0
        %v2060 = vadd.f32 0.0, %v2059
        %v2061 = vpop.f32.mrf.mxu0
        %v2062 = vadd.f32 0.0, %v2061
        %2063 = vdwg.mxu0
        %2064 = vmatprep.subr.bf16.mxu0 %v1797
        %2065 = vmatpush1.bf16.msra.mxu0 %v1796
        %2066 = vmatprep.subr.bf16.mxu0 %v1788
        %2067 = vmatpush1.bf16.msra.mxu0 %v1787
        %2068 = vmatprep.subr.bf16.mxu0 %v1779
        %2069 = vmatpush1.bf16.msra.mxu0 %v1778
        %2070 = vmatprep.subr.bf16.mxu0 %v1770
        %2071 = vmatpush1.bf16.msra.mxu0 %v1769
        %2072 = vmatprep.subr.bf16.mxu0 %v1761
        %2073 = vmatpush1.bf16.msra.mxu0 %v1760
        %2074 = vmatprep.subr.bf16.mxu0 %v1752
        %2075 = vmatpush1.bf16.msra.mxu0 %v1751
        %2076 = vmatprep.subr.bf16.mxu0 %v1743
        %2077 = vmatpush1.bf16.msra.mxu0 %v1742
        %2078 = vmatprep.subr.bf16.mxu0 %v1734
        %2079 = vmatpush1.bf16.msra.mxu0 %v1733
        %2080 = vmatprep.subr.bf16.mxu0 0
        %2081 = vmatpush2.bf16.msra.mxu0 0
        %2082 = vmatprep.subr.bf16.mxu0 0
        %2083 = vmatpush2.bf16.msra.mxu0 0
        %2084 = vmatprep.subr.bf16.mxu0 0
        %2085 = vmatpush2.bf16.msra.mxu0 0
        %2086 = vmatprep.subr.bf16.mxu0 0
        %2087 = vmatpush2.bf16.msra.mxu0 0
        %2088 = vmatprep.subr.bf16.mxu0 0
        %2089 = vmatpush2.bf16.msra.mxu0 0
        %2090 = vmatprep.subr.bf16.mxu0 0
        %2091 = vmatpush2.bf16.msra.mxu0 0
        %2092 = vmatprep.subr.bf16.mxu0 0
        %2093 = vmatpush2.bf16.msra.mxu0 0
        %2094 = vmatprep.subr.bf16.mxu0 0
        %2095 = vmatpush2.bf16.msra.mxu0 0
        %2096 = vmatprep.mubr.bf16.mxu0 0
        %2097 = vmatmul.mubr.bf16.gmra.mxu0 %v676
        %v2098 = vpop.f32.mrf.mxu0
        %v2099 = vadd.f32 %v2056, %v2098
        %v2100 = vpop.f32.mrf.mxu0
        %v2101 = vadd.f32 %v2058, %v2100
        %v2102 = vpop.f32.mrf.mxu0
        %v2103 = vadd.f32 %v2060, %v2102
        %v2104 = vpop.f32.mrf.mxu0
        %v2105 = vadd.f32 %v2062, %v2104
        %2106 = vdwg.mxu0
        %2107 = vmatprep.subr.bf16.mxu0 %v1655
        %2108 = vmatpush1.bf16.msra.mxu0 %v1654
        %2109 = vmatprep.subr.bf16.mxu0 %v1646
        %2110 = vmatpush1.bf16.msra.mxu0 %v1645
        %2111 = vmatprep.subr.bf16.mxu0 %v1637
        %2112 = vmatpush1.bf16.msra.mxu0 %v1636
        %2113 = vmatprep.subr.bf16.mxu0 %v1628
        %2114 = vmatpush1.bf16.msra.mxu0 %v1627
        %2115 = vmatprep.subr.bf16.mxu0 %v1619
        %2116 = vmatpush1.bf16.msra.mxu0 %v1618
        %2117 = vmatprep.subr.bf16.mxu0 %v1610
        %2118 = vmatpush1.bf16.msra.mxu0 %v1609
        %2119 = vmatprep.subr.bf16.mxu0 %v1601
        %2120 = vmatpush1.bf16.msra.mxu0 %v1600
        %2121 = vmatprep.subr.bf16.mxu0 %v1592
        %2122 = vmatpush1.bf16.msra.mxu0 %v1591
        %2123 = vmatprep.subr.bf16.mxu0 %v1727
        %2124 = vmatpush2.bf16.msra.mxu0 %v1726
        %2125 = vmatprep.subr.bf16.mxu0 %v1718
        %2126 = vmatpush2.bf16.msra.mxu0 %v1717
        %2127 = vmatprep.subr.bf16.mxu0 %v1709
        %2128 = vmatpush2.bf16.msra.mxu0 %v1708
        %2129 = vmatprep.subr.bf16.mxu0 %v1700
        %2130 = vmatpush2.bf16.msra.mxu0 %v1699
        %2131 = vmatprep.subr.bf16.mxu0 %v1691
        %2132 = vmatpush2.bf16.msra.mxu0 %v1690
        %2133 = vmatprep.subr.bf16.mxu0 %v1682
        %2134 = vmatpush2.bf16.msra.mxu0 %v1681
        %2135 = vmatprep.subr.bf16.mxu0 %v1673
        %2136 = vmatpush2.bf16.msra.mxu0 %v1672
        %2137 = vmatprep.subr.bf16.mxu0 %v1664
        %2138 = vmatpush2.bf16.msra.mxu0 %v1663
        %2139 = vmatprep.mubr.bf16.mxu0 %v675
        %2140 = vmatmul.mubr.bf16.gmra.mxu0 %v674
        %v2141 = vpop.f32.mrf.mxu0
        %v2142 = vadd.f32 0.0, %v2141
        %v2143 = vpop.f32.mrf.mxu0
        %v2144 = vadd.f32 0.0, %v2143
        %v2145 = vpop.f32.mrf.mxu0
        %v2146 = vadd.f32 0.0, %v2145
        %v2147 = vpop.f32.mrf.mxu0
        %v2148 = vadd.f32 0.0, %v2147
        %2149 = vdwg.mxu0
        %2150 = vmatprep.subr.bf16.mxu0 %v1799
        %2151 = vmatpush1.bf16.msra.mxu0 %v1798
        %2152 = vmatprep.subr.bf16.mxu0 %v1790
        %2153 = vmatpush1.bf16.msra.mxu0 %v1789
        %2154 = vmatprep.subr.bf16.mxu0 %v1781
        %2155 = vmatpush1.bf16.msra.mxu0 %v1780
        %2156 = vmatprep.subr.bf16.mxu0 %v1772
        %2157 = vmatpush1.bf16.msra.mxu0 %v1771
        %2158 = vmatprep.subr.bf16.mxu0 %v1763
        %2159 = vmatpush1.bf16.msra.mxu0 %v1762
        %2160 = vmatprep.subr.bf16.mxu0 %v1754
        %2161 = vmatpush1.bf16.msra.mxu0 %v1753
        %2162 = vmatprep.subr.bf16.mxu0 %v1745
        %2163 = vmatpush1.bf16.msra.mxu0 %v1744
        %2164 = vmatprep.subr.bf16.mxu0 %v1736
        %2165 = vmatpush1.bf16.msra.mxu0 %v1735
        %2166 = vmatprep.subr.bf16.mxu0 0
        %2167 = vmatpush2.bf16.msra.mxu0 0
        %2168 = vmatprep.subr.bf16.mxu0 0
        %2169 = vmatpush2.bf16.msra.mxu0 0
        %2170 = vmatprep.subr.bf16.mxu0 0
        %2171 = vmatpush2.bf16.msra.mxu0 0
        %2172 = vmatprep.subr.bf16.mxu0 0
        %2173 = vmatpush2.bf16.msra.mxu0 0
        %2174 = vmatprep.subr.bf16.mxu0 0
        %2175 = vmatpush2.bf16.msra.mxu0 0
        %2176 = vmatprep.subr.bf16.mxu0 0
        %2177 = vmatpush2.bf16.msra.mxu0 0
        %2178 = vmatprep.subr.bf16.mxu0 0
        %2179 = vmatpush2.bf16.msra.mxu0 0
        %2180 = vmatprep.subr.bf16.mxu0 0
        %2181 = vmatpush2.bf16.msra.mxu0 0
        %2182 = vmatprep.mubr.bf16.mxu0 0
        %2183 = vmatmul.mubr.bf16.gmra.mxu0 %v676
        %v2184 = vpop.f32.mrf.mxu0
        %v2185 = vadd.f32 %v2142, %v2184
        %v2186 = vpop.f32.mrf.mxu0
        %v2187 = vadd.f32 %v2144, %v2186
        %v2188 = vpop.f32.mrf.mxu0
        %v2189 = vadd.f32 %v2146, %v2188
        %v2190 = vpop.f32.mrf.mxu0
        %v2191 = vadd.f32 %v2148, %v2190
        %2192 = vdwg.mxu0
        %2193 = vmatprep.subr.bf16.mxu0 %v1657
        %2194 = vmatpush1.bf16.msra.mxu0 %v1656
        %2195 = vmatprep.subr.bf16.mxu0 %v1648
        %2196 = vmatpush1.bf16.msra.mxu0 %v1647
        %2197 = vmatprep.subr.bf16.mxu0 %v1639
        %2198 = vmatpush1.bf16.msra.mxu0 %v1638
        %2199 = vmatprep.subr.bf16.mxu0 %v1630
        %2200 = vmatpush1.bf16.msra.mxu0 %v1629
        %2201 = vmatprep.subr.bf16.mxu0 %v1621
        %2202 = vmatpush1.bf16.msra.mxu0 %v1620
        %2203 = vmatprep.subr.bf16.mxu0 %v1612
        %2204 = vmatpush1.bf16.msra.mxu0 %v1611
        %2205 = vmatprep.subr.bf16.mxu0 %v1603
        %2206 = vmatpush1.bf16.msra.mxu0 %v1602
        %2207 = vmatprep.subr.bf16.mxu0 %v1594
        %2208 = vmatpush1.bf16.msra.mxu0 %v1593
        %2209 = vmatprep.subr.bf16.mxu0 %v1729
        %2210 = vmatpush2.bf16.msra.mxu0 %v1728
        %2211 = vmatprep.subr.bf16.mxu0 %v1720
        %2212 = vmatpush2.bf16.msra.mxu0 %v1719
        %2213 = vmatprep.subr.bf16.mxu0 %v1711
        %2214 = vmatpush2.bf16.msra.mxu0 %v1710
        %2215 = vmatprep.subr.bf16.mxu0 %v1702
        %2216 = vmatpush2.bf16.msra.mxu0 %v1701
        %2217 = vmatprep.subr.bf16.mxu0 %v1693
        %2218 = vmatpush2.bf16.msra.mxu0 %v1692
        %2219 = vmatprep.subr.bf16.mxu0 %v1684
        %2220 = vmatpush2.bf16.msra.mxu0 %v1683
        %2221 = vmatprep.subr.bf16.mxu0 %v1675
        %2222 = vmatpush2.bf16.msra.mxu0 %v1674
        %2223 = vmatprep.subr.bf16.mxu0 %v1666
        %2224 = vmatpush2.bf16.msra.mxu0 %v1665
        %2225 = vmatprep.mubr.bf16.mxu0 %v675
        %2226 = vmatmul.mubr.bf16.gmra.mxu0 %v674
        %v2227 = vpop.f32.mrf.mxu0
        %v2228 = vadd.f32 0.0, %v2227
        %v2229 = vpop.f32.mrf.mxu0
        %v2230 = vadd.f32 0.0, %v2229
        %v2231 = vpop.f32.mrf.mxu0
        %v2232 = vadd.f32 0.0, %v2231
        %v2233 = vpop.f32.mrf.mxu0
        %v2234 = vadd.f32 0.0, %v2233
        %2235 = vdwg.mxu0
        %2236 = vmatprep.subr.bf16.mxu0 %v1801
        %2237 = vmatpush1.bf16.msra.mxu0 %v1800
        %2238 = vmatprep.subr.bf16.mxu0 %v1792
        %2239 = vmatpush1.bf16.msra.mxu0 %v1791
        %2240 = vmatprep.subr.bf16.mxu0 %v1783
        %2241 = vmatpush1.bf16.msra.mxu0 %v1782
        %2242 = vmatprep.subr.bf16.mxu0 %v1774
        %2243 = vmatpush1.bf16.msra.mxu0 %v1773
        %2244 = vmatprep.subr.bf16.mxu0 %v1765
        %2245 = vmatpush1.bf16.msra.mxu0 %v1764
        %2246 = vmatprep.subr.bf16.mxu0 %v1756
        %2247 = vmatpush1.bf16.msra.mxu0 %v1755
        %2248 = vmatprep.subr.bf16.mxu0 %v1747
        %2249 = vmatpush1.bf16.msra.mxu0 %v1746
        %2250 = vmatprep.subr.bf16.mxu0 %v1738
        %2251 = vmatpush1.bf16.msra.mxu0 %v1737
        %2252 = vmatprep.subr.bf16.mxu0 0
        %2253 = vmatpush2.bf16.msra.mxu0 0
        %2254 = vmatprep.subr.bf16.mxu0 0
        %2255 = vmatpush2.bf16.msra.mxu0 0
        %2256 = vmatprep.subr.bf16.mxu0 0
        %2257 = vmatpush2.bf16.msra.mxu0 0
        %2258 = vmatprep.subr.bf16.mxu0 0
        %2259 = vmatpush2.bf16.msra.mxu0 0
        %2260 = vmatprep.subr.bf16.mxu0 0
        %2261 = vmatpush2.bf16.msra.mxu0 0
        %2262 = vmatprep.subr.bf16.mxu0 0
        %2263 = vmatpush2.bf16.msra.mxu0 0
        %2264 = vmatprep.subr.bf16.mxu0 0
        %2265 = vmatpush2.bf16.msra.mxu0 0
        %2266 = vmatprep.subr.bf16.mxu0 0
        %2267 = vmatpush2.bf16.msra.mxu0 0
        %2268 = vmatprep.mubr.bf16.mxu0 0
        %2269 = vmatmul.mubr.bf16.gmra.mxu0 %v676
        %v2270 = vpop.f32.mrf.mxu0
        %v2271 = vadd.f32 %v2228, %v2270
        %v2272 = vpop.f32.mrf.mxu0
        %v2273 = vadd.f32 %v2230, %v2272
        %v2274 = vpop.f32.mrf.mxu0
        %v2275 = vadd.f32 %v2232, %v2274
        %v2276 = vpop.f32.mrf.mxu0
        %v2277 = vadd.f32 %v2234, %v2276
        %2278 = vdwg.mxu0
        %2279 = vmatprep.subr.bf16.mxu0 %v1659
        %2280 = vmatpush1.bf16.msra.mxu0 %v1658
        %2281 = vmatprep.subr.bf16.mxu0 %v1650
        %2282 = vmatpush1.bf16.msra.mxu0 %v1649
        %2283 = vmatprep.subr.bf16.mxu0 %v1641
        %2284 = vmatpush1.bf16.msra.mxu0 %v1640
        %2285 = vmatprep.subr.bf16.mxu0 %v1632
        %2286 = vmatpush1.bf16.msra.mxu0 %v1631
        %2287 = vmatprep.subr.bf16.mxu0 %v1623
        %2288 = vmatpush1.bf16.msra.mxu0 %v1622
        %2289 = vmatprep.subr.bf16.mxu0 %v1614
        %2290 = vmatpush1.bf16.msra.mxu0 %v1613
        %2291 = vmatprep.subr.bf16.mxu0 %v1605
        %2292 = vmatpush1.bf16.msra.mxu0 %v1604
        %2293 = vmatprep.subr.bf16.mxu0 %v1596
        %2294 = vmatpush1.bf16.msra.mxu0 %v1595
        %2295 = vmatprep.subr.bf16.mxu0 %v1731
        %2296 = vmatpush2.bf16.msra.mxu0 %v1730
        %2297 = vmatprep.subr.bf16.mxu0 %v1722
        %2298 = vmatpush2.bf16.msra.mxu0 %v1721
        %2299 = vmatprep.subr.bf16.mxu0 %v1713
        %2300 = vmatpush2.bf16.msra.mxu0 %v1712
        %2301 = vmatprep.subr.bf16.mxu0 %v1704
        %2302 = vmatpush2.bf16.msra.mxu0 %v1703
        %2303 = vmatprep.subr.bf16.mxu0 %v1695
        %2304 = vmatpush2.bf16.msra.mxu0 %v1694
        %2305 = vmatprep.subr.bf16.mxu0 %v1686
        %2306 = vmatpush2.bf16.msra.mxu0 %v1685
        %2307 = vmatprep.subr.bf16.mxu0 %v1677
        %2308 = vmatpush2.bf16.msra.mxu0 %v1676
        %2309 = vmatprep.subr.bf16.mxu0 %v1668
        %2310 = vmatpush2.bf16.msra.mxu0 %v1667
        %2311 = vmatprep.mubr.bf16.mxu0 %v675
        %2312 = vmatmul.mubr.bf16.gmra.mxu0 %v674
        %v2313 = vpop.f32.mrf.mxu0
        %v2314 = vadd.f32 0.0, %v2313
        %v2315 = vpop.f32.mrf.mxu0
        %v2316 = vadd.f32 0.0, %v2315
        %v2317 = vpop.f32.mrf.mxu0
        %v2318 = vadd.f32 0.0, %v2317
        %v2319 = vpop.f32.mrf.mxu0
        %v2320 = vadd.f32 0.0, %v2319
        %2321 = vdwg.mxu0
        %2322 = vmatprep.subr.bf16.mxu0 %v1803
        %2323 = vmatpush1.bf16.msra.mxu0 %v1802
        %2324 = vmatprep.subr.bf16.mxu0 %v1794
        %2325 = vmatpush1.bf16.msra.mxu0 %v1793
        %2326 = vmatprep.subr.bf16.mxu0 %v1785
        %2327 = vmatpush1.bf16.msra.mxu0 %v1784
        %2328 = vmatprep.subr.bf16.mxu0 %v1776
        %2329 = vmatpush1.bf16.msra.mxu0 %v1775
        %2330 = vmatprep.subr.bf16.mxu0 %v1767
        %2331 = vmatpush1.bf16.msra.mxu0 %v1766
        %2332 = vmatprep.subr.bf16.mxu0 %v1758
        %2333 = vmatpush1.bf16.msra.mxu0 %v1757
        %2334 = vmatprep.subr.bf16.mxu0 %v1749
        %2335 = vmatpush1.bf16.msra.mxu0 %v1748
        %2336 = vmatprep.subr.bf16.mxu0 %v1740
        %2337 = vmatpush1.bf16.msra.mxu0 %v1739
        %2338 = vmatprep.subr.bf16.mxu0 0
        %2339 = vmatpush2.bf16.msra.mxu0 0
        %2340 = vmatprep.subr.bf16.mxu0 0
        %2341 = vmatpush2.bf16.msra.mxu0 0
        %2342 = vmatprep.subr.bf16.mxu0 0
        %2343 = vmatpush2.bf16.msra.mxu0 0
        %2344 = vmatprep.subr.bf16.mxu0 0
        %2345 = vmatpush2.bf16.msra.mxu0 0
        %2346 = vmatprep.subr.bf16.mxu0 0
        %2347 = vmatpush2.bf16.msra.mxu0 0
        %2348 = vmatprep.subr.bf16.mxu0 0
        %2349 = vmatpush2.bf16.msra.mxu0 0
        %2350 = vmatprep.subr.bf16.mxu0 0
        %2351 = vmatpush2.bf16.msra.mxu0 0
        %2352 = vmatprep.subr.bf16.mxu0 0
        %2353 = vmatpush2.bf16.msra.mxu0 0
        %2354 = vmatprep.mubr.bf16.mxu0 0
        %2355 = vmatmul.mubr.bf16.gmra.mxu0 %v676
        %v2356 = vpop.f32.mrf.mxu0
        %v2357 = vadd.f32 %v2314, %v2356
        %v2358 = vpop.f32.mrf.mxu0
        %v2359 = vadd.f32 %v2316, %v2358
        %v2360 = vpop.f32.mrf.mxu0
        %v2361 = vadd.f32 %v2318, %v2360
        %v2362 = vpop.f32.mrf.mxu0
        %v2363 = vadd.f32 %v2320, %v2362
        %2364 = vdwg.mxu0
        %2365 = vmatprep.subr.bf16.mxu0 0
        %2366 = vmatpush1.bf16.msra.mxu0 %v1660
        %2367 = vmatprep.subr.bf16.mxu0 0
        %2368 = vmatpush1.bf16.msra.mxu0 %v1651
        %2369 = vmatprep.subr.bf16.mxu0 0
        %2370 = vmatpush1.bf16.msra.mxu0 %v1642
        %2371 = vmatprep.subr.bf16.mxu0 0
        %2372 = vmatpush1.bf16.msra.mxu0 %v1633
        %2373 = vmatprep.subr.bf16.mxu0 0
        %2374 = vmatpush1.bf16.msra.mxu0 %v1624
        %2375 = vmatprep.subr.bf16.mxu0 0
        %2376 = vmatpush1.bf16.msra.mxu0 %v1615
        %2377 = vmatprep.subr.bf16.mxu0 0
        %2378 = vmatpush1.bf16.msra.mxu0 %v1606
        %2379 = vmatprep.subr.bf16.mxu0 0
        %2380 = vmatpush1.bf16.msra.mxu0 %v1597
        %2381 = vmatprep.subr.bf16.mxu0 0
        %2382 = vmatpush2.bf16.msra.mxu0 %v1732
        %2383 = vmatprep.subr.bf16.mxu0 0
        %2384 = vmatpush2.bf16.msra.mxu0 %v1723
        %2385 = vmatprep.subr.bf16.mxu0 0
        %2386 = vmatpush2.bf16.msra.mxu0 %v1714
        %2387 = vmatprep.subr.bf16.mxu0 0
        %2388 = vmatpush2.bf16.msra.mxu0 %v1705
        %2389 = vmatprep.subr.bf16.mxu0 0
        %2390 = vmatpush2.bf16.msra.mxu0 %v1696
        %2391 = vmatprep.subr.bf16.mxu0 0
        %2392 = vmatpush2.bf16.msra.mxu0 %v1687
        %2393 = vmatprep.subr.bf16.mxu0 0
        %2394 = vmatpush2.bf16.msra.mxu0 %v1678
        %2395 = vmatprep.subr.bf16.mxu0 0
        %2396 = vmatpush2.bf16.msra.mxu0 %v1669
        %2397 = vmatprep.mubr.bf16.mxu0 %v675
        %2398 = vmatmul.mubr.bf16.gmra.mxu0 %v674
        %v2399 = vpop.f32.mrf.mxu0
        %v2400 = vadd.f32 0.0, %v2399
        %v2401 = vpop.f32.mrf.mxu0
        %v2402 = vpop.f32.mrf.mxu0
        %v2403 = vadd.f32 0.0, %v2402
        %v2404 = vpop.f32.mrf.mxu0
        %2405 = vdwg.mxu0
        %2406 = vmatprep.subr.bf16.mxu0 0
        %2407 = vmatpush1.bf16.msra.mxu0 %v1804
        %2408 = vmatprep.subr.bf16.mxu0 0
        %2409 = vmatpush1.bf16.msra.mxu0 %v1795
        %2410 = vmatprep.subr.bf16.mxu0 0
        %2411 = vmatpush1.bf16.msra.mxu0 %v1786
        %2412 = vmatprep.subr.bf16.mxu0 0
        %2413 = vmatpush1.bf16.msra.mxu0 %v1777
        %2414 = vmatprep.subr.bf16.mxu0 0
        %2415 = vmatpush1.bf16.msra.mxu0 %v1768
        %2416 = vmatprep.subr.bf16.mxu0 0
        %2417 = vmatpush1.bf16.msra.mxu0 %v1759
        %2418 = vmatprep.subr.bf16.mxu0 0
        %2419 = vmatpush1.bf16.msra.mxu0 %v1750
        %2420 = vmatprep.subr.bf16.mxu0 0
        %2421 = vmatpush1.bf16.msra.mxu0 %v1741
        %2422 = vmatprep.subr.bf16.mxu0 0
        %2423 = vmatpush2.bf16.msra.mxu0 0
        %2424 = vmatprep.subr.bf16.mxu0 0
        %2425 = vmatpush2.bf16.msra.mxu0 0
        %2426 = vmatprep.subr.bf16.mxu0 0
        %2427 = vmatpush2.bf16.msra.mxu0 0
        %2428 = vmatprep.subr.bf16.mxu0 0
        %2429 = vmatpush2.bf16.msra.mxu0 0
        %2430 = vmatprep.subr.bf16.mxu0 0
        %2431 = vmatpush2.bf16.msra.mxu0 0
        %2432 = vmatprep.subr.bf16.mxu0 0
        %2433 = vmatpush2.bf16.msra.mxu0 0
        %2434 = vmatprep.subr.bf16.mxu0 0
        %2435 = vmatpush2.bf16.msra.mxu0 0
        %2436 = vmatprep.subr.bf16.mxu0 0
        %2437 = vmatpush2.bf16.msra.mxu0 0
        %2438 = vmatprep.mubr.bf16.mxu0 0
        %2439 = vmatmul.mubr.bf16.gmra.mxu0 %v676
        %v2440 = vpop.f32.mrf.mxu0
        %v2441 = vadd.f32 %v2400, %v2440
        %v2442 = vpop.f32.mrf.mxu0
        %v2443 = vpop.f32.mrf.mxu0
        %v2444 = vadd.f32 %v2403, %v2443
        %v2445 = vpop.f32.mrf.mxu0
        %2446 = vdwg.mxu0
        %v2447 = vpack.c.bf16 %v2103, %v2099
        %v2448 = vpack.c.bf16 %v2105, %v2101
        %v2449 = vpack.c.bf16 %v2189, %v2185
        %v2450 = vpack.c.bf16 %v2191, %v2187
        %v2451 = vpack.c.bf16 %v2275, %v2271
        %v2452 = vpack.c.bf16 %v2277, %v2273
        %v2453 = vpack.c.bf16 %v2361, %v2357
        %v2454 = vpack.c.bf16 %v2363, %v2359
        %v2455 = vpack.c.bf16 %v2444, %v2441
        %2457 = vrot.lane.b32.xlu0 %v2447, 64
        %v2458 = vpop.permute.xlu0 %2457
        %2460 = vrot.lane.b32.xlu0 %v2448, 64
        %v2461 = vpop.permute.xlu0 %2460
        %2463 = vrot.lane.b32.xlu0 %v2449, 64
        %v2464 = vpop.permute.xlu0 %2463
        %2466 = vrot.lane.b32.xlu0 %v2450, 64
        %v2467 = vpop.permute.xlu0 %2466
        %2469 = vrot.lane.b32.xlu0 %v2451, 64
        %v2470 = vpop.permute.xlu0 %2469
        %2472 = vrot.lane.b32.xlu0 %v2452, 64
        %v2473 = vpop.permute.xlu0 %2472
        %2475 = vrot.lane.b32.xlu0 %v2453, 64
        %v2476 = vpop.permute.xlu0 %2475
        %2479 = vrot.lane.b32.xlu0 %v2454, 64
        %v2480 = vpop.permute.xlu0 %2479
        %2483 = vrot.lane.b32.xlu0 %v2455, 64
        %v2484 = vpop.permute.xlu0 %2483
        %vm2486 = vcmask 523264
        %v2488 = vsel %vm2486, %v2447, 0
        %v2491 = vsel %vm2486, %v2450, 0
        %2493 = vmatprep.subr.bf16.mxu0 0
        %2494 = vmatpush1.bf16.xpose.msra.mxu0 0
        %2495 = vmatprep.subr.bf16.mxu0 0
        %2496 = vmatpush1.bf16.xpose.msra.mxu0 0
        %2497 = vmatprep.subr.bf16.mxu0 0
        %2498 = vmatpush1.bf16.xpose.msra.mxu0 0
        %2499 = vmatprep.subr.bf16.mxu0 0
        %2500 = vmatpush1.bf16.xpose.msra.mxu0 0
        %2501 = vmatprep.subr.bf16.mxu0 0
        %2502 = vmatpush1.bf16.xpose.msra.mxu0 0
        %2503 = vmatprep.subr.bf16.mxu0 0
        %2504 = vmatpush1.bf16.xpose.msra.mxu0 0
        %2505 = vmatprep.subr.bf16.mxu0 0
        %2506 = vmatpush1.bf16.xpose.msra.mxu0 0
        %2507 = vmatprep.subr.bf16.mxu0 0
        %2508 = vmatpush1.bf16.xpose.msra.mxu0 %v2491
        %2509 = vmatprep.subr.bf16.mxu0 0
        %2510 = vmatpush2.bf16.xpose.msra.mxu0 0
        %2511 = vmatprep.subr.bf16.mxu0 0
        %2512 = vmatpush2.bf16.xpose.msra.mxu0 0
        %2513 = vmatprep.subr.bf16.mxu0 0
        %2514 = vmatpush2.bf16.xpose.msra.mxu0 0
        %2515 = vmatprep.subr.bf16.mxu0 0
        %2516 = vmatpush2.bf16.xpose.msra.mxu0 0
        %2517 = vmatprep.subr.bf16.mxu0 0
        %2518 = vmatpush2.bf16.xpose.msra.mxu0 0
        %2519 = vmatprep.subr.bf16.mxu0 0
        %2520 = vmatpush2.bf16.xpose.msra.mxu0 0
        %2521 = vmatprep.subr.bf16.mxu0 0
        %2522 = vmatpush2.bf16.xpose.msra.mxu0 0
        %2523 = vmatprep.subr.bf16.mxu0 0
        %2524 = vmatpush2.bf16.xpose.msra.mxu0 0
        %2525 = vmatprep.mubr.bf16.mxu0 0
        %2526 = vmatmul.mubr.bf16.gmra.mxu0 %v2488
        %v2527 = vpop.f32.mrf.mxu0
        %v2528 = vadd.f32 0.0, %v2527
        %v2529 = vpop.f32.mrf.mxu0
        %v2530 = vpop.f32.mrf.mxu0
        %v2531 = vadd.f32 0.0, %v2530
        %v2532 = vpop.f32.mrf.mxu0
        %2533 = vdwg.mxu0
        %v2535 = vsel %vm2486, %v2458, 0
        %v2538 = vsel %vm2486, %v2467, 0
        %2540 = vmatprep.subr.bf16.mxu0 0
        %2541 = vmatpush1.bf16.xpose.msra.mxu0 0
        %2542 = vmatprep.subr.bf16.mxu0 0
        %2543 = vmatpush1.bf16.xpose.msra.mxu0 0
        %2544 = vmatprep.subr.bf16.mxu0 0
        %2545 = vmatpush1.bf16.xpose.msra.mxu0 0
        %2546 = vmatprep.subr.bf16.mxu0 0
        %2547 = vmatpush1.bf16.xpose.msra.mxu0 0
        %2548 = vmatprep.subr.bf16.mxu0 0
        %2549 = vmatpush1.bf16.xpose.msra.mxu0 0
        %2550 = vmatprep.subr.bf16.mxu0 0
        %2551 = vmatpush1.bf16.xpose.msra.mxu0 0
        %2552 = vmatprep.subr.bf16.mxu0 0
        %2553 = vmatpush1.bf16.xpose.msra.mxu0 0
        %2554 = vmatprep.subr.bf16.mxu0 0
        %2555 = vmatpush1.bf16.xpose.msra.mxu0 %v2538
        %2556 = vmatprep.subr.bf16.mxu0 0
        %2557 = vmatpush2.bf16.xpose.msra.mxu0 0
        %2558 = vmatprep.subr.bf16.mxu0 0
        %2559 = vmatpush2.bf16.xpose.msra.mxu0 0
        %2560 = vmatprep.subr.bf16.mxu0 0
        %2561 = vmatpush2.bf16.xpose.msra.mxu0 0
        %2562 = vmatprep.subr.bf16.mxu0 0
        %2563 = vmatpush2.bf16.xpose.msra.mxu0 0
        %2564 = vmatprep.subr.bf16.mxu0 0
        %2565 = vmatpush2.bf16.xpose.msra.mxu0 0
        %2566 = vmatprep.subr.bf16.mxu0 0
        %2567 = vmatpush2.bf16.xpose.msra.mxu0 0
        %2568 = vmatprep.subr.bf16.mxu0 0
        %2569 = vmatpush2.bf16.xpose.msra.mxu0 0
        %2570 = vmatprep.subr.bf16.mxu0 0
        %2571 = vmatpush2.bf16.xpose.msra.mxu0 0
        %2572 = vmatprep.mubr.bf16.mxu0 0
        %2573 = vmatmul.mubr.bf16.gmra.mxu0 %v2535
        %v2574 = vpop.f32.mrf.mxu0
        %v2575 = vadd.f32 0.0, %v2574
        %v2576 = vpop.f32.mrf.mxu0
        %v2577 = vpop.f32.mrf.mxu0
        %v2578 = vadd.f32 0.0, %v2577
        %v2579 = vpop.f32.mrf.mxu0
        %2580 = vdwg.mxu0
        %v2582 = vsel %vm2486, %v2448, 0
        %v2585 = vsel %vm2486, %v2451, 0
        %2587 = vmatprep.subr.bf16.mxu0 0
        %2588 = vmatpush1.bf16.xpose.msra.mxu0 0
        %2589 = vmatprep.subr.bf16.mxu0 0
        %2590 = vmatpush1.bf16.xpose.msra.mxu0 0
        %2591 = vmatprep.subr.bf16.mxu0 0
        %2592 = vmatpush1.bf16.xpose.msra.mxu0 0
        %2593 = vmatprep.subr.bf16.mxu0 0
        %2594 = vmatpush1.bf16.xpose.msra.mxu0 0
        %2595 = vmatprep.subr.bf16.mxu0 0
        %2596 = vmatpush1.bf16.xpose.msra.mxu0 0
        %2597 = vmatprep.subr.bf16.mxu0 0
        %2598 = vmatpush1.bf16.xpose.msra.mxu0 0
        %2599 = vmatprep.subr.bf16.mxu0 0
        %2600 = vmatpush1.bf16.xpose.msra.mxu0 0
        %2601 = vmatprep.subr.bf16.mxu0 0
        %2602 = vmatpush1.bf16.xpose.msra.mxu0 %v2585
        %2603 = vmatprep.subr.bf16.mxu0 0
        %2604 = vmatpush2.bf16.xpose.msra.mxu0 0
        %2605 = vmatprep.subr.bf16.mxu0 0
        %2606 = vmatpush2.bf16.xpose.msra.mxu0 0
        %2607 = vmatprep.subr.bf16.mxu0 0
        %2608 = vmatpush2.bf16.xpose.msra.mxu0 0
        %2609 = vmatprep.subr.bf16.mxu0 0
        %2610 = vmatpush2.bf16.xpose.msra.mxu0 0
        %2611 = vmatprep.subr.bf16.mxu0 0
        %2612 = vmatpush2.bf16.xpose.msra.mxu0 0
        %2613 = vmatprep.subr.bf16.mxu0 0
        %2614 = vmatpush2.bf16.xpose.msra.mxu0 0
        %2615 = vmatprep.subr.bf16.mxu0 0
        %2616 = vmatpush2.bf16.xpose.msra.mxu0 0
        %2617 = vmatprep.subr.bf16.mxu0 0
        %2618 = vmatpush2.bf16.xpose.msra.mxu0 0
        %2619 = vmatprep.mubr.bf16.mxu0 0
        %2620 = vmatmul.mubr.bf16.gmra.mxu0 %v2582
        %v2621 = vpop.f32.mrf.mxu0
        %v2622 = vadd.f32 0.0, %v2621
        %v2623 = vpop.f32.mrf.mxu0
        %v2624 = vpop.f32.mrf.mxu0
        %v2625 = vadd.f32 0.0, %v2624
        %v2626 = vpop.f32.mrf.mxu0
        %2627 = vdwg.mxu0
        %v2629 = vsel %vm2486, %v2461, 0
        %v2632 = vsel %vm2486, %v2470, 0
        %2634 = vmatprep.subr.bf16.mxu0 0
        %2635 = vmatpush1.bf16.xpose.msra.mxu0 0
        %2636 = vmatprep.subr.bf16.mxu0 0
        %2637 = vmatpush1.bf16.xpose.msra.mxu0 0
        %2638 = vmatprep.subr.bf16.mxu0 0
        %2639 = vmatpush1.bf16.xpose.msra.mxu0 0
        %2640 = vmatprep.subr.bf16.mxu0 0
        %2641 = vmatpush1.bf16.xpose.msra.mxu0 0
        %2642 = vmatprep.subr.bf16.mxu0 0
        %2643 = vmatpush1.bf16.xpose.msra.mxu0 0
        %2644 = vmatprep.subr.bf16.mxu0 0
        %2645 = vmatpush1.bf16.xpose.msra.mxu0 0
        %2646 = vmatprep.subr.bf16.mxu0 0
        %2647 = vmatpush1.bf16.xpose.msra.mxu0 0
        %2648 = vmatprep.subr.bf16.mxu0 0
        %2649 = vmatpush1.bf16.xpose.msra.mxu0 %v2632
        %2650 = vmatprep.subr.bf16.mxu0 0
        %2651 = vmatpush2.bf16.xpose.msra.mxu0 0
        %2652 = vmatprep.subr.bf16.mxu0 0
        %2653 = vmatpush2.bf16.xpose.msra.mxu0 0
        %2654 = vmatprep.subr.bf16.mxu0 0
        %2655 = vmatpush2.bf16.xpose.msra.mxu0 0
        %2656 = vmatprep.subr.bf16.mxu0 0
        %2657 = vmatpush2.bf16.xpose.msra.mxu0 0
        %2658 = vmatprep.subr.bf16.mxu0 0
        %2659 = vmatpush2.bf16.xpose.msra.mxu0 0
        %2660 = vmatprep.subr.bf16.mxu0 0
        %2661 = vmatpush2.bf16.xpose.msra.mxu0 0
        %2662 = vmatprep.subr.bf16.mxu0 0
        %2663 = vmatpush2.bf16.xpose.msra.mxu0 0
        %2664 = vmatprep.subr.bf16.mxu0 0
        %2665 = vmatpush2.bf16.xpose.msra.mxu0 0
        %2666 = vmatprep.mubr.bf16.mxu0 0
        %2667 = vmatmul.mubr.bf16.gmra.mxu0 %v2629
        %v2668 = vpop.f32.mrf.mxu0
        %v2669 = vadd.f32 0.0, %v2668
        %v2670 = vpop.f32.mrf.mxu0
        %v2671 = vpop.f32.mrf.mxu0
        %v2672 = vadd.f32 0.0, %v2671
        %v2673 = vpop.f32.mrf.mxu0
        %2674 = vdwg.mxu0
        %v2676 = vsel %vm2486, %v2449, 0
        %v2679 = vsel %vm2486, %v2452, 0
        %2681 = vmatprep.subr.bf16.mxu0 0
        %2682 = vmatpush1.bf16.xpose.msra.mxu0 0
        %2683 = vmatprep.subr.bf16.mxu0 0
        %2684 = vmatpush1.bf16.xpose.msra.mxu0 0
        %2685 = vmatprep.subr.bf16.mxu0 0
        %2686 = vmatpush1.bf16.xpose.msra.mxu0 0
        %2687 = vmatprep.subr.bf16.mxu0 0
        %2688 = vmatpush1.bf16.xpose.msra.mxu0 0
        %2689 = vmatprep.subr.bf16.mxu0 0
        %2690 = vmatpush1.bf16.xpose.msra.mxu0 0
        %2691 = vmatprep.subr.bf16.mxu0 0
        %2692 = vmatpush1.bf16.xpose.msra.mxu0 0
        %2693 = vmatprep.subr.bf16.mxu0 0
        %2694 = vmatpush1.bf16.xpose.msra.mxu0 0
        %2695 = vmatprep.subr.bf16.mxu0 0
        %2696 = vmatpush1.bf16.xpose.msra.mxu0 %v2679
        %2697 = vmatprep.subr.bf16.mxu0 0
        %2698 = vmatpush2.bf16.xpose.msra.mxu0 0
        %2699 = vmatprep.subr.bf16.mxu0 0
        %2700 = vmatpush2.bf16.xpose.msra.mxu0 0
        %2701 = vmatprep.subr.bf16.mxu0 0
        %2702 = vmatpush2.bf16.xpose.msra.mxu0 0
        %2703 = vmatprep.subr.bf16.mxu0 0
        %2704 = vmatpush2.bf16.xpose.msra.mxu0 0
        %2705 = vmatprep.subr.bf16.mxu0 0
        %2706 = vmatpush2.bf16.xpose.msra.mxu0 0
        %2707 = vmatprep.subr.bf16.mxu0 0
        %2708 = vmatpush2.bf16.xpose.msra.mxu0 0
        %2709 = vmatprep.subr.bf16.mxu0 0
        %2710 = vmatpush2.bf16.xpose.msra.mxu0 0
        %2711 = vmatprep.subr.bf16.mxu0 0
        %2712 = vmatpush2.bf16.xpose.msra.mxu0 0
        %2713 = vmatprep.mubr.bf16.mxu0 0
        %2714 = vmatmul.mubr.bf16.gmra.mxu0 %v2676
        %v2715 = vpop.f32.mrf.mxu0
        %v2716 = vadd.f32 0.0, %v2715
        %v2717 = vpop.f32.mrf.mxu0
        %v2718 = vpop.f32.mrf.mxu0
        %v2719 = vadd.f32 0.0, %v2718
        %v2720 = vpop.f32.mrf.mxu0
        %2721 = vdwg.mxu0
        %v2723 = vsel %vm2486, %v2464, 0
        %v2726 = vsel %vm2486, %v2473, 0
        %2728 = vmatprep.subr.bf16.mxu0 0
        %2729 = vmatpush1.bf16.xpose.msra.mxu0 0
        %2730 = vmatprep.subr.bf16.mxu0 0
        %2731 = vmatpush1.bf16.xpose.msra.mxu0 0
        %2732 = vmatprep.subr.bf16.mxu0 0
        %2733 = vmatpush1.bf16.xpose.msra.mxu0 0
        %2734 = vmatprep.subr.bf16.mxu0 0
        %2735 = vmatpush1.bf16.xpose.msra.mxu0 0
        %2736 = vmatprep.subr.bf16.mxu0 0
        %2737 = vmatpush1.bf16.xpose.msra.mxu0 0
        %2738 = vmatprep.subr.bf16.mxu0 0
        %2739 = vmatpush1.bf16.xpose.msra.mxu0 0
        %2740 = vmatprep.subr.bf16.mxu0 0
        %2741 = vmatpush1.bf16.xpose.msra.mxu0 0
        %2742 = vmatprep.subr.bf16.mxu0 0
        %2743 = vmatpush1.bf16.xpose.msra.mxu0 %v2726
        %2744 = vmatprep.subr.bf16.mxu0 0
        %2745 = vmatpush2.bf16.xpose.msra.mxu0 0
        %2746 = vmatprep.subr.bf16.mxu0 0
        %2747 = vmatpush2.bf16.xpose.msra.mxu0 0
        %2748 = vmatprep.subr.bf16.mxu0 0
        %2749 = vmatpush2.bf16.xpose.msra.mxu0 0
        %2750 = vmatprep.subr.bf16.mxu0 0
        %2751 = vmatpush2.bf16.xpose.msra.mxu0 0
        %2752 = vmatprep.subr.bf16.mxu0 0
        %2753 = vmatpush2.bf16.xpose.msra.mxu0 0
        %2754 = vmatprep.subr.bf16.mxu0 0
        %2755 = vmatpush2.bf16.xpose.msra.mxu0 0
        %2756 = vmatprep.subr.bf16.mxu0 0
        %2757 = vmatpush2.bf16.xpose.msra.mxu0 0
        %2758 = vmatprep.subr.bf16.mxu0 0
        %2759 = vmatpush2.bf16.xpose.msra.mxu0 0
        %2760 = vmatprep.mubr.bf16.mxu0 0
        %2761 = vmatmul.mubr.bf16.gmra.mxu0 %v2723
        %v2762 = vpop.f32.mrf.mxu0
        %v2763 = vadd.f32 0.0, %v2762
        %v2764 = vpop.f32.mrf.mxu0
        %v2765 = vpop.f32.mrf.mxu0
        %v2766 = vadd.f32 0.0, %v2765
        %v2767 = vpop.f32.mrf.mxu0
        %2768 = vdwg.mxu0
        %v2769 = vmul.f32 %v2528, 0.05103104
        %v2770 = vmul.f32 %v2531, 0.05103104
        %v2771 = vmul.f32 %v2575, 0.05103104
        %v2772 = vmul.f32 %v2578, 0.05103104
        %v2773 = vmul.f32 %v2622, 0.05103104
        %v2774 = vmul.f32 %v2625, 0.05103104
        %v2775 = vmul.f32 %v2669, 0.05103104
        %v2776 = vmul.f32 %v2672, 0.05103104
        %v2777 = vmul.f32 %v2716, 0.05103104
        %v2778 = vmul.f32 %v2719, 0.05103104
        %v2779 = vmul.f32 %v2763, 0.05103104
        %v2780 = vmul.f32 %v2766, 0.05103104
        %v2781 = vlaneseq
        %v2782 = vshrl.u32 %v2781, 7
        %v2783 = vadd.s32 %v2782, 8
        %v2784 = vlaneseq
        %v2785 = vand.u32 %v2784, 127
        %vm2786 = vcmp.le.s32.totalorder %v2785, %v2782
        %vm2787 = vcmp.le.s32.totalorder %v2785, %v2783
        %v2788 = vsel %vm2786, 1, 0
        %v2789 = vsel %vm2787, 1, 0
        %vm2790 = vcmp.eq.s32.totalorder %v2788, 1
        %vm2791 = vcmp.eq.s32.totalorder %v2789, 1
        %v2792 = vsel %vm2790, %v2769, -1e+30
        %v2793 = vsel %vm2791, %v2770, -1e+30
        %v2794 = vsel %vm2790, %v2771, -1e+30
        %v2795 = vsel %vm2791, %v2772, -1e+30
        %v2796 = vsel %vm2790, %v2773, -1e+30
        %v2797 = vsel %vm2791, %v2774, -1e+30
        %v2798 = vsel %vm2790, %v2775, -1e+30
        %v2799 = vsel %vm2791, %v2776, -1e+30
        %v2800 = vsel %vm2790, %v2777, -1e+30
        %v2801 = vsel %vm2791, %v2778, -1e+30
        %v2802 = vsel %vm2790, %v2779, -1e+30
        %v2803 = vsel %vm2791, %v2780, -1e+30
        %vm2804 = vcmask 130048
        %v2805 = vsel %vm2804, %v2792, -inf
        %2806 = vmax.xlane.f32.xlu0 %v2805
        %v2807 = vpop.xlane.xlu0 %2806
        %v2808 = vsel %vm2804, %v2793, -inf
        %2809 = vmax.xlane.f32.xlu0 %v2808
        %v2810 = vpop.xlane.xlu0 %2809
        %v2811 = vsel %vm2804, %v2794, -inf
        %2812 = vmax.xlane.f32.xlu0 %v2811
        %v2813 = vpop.xlane.xlu0 %2812
        %v2814 = vsel %vm2804, %v2795, -inf
        %2815 = vmax.xlane.f32.xlu0 %v2814
        %v2816 = vpop.xlane.xlu0 %2815
        %v2817 = vsel %vm2804, %v2796, -inf
        %2818 = vmax.xlane.f32.xlu0 %v2817
        %v2819 = vpop.xlane.xlu0 %2818
        %v2820 = vsel %vm2804, %v2797, -inf
        %2821 = vmax.xlane.f32.xlu0 %v2820
        %v2822 = vpop.xlane.xlu0 %2821
        %v2823 = vsel %vm2804, %v2798, -inf
        %2824 = vmax.xlane.f32.xlu0 %v2823
        %v2825 = vpop.xlane.xlu0 %2824
        %v2826 = vsel %vm2804, %v2799, -inf
        %2827 = vmax.xlane.f32.xlu0 %v2826
        %v2828 = vpop.xlane.xlu0 %2827
        %v2829 = vsel %vm2804, %v2800, -inf
        %2830 = vmax.xlane.f32.xlu0 %v2829
        %v2831 = vpop.xlane.xlu0 %2830
        %v2832 = vsel %vm2804, %v2801, -inf
        %2833 = vmax.xlane.f32.xlu0 %v2832
        %v2834 = vpop.xlane.xlu0 %2833
        %v2835 = vsel %vm2804, %v2802, -inf
        %2836 = vmax.xlane.f32.xlu0 %v2835
        %v2837 = vpop.xlane.xlu0 %2836
        %v2838 = vsel %vm2804, %v2803, -inf
        %2839 = vmax.xlane.f32.xlu0 %v2838
        %v2840 = vpop.xlane.xlu0 %2839
        %v2841 = vsub.f32 %v2792, %v2807
        %v2842 = vsub.f32 %v2793, %v2810
        %v2843 = vsub.f32 %v2794, %v2813
        %v2844 = vsub.f32 %v2795, %v2816
        %v2845 = vsub.f32 %v2796, %v2819
        %v2846 = vsub.f32 %v2797, %v2822
        %v2847 = vsub.f32 %v2798, %v2825
        %v2848 = vsub.f32 %v2799, %v2828
        %v2849 = vsub.f32 %v2800, %v2831
        %v2850 = vsub.f32 %v2801, %v2834
        %v2851 = vsub.f32 %v2802, %v2837
        %v2852 = vsub.f32 %v2803, %v2840
        %v2853 = vmul.f32 %v2841, 1.442695
        %v2854 = vpow.pop %v2853
        %v2855 = vmul.f32 %v2842, 1.442695
        %v2856 = vpow.pop %v2855
        %v2857 = vmul.f32 %v2843, 1.442695
        %v2858 = vpow.pop %v2857
        %v2859 = vmul.f32 %v2844, 1.442695
        %v2860 = vpow.pop %v2859
        %v2861 = vmul.f32 %v2845, 1.442695
        %v2862 = vpow.pop %v2861
        %v2863 = vmul.f32 %v2846, 1.442695
        %v2864 = vpow.pop %v2863
        %v2865 = vmul.f32 %v2847, 1.442695
        %v2866 = vpow.pop %v2865
        %v2867 = vmul.f32 %v2848, 1.442695
        %v2868 = vpow.pop %v2867
        %v2869 = vmul.f32 %v2849, 1.442695
        %v2870 = vpow.pop %v2869
        %v2871 = vmul.f32 %v2850, 1.442695
        %v2872 = vpow.pop %v2871
        %v2873 = vmul.f32 %v2851, 1.442695
        %v2874 = vpow.pop %v2873
        %v2875 = vmul.f32 %v2852, 1.442695
        %v2876 = vpow.pop %v2875
        %v2877 = vsel %vm2804, %v2854, 0.0
        %2878 = vadd.xlane.f32.xlu0 %v2877
        %v2879 = vpop.xlane.xlu0 %2878
        %v2880 = vsel %vm2804, %v2856, 0.0
        %2881 = vadd.xlane.f32.xlu0 %v2880
        %v2882 = vpop.xlane.xlu0 %2881
        %v2883 = vsel %vm2804, %v2858, 0.0
        %2884 = vadd.xlane.f32.xlu0 %v2883
        %v2885 = vpop.xlane.xlu0 %2884
        %v2886 = vsel %vm2804, %v2860, 0.0
        %2887 = vadd.xlane.f32.xlu0 %v2886
        %v2888 = vpop.xlane.xlu0 %2887
        %v2889 = vsel %vm2804, %v2862, 0.0
        %2890 = vadd.xlane.f32.xlu0 %v2889
        %v2891 = vpop.xlane.xlu0 %2890
        %v2892 = vsel %vm2804, %v2864, 0.0
        %2893 = vadd.xlane.f32.xlu0 %v2892
        %v2894 = vpop.xlane.xlu0 %2893
        %v2895 = vsel %vm2804, %v2866, 0.0
        %2896 = vadd.xlane.f32.xlu0 %v2895
        %v2897 = vpop.xlane.xlu0 %2896
        %v2898 = vsel %vm2804, %v2868, 0.0
        %2899 = vadd.xlane.f32.xlu0 %v2898
        %v2900 = vpop.xlane.xlu0 %2899
        %v2901 = vsel %vm2804, %v2870, 0.0
        %2902 = vadd.xlane.f32.xlu0 %v2901
        %v2903 = vpop.xlane.xlu0 %2902
        %v2904 = vsel %vm2804, %v2872, 0.0
        %2905 = vadd.xlane.f32.xlu0 %v2904
        %v2906 = vpop.xlane.xlu0 %2905
        %v2907 = vsel %vm2804, %v2874, 0.0
        %2908 = vadd.xlane.f32.xlu0 %v2907
        %v2909 = vpop.xlane.xlu0 %2908
        %v2910 = vsel %vm2804, %v2876, 0.0
        %2911 = vadd.xlane.f32.xlu0 %v2910
        %v2912 = vpop.xlane.xlu0 %2911
        %v2913 = vrcp.pop %v2879
        %v2914 = vrcp.pop %v2882
        %v2915 = vrcp.pop %v2885
        %v2916 = vrcp.pop %v2888
        %v2917 = vrcp.pop %v2891
        %v2918 = vrcp.pop %v2894
        %v2919 = vrcp.pop %v2897
        %v2920 = vrcp.pop %v2900
        %v2921 = vrcp.pop %v2903
        %v2922 = vrcp.pop %v2906
        %v2923 = vrcp.pop %v2909
        %v2924 = vrcp.pop %v2912
        %v2925 = vmul.f32 %v2854, %v2913
        %v2926 = vmul.f32 %v2856, %v2914
        %v2927 = vmul.f32 %v2858, %v2915
        %v2928 = vmul.f32 %v2860, %v2916
        %v2929 = vmul.f32 %v2862, %v2917
        %v2930 = vmul.f32 %v2864, %v2918
        %v2931 = vmul.f32 %v2866, %v2919
        %v2932 = vmul.f32 %v2868, %v2920
        %v2933 = vmul.f32 %v2870, %v2921
        %v2934 = vmul.f32 %v2872, %v2922
        %v2935 = vmul.f32 %v2874, %v2923
        %v2936 = vmul.f32 %v2876, %v2924
        %v2937 = vpack.c.bf16 %v2926, %v2925
        %v2938 = vpack.c.bf16 %v2928, %v2927
        %v2939 = vpack.c.bf16 %v2930, %v2929
        %v2940 = vpack.c.bf16 %v2932, %v2931
        %v2941 = vpack.c.bf16 %v2934, %v2933
        %v2942 = vpack.c.bf16 %v2936, %v2935
        %v2944 = vsel %vm2804, %v2937, 0
        %2946 = vmatprep.subr.bf16.mxu0 0
        %2947 = vmatpush1.bf16.msra.mxu0 0
        %2948 = vmatprep.subr.bf16.mxu0 0
        %2949 = vmatpush1.bf16.msra.mxu0 0
        %2950 = vmatprep.subr.bf16.mxu0 0
        %2951 = vmatpush1.bf16.msra.mxu0 0
        %2952 = vmatprep.subr.bf16.mxu0 0
        %2953 = vmatpush1.bf16.msra.mxu0 0
        %2954 = vmatprep.subr.bf16.mxu0 0
        %2955 = vmatpush1.bf16.msra.mxu0 0
        %2956 = vmatprep.subr.bf16.mxu0 0
        %2957 = vmatpush1.bf16.msra.mxu0 0
        %2958 = vmatprep.subr.bf16.mxu0 0
        %2959 = vmatpush1.bf16.msra.mxu0 0
        %2960 = vmatprep.subr.bf16.mxu0 0
        %2961 = vmatpush1.bf16.msra.mxu0 %v2453
        %2962 = vmatprep.subr.bf16.mxu0 0
        %2963 = vmatpush2.bf16.msra.mxu0 0
        %2964 = vmatprep.subr.bf16.mxu0 0
        %2965 = vmatpush2.bf16.msra.mxu0 0
        %2966 = vmatprep.subr.bf16.mxu0 0
        %2967 = vmatpush2.bf16.msra.mxu0 0
        %2968 = vmatprep.subr.bf16.mxu0 0
        %2969 = vmatpush2.bf16.msra.mxu0 0
        %2970 = vmatprep.subr.bf16.mxu0 0
        %2971 = vmatpush2.bf16.msra.mxu0 0
        %2972 = vmatprep.subr.bf16.mxu0 0
        %2973 = vmatpush2.bf16.msra.mxu0 0
        %2974 = vmatprep.subr.bf16.mxu0 0
        %2975 = vmatpush2.bf16.msra.mxu0 0
        %2976 = vmatprep.subr.bf16.mxu0 0
        %2977 = vmatpush2.bf16.msra.mxu0 0
        %2978 = vmatprep.mubr.bf16.mxu0 0
        %2979 = vmatmul.mubr.bf16.gmra.mxu0 %v2944
        %v2980 = vpop.f32.mrf.mxu0
        %v2981 = vadd.f32 0.0, %v2980
        %v2982 = vpop.f32.mrf.mxu0
        %v2983 = vpop.f32.mrf.mxu0
        %v2984 = vadd.f32 0.0, %v2983
        %v2985 = vpop.f32.mrf.mxu0
        %2986 = vdwg.mxu0
        %v2988 = vsel %vm2804, %v2938, 0
        %2990 = vmatprep.subr.bf16.mxu0 0
        %2991 = vmatpush1.bf16.msra.mxu0 0
        %2992 = vmatprep.subr.bf16.mxu0 0
        %2993 = vmatpush1.bf16.msra.mxu0 0
        %2994 = vmatprep.subr.bf16.mxu0 0
        %2995 = vmatpush1.bf16.msra.mxu0 0
        %2996 = vmatprep.subr.bf16.mxu0 0
        %2997 = vmatpush1.bf16.msra.mxu0 0
        %2998 = vmatprep.subr.bf16.mxu0 0
        %2999 = vmatpush1.bf16.msra.mxu0 0
        %3000 = vmatprep.subr.bf16.mxu0 0
        %3001 = vmatpush1.bf16.msra.mxu0 0
        %3002 = vmatprep.subr.bf16.mxu0 0
        %3003 = vmatpush1.bf16.msra.mxu0 0
        %3004 = vmatprep.subr.bf16.mxu0 0
        %3005 = vmatpush1.bf16.msra.mxu0 %v2476
        %3006 = vmatprep.subr.bf16.mxu0 0
        %3007 = vmatpush2.bf16.msra.mxu0 0
        %3008 = vmatprep.subr.bf16.mxu0 0
        %3009 = vmatpush2.bf16.msra.mxu0 0
        %3010 = vmatprep.subr.bf16.mxu0 0
        %3011 = vmatpush2.bf16.msra.mxu0 0
        %3012 = vmatprep.subr.bf16.mxu0 0
        %3013 = vmatpush2.bf16.msra.mxu0 0
        %3014 = vmatprep.subr.bf16.mxu0 0
        %3015 = vmatpush2.bf16.msra.mxu0 0
        %3016 = vmatprep.subr.bf16.mxu0 0
        %3017 = vmatpush2.bf16.msra.mxu0 0
        %3018 = vmatprep.subr.bf16.mxu0 0
        %3019 = vmatpush2.bf16.msra.mxu0 0
        %3020 = vmatprep.subr.bf16.mxu0 0
        %3021 = vmatpush2.bf16.msra.mxu0 0
        %3022 = vmatprep.mubr.bf16.mxu0 0
        %3023 = vmatmul.mubr.bf16.gmra.mxu0 %v2988
        %v3024 = vpop.f32.mrf.mxu0
        %v3025 = vadd.f32 0.0, %v3024
        %v3026 = vpop.f32.mrf.mxu0
        %v3027 = vpop.f32.mrf.mxu0
        %v3028 = vadd.f32 0.0, %v3027
        %v3029 = vpop.f32.mrf.mxu0
        %3030 = vdwg.mxu0
        %v3032 = vsel %vm2804, %v2939, 0
        %3034 = vmatprep.subr.bf16.mxu0 0
        %3035 = vmatpush1.bf16.msra.mxu0 0
        %3036 = vmatprep.subr.bf16.mxu0 0
        %3037 = vmatpush1.bf16.msra.mxu0 0
        %3038 = vmatprep.subr.bf16.mxu0 0
        %3039 = vmatpush1.bf16.msra.mxu0 0
        %3040 = vmatprep.subr.bf16.mxu0 0
        %3041 = vmatpush1.bf16.msra.mxu0 0
        %3042 = vmatprep.subr.bf16.mxu0 0
        %3043 = vmatpush1.bf16.msra.mxu0 0
        %3044 = vmatprep.subr.bf16.mxu0 0
        %3045 = vmatpush1.bf16.msra.mxu0 0
        %3046 = vmatprep.subr.bf16.mxu0 0
        %3047 = vmatpush1.bf16.msra.mxu0 0
        %3048 = vmatprep.subr.bf16.mxu0 0
        %3049 = vmatpush1.bf16.msra.mxu0 %v2454
        %3050 = vmatprep.subr.bf16.mxu0 0
        %3051 = vmatpush2.bf16.msra.mxu0 0
        %3052 = vmatprep.subr.bf16.mxu0 0
        %3053 = vmatpush2.bf16.msra.mxu0 0
        %3054 = vmatprep.subr.bf16.mxu0 0
        %3055 = vmatpush2.bf16.msra.mxu0 0
        %3056 = vmatprep.subr.bf16.mxu0 0
        %3057 = vmatpush2.bf16.msra.mxu0 0
        %3058 = vmatprep.subr.bf16.mxu0 0
        %3059 = vmatpush2.bf16.msra.mxu0 0
        %3060 = vmatprep.subr.bf16.mxu0 0
        %3061 = vmatpush2.bf16.msra.mxu0 0
        %3062 = vmatprep.subr.bf16.mxu0 0
        %3063 = vmatpush2.bf16.msra.mxu0 0
        %3064 = vmatprep.subr.bf16.mxu0 0
        %3065 = vmatpush2.bf16.msra.mxu0 0
        %3066 = vmatprep.mubr.bf16.mxu0 0
        %3067 = vmatmul.mubr.bf16.gmra.mxu0 %v3032
        %v3068 = vpop.f32.mrf.mxu0
        %v3069 = vadd.f32 0.0, %v3068
        %v3070 = vpop.f32.mrf.mxu0
        %v3071 = vpop.f32.mrf.mxu0
        %v3072 = vadd.f32 0.0, %v3071
        %v3073 = vpop.f32.mrf.mxu0
        %3074 = vdwg.mxu0
        %v3076 = vsel %vm2804, %v2940, 0
        %3078 = vmatprep.subr.bf16.mxu0 0
        %3079 = vmatpush1.bf16.msra.mxu0 0
        %3080 = vmatprep.subr.bf16.mxu0 0
        %3081 = vmatpush1.bf16.msra.mxu0 0
        %3082 = vmatprep.subr.bf16.mxu0 0
        %3083 = vmatpush1.bf16.msra.mxu0 0
        %3084 = vmatprep.subr.bf16.mxu0 0
        %3085 = vmatpush1.bf16.msra.mxu0 0
        %3086 = vmatprep.subr.bf16.mxu0 0
        %3087 = vmatpush1.bf16.msra.mxu0 0
        %3088 = vmatprep.subr.bf16.mxu0 0
        %3089 = vmatpush1.bf16.msra.mxu0 0
        %3090 = vmatprep.subr.bf16.mxu0 0
        %3091 = vmatpush1.bf16.msra.mxu0 0
        %3092 = vmatprep.subr.bf16.mxu0 0
        %3093 = vmatpush1.bf16.msra.mxu0 %v2480
        %3094 = vmatprep.subr.bf16.mxu0 0
        %3095 = vmatpush2.bf16.msra.mxu0 0
        %3096 = vmatprep.subr.bf16.mxu0 0
        %3097 = vmatpush2.bf16.msra.mxu0 0
        %3098 = vmatprep.subr.bf16.mxu0 0
        %3099 = vmatpush2.bf16.msra.mxu0 0
        %3100 = vmatprep.subr.bf16.mxu0 0
        %3101 = vmatpush2.bf16.msra.mxu0 0
        %3102 = vmatprep.subr.bf16.mxu0 0
        %3103 = vmatpush2.bf16.msra.mxu0 0
        %3104 = vmatprep.subr.bf16.mxu0 0
        %3105 = vmatpush2.bf16.msra.mxu0 0
        %3106 = vmatprep.subr.bf16.mxu0 0
        %3107 = vmatpush2.bf16.msra.mxu0 0
        %3108 = vmatprep.subr.bf16.mxu0 0
        %3109 = vmatpush2.bf16.msra.mxu0 0
        %3110 = vmatprep.mubr.bf16.mxu0 0
        %3111 = vmatmul.mubr.bf16.gmra.mxu0 %v3076
        %v3112 = vpop.f32.mrf.mxu0
        %v3113 = vadd.f32 0.0, %v3112
        %v3114 = vpop.f32.mrf.mxu0
        %v3115 = vpop.f32.mrf.mxu0
        %v3116 = vadd.f32 0.0, %v3115
        %v3117 = vpop.f32.mrf.mxu0
        %3118 = vdwg.mxu0
        %v3120 = vsel %vm2804, %v2941, 0
        %3122 = vmatprep.subr.bf16.mxu0 0
        %3123 = vmatpush1.bf16.msra.mxu0 0
        %3124 = vmatprep.subr.bf16.mxu0 0
        %3125 = vmatpush1.bf16.msra.mxu0 0
        %3126 = vmatprep.subr.bf16.mxu0 0
        %3127 = vmatpush1.bf16.msra.mxu0 0
        %3128 = vmatprep.subr.bf16.mxu0 0
        %3129 = vmatpush1.bf16.msra.mxu0 0
        %3130 = vmatprep.subr.bf16.mxu0 0
        %3131 = vmatpush1.bf16.msra.mxu0 0
        %3132 = vmatprep.subr.bf16.mxu0 0
        %3133 = vmatpush1.bf16.msra.mxu0 0
        %3134 = vmatprep.subr.bf16.mxu0 0
        %3135 = vmatpush1.bf16.msra.mxu0 0
        %3136 = vmatprep.subr.bf16.mxu0 0
        %3137 = vmatpush1.bf16.msra.mxu0 %v2455
        %3138 = vmatprep.subr.bf16.mxu0 0
        %3139 = vmatpush2.bf16.msra.mxu0 0
        %3140 = vmatprep.subr.bf16.mxu0 0
        %3141 = vmatpush2.bf16.msra.mxu0 0
        %3142 = vmatprep.subr.bf16.mxu0 0
        %3143 = vmatpush2.bf16.msra.mxu0 0
        %3144 = vmatprep.subr.bf16.mxu0 0
        %3145 = vmatpush2.bf16.msra.mxu0 0
        %3146 = vmatprep.subr.bf16.mxu0 0
        %3147 = vmatpush2.bf16.msra.mxu0 0
        %3148 = vmatprep.subr.bf16.mxu0 0
        %3149 = vmatpush2.bf16.msra.mxu0 0
        %3150 = vmatprep.subr.bf16.mxu0 0
        %3151 = vmatpush2.bf16.msra.mxu0 0
        %3152 = vmatprep.subr.bf16.mxu0 0
        %3153 = vmatpush2.bf16.msra.mxu0 0
        %3154 = vmatprep.mubr.bf16.mxu0 0
        %3155 = vmatmul.mubr.bf16.gmra.mxu0 %v3120
        %v3156 = vpop.f32.mrf.mxu0
        %v3157 = vadd.f32 0.0, %v3156
        %v3158 = vpop.f32.mrf.mxu0
        %v3159 = vpop.f32.mrf.mxu0
        %v3160 = vadd.f32 0.0, %v3159
        %v3161 = vpop.f32.mrf.mxu0
        %3162 = vdwg.mxu0
        %v3164 = vsel %vm2804, %v2942, 0
        %3166 = vmatprep.subr.bf16.mxu0 0
        %3167 = vmatpush1.bf16.msra.mxu0 0
        %3168 = vmatprep.subr.bf16.mxu0 0
        %3169 = vmatpush1.bf16.msra.mxu0 0
        %3170 = vmatprep.subr.bf16.mxu0 0
        %3171 = vmatpush1.bf16.msra.mxu0 0
        %3172 = vmatprep.subr.bf16.mxu0 0
        %3173 = vmatpush1.bf16.msra.mxu0 0
        %3174 = vmatprep.subr.bf16.mxu0 0
        %3175 = vmatpush1.bf16.msra.mxu0 0
        %3176 = vmatprep.subr.bf16.mxu0 0
        %3177 = vmatpush1.bf16.msra.mxu0 0
        %3178 = vmatprep.subr.bf16.mxu0 0
        %3179 = vmatpush1.bf16.msra.mxu0 0
        %3180 = vmatprep.subr.bf16.mxu0 0
        %3181 = vmatpush1.bf16.msra.mxu0 %v2484
        %3182 = vmatprep.subr.bf16.mxu0 0
        %3183 = vmatpush2.bf16.msra.mxu0 0
        %3184 = vmatprep.subr.bf16.mxu0 0
        %3185 = vmatpush2.bf16.msra.mxu0 0
        %3186 = vmatprep.subr.bf16.mxu0 0
        %3187 = vmatpush2.bf16.msra.mxu0 0
        %3188 = vmatprep.subr.bf16.mxu0 0
        %3189 = vmatpush2.bf16.msra.mxu0 0
        %3190 = vmatprep.subr.bf16.mxu0 0
        %3191 = vmatpush2.bf16.msra.mxu0 0
        %3192 = vmatprep.subr.bf16.mxu0 0
        %3193 = vmatpush2.bf16.msra.mxu0 0
        %3194 = vmatprep.subr.bf16.mxu0 0
        %3195 = vmatpush2.bf16.msra.mxu0 0
        %3196 = vmatprep.subr.bf16.mxu0 0
        %3197 = vmatpush2.bf16.msra.mxu0 0
        %3198 = vmatprep.mubr.bf16.mxu0 0
        %3199 = vmatmul.mubr.bf16.gmra.mxu0 %v3164
        %v3200 = vpop.f32.mrf.mxu0
        %v3201 = vadd.f32 0.0, %v3200
        %v3202 = vpop.f32.mrf.mxu0
        %v3203 = vpop.f32.mrf.mxu0
        %v3204 = vadd.f32 0.0, %v3203
        %v3205 = vpop.f32.mrf.mxu0
        %3206 = vdwg.mxu0
        %v3207 = vpack.c.bf16 %v2984, %v2981
        %v3209 = vunpack.c.l.b16 %v3207
        %v3210 = vunpack.c.h.b16 %v3207
        %v3211 = vpack.c.b16 %v3209, %v3209
        %v3212 = vpack.c.b16 %v3210, %v3210
        %vm3215 = vcmask 519168
        %3216 = vst.msk [vmem:[#allocation2] sm:$0xf] %vm3215, %v3211
        %3217 = vst.msk [vmem:[#allocation2 + $0xc] sm:$0xf] %vm3215, %v3212
        %v3218 = vpack.c.bf16 %v3028, %v3025
        %v3220 = vunpack.c.l.b16 %v3218
        %v3221 = vunpack.c.h.b16 %v3218
        %v3222 = vpack.c.b16 %v3220, %v3220
        %v3223 = vpack.c.b16 %v3221, %v3221
        %3224 = vrot.lane.b32.xlu0 %v3222, 64
        %v3225 = vpop.permute.xlu0 %3224
        %3226 = vrot.lane.b32.xlu0 %v3223, 64
        %v3227 = vpop.permute.xlu0 %3226
        %vm3230 = vcmask 1043968
        %3231 = vst.msk [vmem:[#allocation2] sm:$0xf] %vm3230, %v3225
        %3232 = vst.msk [vmem:[#allocation2 + $0xc] sm:$0xf] %vm3230, %v3227
        %v3233 = vpack.c.bf16 %v3072, %v3069
        %v3235 = vunpack.c.l.b16 %v3233
        %v3236 = vunpack.c.h.b16 %v3233
        %v3237 = vpack.c.b16 %v3235, %v3235
        %v3238 = vpack.c.b16 %v3236, %v3236
        %3241 = vst.msk [vmem:[#allocation2 + $0x4] sm:$0xf] %vm3215, %v3237
        %3242 = vst.msk [vmem:[#allocation2 + $0x10] sm:$0xf] %vm3215, %v3238
        %v3243 = vpack.c.bf16 %v3116, %v3113
        %v3245 = vunpack.c.l.b16 %v3243
        %v3246 = vunpack.c.h.b16 %v3243
        %v3247 = vpack.c.b16 %v3245, %v3245
        %v3248 = vpack.c.b16 %v3246, %v3246
        %3249 = vrot.lane.b32.xlu0 %v3247, 64
        %v3250 = vpop.permute.xlu0 %3249
        %3251 = vrot.lane.b32.xlu0 %v3248, 64
        %v3252 = vpop.permute.xlu0 %3251
        %3255 = vst.msk [vmem:[#allocation2 + $0x4] sm:$0xf] %vm3230, %v3250
        %3256 = vst.msk [vmem:[#allocation2 + $0x10] sm:$0xf] %vm3230, %v3252
        %v3257 = vpack.c.bf16 %v3160, %v3157
        %v3259 = vunpack.c.l.b16 %v3257
        %v3260 = vunpack.c.h.b16 %v3257
        %v3261 = vpack.c.b16 %v3259, %v3259
        %v3262 = vpack.c.b16 %v3260, %v3260
        %3265 = vst.msk [vmem:[#allocation2 + $0x8] sm:$0xf] %vm3215, %v3261
        %3266 = vst.msk [vmem:[#allocation2 + $0x14] sm:$0xf] %vm3215, %v3262
        %v3267 = vpack.c.bf16 %v3204, %v3201
        %v3269 = vunpack.c.l.b16 %v3267
        %v3270 = vunpack.c.h.b16 %v3267
        %v3271 = vpack.c.b16 %v3269, %v3269
        %v3272 = vpack.c.b16 %v3270, %v3270
        %3273 = vrot.lane.b32.xlu0 %v3271, 64
        %v3274 = vpop.permute.xlu0 %3273
        %3275 = vrot.lane.b32.xlu0 %v3272, 64
        %v3276 = vpop.permute.xlu0 %3275
        %3279 = vst.msk [vmem:[#allocation2 + $0x8] sm:$0xf] %vm3230, %v3274
        %3280 = vst.msk [vmem:[#allocation2 + $0x14] sm:$0xf] %vm3230, %v3276
        %v3281 = vld [vmem:[#allocation2] sm:$0xff]
        %v3282 = vld [vmem:[#allocation2 + $0x8] sm:$0xf]
        %v3283 = vld [vmem:[#allocation2 + $0xc] sm:$0xff]
        %v3284 = vld [vmem:[#allocation2 + $0x14] sm:$0xf]
        %v3285 = vld [vmem:[#allocation8] sm:$0xff]
        %v3286 = vld [vmem:[#allocation8 + $0x8] sm:$0xf]
        %v3287 = vld [vmem:[#allocation8 + $0xc] sm:$0xff]
        %v3288 = vld [vmem:[#allocation8 + $0x14] sm:$0xf]
        %v3289 = vld [vmem:[#allocation8 + $0x18] sm:$0xff]
        %v3290 = vld [vmem:[#allocation8 + $0x20] sm:$0xf]
        %v3291 = vld [vmem:[#allocation8 + $0x24] sm:$0xff]
        %v3292 = vld [vmem:[#allocation8 + $0x2c] sm:$0xf]
        %v3293 = vld [vmem:[#allocation8 + $0x30] sm:$0xff]
        %v3294 = vld [vmem:[#allocation8 + $0x38] sm:$0xf]
        %v3295 = vld [vmem:[#allocation8 + $0x3c] sm:$0xff]
        %v3296 = vld [vmem:[#allocation8 + $0x44] sm:$0xf]
        %v3297 = vld [vmem:[#allocation8 + $0x48] sm:$0xff]
        %v3298 = vld [vmem:[#allocation8 + $0x50] sm:$0xf]
        %v3299 = vld [vmem:[#allocation8 + $0x54] sm:$0xff]
        %v3300 = vld [vmem:[#allocation8 + $0x5c] sm:$0xf]
        %v3301 = vld [vmem:[#allocation8 + $0x60] sm:$0xff]
        %v3302 = vld [vmem:[#allocation8 + $0x68] sm:$0xf]
        %v3303 = vld [vmem:[#allocation8 + $0x6c] sm:$0xff]
        %v3304 = vld [vmem:[#allocation8 + $0x74] sm:$0xf]
        %v3305 = vld [vmem:[#allocation8 + $0x78] sm:$0xff]
        %v3306 = vld [vmem:[#allocation8 + $0x80] sm:$0xf]
        %v3307 = vld [vmem:[#allocation8 + $0x84] sm:$0xff]
        %v3308 = vld [vmem:[#allocation8 + $0x8c] sm:$0xf]
        %v3309 = vld [vmem:[#allocation8 + $0x90] sm:$0xff]
        %v3310 = vld [vmem:[#allocation8 + $0x98] sm:$0xf]
        %v3311 = vld [vmem:[#allocation8 + $0x9c] sm:$0xff]
        %v3312 = vld [vmem:[#allocation8 + $0xa4] sm:$0xf]
        %v3313 = vld [vmem:[#allocation8 + $0xa8] sm:$0xff]
        %v3314 = vld [vmem:[#allocation8 + $0xb0] sm:$0xf]
        %v3315 = vld [vmem:[#allocation8 + $0xb4] sm:$0xff]
        %v3316 = vld [vmem:[#allocation8 + $0xbc] sm:$0xf]
        %v3317 = vld [vmem:[#allocation8 + $0xc0] sm:$0xff]
        %v3318 = vld [vmem:[#allocation8 + $0xc8] sm:$0xf]
        %v3319 = vld [vmem:[#allocation8 + $0xcc] sm:$0xff]
        %v3320 = vld [vmem:[#allocation8 + $0xd4] sm:$0xf]
        %v3321 = vld [vmem:[#allocation8 + $0xd8] sm:$0xff]
        %v3322 = vld [vmem:[#allocation8 + $0xe0] sm:$0xf]
        %v3323 = vld [vmem:[#allocation8 + $0xe4] sm:$0xff]
        %v3324 = vld [vmem:[#allocation8 + $0xec] sm:$0xf]
        %v3325 = vld [vmem:[#allocation8 + $0xf0] sm:$0xff]
        %v3326 = vld [vmem:[#allocation8 + $0xf8] sm:$0xf]
        %v3327 = vld [vmem:[#allocation8 + $0xfc] sm:$0xff]
        %v3328 = vld [vmem:[#allocation8 + $0x104] sm:$0xf]
        %v3329 = vld [vmem:[#allocation8 + $0x108] sm:$0xff]
        %v3330 = vld [vmem:[#allocation8 + $0x110] sm:$0xf]
        %v3331 = vld [vmem:[#allocation8 + $0x114] sm:$0xff]
        %v3332 = vld [vmem:[#allocation8 + $0x11c] sm:$0xf]
        %v3333 = vld [vmem:[#allocation8 + $0x120] sm:$0xff]
        %v3334 = vld [vmem:[#allocation8 + $0x128] sm:$0xf]
        %v3335 = vld [vmem:[#allocation8 + $0x12c] sm:$0xff]
        %v3336 = vld [vmem:[#allocation8 + $0x134] sm:$0xf]
        %v3337 = vld [vmem:[#allocation8 + $0x138] sm:$0xff]
        %v3338 = vld [vmem:[#allocation8 + $0x140] sm:$0xf]
        %v3339 = vld [vmem:[#allocation8 + $0x144] sm:$0xff]
        %v3340 = vld [vmem:[#allocation8 + $0x14c] sm:$0xf]
        %v3341 = vld [vmem:[#allocation8 + $0x150] sm:$0xff]
        %v3342 = vld [vmem:[#allocation8 + $0x158] sm:$0xf]
        %v3343 = vld [vmem:[#allocation8 + $0x15c] sm:$0xff]
        %v3344 = vld [vmem:[#allocation8 + $0x164] sm:$0xf]
        %v3345 = vld [vmem:[#allocation8 + $0x168] sm:$0xff]
        %v3346 = vld [vmem:[#allocation8 + $0x170] sm:$0xf]
        %v3347 = vld [vmem:[#allocation8 + $0x174] sm:$0xff]
        %v3348 = vld [vmem:[#allocation8 + $0x17c] sm:$0xf]
        %v3349 = vld [vmem:[#allocation8 + $0x180] sm:$0xff]
        %v3350 = vld [vmem:[#allocation8 + $0x188] sm:$0xf]
        %v3351 = vld [vmem:[#allocation8 + $0x18c] sm:$0xff]
        %v3352 = vld [vmem:[#allocation8 + $0x194] sm:$0xf]
        %v3353 = vld [vmem:[#allocation8 + $0x198] sm:$0xff]
        %v3354 = vld [vmem:[#allocation8 + $0x1a0] sm:$0xf]
        %v3355 = vld [vmem:[#allocation8 + $0x1a4] sm:$0xff]
        %v3356 = vld [vmem:[#allocation8 + $0x1ac] sm:$0xf]
        %v3357 = vld [vmem:[#allocation8 + $0x1b0] sm:$0xff]
        %v3358 = vld [vmem:[#allocation8 + $0x1b8] sm:$0xf]
        %v3359 = vld [vmem:[#allocation8 + $0x1bc] sm:$0xff]
        %v3360 = vld [vmem:[#allocation8 + $0x1c4] sm:$0xf]
        %v3361 = vld [vmem:[#allocation8 + $0x1c8] sm:$0xff]
        %v3362 = vld [vmem:[#allocation8 + $0x1d0] sm:$0xf]
        %v3363 = vld [vmem:[#allocation8 + $0x1d4] sm:$0xff]
        %v3364 = vld [vmem:[#allocation8 + $0x1dc] sm:$0xf]
        %v3365 = vld [vmem:[#allocation8 + $0x1e0] sm:$0xff]
        %v3366 = vld [vmem:[#allocation8 + $0x1e8] sm:$0xf]
        %v3367 = vld [vmem:[#allocation8 + $0x1ec] sm:$0xff]
        %v3368 = vld [vmem:[#allocation8 + $0x1f4] sm:$0xf]
        %v3369 = vld [vmem:[#allocation8 + $0x1f8] sm:$0xff]
        %v3370 = vld [vmem:[#allocation8 + $0x200] sm:$0xf]
        %v3371 = vld [vmem:[#allocation8 + $0x204] sm:$0xff]
        %v3372 = vld [vmem:[#allocation8 + $0x20c] sm:$0xf]
        %v3373 = vld [vmem:[#allocation8 + $0x210] sm:$0xff]
        %v3374 = vld [vmem:[#allocation8 + $0x218] sm:$0xf]
        %v3375 = vld [vmem:[#allocation8 + $0x21c] sm:$0xff]
        %v3376 = vld [vmem:[#allocation8 + $0x224] sm:$0xf]
        %v3377 = vld [vmem:[#allocation8 + $0x228] sm:$0xff]
        %v3378 = vld [vmem:[#allocation8 + $0x230] sm:$0xf]
        %v3379 = vld [vmem:[#allocation8 + $0x234] sm:$0xff]
        %v3380 = vld [vmem:[#allocation8 + $0x23c] sm:$0xf]
        %v3381 = vld [vmem:[#allocation9] sm:$0x7]
        %v3383 = vlaneseq
        %v3384 = vshrl.u32 %v3383, 7
        %v3385 = vsub.s32 0, %v3384
        %v3386 = vrot.slane %v3381, %v3385
        %v3387 = vlaneseq
        %v3388 = vshrl.u32 %v3387, 7
        %v3389 = vsub.s32 1, %v3388
        %v3390 = vrot.slane %v3381, %v3389
        %v3391 = vlaneseq
        %v3392 = vshrl.u32 %v3391, 7
        %v3393 = vsub.s32 2, %v3392
        %v3394 = vrot.slane %v3381, %v3393
        %v3402 = vunpack.c.l.b16 %v3281
        %v3403 = vunpack.c.h.b16 %v3281
        %v3404 = vunpack.c.l.b16 %v3282
        %v3405 = vunpack.c.l.b16 %v3283
        %v3406 = vunpack.c.h.b16 %v3283
        %v3407 = vunpack.c.l.b16 %v3284
        %v3408 = vpack.c.b16 %v3405, %v3402
        %v3409 = vpack.c.b16 %v3406, %v3403
        %v3410 = vpack.c.b16 %v3407, %v3404
        %v3510 = vunpack.c.l.b16 %v3285
        %v3511 = vunpack.c.h.b16 %v3285
        %v3512 = vunpack.c.l.b16 %v3286
        %v3513 = vunpack.c.l.b16 %v3287
        %v3514 = vunpack.c.h.b16 %v3287
        %v3515 = vunpack.c.l.b16 %v3288
        %v3516 = vunpack.c.l.b16 %v3289
        %v3517 = vunpack.c.h.b16 %v3289
        %v3518 = vunpack.c.l.b16 %v3290
        %v3519 = vunpack.c.l.b16 %v3291
        %v3520 = vunpack.c.h.b16 %v3291
        %v3521 = vunpack.c.l.b16 %v3292
        %v3522 = vunpack.c.l.b16 %v3293
        %v3523 = vunpack.c.h.b16 %v3293
        %v3524 = vunpack.c.l.b16 %v3294
        %v3525 = vunpack.c.l.b16 %v3295
        %v3526 = vunpack.c.h.b16 %v3295
        %v3527 = vunpack.c.l.b16 %v3296
        %v3528 = vunpack.c.l.b16 %v3297
        %v3529 = vunpack.c.h.b16 %v3297
        %v3530 = vunpack.c.l.b16 %v3298
        %v3531 = vunpack.c.l.b16 %v3299
        %v3532 = vunpack.c.h.b16 %v3299
        %v3533 = vunpack.c.l.b16 %v3300
        %v3534 = vunpack.c.l.b16 %v3301
        %v3535 = vunpack.c.h.b16 %v3301
        %v3536 = vunpack.c.l.b16 %v3302
        %v3537 = vunpack.c.l.b16 %v3303
        %v3538 = vunpack.c.h.b16 %v3303
        %v3539 = vunpack.c.l.b16 %v3304
        %v3540 = vunpack.c.l.b16 %v3305
        %v3541 = vunpack.c.h.b16 %v3305
        %v3542 = vunpack.c.l.b16 %v3306
        %v3543 = vunpack.c.l.b16 %v3307
        %v3544 = vunpack.c.h.b16 %v3307
        %v3545 = vunpack.c.l.b16 %v3308
        %v3546 = vunpack.c.l.b16 %v3309
        %v3547 = vunpack.c.h.b16 %v3309
        %v3548 = vunpack.c.l.b16 %v3310
        %v3549 = vunpack.c.l.b16 %v3311
        %v3550 = vunpack.c.h.b16 %v3311
        %v3551 = vunpack.c.l.b16 %v3312
        %v3552 = vunpack.c.l.b16 %v3313
        %v3553 = vunpack.c.h.b16 %v3313
        %v3554 = vunpack.c.l.b16 %v3314
        %v3555 = vunpack.c.l.b16 %v3315
        %v3556 = vunpack.c.h.b16 %v3315
        %v3557 = vunpack.c.l.b16 %v3316
        %v3558 = vunpack.c.l.b16 %v3317
        %v3559 = vunpack.c.h.b16 %v3317
        %v3560 = vunpack.c.l.b16 %v3318
        %v3561 = vunpack.c.l.b16 %v3319
        %v3562 = vunpack.c.h.b16 %v3319
        %v3563 = vunpack.c.l.b16 %v3320
        %v3564 = vunpack.c.l.b16 %v3321
        %v3565 = vunpack.c.h.b16 %v3321
        %v3566 = vunpack.c.l.b16 %v3322
        %v3567 = vunpack.c.l.b16 %v3323
        %v3568 = vunpack.c.h.b16 %v3323
        %v3569 = vunpack.c.l.b16 %v3324
        %v3570 = vunpack.c.l.b16 %v3325
        %v3571 = vunpack.c.h.b16 %v3325
        %v3572 = vunpack.c.l.b16 %v3326
        %v3573 = vunpack.c.l.b16 %v3327
        %v3574 = vunpack.c.h.b16 %v3327
        %v3575 = vunpack.c.l.b16 %v3328
        %v3576 = vunpack.c.l.b16 %v3329
        %v3577 = vunpack.c.h.b16 %v3329
        %v3578 = vunpack.c.l.b16 %v3330
        %v3579 = vunpack.c.l.b16 %v3331
        %v3580 = vunpack.c.h.b16 %v3331
        %v3581 = vunpack.c.l.b16 %v3332
        %v3582 = vunpack.c.l.b16 %v3333
        %v3583 = vunpack.c.h.b16 %v3333
        %v3584 = vunpack.c.l.b16 %v3334
        %v3585 = vunpack.c.l.b16 %v3335
        %v3586 = vunpack.c.h.b16 %v3335
        %v3587 = vunpack.c.l.b16 %v3336
        %v3588 = vunpack.c.l.b16 %v3337
        %v3589 = vunpack.c.h.b16 %v3337
        %v3590 = vunpack.c.l.b16 %v3338
        %v3591 = vunpack.c.l.b16 %v3339
        %v3592 = vunpack.c.h.b16 %v3339
        %v3593 = vunpack.c.l.b16 %v3340
        %v3594 = vunpack.c.l.b16 %v3341
        %v3595 = vunpack.c.h.b16 %v3341
        %v3596 = vunpack.c.l.b16 %v3342
        %v3597 = vunpack.c.l.b16 %v3343
        %v3598 = vunpack.c.h.b16 %v3343
        %v3599 = vunpack.c.l.b16 %v3344
        %v3600 = vunpack.c.l.b16 %v3345
        %v3601 = vunpack.c.h.b16 %v3345
        %v3602 = vunpack.c.l.b16 %v3346
        %v3603 = vunpack.c.l.b16 %v3347
        %v3604 = vunpack.c.h.b16 %v3347
        %v3605 = vunpack.c.l.b16 %v3348
        %v3606 = vunpack.c.l.b16 %v3349
        %v3607 = vunpack.c.h.b16 %v3349
        %v3608 = vunpack.c.l.b16 %v3350
        %v3609 = vunpack.c.l.b16 %v3351
        %v3610 = vunpack.c.h.b16 %v3351
        %v3611 = vunpack.c.l.b16 %v3352
        %v3612 = vunpack.c.l.b16 %v3353
        %v3613 = vunpack.c.h.b16 %v3353
        %v3614 = vunpack.c.l.b16 %v3354
        %v3615 = vunpack.c.l.b16 %v3355
        %v3616 = vunpack.c.h.b16 %v3355
        %v3617 = vunpack.c.l.b16 %v3356
        %v3618 = vunpack.c.l.b16 %v3357
        %v3619 = vunpack.c.h.b16 %v3357
        %v3620 = vunpack.c.l.b16 %v3358
        %v3621 = vunpack.c.l.b16 %v3359
        %v3622 = vunpack.c.h.b16 %v3359
        %v3623 = vunpack.c.l.b16 %v3360
        %v3624 = vunpack.c.l.b16 %v3361
        %v3625 = vunpack.c.h.b16 %v3361
        %v3626 = vunpack.c.l.b16 %v3362
        %v3627 = vunpack.c.l.b16 %v3363
        %v3628 = vunpack.c.h.b16 %v3363
        %v3629 = vunpack.c.l.b16 %v3364
        %v3630 = vunpack.c.l.b16 %v3365
        %v3631 = vunpack.c.h.b16 %v3365
        %v3632 = vunpack.c.l.b16 %v3366
        %v3633 = vunpack.c.l.b16 %v3367
        %v3634 = vunpack.c.h.b16 %v3367
        %v3635 = vunpack.c.l.b16 %v3368
        %v3636 = vunpack.c.l.b16 %v3369
        %v3637 = vunpack.c.h.b16 %v3369
        %v3638 = vunpack.c.l.b16 %v3370
        %v3639 = vunpack.c.l.b16 %v3371
        %v3640 = vunpack.c.h.b16 %v3371
        %v3641 = vunpack.c.l.b16 %v3372
        %v3642 = vunpack.c.l.b16 %v3373
        %v3643 = vunpack.c.h.b16 %v3373
        %v3644 = vunpack.c.l.b16 %v3374
        %v3645 = vunpack.c.l.b16 %v3375
        %v3646 = vunpack.c.h.b16 %v3375
        %v3647 = vunpack.c.l.b16 %v3376
        %v3648 = vunpack.c.l.b16 %v3377
        %v3649 = vunpack.c.h.b16 %v3377
        %v3650 = vunpack.c.l.b16 %v3378
        %v3651 = vunpack.c.l.b16 %v3379
        %v3652 = vunpack.c.h.b16 %v3379
        %v3653 = vunpack.c.l.b16 %v3380
        %v3654 = vpack.c.b16 %v3513, %v3510
        %v3655 = vpack.c.b16 %v3514, %v3511
        %v3656 = vpack.c.b16 %v3515, %v3512
        %v3657 = vpack.c.b16 %v3519, %v3516
        %v3658 = vpack.c.b16 %v3520, %v3517
        %v3659 = vpack.c.b16 %v3521, %v3518
        %v3660 = vpack.c.b16 %v3525, %v3522
        %v3661 = vpack.c.b16 %v3526, %v3523
        %v3662 = vpack.c.b16 %v3527, %v3524
        %v3663 = vpack.c.b16 %v3531, %v3528
        %v3664 = vpack.c.b16 %v3532, %v3529
        %v3665 = vpack.c.b16 %v3533, %v3530
        %v3666 = vpack.c.b16 %v3537, %v3534
        %v3667 = vpack.c.b16 %v3538, %v3535
        %v3668 = vpack.c.b16 %v3539, %v3536
        %v3669 = vpack.c.b16 %v3543, %v3540
        %v3670 = vpack.c.b16 %v3544, %v3541
        %v3671 = vpack.c.b16 %v3545, %v3542
        %v3672 = vpack.c.b16 %v3549, %v3546
        %v3673 = vpack.c.b16 %v3550, %v3547
        %v3674 = vpack.c.b16 %v3551, %v3548
        %v3675 = vpack.c.b16 %v3555, %v3552
        %v3676 = vpack.c.b16 %v3556, %v3553
        %v3677 = vpack.c.b16 %v3557, %v3554
        %v3678 = vpack.c.b16 %v3561, %v3558
        %v3679 = vpack.c.b16 %v3562, %v3559
        %v3680 = vpack.c.b16 %v3563, %v3560
        %v3681 = vpack.c.b16 %v3567, %v3564
        %v3682 = vpack.c.b16 %v3568, %v3565
        %v3683 = vpack.c.b16 %v3569, %v3566
        %v3684 = vpack.c.b16 %v3573, %v3570
        %v3685 = vpack.c.b16 %v3574, %v3571
        %v3686 = vpack.c.b16 %v3575, %v3572
        %v3687 = vpack.c.b16 %v3579, %v3576
        %v3688 = vpack.c.b16 %v3580, %v3577
        %v3689 = vpack.c.b16 %v3581, %v3578
        %v3690 = vpack.c.b16 %v3585, %v3582
        %v3691 = vpack.c.b16 %v3586, %v3583
        %v3692 = vpack.c.b16 %v3587, %v3584
        %v3693 = vpack.c.b16 %v3591, %v3588
        %v3694 = vpack.c.b16 %v3592, %v3589
        %v3695 = vpack.c.b16 %v3593, %v3590
        %v3696 = vpack.c.b16 %v3597, %v3594
        %v3697 = vpack.c.b16 %v3598, %v3595
        %v3698 = vpack.c.b16 %v3599, %v3596
        %v3699 = vpack.c.b16 %v3603, %v3600
        %v3700 = vpack.c.b16 %v3604, %v3601
        %v3701 = vpack.c.b16 %v3605, %v3602
        %v3702 = vpack.c.b16 %v3609, %v3606
        %v3703 = vpack.c.b16 %v3610, %v3607
        %v3704 = vpack.c.b16 %v3611, %v3608
        %v3705 = vpack.c.b16 %v3615, %v3612
        %v3706 = vpack.c.b16 %v3616, %v3613
        %v3707 = vpack.c.b16 %v3617, %v3614
        %v3708 = vpack.c.b16 %v3621, %v3618
        %v3709 = vpack.c.b16 %v3622, %v3619
        %v3710 = vpack.c.b16 %v3623, %v3620
        %v3711 = vpack.c.b16 %v3627, %v3624
        %v3712 = vpack.c.b16 %v3628, %v3625
        %v3713 = vpack.c.b16 %v3629, %v3626
        %v3714 = vpack.c.b16 %v3633, %v3630
        %v3715 = vpack.c.b16 %v3634, %v3631
        %v3716 = vpack.c.b16 %v3635, %v3632
        %v3717 = vpack.c.b16 %v3639, %v3636
        %v3718 = vpack.c.b16 %v3640, %v3637
        %v3719 = vpack.c.b16 %v3641, %v3638
        %v3720 = vpack.c.b16 %v3645, %v3642
        %v3721 = vpack.c.b16 %v3646, %v3643
        %v3722 = vpack.c.b16 %v3647, %v3644
        %v3723 = vpack.c.b16 %v3651, %v3648
        %v3724 = vpack.c.b16 %v3652, %v3649
        %v3725 = vpack.c.b16 %v3653, %v3650
        %3798 = vmatprep.subr.bf16.mxu0 %v3676
        %3799 = vmatpush1.bf16.msra.mxu0 %v3675
        %3800 = vmatprep.subr.bf16.mxu0 %v3673
        %3801 = vmatpush1.bf16.msra.mxu0 %v3672
        %3802 = vmatprep.subr.bf16.mxu0 %v3670
        %3803 = vmatpush1.bf16.msra.mxu0 %v3669
        %3804 = vmatprep.subr.bf16.mxu0 %v3667
        %3805 = vmatpush1.bf16.msra.mxu0 %v3666
        %3806 = vmatprep.subr.bf16.mxu0 %v3664
        %3807 = vmatpush1.bf16.msra.mxu0 %v3663
        %3808 = vmatprep.subr.bf16.mxu0 %v3661
        %3809 = vmatpush1.bf16.msra.mxu0 %v3660
        %3810 = vmatprep.subr.bf16.mxu0 %v3658
        %3811 = vmatpush1.bf16.msra.mxu0 %v3657
        %3812 = vmatprep.subr.bf16.mxu0 %v3655
        %3813 = vmatpush1.bf16.msra.mxu0 %v3654
        %3814 = vmatprep.subr.bf16.mxu0 %v3700
        %3815 = vmatpush2.bf16.msra.mxu0 %v3699
        %3816 = vmatprep.subr.bf16.mxu0 %v3697
        %3817 = vmatpush2.bf16.msra.mxu0 %v3696
        %3818 = vmatprep.subr.bf16.mxu0 %v3694
        %3819 = vmatpush2.bf16.msra.mxu0 %v3693
        %3820 = vmatprep.subr.bf16.mxu0 %v3691
        %3821 = vmatpush2.bf16.msra.mxu0 %v3690
        %3822 = vmatprep.subr.bf16.mxu0 %v3688
        %3823 = vmatpush2.bf16.msra.mxu0 %v3687
        %3824 = vmatprep.subr.bf16.mxu0 %v3685
        %3825 = vmatpush2.bf16.msra.mxu0 %v3684
        %3826 = vmatprep.subr.bf16.mxu0 %v3682
        %3827 = vmatpush2.bf16.msra.mxu0 %v3681
        %3828 = vmatprep.subr.bf16.mxu0 %v3679
        %3829 = vmatpush2.bf16.msra.mxu0 %v3678
        %3830 = vmatprep.mubr.bf16.mxu0 %v3409
        %3831 = vmatmul.mubr.bf16.gmra.mxu0 %v3408
        %v3832 = vpop.f32.mrf.mxu0
        %v3833 = vadd.f32 %v3386, %v3832
        %v3834 = vpop.f32.mrf.mxu0
        %v3835 = vadd.f32 %v3390, %v3834
        %v3836 = vpop.f32.mrf.mxu0
        %v3837 = vadd.f32 %v3386, %v3836
        %v3838 = vpop.f32.mrf.mxu0
        %v3839 = vadd.f32 %v3390, %v3838
        %3840 = vdwg.mxu0
        %3841 = vmatprep.subr.bf16.mxu0 %v3724
        %3842 = vmatpush1.bf16.msra.mxu0 %v3723
        %3843 = vmatprep.subr.bf16.mxu0 %v3721
        %3844 = vmatpush1.bf16.msra.mxu0 %v3720
        %3845 = vmatprep.subr.bf16.mxu0 %v3718
        %3846 = vmatpush1.bf16.msra.mxu0 %v3717
        %3847 = vmatprep.subr.bf16.mxu0 %v3715
        %3848 = vmatpush1.bf16.msra.mxu0 %v3714
        %3849 = vmatprep.subr.bf16.mxu0 %v3712
        %3850 = vmatpush1.bf16.msra.mxu0 %v3711
        %3851 = vmatprep.subr.bf16.mxu0 %v3709
        %3852 = vmatpush1.bf16.msra.mxu0 %v3708
        %3853 = vmatprep.subr.bf16.mxu0 %v3706
        %3854 = vmatpush1.bf16.msra.mxu0 %v3705
        %3855 = vmatprep.subr.bf16.mxu0 %v3703
        %3856 = vmatpush1.bf16.msra.mxu0 %v3702
        %3857 = vmatprep.subr.bf16.mxu0 0
        %3858 = vmatpush2.bf16.msra.mxu0 0
        %3859 = vmatprep.subr.bf16.mxu0 0
        %3860 = vmatpush2.bf16.msra.mxu0 0
        %3861 = vmatprep.subr.bf16.mxu0 0
        %3862 = vmatpush2.bf16.msra.mxu0 0
        %3863 = vmatprep.subr.bf16.mxu0 0
        %3864 = vmatpush2.bf16.msra.mxu0 0
        %3865 = vmatprep.subr.bf16.mxu0 0
        %3866 = vmatpush2.bf16.msra.mxu0 0
        %3867 = vmatprep.subr.bf16.mxu0 0
        %3868 = vmatpush2.bf16.msra.mxu0 0
        %3869 = vmatprep.subr.bf16.mxu0 0
        %3870 = vmatpush2.bf16.msra.mxu0 0
        %3871 = vmatprep.subr.bf16.mxu0 0
        %3872 = vmatpush2.bf16.msra.mxu0 0
        %3873 = vmatprep.mubr.bf16.mxu0 0
        %3874 = vmatmul.mubr.bf16.gmra.mxu0 %v3410
        %v3875 = vpop.f32.mrf.mxu0
        %v3876 = vadd.f32 %v3833, %v3875
        %v3877 = vpop.f32.mrf.mxu0
        %v3878 = vadd.f32 %v3835, %v3877
        %v3879 = vpop.f32.mrf.mxu0
        %v3880 = vadd.f32 %v3837, %v3879
        %v3881 = vpop.f32.mrf.mxu0
        %v3882 = vadd.f32 %v3839, %v3881
        %3883 = vdwg.mxu0
        %3884 = vmatprep.subr.bf16.mxu0 0
        %3885 = vmatpush1.bf16.msra.mxu0 %v3677
        %3886 = vmatprep.subr.bf16.mxu0 0
        %3887 = vmatpush1.bf16.msra.mxu0 %v3674
        %3888 = vmatprep.subr.bf16.mxu0 0
        %3889 = vmatpush1.bf16.msra.mxu0 %v3671
        %3890 = vmatprep.subr.bf16.mxu0 0
        %3891 = vmatpush1.bf16.msra.mxu0 %v3668
        %3892 = vmatprep.subr.bf16.mxu0 0
        %3893 = vmatpush1.bf16.msra.mxu0 %v3665
        %3894 = vmatprep.subr.bf16.mxu0 0
        %3895 = vmatpush1.bf16.msra.mxu0 %v3662
        %3896 = vmatprep.subr.bf16.mxu0 0
        %3897 = vmatpush1.bf16.msra.mxu0 %v3659
        %3898 = vmatprep.subr.bf16.mxu0 0
        %3899 = vmatpush1.bf16.msra.mxu0 %v3656
        %3900 = vmatprep.subr.bf16.mxu0 0
        %3901 = vmatpush2.bf16.msra.mxu0 %v3701
        %3902 = vmatprep.subr.bf16.mxu0 0
        %3903 = vmatpush2.bf16.msra.mxu0 %v3698
        %3904 = vmatprep.subr.bf16.mxu0 0
        %3905 = vmatpush2.bf16.msra.mxu0 %v3695
        %3906 = vmatprep.subr.bf16.mxu0 0
        %3907 = vmatpush2.bf16.msra.mxu0 %v3692
        %3908 = vmatprep.subr.bf16.mxu0 0
        %3909 = vmatpush2.bf16.msra.mxu0 %v3689
        %3910 = vmatprep.subr.bf16.mxu0 0
        %3911 = vmatpush2.bf16.msra.mxu0 %v3686
        %3912 = vmatprep.subr.bf16.mxu0 0
        %3913 = vmatpush2.bf16.msra.mxu0 %v3683
        %3914 = vmatprep.subr.bf16.mxu0 0
        %3915 = vmatpush2.bf16.msra.mxu0 %v3680
        %3916 = vmatprep.mubr.bf16.mxu0 %v3409
        %3917 = vmatmul.mubr.bf16.gmra.mxu0 %v3408
        %v3918 = vpop.f32.mrf.mxu0
        %v3919 = vadd.f32 %v3394, %v3918
        %v3920 = vpop.f32.mrf.mxu0
        %v3921 = vpop.f32.mrf.mxu0
        %v3922 = vadd.f32 %v3394, %v3921
        %v3923 = vpop.f32.mrf.mxu0
        %3924 = vdwg.mxu0
        %3925 = vmatprep.subr.bf16.mxu0 0
        %3926 = vmatpush1.bf16.msra.mxu0 %v3725
        %3927 = vmatprep.subr.bf16.mxu0 0
        %3928 = vmatpush1.bf16.msra.mxu0 %v3722
        %3929 = vmatprep.subr.bf16.mxu0 0
        %3930 = vmatpush1.bf16.msra.mxu0 %v3719
        %3931 = vmatprep.subr.bf16.mxu0 0
        %3932 = vmatpush1.bf16.msra.mxu0 %v3716
        %3933 = vmatprep.subr.bf16.mxu0 0
        %3934 = vmatpush1.bf16.msra.mxu0 %v3713
        %3935 = vmatprep.subr.bf16.mxu0 0
        %3936 = vmatpush1.bf16.msra.mxu0 %v3710
        %3937 = vmatprep.subr.bf16.mxu0 0
        %3938 = vmatpush1.bf16.msra.mxu0 %v3707
        %3939 = vmatprep.subr.bf16.mxu0 0
        %3940 = vmatpush1.bf16.msra.mxu0 %v3704
        %3941 = vmatprep.subr.bf16.mxu0 0
        %3942 = vmatpush2.bf16.msra.mxu0 0
        %3943 = vmatprep.subr.bf16.mxu0 0
        %3944 = vmatpush2.bf16.msra.mxu0 0
        %3945 = vmatprep.subr.bf16.mxu0 0
        %3946 = vmatpush2.bf16.msra.mxu0 0
        %3947 = vmatprep.subr.bf16.mxu0 0
        %3948 = vmatpush2.bf16.msra.mxu0 0
        %3949 = vmatprep.subr.bf16.mxu0 0
        %3950 = vmatpush2.bf16.msra.mxu0 0
        %3951 = vmatprep.subr.bf16.mxu0 0
        %3952 = vmatpush2.bf16.msra.mxu0 0
        %3953 = vmatprep.subr.bf16.mxu0 0
        %3954 = vmatpush2.bf16.msra.mxu0 0
        %3955 = vmatprep.subr.bf16.mxu0 0
        %3956 = vmatpush2.bf16.msra.mxu0 0
        %3957 = vmatprep.mubr.bf16.mxu0 0
        %3958 = vmatmul.mubr.bf16.gmra.mxu0 %v3410
        %v3959 = vpop.f32.mrf.mxu0
        %v3960 = vadd.f32 %v3919, %v3959
        %v3961 = vpop.f32.mrf.mxu0
        %v3962 = vpop.f32.mrf.mxu0
        %v3963 = vadd.f32 %v3922, %v3962
        %v3964 = vpop.f32.mrf.mxu0
        %3965 = vdwg.mxu0
        %v3966 = vadd.f32 %v579, %v3876
        %v3967 = vadd.f32 %v580, %v3878
        %v3968 = vadd.f32 %v581, %v3960
        %v3969 = vadd.f32 %v582, %v3880
        %v3970 = vadd.f32 %v583, %v3882
        %v3971 = vadd.f32 %v584, %v3963
        %v3972 = vld [vmem:[#allocation20] sm:$0x7]
        %v3973 = vld [vmem:[#allocation21] sm:$0x7]
        %v3974 = vadd.f32 %v3966, %v3967
        %v3975 = vadd.f32 %v3974, %v3968
        %3976 = vadd.xlane.f32.xlu0 %v3975
        %v3977 = vpop.xlane.xlu0 %3976
        %v3978 = vadd.f32 %v3969, %v3970
        %v3979 = vadd.f32 %v3978, %v3971
        %3980 = vadd.xlane.f32.xlu0 %v3979
        %v3981 = vpop.xlane.xlu0 %3980
        %v3982 = vmul.f32 %v3977, %v595
        %v3983 = vmul.f32 %v3981, %v595
        %v3984 = vsub.f32 %v3966, %v3982
        %v3985 = vsub.f32 %v3967, %v3982
        %v3986 = vsub.f32 %v3968, %v3982
        %v3987 = vsub.f32 %v3969, %v3983
        %v3988 = vsub.f32 %v3970, %v3983
        %v3989 = vsub.f32 %v3971, %v3983
        %v3990 = vmul.f32 %v3984, %v3984
        %v3991 = vmul.f32 %v3985, %v3985
        %v3992 = vmul.f32 %v3986, %v3986
        %v3993 = vmul.f32 %v3987, %v3987
        %v3994 = vmul.f32 %v3988, %v3988
        %v3995 = vmul.f32 %v3989, %v3989
        %v3996 = vadd.f32 %v3990, %v3991
        %v3997 = vadd.f32 %v3996, %v3992
        %3998 = vadd.xlane.f32.xlu0 %v3997
        %v3999 = vpop.xlane.xlu0 %3998
        %v4000 = vadd.f32 %v3993, %v3994
        %v4001 = vadd.f32 %v4000, %v3995
        %4002 = vadd.xlane.f32.xlu0 %v4001
        %v4003 = vpop.xlane.xlu0 %4002
        %v4004 = vmul.f32 %v3999, %v595
        %v4005 = vmul.f32 %v4003, %v595
        %v4006 = vadd.f32 %v4004, 1e-05
        %v4007 = vadd.f32 %v4005, 1e-05
        %v4008 = vrsqrt.pop %v4006
        %v4009 = vrsqrt.pop %v4007
        %v4010 = vmul.f32 %v3984, %v4008
        %v4011 = vmul.f32 %v3985, %v4008
        %v4012 = vmul.f32 %v3986, %v4008
        %v4013 = vmul.f32 %v3987, %v4009
        %v4014 = vmul.f32 %v3988, %v4009
        %v4015 = vmul.f32 %v3989, %v4009
        %v4017 = vlaneseq
        %v4018 = vshrl.u32 %v4017, 7
        %v4019 = vsub.s32 0, %v4018
        %v4020 = vrot.slane %v3972, %v4019
        %v4021 = vlaneseq
        %v4022 = vshrl.u32 %v4021, 7
        %v4023 = vsub.s32 1, %v4022
        %v4024 = vrot.slane %v3972, %v4023
        %v4025 = vlaneseq
        %v4026 = vshrl.u32 %v4025, 7
        %v4027 = vsub.s32 2, %v4026
        %v4028 = vrot.slane %v3972, %v4027
        %v4032 = vmul.f32 %v4010, %v4020
        %v4033 = vmul.f32 %v4011, %v4024
        %v4034 = vmul.f32 %v4012, %v4028
        %v4035 = vmul.f32 %v4013, %v4020
        %v4036 = vmul.f32 %v4014, %v4024
        %v4037 = vmul.f32 %v4015, %v4028
        %v4039 = vlaneseq
        %v4040 = vshrl.u32 %v4039, 7
        %v4041 = vsub.s32 0, %v4040
        %v4042 = vrot.slane %v3973, %v4041
        %v4043 = vlaneseq
        %v4044 = vshrl.u32 %v4043, 7
        %v4045 = vsub.s32 1, %v4044
        %v4046 = vrot.slane %v3973, %v4045
        %v4047 = vlaneseq
        %v4048 = vshrl.u32 %v4047, 7
        %v4049 = vsub.s32 2, %v4048
        %v4050 = vrot.slane %v3973, %v4049
        %v4054 = vadd.f32 %v4032, %v4042
        %v4055 = vadd.f32 %v4033, %v4046
        %v4056 = vadd.f32 %v4034, %v4050
        %v4057 = vadd.f32 %v4035, %v4042
        %v4058 = vadd.f32 %v4036, %v4046
        %v4059 = vadd.f32 %v4037, %v4050
        %v4060 = vpack.c.bf16 %v4057, %v4054
        %v4061 = vpack.c.bf16 %v4058, %v4055
        %v4062 = vpack.c.bf16 %v4059, %v4056
        %v4063 = vld [vmem:[#allocation11] sm:$0xff]
        %v4064 = vld [vmem:[#allocation11 + $0x8] sm:$0xff]
        %v4065 = vld [vmem:[#allocation11 + $0x10] sm:$0xff]
        %v4066 = vld [vmem:[#allocation11 + $0x18] sm:$0xff]
        %v4067 = vld [vmem:[#allocation11 + $0x20] sm:$0xff]
        %v4068 = vld [vmem:[#allocation11 + $0x28] sm:$0xff]
        %v4069 = vld [vmem:[#allocation11 + $0x30] sm:$0xff]
        %v4070 = vld [vmem:[#allocation11 + $0x38] sm:$0xff]
        %v4071 = vld [vmem:[#allocation11 + $0x40] sm:$0xff]
        %v4072 = vld [vmem:[#allocation11 + $0x48] sm:$0xff]
        %v4073 = vld [vmem:[#allocation11 + $0x50] sm:$0xff]
        %v4074 = vld [vmem:[#allocation11 + $0x58] sm:$0xff]
        %v4075 = vld [vmem:[#allocation11 + $0x60] sm:$0xff]
        %v4076 = vld [vmem:[#allocation11 + $0x68] sm:$0xff]
        %v4077 = vld [vmem:[#allocation11 + $0x70] sm:$0xff]
        %v4078 = vld [vmem:[#allocation11 + $0x78] sm:$0xff]
        %v4079 = vld [vmem:[#allocation11 + $0x80] sm:$0xff]
        %v4080 = vld [vmem:[#allocation11 + $0x88] sm:$0xff]
        %v4081 = vld [vmem:[#allocation11 + $0x90] sm:$0xff]
        %v4082 = vld [vmem:[#allocation11 + $0x98] sm:$0xff]
        %v4083 = vld [vmem:[#allocation11 + $0xa0] sm:$0xff]
        %v4084 = vld [vmem:[#allocation11 + $0xa8] sm:$0xff]
        %v4085 = vld [vmem:[#allocation11 + $0xb0] sm:$0xff]
        %v4086 = vld [vmem:[#allocation11 + $0xb8] sm:$0xff]
        %v4087 = vld [vmem:[#allocation11 + $0xc0] sm:$0xff]
        %v4088 = vld [vmem:[#allocation11 + $0xc8] sm:$0xff]
        %v4089 = vld [vmem:[#allocation11 + $0xd0] sm:$0xff]
        %v4090 = vld [vmem:[#allocation11 + $0xd8] sm:$0xff]
        %v4091 = vld [vmem:[#allocation11 + $0xe0] sm:$0xff]
        %v4092 = vld [vmem:[#allocation11 + $0xe8] sm:$0xff]
        %v4093 = vld [vmem:[#allocation11 + $0xf0] sm:$0xff]
        %v4094 = vld [vmem:[#allocation11 + $0xf8] sm:$0xff]
        %v4095 = vld [vmem:[#allocation11 + $0x100] sm:$0xff]
        %v4096 = vld [vmem:[#allocation11 + $0x108] sm:$0xff]
        %v4097 = vld [vmem:[#allocation11 + $0x110] sm:$0xff]
        %v4098 = vld [vmem:[#allocation11 + $0x118] sm:$0xff]
        %v4099 = vld [vmem:[#allocation11 + $0x120] sm:$0xff]
        %v4100 = vld [vmem:[#allocation11 + $0x128] sm:$0xff]
        %v4101 = vld [vmem:[#allocation11 + $0x130] sm:$0xff]
        %v4102 = vld [vmem:[#allocation11 + $0x138] sm:$0xff]
        %v4103 = vld [vmem:[#allocation11 + $0x140] sm:$0xff]
        %v4104 = vld [vmem:[#allocation11 + $0x148] sm:$0xff]
        %v4105 = vld [vmem:[#allocation11 + $0x150] sm:$0xff]
        %v4106 = vld [vmem:[#allocation11 + $0x158] sm:$0xff]
        %v4107 = vld [vmem:[#allocation11 + $0x160] sm:$0xff]
        %v4108 = vld [vmem:[#allocation11 + $0x168] sm:$0xff]
        %v4109 = vld [vmem:[#allocation11 + $0x170] sm:$0xff]
        %v4110 = vld [vmem:[#allocation11 + $0x178] sm:$0xff]
        %v4111 = vld [vmem:[#allocation11 + $0x180] sm:$0xff]
        %v4112 = vld [vmem:[#allocation11 + $0x188] sm:$0xff]
        %v4113 = vld [vmem:[#allocation11 + $0x190] sm:$0xff]
        %v4114 = vld [vmem:[#allocation11 + $0x198] sm:$0xff]
        %v4115 = vld [vmem:[#allocation11 + $0x1a0] sm:$0xff]
        %v4116 = vld [vmem:[#allocation11 + $0x1a8] sm:$0xff]
        %v4117 = vld [vmem:[#allocation11 + $0x1b0] sm:$0xff]
        %v4118 = vld [vmem:[#allocation11 + $0x1b8] sm:$0xff]
        %v4119 = vld [vmem:[#allocation11 + $0x1c0] sm:$0xff]
        %v4120 = vld [vmem:[#allocation11 + $0x1c8] sm:$0xff]
        %v4121 = vld [vmem:[#allocation11 + $0x1d0] sm:$0xff]
        %v4122 = vld [vmem:[#allocation11 + $0x1d8] sm:$0xff]
        %v4123 = vld [vmem:[#allocation11 + $0x1e0] sm:$0xff]
        %v4124 = vld [vmem:[#allocation11 + $0x1e8] sm:$0xff]
        %v4125 = vld [vmem:[#allocation11 + $0x1f0] sm:$0xff]
        %v4126 = vld [vmem:[#allocation11 + $0x1f8] sm:$0xff]
        %v4127 = vld [vmem:[#allocation11 + $0x200] sm:$0xff]
        %v4128 = vld [vmem:[#allocation11 + $0x208] sm:$0xff]
        %v4129 = vld [vmem:[#allocation11 + $0x210] sm:$0xff]
        %v4130 = vld [vmem:[#allocation11 + $0x218] sm:$0xff]
        %v4131 = vld [vmem:[#allocation11 + $0x220] sm:$0xff]
        %v4132 = vld [vmem:[#allocation11 + $0x228] sm:$0xff]
        %v4133 = vld [vmem:[#allocation11 + $0x230] sm:$0xff]
        %v4134 = vld [vmem:[#allocation11 + $0x238] sm:$0xff]
        %v4135 = vld [vmem:[#allocation11 + $0x240] sm:$0xff]
        %v4136 = vld [vmem:[#allocation11 + $0x248] sm:$0xff]
        %v4137 = vld [vmem:[#allocation11 + $0x250] sm:$0xff]
        %v4138 = vld [vmem:[#allocation11 + $0x258] sm:$0xff]
        %v4139 = vld [vmem:[#allocation11 + $0x260] sm:$0xff]
        %v4140 = vld [vmem:[#allocation11 + $0x268] sm:$0xff]
        %v4141 = vld [vmem:[#allocation11 + $0x270] sm:$0xff]
        %v4142 = vld [vmem:[#allocation11 + $0x278] sm:$0xff]
        %v4143 = vld [vmem:[#allocation11 + $0x280] sm:$0xff]
        %v4144 = vld [vmem:[#allocation11 + $0x288] sm:$0xff]
        %v4145 = vld [vmem:[#allocation11 + $0x290] sm:$0xff]
        %v4146 = vld [vmem:[#allocation11 + $0x298] sm:$0xff]
        %v4147 = vld [vmem:[#allocation11 + $0x2a0] sm:$0xff]
        %v4148 = vld [vmem:[#allocation11 + $0x2a8] sm:$0xff]
        %v4149 = vld [vmem:[#allocation11 + $0x2b0] sm:$0xff]
        %v4150 = vld [vmem:[#allocation11 + $0x2b8] sm:$0xff]
        %v4151 = vld [vmem:[#allocation11 + $0x2c0] sm:$0xff]
        %v4152 = vld [vmem:[#allocation11 + $0x2c8] sm:$0xff]
        %v4153 = vld [vmem:[#allocation11 + $0x2d0] sm:$0xff]
        %v4154 = vld [vmem:[#allocation11 + $0x2d8] sm:$0xff]
        %v4155 = vld [vmem:[#allocation11 + $0x2e0] sm:$0xff]
        %v4156 = vld [vmem:[#allocation11 + $0x2e8] sm:$0xff]
        %v4157 = vld [vmem:[#allocation11 + $0x2f0] sm:$0xff]
        %v4158 = vld [vmem:[#allocation11 + $0x2f8] sm:$0xff]
        %v4159 = vld [vmem:[#allocation11 + $0x300] sm:$0xff]
        %v4160 = vld [vmem:[#allocation11 + $0x308] sm:$0xff]
        %v4161 = vld [vmem:[#allocation11 + $0x310] sm:$0xff]
        %v4162 = vld [vmem:[#allocation11 + $0x318] sm:$0xff]
        %v4163 = vld [vmem:[#allocation11 + $0x320] sm:$0xff]
        %v4164 = vld [vmem:[#allocation11 + $0x328] sm:$0xff]
        %v4165 = vld [vmem:[#allocation11 + $0x330] sm:$0xff]
        %v4166 = vld [vmem:[#allocation11 + $0x338] sm:$0xff]
        %v4167 = vld [vmem:[#allocation11 + $0x340] sm:$0xff]
        %v4168 = vld [vmem:[#allocation11 + $0x348] sm:$0xff]
        %v4169 = vld [vmem:[#allocation11 + $0x350] sm:$0xff]
        %v4170 = vld [vmem:[#allocation11 + $0x358] sm:$0xff]
        %v4171 = vld [vmem:[#allocation11 + $0x360] sm:$0xff]
        %v4172 = vld [vmem:[#allocation11 + $0x368] sm:$0xff]
        %v4173 = vld [vmem:[#allocation11 + $0x370] sm:$0xff]
        %v4174 = vld [vmem:[#allocation11 + $0x378] sm:$0xff]
        %v4175 = vld [vmem:[#allocation11 + $0x380] sm:$0xff]
        %v4176 = vld [vmem:[#allocation11 + $0x388] sm:$0xff]
        %v4177 = vld [vmem:[#allocation11 + $0x390] sm:$0xff]
        %v4178 = vld [vmem:[#allocation11 + $0x398] sm:$0xff]
        %v4179 = vld [vmem:[#allocation11 + $0x3a0] sm:$0xff]
        %v4180 = vld [vmem:[#allocation11 + $0x3a8] sm:$0xff]
        %v4181 = vld [vmem:[#allocation11 + $0x3b0] sm:$0xff]
        %v4182 = vld [vmem:[#allocation11 + $0x3b8] sm:$0xff]
        %v4183 = vld [vmem:[#allocation11 + $0x3c0] sm:$0xff]
        %v4184 = vld [vmem:[#allocation11 + $0x3c8] sm:$0xff]
        %v4185 = vld [vmem:[#allocation11 + $0x3d0] sm:$0xff]
        %v4186 = vld [vmem:[#allocation11 + $0x3d8] sm:$0xff]
        %v4187 = vld [vmem:[#allocation11 + $0x3e0] sm:$0xff]
        %v4188 = vld [vmem:[#allocation11 + $0x3e8] sm:$0xff]
        %v4189 = vld [vmem:[#allocation11 + $0x3f0] sm:$0xff]
        %v4190 = vld [vmem:[#allocation11 + $0x3f8] sm:$0xff]
        %v4191 = vld [vmem:[#allocation11 + $0x400] sm:$0xff]
        %v4192 = vld [vmem:[#allocation11 + $0x408] sm:$0xff]
        %v4193 = vld [vmem:[#allocation11 + $0x410] sm:$0xff]
        %v4194 = vld [vmem:[#allocation11 + $0x418] sm:$0xff]
        %v4195 = vld [vmem:[#allocation11 + $0x420] sm:$0xff]
        %v4196 = vld [vmem:[#allocation11 + $0x428] sm:$0xff]
        %v4197 = vld [vmem:[#allocation11 + $0x430] sm:$0xff]
        %v4198 = vld [vmem:[#allocation11 + $0x438] sm:$0xff]
        %v4199 = vld [vmem:[#allocation11 + $0x440] sm:$0xff]
        %v4200 = vld [vmem:[#allocation11 + $0x448] sm:$0xff]
        %v4201 = vld [vmem:[#allocation11 + $0x450] sm:$0xff]
        %v4202 = vld [vmem:[#allocation11 + $0x458] sm:$0xff]
        %v4203 = vld [vmem:[#allocation11 + $0x460] sm:$0xff]
        %v4204 = vld [vmem:[#allocation11 + $0x468] sm:$0xff]
        %v4205 = vld [vmem:[#allocation11 + $0x470] sm:$0xff]
        %v4206 = vld [vmem:[#allocation11 + $0x478] sm:$0xff]
        %v4207 = vld [vmem:[#allocation11 + $0x480] sm:$0xff]
        %v4208 = vld [vmem:[#allocation11 + $0x488] sm:$0xff]
        %v4209 = vld [vmem:[#allocation11 + $0x490] sm:$0xff]
        %v4210 = vld [vmem:[#allocation11 + $0x498] sm:$0xff]
        %v4211 = vld [vmem:[#allocation11 + $0x4a0] sm:$0xff]
        %v4212 = vld [vmem:[#allocation11 + $0x4a8] sm:$0xff]
        %v4213 = vld [vmem:[#allocation11 + $0x4b0] sm:$0xff]
        %v4214 = vld [vmem:[#allocation11 + $0x4b8] sm:$0xff]
        %v4215 = vld [vmem:[#allocation11 + $0x4c0] sm:$0xff]
        %v4216 = vld [vmem:[#allocation11 + $0x4c8] sm:$0xff]
        %v4217 = vld [vmem:[#allocation11 + $0x4d0] sm:$0xff]
        %v4218 = vld [vmem:[#allocation11 + $0x4d8] sm:$0xff]
        %v4219 = vld [vmem:[#allocation11 + $0x4e0] sm:$0xff]
        %v4220 = vld [vmem:[#allocation11 + $0x4e8] sm:$0xff]
        %v4221 = vld [vmem:[#allocation11 + $0x4f0] sm:$0xff]
        %v4222 = vld [vmem:[#allocation11 + $0x4f8] sm:$0xff]
        %v4223 = vld [vmem:[#allocation11 + $0x500] sm:$0xff]
        %v4224 = vld [vmem:[#allocation11 + $0x508] sm:$0xff]
        %v4225 = vld [vmem:[#allocation11 + $0x510] sm:$0xff]
        %v4226 = vld [vmem:[#allocation11 + $0x518] sm:$0xff]
        %v4227 = vld [vmem:[#allocation11 + $0x520] sm:$0xff]
        %v4228 = vld [vmem:[#allocation11 + $0x528] sm:$0xff]
        %v4229 = vld [vmem:[#allocation11 + $0x530] sm:$0xff]
        %v4230 = vld [vmem:[#allocation11 + $0x538] sm:$0xff]
        %v4231 = vld [vmem:[#allocation11 + $0x540] sm:$0xff]
        %v4232 = vld [vmem:[#allocation11 + $0x548] sm:$0xff]
        %v4233 = vld [vmem:[#allocation11 + $0x550] sm:$0xff]
        %v4234 = vld [vmem:[#allocation11 + $0x558] sm:$0xff]
        %v4235 = vld [vmem:[#allocation11 + $0x560] sm:$0xff]
        %v4236 = vld [vmem:[#allocation11 + $0x568] sm:$0xff]
        %v4237 = vld [vmem:[#allocation11 + $0x570] sm:$0xff]
        %v4238 = vld [vmem:[#allocation11 + $0x578] sm:$0xff]
        %v4239 = vld [vmem:[#allocation11 + $0x580] sm:$0xff]
        %v4240 = vld [vmem:[#allocation11 + $0x588] sm:$0xff]
        %v4241 = vld [vmem:[#allocation11 + $0x590] sm:$0xff]
        %v4242 = vld [vmem:[#allocation11 + $0x598] sm:$0xff]
        %v4243 = vld [vmem:[#allocation11 + $0x5a0] sm:$0xff]
        %v4244 = vld [vmem:[#allocation11 + $0x5a8] sm:$0xff]
        %v4245 = vld [vmem:[#allocation11 + $0x5b0] sm:$0xff]
        %v4246 = vld [vmem:[#allocation11 + $0x5b8] sm:$0xff]
        %v4247 = vld [vmem:[#allocation11 + $0x5c0] sm:$0xff]
        %v4248 = vld [vmem:[#allocation11 + $0x5c8] sm:$0xff]
        %v4249 = vld [vmem:[#allocation11 + $0x5d0] sm:$0xff]
        %v4250 = vld [vmem:[#allocation11 + $0x5d8] sm:$0xff]
        %v4251 = vld [vmem:[#allocation11 + $0x5e0] sm:$0xff]
        %v4252 = vld [vmem:[#allocation11 + $0x5e8] sm:$0xff]
        %v4253 = vld [vmem:[#allocation11 + $0x5f0] sm:$0xff]
        %v4254 = vld [vmem:[#allocation11 + $0x5f8] sm:$0xff]
        %v4255 = vld [vmem:[#allocation11 + $0x600] sm:$0xff]
        %v4256 = vld [vmem:[#allocation11 + $0x608] sm:$0xff]
        %v4257 = vld [vmem:[#allocation11 + $0x610] sm:$0xff]
        %v4258 = vld [vmem:[#allocation11 + $0x618] sm:$0xff]
        %v4259 = vld [vmem:[#allocation11 + $0x620] sm:$0xff]
        %v4260 = vld [vmem:[#allocation11 + $0x628] sm:$0xff]
        %v4261 = vld [vmem:[#allocation11 + $0x630] sm:$0xff]
        %v4262 = vld [vmem:[#allocation11 + $0x638] sm:$0xff]
        %v4263 = vld [vmem:[#allocation11 + $0x640] sm:$0xff]
        %v4264 = vld [vmem:[#allocation11 + $0x648] sm:$0xff]
        %v4265 = vld [vmem:[#allocation11 + $0x650] sm:$0xff]
        %v4266 = vld [vmem:[#allocation11 + $0x658] sm:$0xff]
        %v4267 = vld [vmem:[#allocation11 + $0x660] sm:$0xff]
        %v4268 = vld [vmem:[#allocation11 + $0x668] sm:$0xff]
        %v4269 = vld [vmem:[#allocation11 + $0x670] sm:$0xff]
        %v4270 = vld [vmem:[#allocation11 + $0x678] sm:$0xff]
        %v4271 = vld [vmem:[#allocation11 + $0x680] sm:$0xff]
        %v4272 = vld [vmem:[#allocation11 + $0x688] sm:$0xff]
        %v4273 = vld [vmem:[#allocation11 + $0x690] sm:$0xff]
        %v4274 = vld [vmem:[#allocation11 + $0x698] sm:$0xff]
        %v4275 = vld [vmem:[#allocation11 + $0x6a0] sm:$0xff]
        %v4276 = vld [vmem:[#allocation11 + $0x6a8] sm:$0xff]
        %v4277 = vld [vmem:[#allocation11 + $0x6b0] sm:$0xff]
        %v4278 = vld [vmem:[#allocation11 + $0x6b8] sm:$0xff]
        %v4279 = vld [vmem:[#allocation11 + $0x6c0] sm:$0xff]
        %v4280 = vld [vmem:[#allocation11 + $0x6c8] sm:$0xff]
        %v4281 = vld [vmem:[#allocation11 + $0x6d0] sm:$0xff]
        %v4282 = vld [vmem:[#allocation11 + $0x6d8] sm:$0xff]
        %v4283 = vld [vmem:[#allocation11 + $0x6e0] sm:$0xff]
        %v4284 = vld [vmem:[#allocation11 + $0x6e8] sm:$0xff]
        %v4285 = vld [vmem:[#allocation11 + $0x6f0] sm:$0xff]
        %v4286 = vld [vmem:[#allocation11 + $0x6f8] sm:$0xff]
        %v4287 = vld [vmem:[#allocation11 + $0x700] sm:$0xff]
        %v4288 = vld [vmem:[#allocation11 + $0x708] sm:$0xff]
        %v4289 = vld [vmem:[#allocation11 + $0x710] sm:$0xff]
        %v4290 = vld [vmem:[#allocation11 + $0x718] sm:$0xff]
        %v4291 = vld [vmem:[#allocation11 + $0x720] sm:$0xff]
        %v4292 = vld [vmem:[#allocation11 + $0x728] sm:$0xff]
        %v4293 = vld [vmem:[#allocation11 + $0x730] sm:$0xff]
        %v4294 = vld [vmem:[#allocation11 + $0x738] sm:$0xff]
        %v4295 = vld [vmem:[#allocation11 + $0x740] sm:$0xff]
        %v4296 = vld [vmem:[#allocation11 + $0x748] sm:$0xff]
        %v4297 = vld [vmem:[#allocation11 + $0x750] sm:$0xff]
        %v4298 = vld [vmem:[#allocation11 + $0x758] sm:$0xff]
        %v4299 = vld [vmem:[#allocation11 + $0x760] sm:$0xff]
        %v4300 = vld [vmem:[#allocation11 + $0x768] sm:$0xff]
        %v4301 = vld [vmem:[#allocation11 + $0x770] sm:$0xff]
        %v4302 = vld [vmem:[#allocation11 + $0x778] sm:$0xff]
        %v4303 = vld [vmem:[#allocation11 + $0x780] sm:$0xff]
        %v4304 = vld [vmem:[#allocation11 + $0x788] sm:$0xff]
        %v4305 = vld [vmem:[#allocation11 + $0x790] sm:$0xff]
        %v4306 = vld [vmem:[#allocation11 + $0x798] sm:$0xff]
        %v4307 = vld [vmem:[#allocation11 + $0x7a0] sm:$0xff]
        %v4308 = vld [vmem:[#allocation11 + $0x7a8] sm:$0xff]
        %v4309 = vld [vmem:[#allocation11 + $0x7b0] sm:$0xff]
        %v4310 = vld [vmem:[#allocation11 + $0x7b8] sm:$0xff]
        %v4311 = vld [vmem:[#allocation11 + $0x7c0] sm:$0xff]
        %v4312 = vld [vmem:[#allocation11 + $0x7c8] sm:$0xff]
        %v4313 = vld [vmem:[#allocation11 + $0x7d0] sm:$0xff]
        %v4314 = vld [vmem:[#allocation11 + $0x7d8] sm:$0xff]
        %v4315 = vld [vmem:[#allocation11 + $0x7e0] sm:$0xff]
        %v4316 = vld [vmem:[#allocation11 + $0x7e8] sm:$0xff]
        %v4317 = vld [vmem:[#allocation11 + $0x7f0] sm:$0xff]
        %v4318 = vld [vmem:[#allocation11 + $0x7f8] sm:$0xff]
        %v4319 = vld [vmem:[#allocation11 + $0x800] sm:$0xff]
        %v4320 = vld [vmem:[#allocation11 + $0x808] sm:$0xff]
        %v4321 = vld [vmem:[#allocation11 + $0x810] sm:$0xff]
        %v4322 = vld [vmem:[#allocation11 + $0x818] sm:$0xff]
        %v4323 = vld [vmem:[#allocation11 + $0x820] sm:$0xff]
        %v4324 = vld [vmem:[#allocation11 + $0x828] sm:$0xff]
        %v4325 = vld [vmem:[#allocation11 + $0x830] sm:$0xff]
        %v4326 = vld [vmem:[#allocation11 + $0x838] sm:$0xff]
        %v4327 = vld [vmem:[#allocation11 + $0x840] sm:$0xff]
        %v4328 = vld [vmem:[#allocation11 + $0x848] sm:$0xff]
        %v4329 = vld [vmem:[#allocation11 + $0x850] sm:$0xff]
        %v4330 = vld [vmem:[#allocation11 + $0x858] sm:$0xff]
        %v4331 = vld [vmem:[#allocation11 + $0x860] sm:$0xff]
        %v4332 = vld [vmem:[#allocation11 + $0x868] sm:$0xff]
        %v4333 = vld [vmem:[#allocation11 + $0x870] sm:$0xff]
        %v4334 = vld [vmem:[#allocation11 + $0x878] sm:$0xff]
        %v4335 = vld [vmem:[#allocation11 + $0x880] sm:$0xff]
        %v4336 = vld [vmem:[#allocation11 + $0x888] sm:$0xff]
        %v4337 = vld [vmem:[#allocation11 + $0x890] sm:$0xff]
        %v4338 = vld [vmem:[#allocation11 + $0x898] sm:$0xff]
        %v4339 = vld [vmem:[#allocation11 + $0x8a0] sm:$0xff]
        %v4340 = vld [vmem:[#allocation11 + $0x8a8] sm:$0xff]
        %v4341 = vld [vmem:[#allocation11 + $0x8b0] sm:$0xff]
        %v4342 = vld [vmem:[#allocation11 + $0x8b8] sm:$0xff]
        %v4343 = vld [vmem:[#allocation11 + $0x8c0] sm:$0xff]
        %v4344 = vld [vmem:[#allocation11 + $0x8c8] sm:$0xff]
        %v4345 = vld [vmem:[#allocation11 + $0x8d0] sm:$0xff]
        %v4346 = vld [vmem:[#allocation11 + $0x8d8] sm:$0xff]
        %v4347 = vld [vmem:[#allocation11 + $0x8e0] sm:$0xff]
        %v4348 = vld [vmem:[#allocation11 + $0x8e8] sm:$0xff]
        %v4349 = vld [vmem:[#allocation11 + $0x8f0] sm:$0xff]
        %v4350 = vld [vmem:[#allocation11 + $0x8f8] sm:$0xff]
        %v4351 = vld [vmem:[#allocation12] sm:$0xff]
        %v4352 = vld [vmem:[#allocation12 + $0x8] sm:$0xf]
        %v4355 = vlaneseq
        %v4356 = vshrl.u32 %v4355, 7
        %v4357 = vsub.s32 0, %v4356
        %v4358 = vrot.slane %v4351, %v4357
        %v4359 = vlaneseq
        %v4360 = vshrl.u32 %v4359, 7
        %v4361 = vsub.s32 1, %v4360
        %v4362 = vrot.slane %v4351, %v4361
        %v4363 = vlaneseq
        %v4364 = vshrl.u32 %v4363, 7
        %v4365 = vsub.s32 2, %v4364
        %v4366 = vrot.slane %v4351, %v4365
        %v4367 = vlaneseq
        %v4368 = vshrl.u32 %v4367, 7
        %v4369 = vsub.s32 3, %v4368
        %v4370 = vrot.slane %v4351, %v4369
        %v4371 = vlaneseq
        %v4372 = vshrl.u32 %v4371, 7
        %v4373 = vsub.s32 4, %v4372
        %v4374 = vrot.slane %v4351, %v4373
        %v4375 = vlaneseq
        %v4376 = vshrl.u32 %v4375, 7
        %v4377 = vsub.s32 5, %v4376
        %v4378 = vrot.slane %v4351, %v4377
        %v4379 = vlaneseq
        %v4380 = vshrl.u32 %v4379, 7
        %v4381 = vsub.s32 6, %v4380
        %v4382 = vrot.slane %v4351, %v4381
        %v4383 = vlaneseq
        %v4384 = vshrl.u32 %v4383, 7
        %v4385 = vsub.s32 7, %v4384
        %v4386 = vrot.slane %v4351, %v4385
        %v4387 = vlaneseq
        %v4388 = vshrl.u32 %v4387, 7
        %v4389 = vsub.s32 0, %v4388
        %v4390 = vrot.slane %v4352, %v4389
        %v4391 = vlaneseq
        %v4392 = vshrl.u32 %v4391, 7
        %v4393 = vsub.s32 1, %v4392
        %v4394 = vrot.slane %v4352, %v4393
        %v4395 = vlaneseq
        %v4396 = vshrl.u32 %v4395, 7
        %v4397 = vsub.s32 2, %v4396
        %v4398 = vrot.slane %v4352, %v4397
        %v4399 = vlaneseq
        %v4400 = vshrl.u32 %v4399, 7
        %v4401 = vsub.s32 3, %v4400
        %v4402 = vrot.slane %v4352, %v4401
        %v4703 = vunpack.c.l.b16 %v4063
        %v4704 = vunpack.c.h.b16 %v4063
        %v4705 = vunpack.c.l.b16 %v4064
        %v4706 = vunpack.c.h.b16 %v4064
        %v4707 = vunpack.c.l.b16 %v4065
        %v4708 = vunpack.c.h.b16 %v4065
        %v4709 = vunpack.c.l.b16 %v4066
        %v4710 = vunpack.c.h.b16 %v4066
        %v4711 = vunpack.c.l.b16 %v4067
        %v4712 = vunpack.c.h.b16 %v4067
        %v4713 = vunpack.c.l.b16 %v4068
        %v4714 = vunpack.c.h.b16 %v4068
        %v4715 = vunpack.c.l.b16 %v4069
        %v4716 = vunpack.c.h.b16 %v4069
        %v4717 = vunpack.c.l.b16 %v4070
        %v4718 = vunpack.c.h.b16 %v4070
        %v4719 = vunpack.c.l.b16 %v4071
        %v4720 = vunpack.c.h.b16 %v4071
        %v4721 = vunpack.c.l.b16 %v4072
        %v4722 = vunpack.c.h.b16 %v4072
        %v4723 = vunpack.c.l.b16 %v4073
        %v4724 = vunpack.c.h.b16 %v4073
        %v4725 = vunpack.c.l.b16 %v4074
        %v4726 = vunpack.c.h.b16 %v4074
        %v4727 = vunpack.c.l.b16 %v4075
        %v4728 = vunpack.c.h.b16 %v4075
        %v4729 = vunpack.c.l.b16 %v4076
        %v4730 = vunpack.c.h.b16 %v4076
        %v4731 = vunpack.c.l.b16 %v4077
        %v4732 = vunpack.c.h.b16 %v4077
        %v4733 = vunpack.c.l.b16 %v4078
        %v4734 = vunpack.c.h.b16 %v4078
        %v4735 = vunpack.c.l.b16 %v4079
        %v4736 = vunpack.c.h.b16 %v4079
        %v4737 = vunpack.c.l.b16 %v4080
        %v4738 = vunpack.c.h.b16 %v4080
        %v4739 = vunpack.c.l.b16 %v4081
        %v4740 = vunpack.c.h.b16 %v4081
        %v4741 = vunpack.c.l.b16 %v4082
        %v4742 = vunpack.c.h.b16 %v4082
        %v4743 = vunpack.c.l.b16 %v4083
        %v4744 = vunpack.c.h.b16 %v4083
        %v4745 = vunpack.c.l.b16 %v4084
        %v4746 = vunpack.c.h.b16 %v4084
        %v4747 = vunpack.c.l.b16 %v4085
        %v4748 = vunpack.c.h.b16 %v4085
        %v4749 = vunpack.c.l.b16 %v4086
        %v4750 = vunpack.c.h.b16 %v4086
        %v4751 = vunpack.c.l.b16 %v4087
        %v4752 = vunpack.c.h.b16 %v4087
        %v4753 = vunpack.c.l.b16 %v4088
        %v4754 = vunpack.c.h.b16 %v4088
        %v4755 = vunpack.c.l.b16 %v4089
        %v4756 = vunpack.c.h.b16 %v4089
        %v4757 = vunpack.c.l.b16 %v4090
        %v4758 = vunpack.c.h.b16 %v4090
        %v4759 = vunpack.c.l.b16 %v4091
        %v4760 = vunpack.c.h.b16 %v4091
        %v4761 = vunpack.c.l.b16 %v4092
        %v4762 = vunpack.c.h.b16 %v4092
        %v4763 = vunpack.c.l.b16 %v4093
        %v4764 = vunpack.c.h.b16 %v4093
        %v4765 = vunpack.c.l.b16 %v4094
        %v4766 = vunpack.c.h.b16 %v4094
        %v4767 = vunpack.c.l.b16 %v4095
        %v4768 = vunpack.c.h.b16 %v4095
        %v4769 = vunpack.c.l.b16 %v4096
        %v4770 = vunpack.c.h.b16 %v4096
        %v4771 = vunpack.c.l.b16 %v4097
        %v4772 = vunpack.c.h.b16 %v4097
        %v4773 = vunpack.c.l.b16 %v4098
        %v4774 = vunpack.c.h.b16 %v4098
        %v4775 = vunpack.c.l.b16 %v4099
        %v4776 = vunpack.c.h.b16 %v4099
        %v4777 = vunpack.c.l.b16 %v4100
        %v4778 = vunpack.c.h.b16 %v4100
        %v4779 = vunpack.c.l.b16 %v4101
        %v4780 = vunpack.c.h.b16 %v4101
        %v4781 = vunpack.c.l.b16 %v4102
        %v4782 = vunpack.c.h.b16 %v4102
        %v4783 = vunpack.c.l.b16 %v4103
        %v4784 = vunpack.c.h.b16 %v4103
        %v4785 = vunpack.c.l.b16 %v4104
        %v4786 = vunpack.c.h.b16 %v4104
        %v4787 = vunpack.c.l.b16 %v4105
        %v4788 = vunpack.c.h.b16 %v4105
        %v4789 = vunpack.c.l.b16 %v4106
        %v4790 = vunpack.c.h.b16 %v4106
        %v4791 = vunpack.c.l.b16 %v4107
        %v4792 = vunpack.c.h.b16 %v4107
        %v4793 = vunpack.c.l.b16 %v4108
        %v4794 = vunpack.c.h.b16 %v4108
        %v4795 = vunpack.c.l.b16 %v4109
        %v4796 = vunpack.c.h.b16 %v4109
        %v4797 = vunpack.c.l.b16 %v4110
        %v4798 = vunpack.c.h.b16 %v4110
        %v4799 = vunpack.c.l.b16 %v4111
        %v4800 = vunpack.c.h.b16 %v4111
        %v4801 = vunpack.c.l.b16 %v4112
        %v4802 = vunpack.c.h.b16 %v4112
        %v4803 = vunpack.c.l.b16 %v4113
        %v4804 = vunpack.c.h.b16 %v4113
        %v4805 = vunpack.c.l.b16 %v4114
        %v4806 = vunpack.c.h.b16 %v4114
        %v4807 = vunpack.c.l.b16 %v4115
        %v4808 = vunpack.c.h.b16 %v4115
        %v4809 = vunpack.c.l.b16 %v4116
        %v4810 = vunpack.c.h.b16 %v4116
        %v4811 = vunpack.c.l.b16 %v4117
        %v4812 = vunpack.c.h.b16 %v4117
        %v4813 = vunpack.c.l.b16 %v4118
        %v4814 = vunpack.c.h.b16 %v4118
        %v4815 = vunpack.c.l.b16 %v4119
        %v4816 = vunpack.c.h.b16 %v4119
        %v4817 = vunpack.c.l.b16 %v4120
        %v4818 = vunpack.c.h.b16 %v4120
        %v4819 = vunpack.c.l.b16 %v4121
        %v4820 = vunpack.c.h.b16 %v4121
        %v4821 = vunpack.c.l.b16 %v4122
        %v4822 = vunpack.c.h.b16 %v4122
        %v4823 = vunpack.c.l.b16 %v4123
        %v4824 = vunpack.c.h.b16 %v4123
        %v4825 = vunpack.c.l.b16 %v4124
        %v4826 = vunpack.c.h.b16 %v4124
        %v4827 = vunpack.c.l.b16 %v4125
        %v4828 = vunpack.c.h.b16 %v4125
        %v4829 = vunpack.c.l.b16 %v4126
        %v4830 = vunpack.c.h.b16 %v4126
        %v4831 = vunpack.c.l.b16 %v4127
        %v4832 = vunpack.c.h.b16 %v4127
        %v4833 = vunpack.c.l.b16 %v4128
        %v4834 = vunpack.c.h.b16 %v4128
        %v4835 = vunpack.c.l.b16 %v4129
        %v4836 = vunpack.c.h.b16 %v4129
        %v4837 = vunpack.c.l.b16 %v4130
        %v4838 = vunpack.c.h.b16 %v4130
        %v4839 = vunpack.c.l.b16 %v4131
        %v4840 = vunpack.c.h.b16 %v4131
        %v4841 = vunpack.c.l.b16 %v4132
        %v4842 = vunpack.c.h.b16 %v4132
        %v4843 = vunpack.c.l.b16 %v4133
        %v4844 = vunpack.c.h.b16 %v4133
        %v4845 = vunpack.c.l.b16 %v4134
        %v4846 = vunpack.c.h.b16 %v4134
        %v4847 = vunpack.c.l.b16 %v4135
        %v4848 = vunpack.c.h.b16 %v4135
        %v4849 = vunpack.c.l.b16 %v4136
        %v4850 = vunpack.c.h.b16 %v4136
        %v4851 = vunpack.c.l.b16 %v4137
        %v4852 = vunpack.c.h.b16 %v4137
        %v4853 = vunpack.c.l.b16 %v4138
        %v4854 = vunpack.c.h.b16 %v4138
        %v4855 = vunpack.c.l.b16 %v4139
        %v4856 = vunpack.c.h.b16 %v4139
        %v4857 = vunpack.c.l.b16 %v4140
        %v4858 = vunpack.c.h.b16 %v4140
        %v4859 = vunpack.c.l.b16 %v4141
        %v4860 = vunpack.c.h.b16 %v4141
        %v4861 = vunpack.c.l.b16 %v4142
        %v4862 = vunpack.c.h.b16 %v4142
        %v4863 = vunpack.c.l.b16 %v4143
        %v4864 = vunpack.c.h.b16 %v4143
        %v4865 = vunpack.c.l.b16 %v4144
        %v4866 = vunpack.c.h.b16 %v4144
        %v4867 = vunpack.c.l.b16 %v4145
        %v4868 = vunpack.c.h.b16 %v4145
        %v4869 = vunpack.c.l.b16 %v4146
        %v4870 = vunpack.c.h.b16 %v4146
        %v4871 = vunpack.c.l.b16 %v4147
        %v4872 = vunpack.c.h.b16 %v4147
        %v4873 = vunpack.c.l.b16 %v4148
        %v4874 = vunpack.c.h.b16 %v4148
        %v4875 = vunpack.c.l.b16 %v4149
        %v4876 = vunpack.c.h.b16 %v4149
        %v4877 = vunpack.c.l.b16 %v4150
        %v4878 = vunpack.c.h.b16 %v4150
        %v4879 = vunpack.c.l.b16 %v4151
        %v4880 = vunpack.c.h.b16 %v4151
        %v4881 = vunpack.c.l.b16 %v4152
        %v4882 = vunpack.c.h.b16 %v4152
        %v4883 = vunpack.c.l.b16 %v4153
        %v4884 = vunpack.c.h.b16 %v4153
        %v4885 = vunpack.c.l.b16 %v4154
        %v4886 = vunpack.c.h.b16 %v4154
        %v4887 = vunpack.c.l.b16 %v4155
        %v4888 = vunpack.c.h.b16 %v4155
        %v4889 = vunpack.c.l.b16 %v4156
        %v4890 = vunpack.c.h.b16 %v4156
        %v4891 = vunpack.c.l.b16 %v4157
        %v4892 = vunpack.c.h.b16 %v4157
        %v4893 = vunpack.c.l.b16 %v4158
        %v4894 = vunpack.c.h.b16 %v4158
        %v4895 = vunpack.c.l.b16 %v4159
        %v4896 = vunpack.c.h.b16 %v4159
        %v4897 = vunpack.c.l.b16 %v4160
        %v4898 = vunpack.c.h.b16 %v4160
        %v4899 = vunpack.c.l.b16 %v4161
        %v4900 = vunpack.c.h.b16 %v4161
        %v4901 = vunpack.c.l.b16 %v4162
        %v4902 = vunpack.c.h.b16 %v4162
        %v4903 = vunpack.c.l.b16 %v4163
        %v4904 = vunpack.c.h.b16 %v4163
        %v4905 = vunpack.c.l.b16 %v4164
        %v4906 = vunpack.c.h.b16 %v4164
        %v4907 = vunpack.c.l.b16 %v4165
        %v4908 = vunpack.c.h.b16 %v4165
        %v4909 = vunpack.c.l.b16 %v4166
        %v4910 = vunpack.c.h.b16 %v4166
        %v4911 = vunpack.c.l.b16 %v4167
        %v4912 = vunpack.c.h.b16 %v4167
        %v4913 = vunpack.c.l.b16 %v4168
        %v4914 = vunpack.c.h.b16 %v4168
        %v4915 = vunpack.c.l.b16 %v4169
        %v4916 = vunpack.c.h.b16 %v4169
        %v4917 = vunpack.c.l.b16 %v4170
        %v4918 = vunpack.c.h.b16 %v4170
        %v4919 = vunpack.c.l.b16 %v4171
        %v4920 = vunpack.c.h.b16 %v4171
        %v4921 = vunpack.c.l.b16 %v4172
        %v4922 = vunpack.c.h.b16 %v4172
        %v4923 = vunpack.c.l.b16 %v4173
        %v4924 = vunpack.c.h.b16 %v4173
        %v4925 = vunpack.c.l.b16 %v4174
        %v4926 = vunpack.c.h.b16 %v4174
        %v4927 = vunpack.c.l.b16 %v4175
        %v4928 = vunpack.c.h.b16 %v4175
        %v4929 = vunpack.c.l.b16 %v4176
        %v4930 = vunpack.c.h.b16 %v4176
        %v4931 = vunpack.c.l.b16 %v4177
        %v4932 = vunpack.c.h.b16 %v4177
        %v4933 = vunpack.c.l.b16 %v4178
        %v4934 = vunpack.c.h.b16 %v4178
        %v4935 = vunpack.c.l.b16 %v4179
        %v4936 = vunpack.c.h.b16 %v4179
        %v4937 = vunpack.c.l.b16 %v4180
        %v4938 = vunpack.c.h.b16 %v4180
        %v4939 = vunpack.c.l.b16 %v4181
        %v4940 = vunpack.c.h.b16 %v4181
        %v4941 = vunpack.c.l.b16 %v4182
        %v4942 = vunpack.c.h.b16 %v4182
        %v4943 = vunpack.c.l.b16 %v4183
        %v4944 = vunpack.c.h.b16 %v4183
        %v4945 = vunpack.c.l.b16 %v4184
        %v4946 = vunpack.c.h.b16 %v4184
        %v4947 = vunpack.c.l.b16 %v4185
        %v4948 = vunpack.c.h.b16 %v4185
        %v4949 = vunpack.c.l.b16 %v4186
        %v4950 = vunpack.c.h.b16 %v4186
        %v4951 = vunpack.c.l.b16 %v4187
        %v4952 = vunpack.c.h.b16 %v4187
        %v4953 = vunpack.c.l.b16 %v4188
        %v4954 = vunpack.c.h.b16 %v4188
        %v4955 = vunpack.c.l.b16 %v4189
        %v4956 = vunpack.c.h.b16 %v4189
        %v4957 = vunpack.c.l.b16 %v4190
        %v4958 = vunpack.c.h.b16 %v4190
        %v4959 = vunpack.c.l.b16 %v4191
        %v4960 = vunpack.c.h.b16 %v4191
        %v4961 = vunpack.c.l.b16 %v4192
        %v4962 = vunpack.c.h.b16 %v4192
        %v4963 = vunpack.c.l.b16 %v4193
        %v4964 = vunpack.c.h.b16 %v4193
        %v4965 = vunpack.c.l.b16 %v4194
        %v4966 = vunpack.c.h.b16 %v4194
        %v4967 = vunpack.c.l.b16 %v4195
        %v4968 = vunpack.c.h.b16 %v4195
        %v4969 = vunpack.c.l.b16 %v4196
        %v4970 = vunpack.c.h.b16 %v4196
        %v4971 = vunpack.c.l.b16 %v4197
        %v4972 = vunpack.c.h.b16 %v4197
        %v4973 = vunpack.c.l.b16 %v4198
        %v4974 = vunpack.c.h.b16 %v4198
        %v4975 = vunpack.c.l.b16 %v4199
        %v4976 = vunpack.c.h.b16 %v4199
        %v4977 = vunpack.c.l.b16 %v4200
        %v4978 = vunpack.c.h.b16 %v4200
        %v4979 = vunpack.c.l.b16 %v4201
        %v4980 = vunpack.c.h.b16 %v4201
        %v4981 = vunpack.c.l.b16 %v4202
        %v4982 = vunpack.c.h.b16 %v4202
        %v4983 = vunpack.c.l.b16 %v4203
        %v4984 = vunpack.c.h.b16 %v4203
        %v4985 = vunpack.c.l.b16 %v4204
        %v4986 = vunpack.c.h.b16 %v4204
        %v4987 = vunpack.c.l.b16 %v4205
        %v4988 = vunpack.c.h.b16 %v4205
        %v4989 = vunpack.c.l.b16 %v4206
        %v4990 = vunpack.c.h.b16 %v4206
        %v4991 = vunpack.c.l.b16 %v4207
        %v4992 = vunpack.c.h.b16 %v4207
        %v4993 = vunpack.c.l.b16 %v4208
        %v4994 = vunpack.c.h.b16 %v4208
        %v4995 = vunpack.c.l.b16 %v4209
        %v4996 = vunpack.c.h.b16 %v4209
        %v4997 = vunpack.c.l.b16 %v4210
        %v4998 = vunpack.c.h.b16 %v4210
        %v4999 = vunpack.c.l.b16 %v4211
        %v5000 = vunpack.c.h.b16 %v4211
        %v5001 = vunpack.c.l.b16 %v4212
        %v5002 = vunpack.c.h.b16 %v4212
        %v5003 = vunpack.c.l.b16 %v4213
        %v5004 = vunpack.c.h.b16 %v4213
        %v5005 = vunpack.c.l.b16 %v4214
        %v5006 = vunpack.c.h.b16 %v4214
        %v5007 = vunpack.c.l.b16 %v4215
        %v5008 = vunpack.c.h.b16 %v4215
        %v5009 = vunpack.c.l.b16 %v4216
        %v5010 = vunpack.c.h.b16 %v4216
        %v5011 = vunpack.c.l.b16 %v4217
        %v5012 = vunpack.c.h.b16 %v4217
        %v5013 = vunpack.c.l.b16 %v4218
        %v5014 = vunpack.c.h.b16 %v4218
        %v5015 = vunpack.c.l.b16 %v4219
        %v5016 = vunpack.c.h.b16 %v4219
        %v5017 = vunpack.c.l.b16 %v4220
        %v5018 = vunpack.c.h.b16 %v4220
        %v5019 = vunpack.c.l.b16 %v4221
        %v5020 = vunpack.c.h.b16 %v4221
        %v5021 = vunpack.c.l.b16 %v4222
        %v5022 = vunpack.c.h.b16 %v4222
        %v5023 = vunpack.c.l.b16 %v4223
        %v5024 = vunpack.c.h.b16 %v4223
        %v5025 = vunpack.c.l.b16 %v4224
        %v5026 = vunpack.c.h.b16 %v4224
        %v5027 = vunpack.c.l.b16 %v4225
        %v5028 = vunpack.c.h.b16 %v4225
        %v5029 = vunpack.c.l.b16 %v4226
        %v5030 = vunpack.c.h.b16 %v4226
        %v5031 = vunpack.c.l.b16 %v4227
        %v5032 = vunpack.c.h.b16 %v4227
        %v5033 = vunpack.c.l.b16 %v4228
        %v5034 = vunpack.c.h.b16 %v4228
        %v5035 = vunpack.c.l.b16 %v4229
        %v5036 = vunpack.c.h.b16 %v4229
        %v5037 = vunpack.c.l.b16 %v4230
        %v5038 = vunpack.c.h.b16 %v4230
        %v5039 = vunpack.c.l.b16 %v4231
        %v5040 = vunpack.c.h.b16 %v4231
        %v5041 = vunpack.c.l.b16 %v4232
        %v5042 = vunpack.c.h.b16 %v4232
        %v5043 = vunpack.c.l.b16 %v4233
        %v5044 = vunpack.c.h.b16 %v4233
        %v5045 = vunpack.c.l.b16 %v4234
        %v5046 = vunpack.c.h.b16 %v4234
        %v5047 = vunpack.c.l.b16 %v4235
        %v5048 = vunpack.c.h.b16 %v4235
        %v5049 = vunpack.c.l.b16 %v4236
        %v5050 = vunpack.c.h.b16 %v4236
        %v5051 = vunpack.c.l.b16 %v4237
        %v5052 = vunpack.c.h.b16 %v4237
        %v5053 = vunpack.c.l.b16 %v4238
        %v5054 = vunpack.c.h.b16 %v4238
        %v5055 = vunpack.c.l.b16 %v4239
        %v5056 = vunpack.c.h.b16 %v4239
        %v5057 = vunpack.c.l.b16 %v4240
        %v5058 = vunpack.c.h.b16 %v4240
        %v5059 = vunpack.c.l.b16 %v4241
        %v5060 = vunpack.c.h.b16 %v4241
        %v5061 = vunpack.c.l.b16 %v4242
        %v5062 = vunpack.c.h.b16 %v4242
        %v5063 = vunpack.c.l.b16 %v4243
        %v5064 = vunpack.c.h.b16 %v4243
        %v5065 = vunpack.c.l.b16 %v4244
        %v5066 = vunpack.c.h.b16 %v4244
        %v5067 = vunpack.c.l.b16 %v4245
        %v5068 = vunpack.c.h.b16 %v4245
        %v5069 = vunpack.c.l.b16 %v4246
        %v5070 = vunpack.c.h.b16 %v4246
        %v5071 = vunpack.c.l.b16 %v4247
        %v5072 = vunpack.c.h.b16 %v4247
        %v5073 = vunpack.c.l.b16 %v4248
        %v5074 = vunpack.c.h.b16 %v4248
        %v5075 = vunpack.c.l.b16 %v4249
        %v5076 = vunpack.c.h.b16 %v4249
        %v5077 = vunpack.c.l.b16 %v4250
        %v5078 = vunpack.c.h.b16 %v4250
        %v5079 = vunpack.c.l.b16 %v4251
        %v5080 = vunpack.c.h.b16 %v4251
        %v5081 = vunpack.c.l.b16 %v4252
        %v5082 = vunpack.c.h.b16 %v4252
        %v5083 = vunpack.c.l.b16 %v4253
        %v5084 = vunpack.c.h.b16 %v4253
        %v5085 = vunpack.c.l.b16 %v4254
        %v5086 = vunpack.c.h.b16 %v4254
        %v5087 = vunpack.c.l.b16 %v4255
        %v5088 = vunpack.c.h.b16 %v4255
        %v5089 = vunpack.c.l.b16 %v4256
        %v5090 = vunpack.c.h.b16 %v4256
        %v5091 = vunpack.c.l.b16 %v4257
        %v5092 = vunpack.c.h.b16 %v4257
        %v5093 = vunpack.c.l.b16 %v4258
        %v5094 = vunpack.c.h.b16 %v4258
        %v5095 = vunpack.c.l.b16 %v4259
        %v5096 = vunpack.c.h.b16 %v4259
        %v5097 = vunpack.c.l.b16 %v4260
        %v5098 = vunpack.c.h.b16 %v4260
        %v5099 = vunpack.c.l.b16 %v4261
        %v5100 = vunpack.c.h.b16 %v4261
        %v5101 = vunpack.c.l.b16 %v4262
        %v5102 = vunpack.c.h.b16 %v4262
        %v5103 = vunpack.c.l.b16 %v4263
        %v5104 = vunpack.c.h.b16 %v4263
        %v5105 = vunpack.c.l.b16 %v4264
        %v5106 = vunpack.c.h.b16 %v4264
        %v5107 = vunpack.c.l.b16 %v4265
        %v5108 = vunpack.c.h.b16 %v4265
        %v5109 = vunpack.c.l.b16 %v4266
        %v5110 = vunpack.c.h.b16 %v4266
        %v5111 = vunpack.c.l.b16 %v4267
        %v5112 = vunpack.c.h.b16 %v4267
        %v5113 = vunpack.c.l.b16 %v4268
        %v5114 = vunpack.c.h.b16 %v4268
        %v5115 = vunpack.c.l.b16 %v4269
        %v5116 = vunpack.c.h.b16 %v4269
        %v5117 = vunpack.c.l.b16 %v4270
        %v5118 = vunpack.c.h.b16 %v4270
        %v5119 = vunpack.c.l.b16 %v4271
        %v5120 = vunpack.c.h.b16 %v4271
        %v5121 = vunpack.c.l.b16 %v4272
        %v5122 = vunpack.c.h.b16 %v4272
        %v5123 = vunpack.c.l.b16 %v4273
        %v5124 = vunpack.c.h.b16 %v4273
        %v5125 = vunpack.c.l.b16 %v4274
        %v5126 = vunpack.c.h.b16 %v4274
        %v5127 = vunpack.c.l.b16 %v4275
        %v5128 = vunpack.c.h.b16 %v4275
        %v5129 = vunpack.c.l.b16 %v4276
        %v5130 = vunpack.c.h.b16 %v4276
        %v5131 = vunpack.c.l.b16 %v4277
        %v5132 = vunpack.c.h.b16 %v4277
        %v5133 = vunpack.c.l.b16 %v4278
        %v5134 = vunpack.c.h.b16 %v4278
        %v5135 = vunpack.c.l.b16 %v4279
        %v5136 = vunpack.c.h.b16 %v4279
        %v5137 = vunpack.c.l.b16 %v4280
        %v5138 = vunpack.c.h.b16 %v4280
        %v5139 = vunpack.c.l.b16 %v4281
        %v5140 = vunpack.c.h.b16 %v4281
        %v5141 = vunpack.c.l.b16 %v4282
        %v5142 = vunpack.c.h.b16 %v4282
        %v5143 = vunpack.c.l.b16 %v4283
        %v5144 = vunpack.c.h.b16 %v4283
        %v5145 = vunpack.c.l.b16 %v4284
        %v5146 = vunpack.c.h.b16 %v4284
        %v5147 = vunpack.c.l.b16 %v4285
        %v5148 = vunpack.c.h.b16 %v4285
        %v5149 = vunpack.c.l.b16 %v4286
        %v5150 = vunpack.c.h.b16 %v4286
        %v5151 = vunpack.c.l.b16 %v4287
        %v5152 = vunpack.c.h.b16 %v4287
        %v5153 = vunpack.c.l.b16 %v4288
        %v5154 = vunpack.c.h.b16 %v4288
        %v5155 = vunpack.c.l.b16 %v4289
        %v5156 = vunpack.c.h.b16 %v4289
        %v5157 = vunpack.c.l.b16 %v4290
        %v5158 = vunpack.c.h.b16 %v4290
        %v5159 = vunpack.c.l.b16 %v4291
        %v5160 = vunpack.c.h.b16 %v4291
        %v5161 = vunpack.c.l.b16 %v4292
        %v5162 = vunpack.c.h.b16 %v4292
        %v5163 = vunpack.c.l.b16 %v4293
        %v5164 = vunpack.c.h.b16 %v4293
        %v5165 = vunpack.c.l.b16 %v4294
        %v5166 = vunpack.c.h.b16 %v4294
        %v5167 = vunpack.c.l.b16 %v4295
        %v5168 = vunpack.c.h.b16 %v4295
        %v5169 = vunpack.c.l.b16 %v4296
        %v5170 = vunpack.c.h.b16 %v4296
        %v5171 = vunpack.c.l.b16 %v4297
        %v5172 = vunpack.c.h.b16 %v4297
        %v5173 = vunpack.c.l.b16 %v4298
        %v5174 = vunpack.c.h.b16 %v4298
        %v5175 = vunpack.c.l.b16 %v4299
        %v5176 = vunpack.c.h.b16 %v4299
        %v5177 = vunpack.c.l.b16 %v4300
        %v5178 = vunpack.c.h.b16 %v4300
        %v5179 = vunpack.c.l.b16 %v4301
        %v5180 = vunpack.c.h.b16 %v4301
        %v5181 = vunpack.c.l.b16 %v4302
        %v5182 = vunpack.c.h.b16 %v4302
        %v5183 = vunpack.c.l.b16 %v4303
        %v5184 = vunpack.c.h.b16 %v4303
        %v5185 = vunpack.c.l.b16 %v4304
        %v5186 = vunpack.c.h.b16 %v4304
        %v5187 = vunpack.c.l.b16 %v4305
        %v5188 = vunpack.c.h.b16 %v4305
        %v5189 = vunpack.c.l.b16 %v4306
        %v5190 = vunpack.c.h.b16 %v4306
        %v5191 = vunpack.c.l.b16 %v4307
        %v5192 = vunpack.c.h.b16 %v4307
        %v5193 = vunpack.c.l.b16 %v4308
        %v5194 = vunpack.c.h.b16 %v4308
        %v5195 = vunpack.c.l.b16 %v4309
        %v5196 = vunpack.c.h.b16 %v4309
        %v5197 = vunpack.c.l.b16 %v4310
        %v5198 = vunpack.c.h.b16 %v4310
        %v5199 = vunpack.c.l.b16 %v4311
        %v5200 = vunpack.c.h.b16 %v4311
        %v5201 = vunpack.c.l.b16 %v4312
        %v5202 = vunpack.c.h.b16 %v4312
        %v5203 = vunpack.c.l.b16 %v4313
        %v5204 = vunpack.c.h.b16 %v4313
        %v5205 = vunpack.c.l.b16 %v4314
        %v5206 = vunpack.c.h.b16 %v4314
        %v5207 = vunpack.c.l.b16 %v4315
        %v5208 = vunpack.c.h.b16 %v4315
        %v5209 = vunpack.c.l.b16 %v4316
        %v5210 = vunpack.c.h.b16 %v4316
        %v5211 = vunpack.c.l.b16 %v4317
        %v5212 = vunpack.c.h.b16 %v4317
        %v5213 = vunpack.c.l.b16 %v4318
        %v5214 = vunpack.c.h.b16 %v4318
        %v5215 = vunpack.c.l.b16 %v4319
        %v5216 = vunpack.c.h.b16 %v4319
        %v5217 = vunpack.c.l.b16 %v4320
        %v5218 = vunpack.c.h.b16 %v4320
        %v5219 = vunpack.c.l.b16 %v4321
        %v5220 = vunpack.c.h.b16 %v4321
        %v5221 = vunpack.c.l.b16 %v4322
        %v5222 = vunpack.c.h.b16 %v4322
        %v5223 = vunpack.c.l.b16 %v4323
        %v5224 = vunpack.c.h.b16 %v4323
        %v5225 = vunpack.c.l.b16 %v4324
        %v5226 = vunpack.c.h.b16 %v4324
        %v5227 = vunpack.c.l.b16 %v4325
        %v5228 = vunpack.c.h.b16 %v4325
        %v5229 = vunpack.c.l.b16 %v4326
        %v5230 = vunpack.c.h.b16 %v4326
        %v5231 = vunpack.c.l.b16 %v4327
        %v5232 = vunpack.c.h.b16 %v4327
        %v5233 = vunpack.c.l.b16 %v4328
        %v5234 = vunpack.c.h.b16 %v4328
        %v5235 = vunpack.c.l.b16 %v4329
        %v5236 = vunpack.c.h.b16 %v4329
        %v5237 = vunpack.c.l.b16 %v4330
        %v5238 = vunpack.c.h.b16 %v4330
        %v5239 = vunpack.c.l.b16 %v4331
        %v5240 = vunpack.c.h.b16 %v4331
        %v5241 = vunpack.c.l.b16 %v4332
        %v5242 = vunpack.c.h.b16 %v4332
        %v5243 = vunpack.c.l.b16 %v4333
        %v5244 = vunpack.c.h.b16 %v4333
        %v5245 = vunpack.c.l.b16 %v4334
        %v5246 = vunpack.c.h.b16 %v4334
        %v5247 = vunpack.c.l.b16 %v4335
        %v5248 = vunpack.c.h.b16 %v4335
        %v5249 = vunpack.c.l.b16 %v4336
        %v5250 = vunpack.c.h.b16 %v4336
        %v5251 = vunpack.c.l.b16 %v4337
        %v5252 = vunpack.c.h.b16 %v4337
        %v5253 = vunpack.c.l.b16 %v4338
        %v5254 = vunpack.c.h.b16 %v4338
        %v5255 = vunpack.c.l.b16 %v4339
        %v5256 = vunpack.c.h.b16 %v4339
        %v5257 = vunpack.c.l.b16 %v4340
        %v5258 = vunpack.c.h.b16 %v4340
        %v5259 = vunpack.c.l.b16 %v4341
        %v5260 = vunpack.c.h.b16 %v4341
        %v5261 = vunpack.c.l.b16 %v4342
        %v5262 = vunpack.c.h.b16 %v4342
        %v5263 = vunpack.c.l.b16 %v4343
        %v5264 = vunpack.c.h.b16 %v4343
        %v5265 = vunpack.c.l.b16 %v4344
        %v5266 = vunpack.c.h.b16 %v4344
        %v5267 = vunpack.c.l.b16 %v4345
        %v5268 = vunpack.c.h.b16 %v4345
        %v5269 = vunpack.c.l.b16 %v4346
        %v5270 = vunpack.c.h.b16 %v4346
        %v5271 = vunpack.c.l.b16 %v4347
        %v5272 = vunpack.c.h.b16 %v4347
        %v5273 = vunpack.c.l.b16 %v4348
        %v5274 = vunpack.c.h.b16 %v4348
        %v5275 = vunpack.c.l.b16 %v4349
        %v5276 = vunpack.c.h.b16 %v4349
        %v5277 = vunpack.c.l.b16 %v4350
        %v5278 = vunpack.c.h.b16 %v4350
        %v5279 = vpack.c.b16 %v4715, %v4703
        %v5280 = vpack.c.b16 %v4716, %v4704
        %v5281 = vpack.c.b16 %v4717, %v4705
        %v5282 = vpack.c.b16 %v4718, %v4706
        %v5283 = vpack.c.b16 %v4719, %v4707
        %v5284 = vpack.c.b16 %v4720, %v4708
        %v5285 = vpack.c.b16 %v4721, %v4709
        %v5286 = vpack.c.b16 %v4722, %v4710
        %v5287 = vpack.c.b16 %v4723, %v4711
        %v5288 = vpack.c.b16 %v4724, %v4712
        %v5289 = vpack.c.b16 %v4725, %v4713
        %v5290 = vpack.c.b16 %v4726, %v4714
        %v5291 = vpack.c.b16 %v4739, %v4727
        %v5292 = vpack.c.b16 %v4740, %v4728
        %v5293 = vpack.c.b16 %v4741, %v4729
        %v5294 = vpack.c.b16 %v4742, %v4730
        %v5295 = vpack.c.b16 %v4743, %v4731
        %v5296 = vpack.c.b16 %v4744, %v4732
        %v5297 = vpack.c.b16 %v4745, %v4733
        %v5298 = vpack.c.b16 %v4746, %v4734
        %v5299 = vpack.c.b16 %v4747, %v4735
        %v5300 = vpack.c.b16 %v4748, %v4736
        %v5301 = vpack.c.b16 %v4749, %v4737
        %v5302 = vpack.c.b16 %v4750, %v4738
        %v5303 = vpack.c.b16 %v4763, %v4751
        %v5304 = vpack.c.b16 %v4764, %v4752
        %v5305 = vpack.c.b16 %v4765, %v4753
        %v5306 = vpack.c.b16 %v4766, %v4754
        %v5307 = vpack.c.b16 %v4767, %v4755
        %v5308 = vpack.c.b16 %v4768, %v4756
        %v5309 = vpack.c.b16 %v4769, %v4757
        %v5310 = vpack.c.b16 %v4770, %v4758
        %v5311 = vpack.c.b16 %v4771, %v4759
        %v5312 = vpack.c.b16 %v4772, %v4760
        %v5313 = vpack.c.b16 %v4773, %v4761
        %v5314 = vpack.c.b16 %v4774, %v4762
        %v5315 = vpack.c.b16 %v4787, %v4775
        %v5316 = vpack.c.b16 %v4788, %v4776
        %v5317 = vpack.c.b16 %v4789, %v4777
        %v5318 = vpack.c.b16 %v4790, %v4778
        %v5319 = vpack.c.b16 %v4791, %v4779
        %v5320 = vpack.c.b16 %v4792, %v4780
        %v5321 = vpack.c.b16 %v4793, %v4781
        %v5322 = vpack.c.b16 %v4794, %v4782
        %v5323 = vpack.c.b16 %v4795, %v4783
        %v5324 = vpack.c.b16 %v4796, %v4784
        %v5325 = vpack.c.b16 %v4797, %v4785
        %v5326 = vpack.c.b16 %v4798, %v4786
        %v5327 = vpack.c.b16 %v4811, %v4799
        %v5328 = vpack.c.b16 %v4812, %v4800
        %v5329 = vpack.c.b16 %v4813, %v4801
        %v5330 = vpack.c.b16 %v4814, %v4802
        %v5331 = vpack.c.b16 %v4815, %v4803
        %v5332 = vpack.c.b16 %v4816, %v4804
        %v5333 = vpack.c.b16 %v4817, %v4805
        %v5334 = vpack.c.b16 %v4818, %v4806
        %v5335 = vpack.c.b16 %v4819, %v4807
        %v5336 = vpack.c.b16 %v4820, %v4808
        %v5337 = vpack.c.b16 %v4821, %v4809
        %v5338 = vpack.c.b16 %v4822, %v4810
        %v5339 = vpack.c.b16 %v4835, %v4823
        %v5340 = vpack.c.b16 %v4836, %v4824
        %v5341 = vpack.c.b16 %v4837, %v4825
        %v5342 = vpack.c.b16 %v4838, %v4826
        %v5343 = vpack.c.b16 %v4839, %v4827
        %v5344 = vpack.c.b16 %v4840, %v4828
        %v5345 = vpack.c.b16 %v4841, %v4829
        %v5346 = vpack.c.b16 %v4842, %v4830
        %v5347 = vpack.c.b16 %v4843, %v4831
        %v5348 = vpack.c.b16 %v4844, %v4832
        %v5349 = vpack.c.b16 %v4845, %v4833
        %v5350 = vpack.c.b16 %v4846, %v4834
        %v5351 = vpack.c.b16 %v4859, %v4847
        %v5352 = vpack.c.b16 %v4860, %v4848
        %v5353 = vpack.c.b16 %v4861, %v4849
        %v5354 = vpack.c.b16 %v4862, %v4850
        %v5355 = vpack.c.b16 %v4863, %v4851
        %v5356 = vpack.c.b16 %v4864, %v4852
        %v5357 = vpack.c.b16 %v4865, %v4853
        %v5358 = vpack.c.b16 %v4866, %v4854
        %v5359 = vpack.c.b16 %v4867, %v4855
        %v5360 = vpack.c.b16 %v4868, %v4856
        %v5361 = vpack.c.b16 %v4869, %v4857
        %v5362 = vpack.c.b16 %v4870, %v4858
        %v5363 = vpack.c.b16 %v4883, %v4871
        %v5364 = vpack.c.b16 %v4884, %v4872
        %v5365 = vpack.c.b16 %v4885, %v4873
        %v5366 = vpack.c.b16 %v4886, %v4874
        %v5367 = vpack.c.b16 %v4887, %v4875
        %v5368 = vpack.c.b16 %v4888, %v4876
        %v5369 = vpack.c.b16 %v4889, %v4877
        %v5370 = vpack.c.b16 %v4890, %v4878
        %v5371 = vpack.c.b16 %v4891, %v4879
        %v5372 = vpack.c.b16 %v4892, %v4880
        %v5373 = vpack.c.b16 %v4893, %v4881
        %v5374 = vpack.c.b16 %v4894, %v4882
        %v5375 = vpack.c.b16 %v4907, %v4895
        %v5376 = vpack.c.b16 %v4908, %v4896
        %v5377 = vpack.c.b16 %v4909, %v4897
        %v5378 = vpack.c.b16 %v4910, %v4898
        %v5379 = vpack.c.b16 %v4911, %v4899
        %v5380 = vpack.c.b16 %v4912, %v4900
        %v5381 = vpack.c.b16 %v4913, %v4901
        %v5382 = vpack.c.b16 %v4914, %v4902
        %v5383 = vpack.c.b16 %v4915, %v4903
        %v5384 = vpack.c.b16 %v4916, %v4904
        %v5385 = vpack.c.b16 %v4917, %v4905
        %v5386 = vpack.c.b16 %v4918, %v4906
        %v5387 = vpack.c.b16 %v4931, %v4919
        %v5388 = vpack.c.b16 %v4932, %v4920
        %v5389 = vpack.c.b16 %v4933, %v4921
        %v5390 = vpack.c.b16 %v4934, %v4922
        %v5391 = vpack.c.b16 %v4935, %v4923
        %v5392 = vpack.c.b16 %v4936, %v4924
        %v5393 = vpack.c.b16 %v4937, %v4925
        %v5394 = vpack.c.b16 %v4938, %v4926
        %v5395 = vpack.c.b16 %v4939, %v4927
        %v5396 = vpack.c.b16 %v4940, %v4928
        %v5397 = vpack.c.b16 %v4941, %v4929
        %v5398 = vpack.c.b16 %v4942, %v4930
        %v5399 = vpack.c.b16 %v4955, %v4943
        %v5400 = vpack.c.b16 %v4956, %v4944
        %v5401 = vpack.c.b16 %v4957, %v4945
        %v5402 = vpack.c.b16 %v4958, %v4946
        %v5403 = vpack.c.b16 %v4959, %v4947
        %v5404 = vpack.c.b16 %v4960, %v4948
        %v5405 = vpack.c.b16 %v4961, %v4949
        %v5406 = vpack.c.b16 %v4962, %v4950
        %v5407 = vpack.c.b16 %v4963, %v4951
        %v5408 = vpack.c.b16 %v4964, %v4952
        %v5409 = vpack.c.b16 %v4965, %v4953
        %v5410 = vpack.c.b16 %v4966, %v4954
        %v5411 = vpack.c.b16 %v4979, %v4967
        %v5412 = vpack.c.b16 %v4980, %v4968
        %v5413 = vpack.c.b16 %v4981, %v4969
        %v5414 = vpack.c.b16 %v4982, %v4970
        %v5415 = vpack.c.b16 %v4983, %v4971
        %v5416 = vpack.c.b16 %v4984, %v4972
        %v5417 = vpack.c.b16 %v4985, %v4973
        %v5418 = vpack.c.b16 %v4986, %v4974
        %v5419 = vpack.c.b16 %v4987, %v4975
        %v5420 = vpack.c.b16 %v4988, %v4976
        %v5421 = vpack.c.b16 %v4989, %v4977
        %v5422 = vpack.c.b16 %v4990, %v4978
        %v5423 = vpack.c.b16 %v5003, %v4991
        %v5424 = vpack.c.b16 %v5004, %v4992
        %v5425 = vpack.c.b16 %v5005, %v4993
        %v5426 = vpack.c.b16 %v5006, %v4994
        %v5427 = vpack.c.b16 %v5007, %v4995
        %v5428 = vpack.c.b16 %v5008, %v4996
        %v5429 = vpack.c.b16 %v5009, %v4997
        %v5430 = vpack.c.b16 %v5010, %v4998
        %v5431 = vpack.c.b16 %v5011, %v4999
        %v5432 = vpack.c.b16 %v5012, %v5000
        %v5433 = vpack.c.b16 %v5013, %v5001
        %v5434 = vpack.c.b16 %v5014, %v5002
        %v5435 = vpack.c.b16 %v5027, %v5015
        %v5436 = vpack.c.b16 %v5028, %v5016
        %v5437 = vpack.c.b16 %v5029, %v5017
        %v5438 = vpack.c.b16 %v5030, %v5018
        %v5439 = vpack.c.b16 %v5031, %v5019
        %v5440 = vpack.c.b16 %v5032, %v5020
        %v5441 = vpack.c.b16 %v5033, %v5021
        %v5442 = vpack.c.b16 %v5034, %v5022
        %v5443 = vpack.c.b16 %v5035, %v5023
        %v5444 = vpack.c.b16 %v5036, %v5024
        %v5445 = vpack.c.b16 %v5037, %v5025
        %v5446 = vpack.c.b16 %v5038, %v5026
        %v5447 = vpack.c.b16 %v5051, %v5039
        %v5448 = vpack.c.b16 %v5052, %v5040
        %v5449 = vpack.c.b16 %v5053, %v5041
        %v5450 = vpack.c.b16 %v5054, %v5042
        %v5451 = vpack.c.b16 %v5055, %v5043
        %v5452 = vpack.c.b16 %v5056, %v5044
        %v5453 = vpack.c.b16 %v5057, %v5045
        %v5454 = vpack.c.b16 %v5058, %v5046
        %v5455 = vpack.c.b16 %v5059, %v5047
        %v5456 = vpack.c.b16 %v5060, %v5048
        %v5457 = vpack.c.b16 %v5061, %v5049
        %v5458 = vpack.c.b16 %v5062, %v5050
        %v5459 = vpack.c.b16 %v5075, %v5063
        %v5460 = vpack.c.b16 %v5076, %v5064
        %v5461 = vpack.c.b16 %v5077, %v5065
        %v5462 = vpack.c.b16 %v5078, %v5066
        %v5463 = vpack.c.b16 %v5079, %v5067
        %v5464 = vpack.c.b16 %v5080, %v5068
        %v5465 = vpack.c.b16 %v5081, %v5069
        %v5466 = vpack.c.b16 %v5082, %v5070
        %v5467 = vpack.c.b16 %v5083, %v5071
        %v5468 = vpack.c.b16 %v5084, %v5072
        %v5469 = vpack.c.b16 %v5085, %v5073
        %v5470 = vpack.c.b16 %v5086, %v5074
        %v5471 = vpack.c.b16 %v5099, %v5087
        %v5472 = vpack.c.b16 %v5100, %v5088
        %v5473 = vpack.c.b16 %v5101, %v5089
        %v5474 = vpack.c.b16 %v5102, %v5090
        %v5475 = vpack.c.b16 %v5103, %v5091
        %v5476 = vpack.c.b16 %v5104, %v5092
        %v5477 = vpack.c.b16 %v5105, %v5093
        %v5478 = vpack.c.b16 %v5106, %v5094
        %v5479 = vpack.c.b16 %v5107, %v5095
        %v5480 = vpack.c.b16 %v5108, %v5096
        %v5481 = vpack.c.b16 %v5109, %v5097
        %v5482 = vpack.c.b16 %v5110, %v5098
        %v5483 = vpack.c.b16 %v5123, %v5111
        %v5484 = vpack.c.b16 %v5124, %v5112
        %v5485 = vpack.c.b16 %v5125, %v5113
        %v5486 = vpack.c.b16 %v5126, %v5114
        %v5487 = vpack.c.b16 %v5127, %v5115
        %v5488 = vpack.c.b16 %v5128, %v5116
        %v5489 = vpack.c.b16 %v5129, %v5117
        %v5490 = vpack.c.b16 %v5130, %v5118
        %v5491 = vpack.c.b16 %v5131, %v5119
        %v5492 = vpack.c.b16 %v5132, %v5120
        %v5493 = vpack.c.b16 %v5133, %v5121
        %v5494 = vpack.c.b16 %v5134, %v5122
        %v5495 = vpack.c.b16 %v5147, %v5135
        %v5496 = vpack.c.b16 %v5148, %v5136
        %v5497 = vpack.c.b16 %v5149, %v5137
        %v5498 = vpack.c.b16 %v5150, %v5138
        %v5499 = vpack.c.b16 %v5151, %v5139
        %v5500 = vpack.c.b16 %v5152, %v5140
        %v5501 = vpack.c.b16 %v5153, %v5141
        %v5502 = vpack.c.b16 %v5154, %v5142
        %v5503 = vpack.c.b16 %v5155, %v5143
        %v5504 = vpack.c.b16 %v5156, %v5144
        %v5505 = vpack.c.b16 %v5157, %v5145
        %v5506 = vpack.c.b16 %v5158, %v5146
        %v5507 = vpack.c.b16 %v5171, %v5159
        %v5508 = vpack.c.b16 %v5172, %v5160
        %v5509 = vpack.c.b16 %v5173, %v5161
        %v5510 = vpack.c.b16 %v5174, %v5162
        %v5511 = vpack.c.b16 %v5175, %v5163
        %v5512 = vpack.c.b16 %v5176, %v5164
        %v5513 = vpack.c.b16 %v5177, %v5165
        %v5514 = vpack.c.b16 %v5178, %v5166
        %v5515 = vpack.c.b16 %v5179, %v5167
        %v5516 = vpack.c.b16 %v5180, %v5168
        %v5517 = vpack.c.b16 %v5181, %v5169
        %v5518 = vpack.c.b16 %v5182, %v5170
        %v5519 = vpack.c.b16 %v5195, %v5183
        %v5520 = vpack.c.b16 %v5196, %v5184
        %v5521 = vpack.c.b16 %v5197, %v5185
        %v5522 = vpack.c.b16 %v5198, %v5186
        %v5523 = vpack.c.b16 %v5199, %v5187
        %v5524 = vpack.c.b16 %v5200, %v5188
        %v5525 = vpack.c.b16 %v5201, %v5189
        %v5526 = vpack.c.b16 %v5202, %v5190
        %v5527 = vpack.c.b16 %v5203, %v5191
        %v5528 = vpack.c.b16 %v5204, %v5192
        %v5529 = vpack.c.b16 %v5205, %v5193
        %v5530 = vpack.c.b16 %v5206, %v5194
        %v5531 = vpack.c.b16 %v5219, %v5207
        %v5532 = vpack.c.b16 %v5220, %v5208
        %v5533 = vpack.c.b16 %v5221, %v5209
        %v5534 = vpack.c.b16 %v5222, %v5210
        %v5535 = vpack.c.b16 %v5223, %v5211
        %v5536 = vpack.c.b16 %v5224, %v5212
        %v5537 = vpack.c.b16 %v5225, %v5213
        %v5538 = vpack.c.b16 %v5226, %v5214
        %v5539 = vpack.c.b16 %v5227, %v5215
        %v5540 = vpack.c.b16 %v5228, %v5216
        %v5541 = vpack.c.b16 %v5229, %v5217
        %v5542 = vpack.c.b16 %v5230, %v5218
        %v5543 = vpack.c.b16 %v5243, %v5231
        %v5544 = vpack.c.b16 %v5244, %v5232
        %v5545 = vpack.c.b16 %v5245, %v5233
        %v5546 = vpack.c.b16 %v5246, %v5234
        %v5547 = vpack.c.b16 %v5247, %v5235
        %v5548 = vpack.c.b16 %v5248, %v5236
        %v5549 = vpack.c.b16 %v5249, %v5237
        %v5550 = vpack.c.b16 %v5250, %v5238
        %v5551 = vpack.c.b16 %v5251, %v5239
        %v5552 = vpack.c.b16 %v5252, %v5240
        %v5553 = vpack.c.b16 %v5253, %v5241
        %v5554 = vpack.c.b16 %v5254, %v5242
        %v5555 = vpack.c.b16 %v5267, %v5255
        %v5556 = vpack.c.b16 %v5268, %v5256
        %v5557 = vpack.c.b16 %v5269, %v5257
        %v5558 = vpack.c.b16 %v5270, %v5258
        %v5559 = vpack.c.b16 %v5271, %v5259
        %v5560 = vpack.c.b16 %v5272, %v5260
        %v5561 = vpack.c.b16 %v5273, %v5261
        %v5562 = vpack.c.b16 %v5274, %v5262
        %v5563 = vpack.c.b16 %v5275, %v5263
        %v5564 = vpack.c.b16 %v5276, %v5264
        %v5565 = vpack.c.b16 %v5277, %v5265
        %v5566 = vpack.c.b16 %v5278, %v5266
        %5855 = vmatprep.subr.bf16.mxu0 %v5364
        %5856 = vmatpush1.bf16.msra.mxu0 %v5363
        %5857 = vmatprep.subr.bf16.mxu0 %v5352
        %5858 = vmatpush1.bf16.msra.mxu0 %v5351
        %5859 = vmatprep.subr.bf16.mxu0 %v5340
        %5860 = vmatpush1.bf16.msra.mxu0 %v5339
        %5861 = vmatprep.subr.bf16.mxu0 %v5328
        %5862 = vmatpush1.bf16.msra.mxu0 %v5327
        %5863 = vmatprep.subr.bf16.mxu0 %v5316
        %5864 = vmatpush1.bf16.msra.mxu0 %v5315
        %5865 = vmatprep.subr.bf16.mxu0 %v5304
        %5866 = vmatpush1.bf16.msra.mxu0 %v5303
        %5867 = vmatprep.subr.bf16.mxu0 %v5292
        %5868 = vmatpush1.bf16.msra.mxu0 %v5291
        %5869 = vmatprep.subr.bf16.mxu0 %v5280
        %5870 = vmatpush1.bf16.msra.mxu0 %v5279
        %5871 = vmatprep.subr.bf16.mxu0 %v5460
        %5872 = vmatpush2.bf16.msra.mxu0 %v5459
        %5873 = vmatprep.subr.bf16.mxu0 %v5448
        %5874 = vmatpush2.bf16.msra.mxu0 %v5447
        %5875 = vmatprep.subr.bf16.mxu0 %v5436
        %5876 = vmatpush2.bf16.msra.mxu0 %v5435
        %5877 = vmatprep.subr.bf16.mxu0 %v5424
        %5878 = vmatpush2.bf16.msra.mxu0 %v5423
        %5879 = vmatprep.subr.bf16.mxu0 %v5412
        %5880 = vmatpush2.bf16.msra.mxu0 %v5411
        %5881 = vmatprep.subr.bf16.mxu0 %v5400
        %5882 = vmatpush2.bf16.msra.mxu0 %v5399
        %5883 = vmatprep.subr.bf16.mxu0 %v5388
        %5884 = vmatpush2.bf16.msra.mxu0 %v5387
        %5885 = vmatprep.subr.bf16.mxu0 %v5376
        %5886 = vmatpush2.bf16.msra.mxu0 %v5375
        %5887 = vmatprep.mubr.bf16.mxu0 %v4061
        %5888 = vmatmul.mubr.bf16.gmra.mxu0 %v4060
        %v5889 = vpop.f32.mrf.mxu0
        %v5890 = vadd.f32 %v4358, %v5889
        %v5891 = vpop.f32.mrf.mxu0
        %v5892 = vadd.f32 %v4362, %v5891
        %v5893 = vpop.f32.mrf.mxu0
        %v5894 = vadd.f32 %v4358, %v5893
        %v5895 = vpop.f32.mrf.mxu0
        %v5896 = vadd.f32 %v4362, %v5895
        %5897 = vdwg.mxu0
        %5898 = vmatprep.subr.bf16.mxu0 %v5556
        %5899 = vmatpush1.bf16.msra.mxu0 %v5555
        %5900 = vmatprep.subr.bf16.mxu0 %v5544
        %5901 = vmatpush1.bf16.msra.mxu0 %v5543
        %5902 = vmatprep.subr.bf16.mxu0 %v5532
        %5903 = vmatpush1.bf16.msra.mxu0 %v5531
        %5904 = vmatprep.subr.bf16.mxu0 %v5520
        %5905 = vmatpush1.bf16.msra.mxu0 %v5519
        %5906 = vmatprep.subr.bf16.mxu0 %v5508
        %5907 = vmatpush1.bf16.msra.mxu0 %v5507
        %5908 = vmatprep.subr.bf16.mxu0 %v5496
        %5909 = vmatpush1.bf16.msra.mxu0 %v5495
        %5910 = vmatprep.subr.bf16.mxu0 %v5484
        %5911 = vmatpush1.bf16.msra.mxu0 %v5483
        %5912 = vmatprep.subr.bf16.mxu0 %v5472
        %5913 = vmatpush1.bf16.msra.mxu0 %v5471
        %5914 = vmatprep.subr.bf16.mxu0 0
        %5915 = vmatpush2.bf16.msra.mxu0 0
        %5916 = vmatprep.subr.bf16.mxu0 0
        %5917 = vmatpush2.bf16.msra.mxu0 0
        %5918 = vmatprep.subr.bf16.mxu0 0
        %5919 = vmatpush2.bf16.msra.mxu0 0
        %5920 = vmatprep.subr.bf16.mxu0 0
        %5921 = vmatpush2.bf16.msra.mxu0 0
        %5922 = vmatprep.subr.bf16.mxu0 0
        %5923 = vmatpush2.bf16.msra.mxu0 0
        %5924 = vmatprep.subr.bf16.mxu0 0
        %5925 = vmatpush2.bf16.msra.mxu0 0
        %5926 = vmatprep.subr.bf16.mxu0 0
        %5927 = vmatpush2.bf16.msra.mxu0 0
        %5928 = vmatprep.subr.bf16.mxu0 0
        %5929 = vmatpush2.bf16.msra.mxu0 0
        %5930 = vmatprep.mubr.bf16.mxu0 0
        %5931 = vmatmul.mubr.bf16.gmra.mxu0 %v4062
        %v5932 = vpop.f32.mrf.mxu0
        %v5933 = vadd.f32 %v5890, %v5932
        %v5934 = vpop.f32.mrf.mxu0
        %v5935 = vadd.f32 %v5892, %v5934
        %v5936 = vpop.f32.mrf.mxu0
        %v5937 = vadd.f32 %v5894, %v5936
        %v5938 = vpop.f32.mrf.mxu0
        %v5939 = vadd.f32 %v5896, %v5938
        %5940 = vdwg.mxu0
        %5941 = vmatprep.subr.bf16.mxu0 %v5366
        %5942 = vmatpush1.bf16.msra.mxu0 %v5365
        %5943 = vmatprep.subr.bf16.mxu0 %v5354
        %5944 = vmatpush1.bf16.msra.mxu0 %v5353
        %5945 = vmatprep.subr.bf16.mxu0 %v5342
        %5946 = vmatpush1.bf16.msra.mxu0 %v5341
        %5947 = vmatprep.subr.bf16.mxu0 %v5330
        %5948 = vmatpush1.bf16.msra.mxu0 %v5329
        %5949 = vmatprep.subr.bf16.mxu0 %v5318
        %5950 = vmatpush1.bf16.msra.mxu0 %v5317
        %5951 = vmatprep.subr.bf16.mxu0 %v5306
        %5952 = vmatpush1.bf16.msra.mxu0 %v5305
        %5953 = vmatprep.subr.bf16.mxu0 %v5294
        %5954 = vmatpush1.bf16.msra.mxu0 %v5293
        %5955 = vmatprep.subr.bf16.mxu0 %v5282
        %5956 = vmatpush1.bf16.msra.mxu0 %v5281
        %5957 = vmatprep.subr.bf16.mxu0 %v5462
        %5958 = vmatpush2.bf16.msra.mxu0 %v5461
        %5959 = vmatprep.subr.bf16.mxu0 %v5450
        %5960 = vmatpush2.bf16.msra.mxu0 %v5449
        %5961 = vmatprep.subr.bf16.mxu0 %v5438
        %5962 = vmatpush2.bf16.msra.mxu0 %v5437
        %5963 = vmatprep.subr.bf16.mxu0 %v5426
        %5964 = vmatpush2.bf16.msra.mxu0 %v5425
        %5965 = vmatprep.subr.bf16.mxu0 %v5414
        %5966 = vmatpush2.bf16.msra.mxu0 %v5413
        %5967 = vmatprep.subr.bf16.mxu0 %v5402
        %5968 = vmatpush2.bf16.msra.mxu0 %v5401
        %5969 = vmatprep.subr.bf16.mxu0 %v5390
        %5970 = vmatpush2.bf16.msra.mxu0 %v5389
        %5971 = vmatprep.subr.bf16.mxu0 %v5378
        %5972 = vmatpush2.bf16.msra.mxu0 %v5377
        %5973 = vmatprep.mubr.bf16.mxu0 %v4061
        %5974 = vmatmul.mubr.bf16.gmra.mxu0 %v4060
        %v5975 = vpop.f32.mrf.mxu0
        %v5976 = vadd.f32 %v4366, %v5975
        %v5977 = vpop.f32.mrf.mxu0
        %v5978 = vadd.f32 %v4370, %v5977
        %v5979 = vpop.f32.mrf.mxu0
        %v5980 = vadd.f32 %v4366, %v5979
        %v5981 = vpop.f32.mrf.mxu0
        %v5982 = vadd.f32 %v4370, %v5981
        %5983 = vdwg.mxu0
        %5984 = vmatprep.subr.bf16.mxu0 %v5558
        %5985 = vmatpush1.bf16.msra.mxu0 %v5557
        %5986 = vmatprep.subr.bf16.mxu0 %v5546
        %5987 = vmatpush1.bf16.msra.mxu0 %v5545
        %5988 = vmatprep.subr.bf16.mxu0 %v5534
        %5989 = vmatpush1.bf16.msra.mxu0 %v5533
        %5990 = vmatprep.subr.bf16.mxu0 %v5522
        %5991 = vmatpush1.bf16.msra.mxu0 %v5521
        %5992 = vmatprep.subr.bf16.mxu0 %v5510
        %5993 = vmatpush1.bf16.msra.mxu0 %v5509
        %5994 = vmatprep.subr.bf16.mxu0 %v5498
        %5995 = vmatpush1.bf16.msra.mxu0 %v5497
        %5996 = vmatprep.subr.bf16.mxu0 %v5486
        %5997 = vmatpush1.bf16.msra.mxu0 %v5485
        %5998 = vmatprep.subr.bf16.mxu0 %v5474
        %5999 = vmatpush1.bf16.msra.mxu0 %v5473
        %6000 = vmatprep.subr.bf16.mxu0 0
        %6001 = vmatpush2.bf16.msra.mxu0 0
        %6002 = vmatprep.subr.bf16.mxu0 0
        %6003 = vmatpush2.bf16.msra.mxu0 0
        %6004 = vmatprep.subr.bf16.mxu0 0
        %6005 = vmatpush2.bf16.msra.mxu0 0
        %6006 = vmatprep.subr.bf16.mxu0 0
        %6007 = vmatpush2.bf16.msra.mxu0 0
        %6008 = vmatprep.subr.bf16.mxu0 0
        %6009 = vmatpush2.bf16.msra.mxu0 0
        %6010 = vmatprep.subr.bf16.mxu0 0
        %6011 = vmatpush2.bf16.msra.mxu0 0
        %6012 = vmatprep.subr.bf16.mxu0 0
        %6013 = vmatpush2.bf16.msra.mxu0 0
        %6014 = vmatprep.subr.bf16.mxu0 0
        %6015 = vmatpush2.bf16.msra.mxu0 0
        %6016 = vmatprep.mubr.bf16.mxu0 0
        %6017 = vmatmul.mubr.bf16.gmra.mxu0 %v4062
        %v6018 = vpop.f32.mrf.mxu0
        %v6019 = vadd.f32 %v5976, %v6018
        %v6020 = vpop.f32.mrf.mxu0
        %v6021 = vadd.f32 %v5978, %v6020
        %v6022 = vpop.f32.mrf.mxu0
        %v6023 = vadd.f32 %v5980, %v6022
        %v6024 = vpop.f32.mrf.mxu0
        %v6025 = vadd.f32 %v5982, %v6024
        %6026 = vdwg.mxu0
        %6027 = vmatprep.subr.bf16.mxu0 %v5368
        %6028 = vmatpush1.bf16.msra.mxu0 %v5367
        %6029 = vmatprep.subr.bf16.mxu0 %v5356
        %6030 = vmatpush1.bf16.msra.mxu0 %v5355
        %6031 = vmatprep.subr.bf16.mxu0 %v5344
        %6032 = vmatpush1.bf16.msra.mxu0 %v5343
        %6033 = vmatprep.subr.bf16.mxu0 %v5332
        %6034 = vmatpush1.bf16.msra.mxu0 %v5331
        %6035 = vmatprep.subr.bf16.mxu0 %v5320
        %6036 = vmatpush1.bf16.msra.mxu0 %v5319
        %6037 = vmatprep.subr.bf16.mxu0 %v5308
        %6038 = vmatpush1.bf16.msra.mxu0 %v5307
        %6039 = vmatprep.subr.bf16.mxu0 %v5296
        %6040 = vmatpush1.bf16.msra.mxu0 %v5295
        %6041 = vmatprep.subr.bf16.mxu0 %v5284
        %6042 = vmatpush1.bf16.msra.mxu0 %v5283
        %6043 = vmatprep.subr.bf16.mxu0 %v5464
        %6044 = vmatpush2.bf16.msra.mxu0 %v5463
        %6045 = vmatprep.subr.bf16.mxu0 %v5452
        %6046 = vmatpush2.bf16.msra.mxu0 %v5451
        %6047 = vmatprep.subr.bf16.mxu0 %v5440
        %6048 = vmatpush2.bf16.msra.mxu0 %v5439
        %6049 = vmatprep.subr.bf16.mxu0 %v5428
        %6050 = vmatpush2.bf16.msra.mxu0 %v5427
        %6051 = vmatprep.subr.bf16.mxu0 %v5416
        %6052 = vmatpush2.bf16.msra.mxu0 %v5415
        %6053 = vmatprep.subr.bf16.mxu0 %v5404
        %6054 = vmatpush2.bf16.msra.mxu0 %v5403
        %6055 = vmatprep.subr.bf16.mxu0 %v5392
        %6056 = vmatpush2.bf16.msra.mxu0 %v5391
        %6057 = vmatprep.subr.bf16.mxu0 %v5380
        %6058 = vmatpush2.bf16.msra.mxu0 %v5379
        %6059 = vmatprep.mubr.bf16.mxu0 %v4061
        %6060 = vmatmul.mubr.bf16.gmra.mxu0 %v4060
        %v6061 = vpop.f32.mrf.mxu0
        %v6062 = vadd.f32 %v4374, %v6061
        %v6063 = vpop.f32.mrf.mxu0
        %v6064 = vadd.f32 %v4378, %v6063
        %v6065 = vpop.f32.mrf.mxu0
        %v6066 = vadd.f32 %v4374, %v6065
        %v6067 = vpop.f32.mrf.mxu0
        %v6068 = vadd.f32 %v4378, %v6067
        %6069 = vdwg.mxu0
        %6070 = vmatprep.subr.bf16.mxu0 %v5560
        %6071 = vmatpush1.bf16.msra.mxu0 %v5559
        %6072 = vmatprep.subr.bf16.mxu0 %v5548
        %6073 = vmatpush1.bf16.msra.mxu0 %v5547
        %6074 = vmatprep.subr.bf16.mxu0 %v5536
        %6075 = vmatpush1.bf16.msra.mxu0 %v5535
        %6076 = vmatprep.subr.bf16.mxu0 %v5524
        %6077 = vmatpush1.bf16.msra.mxu0 %v5523
        %6078 = vmatprep.subr.bf16.mxu0 %v5512
        %6079 = vmatpush1.bf16.msra.mxu0 %v5511
        %6080 = vmatprep.subr.bf16.mxu0 %v5500
        %6081 = vmatpush1.bf16.msra.mxu0 %v5499
        %6082 = vmatprep.subr.bf16.mxu0 %v5488
        %6083 = vmatpush1.bf16.msra.mxu0 %v5487
        %6084 = vmatprep.subr.bf16.mxu0 %v5476
        %6085 = vmatpush1.bf16.msra.mxu0 %v5475
        %6086 = vmatprep.subr.bf16.mxu0 0
        %6087 = vmatpush2.bf16.msra.mxu0 0
        %6088 = vmatprep.subr.bf16.mxu0 0
        %6089 = vmatpush2.bf16.msra.mxu0 0
        %6090 = vmatprep.subr.bf16.mxu0 0
        %6091 = vmatpush2.bf16.msra.mxu0 0
        %6092 = vmatprep.subr.bf16.mxu0 0
        %6093 = vmatpush2.bf16.msra.mxu0 0
        %6094 = vmatprep.subr.bf16.mxu0 0
        %6095 = vmatpush2.bf16.msra.mxu0 0
        %6096 = vmatprep.subr.bf16.mxu0 0
        %6097 = vmatpush2.bf16.msra.mxu0 0
        %6098 = vmatprep.subr.bf16.mxu0 0
        %6099 = vmatpush2.bf16.msra.mxu0 0
        %6100 = vmatprep.subr.bf16.mxu0 0
        %6101 = vmatpush2.bf16.msra.mxu0 0
        %6102 = vmatprep.mubr.bf16.mxu0 0
        %6103 = vmatmul.mubr.bf16.gmra.mxu0 %v4062
        %v6104 = vpop.f32.mrf.mxu0
        %v6105 = vadd.f32 %v6062, %v6104
        %v6106 = vpop.f32.mrf.mxu0
        %v6107 = vadd.f32 %v6064, %v6106
        %v6108 = vpop.f32.mrf.mxu0
        %v6109 = vadd.f32 %v6066, %v6108
        %v6110 = vpop.f32.mrf.mxu0
        %v6111 = vadd.f32 %v6068, %v6110
        %6112 = vdwg.mxu0
        %6113 = vmatprep.subr.bf16.mxu0 %v5370
        %6114 = vmatpush1.bf16.msra.mxu0 %v5369
        %6115 = vmatprep.subr.bf16.mxu0 %v5358
        %6116 = vmatpush1.bf16.msra.mxu0 %v5357
        %6117 = vmatprep.subr.bf16.mxu0 %v5346
        %6118 = vmatpush1.bf16.msra.mxu0 %v5345
        %6119 = vmatprep.subr.bf16.mxu0 %v5334
        %6120 = vmatpush1.bf16.msra.mxu0 %v5333
        %6121 = vmatprep.subr.bf16.mxu0 %v5322
        %6122 = vmatpush1.bf16.msra.mxu0 %v5321
        %6123 = vmatprep.subr.bf16.mxu0 %v5310
        %6124 = vmatpush1.bf16.msra.mxu0 %v5309
        %6125 = vmatprep.subr.bf16.mxu0 %v5298
        %6126 = vmatpush1.bf16.msra.mxu0 %v5297
        %6127 = vmatprep.subr.bf16.mxu0 %v5286
        %6128 = vmatpush1.bf16.msra.mxu0 %v5285
        %6129 = vmatprep.subr.bf16.mxu0 %v5466
        %6130 = vmatpush2.bf16.msra.mxu0 %v5465
        %6131 = vmatprep.subr.bf16.mxu0 %v5454
        %6132 = vmatpush2.bf16.msra.mxu0 %v5453
        %6133 = vmatprep.subr.bf16.mxu0 %v5442
        %6134 = vmatpush2.bf16.msra.mxu0 %v5441
        %6135 = vmatprep.subr.bf16.mxu0 %v5430
        %6136 = vmatpush2.bf16.msra.mxu0 %v5429
        %6137 = vmatprep.subr.bf16.mxu0 %v5418
        %6138 = vmatpush2.bf16.msra.mxu0 %v5417
        %6139 = vmatprep.subr.bf16.mxu0 %v5406
        %6140 = vmatpush2.bf16.msra.mxu0 %v5405
        %6141 = vmatprep.subr.bf16.mxu0 %v5394
        %6142 = vmatpush2.bf16.msra.mxu0 %v5393
        %6143 = vmatprep.subr.bf16.mxu0 %v5382
        %6144 = vmatpush2.bf16.msra.mxu0 %v5381
        %6145 = vmatprep.mubr.bf16.mxu0 %v4061
        %6146 = vmatmul.mubr.bf16.gmra.mxu0 %v4060
        %v6147 = vpop.f32.mrf.mxu0
        %v6148 = vadd.f32 %v4382, %v6147
        %v6149 = vpop.f32.mrf.mxu0
        %v6150 = vadd.f32 %v4386, %v6149
        %v6151 = vpop.f32.mrf.mxu0
        %v6152 = vadd.f32 %v4382, %v6151
        %v6153 = vpop.f32.mrf.mxu0
        %v6154 = vadd.f32 %v4386, %v6153
        %6155 = vdwg.mxu0
        %6156 = vmatprep.subr.bf16.mxu0 %v5562
        %6157 = vmatpush1.bf16.msra.mxu0 %v5561
        %6158 = vmatprep.subr.bf16.mxu0 %v5550
        %6159 = vmatpush1.bf16.msra.mxu0 %v5549
        %6160 = vmatprep.subr.bf16.mxu0 %v5538
        %6161 = vmatpush1.bf16.msra.mxu0 %v5537
        %6162 = vmatprep.subr.bf16.mxu0 %v5526
        %6163 = vmatpush1.bf16.msra.mxu0 %v5525
        %6164 = vmatprep.subr.bf16.mxu0 %v5514
        %6165 = vmatpush1.bf16.msra.mxu0 %v5513
        %6166 = vmatprep.subr.bf16.mxu0 %v5502
        %6167 = vmatpush1.bf16.msra.mxu0 %v5501
        %6168 = vmatprep.subr.bf16.mxu0 %v5490
        %6169 = vmatpush1.bf16.msra.mxu0 %v5489
        %6170 = vmatprep.subr.bf16.mxu0 %v5478
        %6171 = vmatpush1.bf16.msra.mxu0 %v5477
        %6172 = vmatprep.subr.bf16.mxu0 0
        %6173 = vmatpush2.bf16.msra.mxu0 0
        %6174 = vmatprep.subr.bf16.mxu0 0
        %6175 = vmatpush2.bf16.msra.mxu0 0
        %6176 = vmatprep.subr.bf16.mxu0 0
        %6177 = vmatpush2.bf16.msra.mxu0 0
        %6178 = vmatprep.subr.bf16.mxu0 0
        %6179 = vmatpush2.bf16.msra.mxu0 0
        %6180 = vmatprep.subr.bf16.mxu0 0
        %6181 = vmatpush2.bf16.msra.mxu0 0
        %6182 = vmatprep.subr.bf16.mxu0 0
        %6183 = vmatpush2.bf16.msra.mxu0 0
        %6184 = vmatprep.subr.bf16.mxu0 0
        %6185 = vmatpush2.bf16.msra.mxu0 0
        %6186 = vmatprep.subr.bf16.mxu0 0
        %6187 = vmatpush2.bf16.msra.mxu0 0
        %6188 = vmatprep.mubr.bf16.mxu0 0
        %6189 = vmatmul.mubr.bf16.gmra.mxu0 %v4062
        %v6190 = vpop.f32.mrf.mxu0
        %v6191 = vadd.f32 %v6148, %v6190
        %v6192 = vpop.f32.mrf.mxu0
        %v6193 = vadd.f32 %v6150, %v6192
        %v6194 = vpop.f32.mrf.mxu0
        %v6195 = vadd.f32 %v6152, %v6194
        %v6196 = vpop.f32.mrf.mxu0
        %v6197 = vadd.f32 %v6154, %v6196
        %6198 = vdwg.mxu0
        %6199 = vmatprep.subr.bf16.mxu0 %v5372
        %6200 = vmatpush1.bf16.msra.mxu0 %v5371
        %6201 = vmatprep.subr.bf16.mxu0 %v5360
        %6202 = vmatpush1.bf16.msra.mxu0 %v5359
        %6203 = vmatprep.subr.bf16.mxu0 %v5348
        %6204 = vmatpush1.bf16.msra.mxu0 %v5347
        %6205 = vmatprep.subr.bf16.mxu0 %v5336
        %6206 = vmatpush1.bf16.msra.mxu0 %v5335
        %6207 = vmatprep.subr.bf16.mxu0 %v5324
        %6208 = vmatpush1.bf16.msra.mxu0 %v5323
        %6209 = vmatprep.subr.bf16.mxu0 %v5312
        %6210 = vmatpush1.bf16.msra.mxu0 %v5311
        %6211 = vmatprep.subr.bf16.mxu0 %v5300
        %6212 = vmatpush1.bf16.msra.mxu0 %v5299
        %6213 = vmatprep.subr.bf16.mxu0 %v5288
        %6214 = vmatpush1.bf16.msra.mxu0 %v5287
        %6215 = vmatprep.subr.bf16.mxu0 %v5468
        %6216 = vmatpush2.bf16.msra.mxu0 %v5467
        %6217 = vmatprep.subr.bf16.mxu0 %v5456
        %6218 = vmatpush2.bf16.msra.mxu0 %v5455
        %6219 = vmatprep.subr.bf16.mxu0 %v5444
        %6220 = vmatpush2.bf16.msra.mxu0 %v5443
        %6221 = vmatprep.subr.bf16.mxu0 %v5432
        %6222 = vmatpush2.bf16.msra.mxu0 %v5431
        %6223 = vmatprep.subr.bf16.mxu0 %v5420
        %6224 = vmatpush2.bf16.msra.mxu0 %v5419
        %6225 = vmatprep.subr.bf16.mxu0 %v5408
        %6226 = vmatpush2.bf16.msra.mxu0 %v5407
        %6227 = vmatprep.subr.bf16.mxu0 %v5396
        %6228 = vmatpush2.bf16.msra.mxu0 %v5395
        %6229 = vmatprep.subr.bf16.mxu0 %v5384
        %6230 = vmatpush2.bf16.msra.mxu0 %v5383
        %6231 = vmatprep.mubr.bf16.mxu0 %v4061
        %6232 = vmatmul.mubr.bf16.gmra.mxu0 %v4060
        %v6233 = vpop.f32.mrf.mxu0
        %v6234 = vadd.f32 %v4390, %v6233
        %v6235 = vpop.f32.mrf.mxu0
        %v6236 = vadd.f32 %v4394, %v6235
        %v6237 = vpop.f32.mrf.mxu0
        %v6238 = vadd.f32 %v4390, %v6237
        %v6239 = vpop.f32.mrf.mxu0
        %v6240 = vadd.f32 %v4394, %v6239
        %6241 = vdwg.mxu0
        %6242 = vmatprep.subr.bf16.mxu0 %v5564
        %6243 = vmatpush1.bf16.msra.mxu0 %v5563
        %6244 = vmatprep.subr.bf16.mxu0 %v5552
        %6245 = vmatpush1.bf16.msra.mxu0 %v5551
        %6246 = vmatprep.subr.bf16.mxu0 %v5540
        %6247 = vmatpush1.bf16.msra.mxu0 %v5539
        %6248 = vmatprep.subr.bf16.mxu0 %v5528
        %6249 = vmatpush1.bf16.msra.mxu0 %v5527
        %6250 = vmatprep.subr.bf16.mxu0 %v5516
        %6251 = vmatpush1.bf16.msra.mxu0 %v5515
        %6252 = vmatprep.subr.bf16.mxu0 %v5504
        %6253 = vmatpush1.bf16.msra.mxu0 %v5503
        %6254 = vmatprep.subr.bf16.mxu0 %v5492
        %6255 = vmatpush1.bf16.msra.mxu0 %v5491
        %6256 = vmatprep.subr.bf16.mxu0 %v5480
        %6257 = vmatpush1.bf16.msra.mxu0 %v5479
        %6258 = vmatprep.subr.bf16.mxu0 0
        %6259 = vmatpush2.bf16.msra.mxu0 0
        %6260 = vmatprep.subr.bf16.mxu0 0
        %6261 = vmatpush2.bf16.msra.mxu0 0
        %6262 = vmatprep.subr.bf16.mxu0 0
        %6263 = vmatpush2.bf16.msra.mxu0 0
        %6264 = vmatprep.subr.bf16.mxu0 0
        %6265 = vmatpush2.bf16.msra.mxu0 0
        %6266 = vmatprep.subr.bf16.mxu0 0
        %6267 = vmatpush2.bf16.msra.mxu0 0
        %6268 = vmatprep.subr.bf16.mxu0 0
        %6269 = vmatpush2.bf16.msra.mxu0 0
        %6270 = vmatprep.subr.bf16.mxu0 0
        %6271 = vmatpush2.bf16.msra.mxu0 0
        %6272 = vmatprep.subr.bf16.mxu0 0
        %6273 = vmatpush2.bf16.msra.mxu0 0
        %6274 = vmatprep.mubr.bf16.mxu0 0
        %6275 = vmatmul.mubr.bf16.gmra.mxu0 %v4062
        %v6276 = vpop.f32.mrf.mxu0
        %v6277 = vadd.f32 %v6234, %v6276
        %v6278 = vpop.f32.mrf.mxu0
        %v6279 = vadd.f32 %v6236, %v6278
        %v6280 = vpop.f32.mrf.mxu0
        %v6281 = vadd.f32 %v6238, %v6280
        %v6282 = vpop.f32.mrf.mxu0
        %v6283 = vadd.f32 %v6240, %v6282
        %6284 = vdwg.mxu0
        %6285 = vmatprep.subr.bf16.mxu0 %v5374
        %6286 = vmatpush1.bf16.msra.mxu0 %v5373
        %6287 = vmatprep.subr.bf16.mxu0 %v5362
        %6288 = vmatpush1.bf16.msra.mxu0 %v5361
        %6289 = vmatprep.subr.bf16.mxu0 %v5350
        %6290 = vmatpush1.bf16.msra.mxu0 %v5349
        %6291 = vmatprep.subr.bf16.mxu0 %v5338
        %6292 = vmatpush1.bf16.msra.mxu0 %v5337
        %6293 = vmatprep.subr.bf16.mxu0 %v5326
        %6294 = vmatpush1.bf16.msra.mxu0 %v5325
        %6295 = vmatprep.subr.bf16.mxu0 %v5314
        %6296 = vmatpush1.bf16.msra.mxu0 %v5313
        %6297 = vmatprep.subr.bf16.mxu0 %v5302
        %6298 = vmatpush1.bf16.msra.mxu0 %v5301
        %6299 = vmatprep.subr.bf16.mxu0 %v5290
        %6300 = vmatpush1.bf16.msra.mxu0 %v5289
        %6301 = vmatprep.subr.bf16.mxu0 %v5470
        %6302 = vmatpush2.bf16.msra.mxu0 %v5469
        %6303 = vmatprep.subr.bf16.mxu0 %v5458
        %6304 = vmatpush2.bf16.msra.mxu0 %v5457
        %6305 = vmatprep.subr.bf16.mxu0 %v5446
        %6306 = vmatpush2.bf16.msra.mxu0 %v5445
        %6307 = vmatprep.subr.bf16.mxu0 %v5434
        %6308 = vmatpush2.bf16.msra.mxu0 %v5433
        %6309 = vmatprep.subr.bf16.mxu0 %v5422
        %6310 = vmatpush2.bf16.msra.mxu0 %v5421
        %6311 = vmatprep.subr.bf16.mxu0 %v5410
        %6312 = vmatpush2.bf16.msra.mxu0 %v5409
        %6313 = vmatprep.subr.bf16.mxu0 %v5398
        %6314 = vmatpush2.bf16.msra.mxu0 %v5397
        %6315 = vmatprep.subr.bf16.mxu0 %v5386
        %6316 = vmatpush2.bf16.msra.mxu0 %v5385
        %6317 = vmatprep.mubr.bf16.mxu0 %v4061
        %6318 = vmatmul.mubr.bf16.gmra.mxu0 %v4060
        %v6319 = vpop.f32.mrf.mxu0
        %v6320 = vadd.f32 %v4398, %v6319
        %v6321 = vpop.f32.mrf.mxu0
        %v6322 = vadd.f32 %v4402, %v6321
        %v6323 = vpop.f32.mrf.mxu0
        %v6324 = vadd.f32 %v4398, %v6323
        %v6325 = vpop.f32.mrf.mxu0
        %v6326 = vadd.f32 %v4402, %v6325
        %6327 = vdwg.mxu0
        %6328 = vmatprep.subr.bf16.mxu0 %v5566
        %6329 = vmatpush1.bf16.msra.mxu0 %v5565
        %6330 = vmatprep.subr.bf16.mxu0 %v5554
        %6331 = vmatpush1.bf16.msra.mxu0 %v5553
        %6332 = vmatprep.subr.bf16.mxu0 %v5542
        %6333 = vmatpush1.bf16.msra.mxu0 %v5541
        %6334 = vmatprep.subr.bf16.mxu0 %v5530
        %6335 = vmatpush1.bf16.msra.mxu0 %v5529
        %6336 = vmatprep.subr.bf16.mxu0 %v5518
        %6337 = vmatpush1.bf16.msra.mxu0 %v5517
        %6338 = vmatprep.subr.bf16.mxu0 %v5506
        %6339 = vmatpush1.bf16.msra.mxu0 %v5505
        %6340 = vmatprep.subr.bf16.mxu0 %v5494
        %6341 = vmatpush1.bf16.msra.mxu0 %v5493
        %6342 = vmatprep.subr.bf16.mxu0 %v5482
        %6343 = vmatpush1.bf16.msra.mxu0 %v5481
        %6344 = vmatprep.subr.bf16.mxu0 0
        %6345 = vmatpush2.bf16.msra.mxu0 0
        %6346 = vmatprep.subr.bf16.mxu0 0
        %6347 = vmatpush2.bf16.msra.mxu0 0
        %6348 = vmatprep.subr.bf16.mxu0 0
        %6349 = vmatpush2.bf16.msra.mxu0 0
        %6350 = vmatprep.subr.bf16.mxu0 0
        %6351 = vmatpush2.bf16.msra.mxu0 0
        %6352 = vmatprep.subr.bf16.mxu0 0
        %6353 = vmatpush2.bf16.msra.mxu0 0
        %6354 = vmatprep.subr.bf16.mxu0 0
        %6355 = vmatpush2.bf16.msra.mxu0 0
        %6356 = vmatprep.subr.bf16.mxu0 0
        %6357 = vmatpush2.bf16.msra.mxu0 0
        %6358 = vmatprep.subr.bf16.mxu0 0
        %6359 = vmatpush2.bf16.msra.mxu0 0
        %6360 = vmatprep.mubr.bf16.mxu0 0
        %6361 = vmatmul.mubr.bf16.gmra.mxu0 %v4062
        %v6362 = vpop.f32.mrf.mxu0
        %v6363 = vadd.f32 %v6320, %v6362
        %v6364 = vpop.f32.mrf.mxu0
        %v6365 = vadd.f32 %v6322, %v6364
        %v6366 = vpop.f32.mrf.mxu0
        %v6367 = vadd.f32 %v6324, %v6366
        %v6368 = vpop.f32.mrf.mxu0
        %v6369 = vadd.f32 %v6326, %v6368
        %6370 = vdwg.mxu0
        %v6371 = vmax.f32 %v5933, 0.0
        %v6372 = vmax.f32 %v5935, 0.0
        %v6373 = vmax.f32 %v6019, 0.0
        %v6374 = vmax.f32 %v6021, 0.0
        %v6375 = vmax.f32 %v6105, 0.0
        %v6376 = vmax.f32 %v6107, 0.0
        %v6377 = vmax.f32 %v6191, 0.0
        %v6378 = vmax.f32 %v6193, 0.0
        %v6379 = vmax.f32 %v6277, 0.0
        %v6380 = vmax.f32 %v6279, 0.0
        %v6381 = vmax.f32 %v6363, 0.0
        %v6382 = vmax.f32 %v6365, 0.0
        %v6383 = vmax.f32 %v5937, 0.0
        %v6384 = vmax.f32 %v5939, 0.0
        %v6385 = vmax.f32 %v6023, 0.0
        %v6386 = vmax.f32 %v6025, 0.0
        %v6387 = vmax.f32 %v6109, 0.0
        %v6388 = vmax.f32 %v6111, 0.0
        %v6389 = vmax.f32 %v6195, 0.0
        %v6390 = vmax.f32 %v6197, 0.0
        %v6391 = vmax.f32 %v6281, 0.0
        %v6392 = vmax.f32 %v6283, 0.0
        %v6393 = vmax.f32 %v6367, 0.0
        %v6394 = vmax.f32 %v6369, 0.0
        %v6395 = vpack.c.bf16 %v6383, %v6371
        %v6396 = vpack.c.bf16 %v6384, %v6372
        %v6397 = vpack.c.bf16 %v6385, %v6373
        %v6398 = vpack.c.bf16 %v6386, %v6374
        %v6399 = vpack.c.bf16 %v6387, %v6375
        %v6400 = vpack.c.bf16 %v6388, %v6376
        %v6401 = vpack.c.bf16 %v6389, %v6377
        %v6402 = vpack.c.bf16 %v6390, %v6378
        %v6403 = vpack.c.bf16 %v6391, %v6379
        %v6404 = vpack.c.bf16 %v6392, %v6380
        %v6405 = vpack.c.bf16 %v6393, %v6381
        %v6406 = vpack.c.bf16 %v6394, %v6382
        %v6407 = vld [vmem:[#allocation14] sm:$0xff]
        %v6408 = vld [vmem:[#allocation14 + $0x8] sm:$0xf]
        %v6409 = vld [vmem:[#allocation14 + $0xc] sm:$0xff]
        %v6410 = vld [vmem:[#allocation14 + $0x14] sm:$0xf]
        %v6411 = vld [vmem:[#allocation14 + $0x18] sm:$0xff]
        %v6412 = vld [vmem:[#allocation14 + $0x20] sm:$0xf]
        %v6413 = vld [vmem:[#allocation14 + $0x24] sm:$0xff]
        %v6414 = vld [vmem:[#allocation14 + $0x2c] sm:$0xf]
        %v6415 = vld [vmem:[#allocation14 + $0x30] sm:$0xff]
        %v6416 = vld [vmem:[#allocation14 + $0x38] sm:$0xf]
        %v6417 = vld [vmem:[#allocation14 + $0x3c] sm:$0xff]
        %v6418 = vld [vmem:[#allocation14 + $0x44] sm:$0xf]
        %v6419 = vld [vmem:[#allocation14 + $0x48] sm:$0xff]
        %v6420 = vld [vmem:[#allocation14 + $0x50] sm:$0xf]
        %v6421 = vld [vmem:[#allocation14 + $0x54] sm:$0xff]
        %v6422 = vld [vmem:[#allocation14 + $0x5c] sm:$0xf]
        %v6423 = vld [vmem:[#allocation14 + $0x60] sm:$0xff]
        %v6424 = vld [vmem:[#allocation14 + $0x68] sm:$0xf]
        %v6425 = vld [vmem:[#allocation14 + $0x6c] sm:$0xff]
        %v6426 = vld [vmem:[#allocation14 + $0x74] sm:$0xf]
        %v6427 = vld [vmem:[#allocation14 + $0x78] sm:$0xff]
        %v6428 = vld [vmem:[#allocation14 + $0x80] sm:$0xf]
        %v6429 = vld [vmem:[#allocation14 + $0x84] sm:$0xff]
        %v6430 = vld [vmem:[#allocation14 + $0x8c] sm:$0xf]
        %v6431 = vld [vmem:[#allocation14 + $0x90] sm:$0xff]
        %v6432 = vld [vmem:[#allocation14 + $0x98] sm:$0xf]
        %v6433 = vld [vmem:[#allocation14 + $0x9c] sm:$0xff]
        %v6434 = vld [vmem:[#allocation14 + $0xa4] sm:$0xf]
        %v6435 = vld [vmem:[#allocation14 + $0xa8] sm:$0xff]
        %v6436 = vld [vmem:[#allocation14 + $0xb0] sm:$0xf]
        %v6437 = vld [vmem:[#allocation14 + $0xb4] sm:$0xff]
        %v6438 = vld [vmem:[#allocation14 + $0xbc] sm:$0xf]
        %v6439 = vld [vmem:[#allocation14 + $0xc0] sm:$0xff]
        %v6440 = vld [vmem:[#allocation14 + $0xc8] sm:$0xf]
        %v6441 = vld [vmem:[#allocation14 + $0xcc] sm:$0xff]
        %v6442 = vld [vmem:[#allocation14 + $0xd4] sm:$0xf]
        %v6443 = vld [vmem:[#allocation14 + $0xd8] sm:$0xff]
        %v6444 = vld [vmem:[#allocation14 + $0xe0] sm:$0xf]
        %v6445 = vld [vmem:[#allocation14 + $0xe4] sm:$0xff]
        %v6446 = vld [vmem:[#allocation14 + $0xec] sm:$0xf]
        %v6447 = vld [vmem:[#allocation14 + $0xf0] sm:$0xff]
        %v6448 = vld [vmem:[#allocation14 + $0xf8] sm:$0xf]
        %v6449 = vld [vmem:[#allocation14 + $0xfc] sm:$0xff]
        %v6450 = vld [vmem:[#allocation14 + $0x104] sm:$0xf]
        %v6451 = vld [vmem:[#allocation14 + $0x108] sm:$0xff]
        %v6452 = vld [vmem:[#allocation14 + $0x110] sm:$0xf]
        %v6453 = vld [vmem:[#allocation14 + $0x114] sm:$0xff]
        %v6454 = vld [vmem:[#allocation14 + $0x11c] sm:$0xf]
        %v6455 = vld [vmem:[#allocation14 + $0x120] sm:$0xff]
        %v6456 = vld [vmem:[#allocation14 + $0x128] sm:$0xf]
        %v6457 = vld [vmem:[#allocation14 + $0x12c] sm:$0xff]
        %v6458 = vld [vmem:[#allocation14 + $0x134] sm:$0xf]
        %v6459 = vld [vmem:[#allocation14 + $0x138] sm:$0xff]
        %v6460 = vld [vmem:[#allocation14 + $0x140] sm:$0xf]
        %v6461 = vld [vmem:[#allocation14 + $0x144] sm:$0xff]
        %v6462 = vld [vmem:[#allocation14 + $0x14c] sm:$0xf]
        %v6463 = vld [vmem:[#allocation14 + $0x150] sm:$0xff]
        %v6464 = vld [vmem:[#allocation14 + $0x158] sm:$0xf]
        %v6465 = vld [vmem:[#allocation14 + $0x15c] sm:$0xff]
        %v6466 = vld [vmem:[#allocation14 + $0x164] sm:$0xf]
        %v6467 = vld [vmem:[#allocation14 + $0x168] sm:$0xff]
        %v6468 = vld [vmem:[#allocation14 + $0x170] sm:$0xf]
        %v6469 = vld [vmem:[#allocation14 + $0x174] sm:$0xff]
        %v6470 = vld [vmem:[#allocation14 + $0x17c] sm:$0xf]
        %v6471 = vld [vmem:[#allocation14 + $0x180] sm:$0xff]
        %v6472 = vld [vmem:[#allocation14 + $0x188] sm:$0xf]
        %v6473 = vld [vmem:[#allocation14 + $0x18c] sm:$0xff]
        %v6474 = vld [vmem:[#allocation14 + $0x194] sm:$0xf]
        %v6475 = vld [vmem:[#allocation14 + $0x198] sm:$0xff]
        %v6476 = vld [vmem:[#allocation14 + $0x1a0] sm:$0xf]
        %v6477 = vld [vmem:[#allocation14 + $0x1a4] sm:$0xff]
        %v6478 = vld [vmem:[#allocation14 + $0x1ac] sm:$0xf]
        %v6479 = vld [vmem:[#allocation14 + $0x1b0] sm:$0xff]
        %v6480 = vld [vmem:[#allocation14 + $0x1b8] sm:$0xf]
        %v6481 = vld [vmem:[#allocation14 + $0x1bc] sm:$0xff]
        %v6482 = vld [vmem:[#allocation14 + $0x1c4] sm:$0xf]
        %v6483 = vld [vmem:[#allocation14 + $0x1c8] sm:$0xff]
        %v6484 = vld [vmem:[#allocation14 + $0x1d0] sm:$0xf]
        %v6485 = vld [vmem:[#allocation14 + $0x1d4] sm:$0xff]
        %v6486 = vld [vmem:[#allocation14 + $0x1dc] sm:$0xf]
        %v6487 = vld [vmem:[#allocation14 + $0x1e0] sm:$0xff]
        %v6488 = vld [vmem:[#allocation14 + $0x1e8] sm:$0xf]
        %v6489 = vld [vmem:[#allocation14 + $0x1ec] sm:$0xff]
        %v6490 = vld [vmem:[#allocation14 + $0x1f4] sm:$0xf]
        %v6491 = vld [vmem:[#allocation14 + $0x1f8] sm:$0xff]
        %v6492 = vld [vmem:[#allocation14 + $0x200] sm:$0xf]
        %v6493 = vld [vmem:[#allocation14 + $0x204] sm:$0xff]
        %v6494 = vld [vmem:[#allocation14 + $0x20c] sm:$0xf]
        %v6495 = vld [vmem:[#allocation14 + $0x210] sm:$0xff]
        %v6496 = vld [vmem:[#allocation14 + $0x218] sm:$0xf]
        %v6497 = vld [vmem:[#allocation14 + $0x21c] sm:$0xff]
        %v6498 = vld [vmem:[#allocation14 + $0x224] sm:$0xf]
        %v6499 = vld [vmem:[#allocation14 + $0x228] sm:$0xff]
        %v6500 = vld [vmem:[#allocation14 + $0x230] sm:$0xf]
        %v6501 = vld [vmem:[#allocation14 + $0x234] sm:$0xff]
        %v6502 = vld [vmem:[#allocation14 + $0x23c] sm:$0xf]
        %v6503 = vld [vmem:[#allocation14 + $0x240] sm:$0xff]
        %v6504 = vld [vmem:[#allocation14 + $0x248] sm:$0xf]
        %v6505 = vld [vmem:[#allocation14 + $0x24c] sm:$0xff]
        %v6506 = vld [vmem:[#allocation14 + $0x254] sm:$0xf]
        %v6507 = vld [vmem:[#allocation14 + $0x258] sm:$0xff]
        %v6508 = vld [vmem:[#allocation14 + $0x260] sm:$0xf]
        %v6509 = vld [vmem:[#allocation14 + $0x264] sm:$0xff]
        %v6510 = vld [vmem:[#allocation14 + $0x26c] sm:$0xf]
        %v6511 = vld [vmem:[#allocation14 + $0x270] sm:$0xff]
        %v6512 = vld [vmem:[#allocation14 + $0x278] sm:$0xf]
        %v6513 = vld [vmem:[#allocation14 + $0x27c] sm:$0xff]
        %v6514 = vld [vmem:[#allocation14 + $0x284] sm:$0xf]
        %v6515 = vld [vmem:[#allocation14 + $0x288] sm:$0xff]
        %v6516 = vld [vmem:[#allocation14 + $0x290] sm:$0xf]
        %v6517 = vld [vmem:[#allocation14 + $0x294] sm:$0xff]
        %v6518 = vld [vmem:[#allocation14 + $0x29c] sm:$0xf]
        %v6519 = vld [vmem:[#allocation14 + $0x2a0] sm:$0xff]
        %v6520 = vld [vmem:[#allocation14 + $0x2a8] sm:$0xf]
        %v6521 = vld [vmem:[#allocation14 + $0x2ac] sm:$0xff]
        %v6522 = vld [vmem:[#allocation14 + $0x2b4] sm:$0xf]
        %v6523 = vld [vmem:[#allocation14 + $0x2b8] sm:$0xff]
        %v6524 = vld [vmem:[#allocation14 + $0x2c0] sm:$0xf]
        %v6525 = vld [vmem:[#allocation14 + $0x2c4] sm:$0xff]
        %v6526 = vld [vmem:[#allocation14 + $0x2cc] sm:$0xf]
        %v6527 = vld [vmem:[#allocation14 + $0x2d0] sm:$0xff]
        %v6528 = vld [vmem:[#allocation14 + $0x2d8] sm:$0xf]
        %v6529 = vld [vmem:[#allocation14 + $0x2dc] sm:$0xff]
        %v6530 = vld [vmem:[#allocation14 + $0x2e4] sm:$0xf]
        %v6531 = vld [vmem:[#allocation14 + $0x2e8] sm:$0xff]
        %v6532 = vld [vmem:[#allocation14 + $0x2f0] sm:$0xf]
        %v6533 = vld [vmem:[#allocation14 + $0x2f4] sm:$0xff]
        %v6534 = vld [vmem:[#allocation14 + $0x2fc] sm:$0xf]
        %v6535 = vld [vmem:[#allocation14 + $0x300] sm:$0xff]
        %v6536 = vld [vmem:[#allocation14 + $0x308] sm:$0xf]
        %v6537 = vld [vmem:[#allocation14 + $0x30c] sm:$0xff]
        %v6538 = vld [vmem:[#allocation14 + $0x314] sm:$0xf]
        %v6539 = vld [vmem:[#allocation14 + $0x318] sm:$0xff]
        %v6540 = vld [vmem:[#allocation14 + $0x320] sm:$0xf]
        %v6541 = vld [vmem:[#allocation14 + $0x324] sm:$0xff]
        %v6542 = vld [vmem:[#allocation14 + $0x32c] sm:$0xf]
        %v6543 = vld [vmem:[#allocation14 + $0x330] sm:$0xff]
        %v6544 = vld [vmem:[#allocation14 + $0x338] sm:$0xf]
        %v6545 = vld [vmem:[#allocation14 + $0x33c] sm:$0xff]
        %v6546 = vld [vmem:[#allocation14 + $0x344] sm:$0xf]
        %v6547 = vld [vmem:[#allocation14 + $0x348] sm:$0xff]
        %v6548 = vld [vmem:[#allocation14 + $0x350] sm:$0xf]
        %v6549 = vld [vmem:[#allocation14 + $0x354] sm:$0xff]
        %v6550 = vld [vmem:[#allocation14 + $0x35c] sm:$0xf]
        %v6551 = vld [vmem:[#allocation14 + $0x360] sm:$0xff]
        %v6552 = vld [vmem:[#allocation14 + $0x368] sm:$0xf]
        %v6553 = vld [vmem:[#allocation14 + $0x36c] sm:$0xff]
        %v6554 = vld [vmem:[#allocation14 + $0x374] sm:$0xf]
        %v6555 = vld [vmem:[#allocation14 + $0x378] sm:$0xff]
        %v6556 = vld [vmem:[#allocation14 + $0x380] sm:$0xf]
        %v6557 = vld [vmem:[#allocation14 + $0x384] sm:$0xff]
        %v6558 = vld [vmem:[#allocation14 + $0x38c] sm:$0xf]
        %v6559 = vld [vmem:[#allocation14 + $0x390] sm:$0xff]
        %v6560 = vld [vmem:[#allocation14 + $0x398] sm:$0xf]
        %v6561 = vld [vmem:[#allocation14 + $0x39c] sm:$0xff]
        %v6562 = vld [vmem:[#allocation14 + $0x3a4] sm:$0xf]
        %v6563 = vld [vmem:[#allocation14 + $0x3a8] sm:$0xff]
        %v6564 = vld [vmem:[#allocation14 + $0x3b0] sm:$0xf]
        %v6565 = vld [vmem:[#allocation14 + $0x3b4] sm:$0xff]
        %v6566 = vld [vmem:[#allocation14 + $0x3bc] sm:$0xf]
        %v6567 = vld [vmem:[#allocation14 + $0x3c0] sm:$0xff]
        %v6568 = vld [vmem:[#allocation14 + $0x3c8] sm:$0xf]
        %v6569 = vld [vmem:[#allocation14 + $0x3cc] sm:$0xff]
        %v6570 = vld [vmem:[#allocation14 + $0x3d4] sm:$0xf]
        %v6571 = vld [vmem:[#allocation14 + $0x3d8] sm:$0xff]
        %v6572 = vld [vmem:[#allocation14 + $0x3e0] sm:$0xf]
        %v6573 = vld [vmem:[#allocation14 + $0x3e4] sm:$0xff]
        %v6574 = vld [vmem:[#allocation14 + $0x3ec] sm:$0xf]
        %v6575 = vld [vmem:[#allocation14 + $0x3f0] sm:$0xff]
        %v6576 = vld [vmem:[#allocation14 + $0x3f8] sm:$0xf]
        %v6577 = vld [vmem:[#allocation14 + $0x3fc] sm:$0xff]
        %v6578 = vld [vmem:[#allocation14 + $0x404] sm:$0xf]
        %v6579 = vld [vmem:[#allocation14 + $0x408] sm:$0xff]
        %v6580 = vld [vmem:[#allocation14 + $0x410] sm:$0xf]
        %v6581 = vld [vmem:[#allocation14 + $0x414] sm:$0xff]
        %v6582 = vld [vmem:[#allocation14 + $0x41c] sm:$0xf]
        %v6583 = vld [vmem:[#allocation14 + $0x420] sm:$0xff]
        %v6584 = vld [vmem:[#allocation14 + $0x428] sm:$0xf]
        %v6585 = vld [vmem:[#allocation14 + $0x42c] sm:$0xff]
        %v6586 = vld [vmem:[#allocation14 + $0x434] sm:$0xf]
        %v6587 = vld [vmem:[#allocation14 + $0x438] sm:$0xff]
        %v6588 = vld [vmem:[#allocation14 + $0x440] sm:$0xf]
        %v6589 = vld [vmem:[#allocation14 + $0x444] sm:$0xff]
        %v6590 = vld [vmem:[#allocation14 + $0x44c] sm:$0xf]
        %v6591 = vld [vmem:[#allocation14 + $0x450] sm:$0xff]
        %v6592 = vld [vmem:[#allocation14 + $0x458] sm:$0xf]
        %v6593 = vld [vmem:[#allocation14 + $0x45c] sm:$0xff]
        %v6594 = vld [vmem:[#allocation14 + $0x464] sm:$0xf]
        %v6595 = vld [vmem:[#allocation14 + $0x468] sm:$0xff]
        %v6596 = vld [vmem:[#allocation14 + $0x470] sm:$0xf]
        %v6597 = vld [vmem:[#allocation14 + $0x474] sm:$0xff]
        %v6598 = vld [vmem:[#allocation14 + $0x47c] sm:$0xf]
        %v6599 = vld [vmem:[#allocation14 + $0x480] sm:$0xff]
        %v6600 = vld [vmem:[#allocation14 + $0x488] sm:$0xf]
        %v6601 = vld [vmem:[#allocation14 + $0x48c] sm:$0xff]
        %v6602 = vld [vmem:[#allocation14 + $0x494] sm:$0xf]
        %v6603 = vld [vmem:[#allocation14 + $0x498] sm:$0xff]
        %v6604 = vld [vmem:[#allocation14 + $0x4a0] sm:$0xf]
        %v6605 = vld [vmem:[#allocation14 + $0x4a4] sm:$0xff]
        %v6606 = vld [vmem:[#allocation14 + $0x4ac] sm:$0xf]
        %v6607 = vld [vmem:[#allocation14 + $0x4b0] sm:$0xff]
        %v6608 = vld [vmem:[#allocation14 + $0x4b8] sm:$0xf]
        %v6609 = vld [vmem:[#allocation14 + $0x4bc] sm:$0xff]
        %v6610 = vld [vmem:[#allocation14 + $0x4c4] sm:$0xf]
        %v6611 = vld [vmem:[#allocation14 + $0x4c8] sm:$0xff]
        %v6612 = vld [vmem:[#allocation14 + $0x4d0] sm:$0xf]
        %v6613 = vld [vmem:[#allocation14 + $0x4d4] sm:$0xff]
        %v6614 = vld [vmem:[#allocation14 + $0x4dc] sm:$0xf]
        %v6615 = vld [vmem:[#allocation14 + $0x4e0] sm:$0xff]
        %v6616 = vld [vmem:[#allocation14 + $0x4e8] sm:$0xf]
        %v6617 = vld [vmem:[#allocation14 + $0x4ec] sm:$0xff]
        %v6618 = vld [vmem:[#allocation14 + $0x4f4] sm:$0xf]
        %v6619 = vld [vmem:[#allocation14 + $0x4f8] sm:$0xff]
        %v6620 = vld [vmem:[#allocation14 + $0x500] sm:$0xf]
        %v6621 = vld [vmem:[#allocation14 + $0x504] sm:$0xff]
        %v6622 = vld [vmem:[#allocation14 + $0x50c] sm:$0xf]
        %v6623 = vld [vmem:[#allocation14 + $0x510] sm:$0xff]
        %v6624 = vld [vmem:[#allocation14 + $0x518] sm:$0xf]
        %v6625 = vld [vmem:[#allocation14 + $0x51c] sm:$0xff]
        %v6626 = vld [vmem:[#allocation14 + $0x524] sm:$0xf]
        %v6627 = vld [vmem:[#allocation14 + $0x528] sm:$0xff]
        %v6628 = vld [vmem:[#allocation14 + $0x530] sm:$0xf]
        %v6629 = vld [vmem:[#allocation14 + $0x534] sm:$0xff]
        %v6630 = vld [vmem:[#allocation14 + $0x53c] sm:$0xf]
        %v6631 = vld [vmem:[#allocation14 + $0x540] sm:$0xff]
        %v6632 = vld [vmem:[#allocation14 + $0x548] sm:$0xf]
        %v6633 = vld [vmem:[#allocation14 + $0x54c] sm:$0xff]
        %v6634 = vld [vmem:[#allocation14 + $0x554] sm:$0xf]
        %v6635 = vld [vmem:[#allocation14 + $0x558] sm:$0xff]
        %v6636 = vld [vmem:[#allocation14 + $0x560] sm:$0xf]
        %v6637 = vld [vmem:[#allocation14 + $0x564] sm:$0xff]
        %v6638 = vld [vmem:[#allocation14 + $0x56c] sm:$0xf]
        %v6639 = vld [vmem:[#allocation14 + $0x570] sm:$0xff]
        %v6640 = vld [vmem:[#allocation14 + $0x578] sm:$0xf]
        %v6641 = vld [vmem:[#allocation14 + $0x57c] sm:$0xff]
        %v6642 = vld [vmem:[#allocation14 + $0x584] sm:$0xf]
        %v6643 = vld [vmem:[#allocation14 + $0x588] sm:$0xff]
        %v6644 = vld [vmem:[#allocation14 + $0x590] sm:$0xf]
        %v6645 = vld [vmem:[#allocation14 + $0x594] sm:$0xff]
        %v6646 = vld [vmem:[#allocation14 + $0x59c] sm:$0xf]
        %v6647 = vld [vmem:[#allocation14 + $0x5a0] sm:$0xff]
        %v6648 = vld [vmem:[#allocation14 + $0x5a8] sm:$0xf]
        %v6649 = vld [vmem:[#allocation14 + $0x5ac] sm:$0xff]
        %v6650 = vld [vmem:[#allocation14 + $0x5b4] sm:$0xf]
        %v6651 = vld [vmem:[#allocation14 + $0x5b8] sm:$0xff]
        %v6652 = vld [vmem:[#allocation14 + $0x5c0] sm:$0xf]
        %v6653 = vld [vmem:[#allocation14 + $0x5c4] sm:$0xff]
        %v6654 = vld [vmem:[#allocation14 + $0x5cc] sm:$0xf]
        %v6655 = vld [vmem:[#allocation14 + $0x5d0] sm:$0xff]
        %v6656 = vld [vmem:[#allocation14 + $0x5d8] sm:$0xf]
        %v6657 = vld [vmem:[#allocation14 + $0x5dc] sm:$0xff]
        %v6658 = vld [vmem:[#allocation14 + $0x5e4] sm:$0xf]
        %v6659 = vld [vmem:[#allocation14 + $0x5e8] sm:$0xff]
        %v6660 = vld [vmem:[#allocation14 + $0x5f0] sm:$0xf]
        %v6661 = vld [vmem:[#allocation14 + $0x5f4] sm:$0xff]
        %v6662 = vld [vmem:[#allocation14 + $0x5fc] sm:$0xf]
        %v6663 = vld [vmem:[#allocation14 + $0x600] sm:$0xff]
        %v6664 = vld [vmem:[#allocation14 + $0x608] sm:$0xf]
        %v6665 = vld [vmem:[#allocation14 + $0x60c] sm:$0xff]
        %v6666 = vld [vmem:[#allocation14 + $0x614] sm:$0xf]
        %v6667 = vld [vmem:[#allocation14 + $0x618] sm:$0xff]
        %v6668 = vld [vmem:[#allocation14 + $0x620] sm:$0xf]
        %v6669 = vld [vmem:[#allocation14 + $0x624] sm:$0xff]
        %v6670 = vld [vmem:[#allocation14 + $0x62c] sm:$0xf]
        %v6671 = vld [vmem:[#allocation14 + $0x630] sm:$0xff]
        %v6672 = vld [vmem:[#allocation14 + $0x638] sm:$0xf]
        %v6673 = vld [vmem:[#allocation14 + $0x63c] sm:$0xff]
        %v6674 = vld [vmem:[#allocation14 + $0x644] sm:$0xf]
        %v6675 = vld [vmem:[#allocation14 + $0x648] sm:$0xff]
        %v6676 = vld [vmem:[#allocation14 + $0x650] sm:$0xf]
        %v6677 = vld [vmem:[#allocation14 + $0x654] sm:$0xff]
        %v6678 = vld [vmem:[#allocation14 + $0x65c] sm:$0xf]
        %v6679 = vld [vmem:[#allocation14 + $0x660] sm:$0xff]
        %v6680 = vld [vmem:[#allocation14 + $0x668] sm:$0xf]
        %v6681 = vld [vmem:[#allocation14 + $0x66c] sm:$0xff]
        %v6682 = vld [vmem:[#allocation14 + $0x674] sm:$0xf]
        %v6683 = vld [vmem:[#allocation14 + $0x678] sm:$0xff]
        %v6684 = vld [vmem:[#allocation14 + $0x680] sm:$0xf]
        %v6685 = vld [vmem:[#allocation14 + $0x684] sm:$0xff]
        %v6686 = vld [vmem:[#allocation14 + $0x68c] sm:$0xf]
        %v6687 = vld [vmem:[#allocation14 + $0x690] sm:$0xff]
        %v6688 = vld [vmem:[#allocation14 + $0x698] sm:$0xf]
        %v6689 = vld [vmem:[#allocation14 + $0x69c] sm:$0xff]
        %v6690 = vld [vmem:[#allocation14 + $0x6a4] sm:$0xf]
        %v6691 = vld [vmem:[#allocation14 + $0x6a8] sm:$0xff]
        %v6692 = vld [vmem:[#allocation14 + $0x6b0] sm:$0xf]
        %v6693 = vld [vmem:[#allocation14 + $0x6b4] sm:$0xff]
        %v6694 = vld [vmem:[#allocation14 + $0x6bc] sm:$0xf]
        %v6695 = vld [vmem:[#allocation14 + $0x6c0] sm:$0xff]
        %v6696 = vld [vmem:[#allocation14 + $0x6c8] sm:$0xf]
        %v6697 = vld [vmem:[#allocation14 + $0x6cc] sm:$0xff]
        %v6698 = vld [vmem:[#allocation14 + $0x6d4] sm:$0xf]
        %v6699 = vld [vmem:[#allocation14 + $0x6d8] sm:$0xff]
        %v6700 = vld [vmem:[#allocation14 + $0x6e0] sm:$0xf]
        %v6701 = vld [vmem:[#allocation14 + $0x6e4] sm:$0xff]
        %v6702 = vld [vmem:[#allocation14 + $0x6ec] sm:$0xf]
        %v6703 = vld [vmem:[#allocation14 + $0x6f0] sm:$0xff]
        %v6704 = vld [vmem:[#allocation14 + $0x6f8] sm:$0xf]
        %v6705 = vld [vmem:[#allocation14 + $0x6fc] sm:$0xff]
        %v6706 = vld [vmem:[#allocation14 + $0x704] sm:$0xf]
        %v6707 = vld [vmem:[#allocation14 + $0x708] sm:$0xff]
        %v6708 = vld [vmem:[#allocation14 + $0x710] sm:$0xf]
        %v6709 = vld [vmem:[#allocation14 + $0x714] sm:$0xff]
        %v6710 = vld [vmem:[#allocation14 + $0x71c] sm:$0xf]
        %v6711 = vld [vmem:[#allocation14 + $0x720] sm:$0xff]
        %v6712 = vld [vmem:[#allocation14 + $0x728] sm:$0xf]
        %v6713 = vld [vmem:[#allocation14 + $0x72c] sm:$0xff]
        %v6714 = vld [vmem:[#allocation14 + $0x734] sm:$0xf]
        %v6715 = vld [vmem:[#allocation14 + $0x738] sm:$0xff]
        %v6716 = vld [vmem:[#allocation14 + $0x740] sm:$0xf]
        %v6717 = vld [vmem:[#allocation14 + $0x744] sm:$0xff]
        %v6718 = vld [vmem:[#allocation14 + $0x74c] sm:$0xf]
        %v6719 = vld [vmem:[#allocation14 + $0x750] sm:$0xff]
        %v6720 = vld [vmem:[#allocation14 + $0x758] sm:$0xf]
        %v6721 = vld [vmem:[#allocation14 + $0x75c] sm:$0xff]
        %v6722 = vld [vmem:[#allocation14 + $0x764] sm:$0xf]
        %v6723 = vld [vmem:[#allocation14 + $0x768] sm:$0xff]
        %v6724 = vld [vmem:[#allocation14 + $0x770] sm:$0xf]
        %v6725 = vld [vmem:[#allocation14 + $0x774] sm:$0xff]
        %v6726 = vld [vmem:[#allocation14 + $0x77c] sm:$0xf]
        %v6727 = vld [vmem:[#allocation14 + $0x780] sm:$0xff]
        %v6728 = vld [vmem:[#allocation14 + $0x788] sm:$0xf]
        %v6729 = vld [vmem:[#allocation14 + $0x78c] sm:$0xff]
        %v6730 = vld [vmem:[#allocation14 + $0x794] sm:$0xf]
        %v6731 = vld [vmem:[#allocation14 + $0x798] sm:$0xff]
        %v6732 = vld [vmem:[#allocation14 + $0x7a0] sm:$0xf]
        %v6733 = vld [vmem:[#allocation14 + $0x7a4] sm:$0xff]
        %v6734 = vld [vmem:[#allocation14 + $0x7ac] sm:$0xf]
        %v6735 = vld [vmem:[#allocation14 + $0x7b0] sm:$0xff]
        %v6736 = vld [vmem:[#allocation14 + $0x7b8] sm:$0xf]
        %v6737 = vld [vmem:[#allocation14 + $0x7bc] sm:$0xff]
        %v6738 = vld [vmem:[#allocation14 + $0x7c4] sm:$0xf]
        %v6739 = vld [vmem:[#allocation14 + $0x7c8] sm:$0xff]
        %v6740 = vld [vmem:[#allocation14 + $0x7d0] sm:$0xf]
        %v6741 = vld [vmem:[#allocation14 + $0x7d4] sm:$0xff]
        %v6742 = vld [vmem:[#allocation14 + $0x7dc] sm:$0xf]
        %v6743 = vld [vmem:[#allocation14 + $0x7e0] sm:$0xff]
        %v6744 = vld [vmem:[#allocation14 + $0x7e8] sm:$0xf]
        %v6745 = vld [vmem:[#allocation14 + $0x7ec] sm:$0xff]
        %v6746 = vld [vmem:[#allocation14 + $0x7f4] sm:$0xf]
        %v6747 = vld [vmem:[#allocation14 + $0x7f8] sm:$0xff]
        %v6748 = vld [vmem:[#allocation14 + $0x800] sm:$0xf]
        %v6749 = vld [vmem:[#allocation14 + $0x804] sm:$0xff]
        %v6750 = vld [vmem:[#allocation14 + $0x80c] sm:$0xf]
        %v6751 = vld [vmem:[#allocation14 + $0x810] sm:$0xff]
        %v6752 = vld [vmem:[#allocation14 + $0x818] sm:$0xf]
        %v6753 = vld [vmem:[#allocation14 + $0x81c] sm:$0xff]
        %v6754 = vld [vmem:[#allocation14 + $0x824] sm:$0xf]
        %v6755 = vld [vmem:[#allocation14 + $0x828] sm:$0xff]
        %v6756 = vld [vmem:[#allocation14 + $0x830] sm:$0xf]
        %v6757 = vld [vmem:[#allocation14 + $0x834] sm:$0xff]
        %v6758 = vld [vmem:[#allocation14 + $0x83c] sm:$0xf]
        %v6759 = vld [vmem:[#allocation14 + $0x840] sm:$0xff]
        %v6760 = vld [vmem:[#allocation14 + $0x848] sm:$0xf]
        %v6761 = vld [vmem:[#allocation14 + $0x84c] sm:$0xff]
        %v6762 = vld [vmem:[#allocation14 + $0x854] sm:$0xf]
        %v6763 = vld [vmem:[#allocation14 + $0x858] sm:$0xff]
        %v6764 = vld [vmem:[#allocation14 + $0x860] sm:$0xf]
        %v6765 = vld [vmem:[#allocation14 + $0x864] sm:$0xff]
        %v6766 = vld [vmem:[#allocation14 + $0x86c] sm:$0xf]
        %v6767 = vld [vmem:[#allocation14 + $0x870] sm:$0xff]
        %v6768 = vld [vmem:[#allocation14 + $0x878] sm:$0xf]
        %v6769 = vld [vmem:[#allocation14 + $0x87c] sm:$0xff]
        %v6770 = vld [vmem:[#allocation14 + $0x884] sm:$0xf]
        %v6771 = vld [vmem:[#allocation14 + $0x888] sm:$0xff]
        %v6772 = vld [vmem:[#allocation14 + $0x890] sm:$0xf]
        %v6773 = vld [vmem:[#allocation14 + $0x894] sm:$0xff]
        %v6774 = vld [vmem:[#allocation14 + $0x89c] sm:$0xf]
        %v6775 = vld [vmem:[#allocation14 + $0x8a0] sm:$0xff]
        %v6776 = vld [vmem:[#allocation14 + $0x8a8] sm:$0xf]
        %v6777 = vld [vmem:[#allocation14 + $0x8ac] sm:$0xff]
        %v6778 = vld [vmem:[#allocation14 + $0x8b4] sm:$0xf]
        %v6779 = vld [vmem:[#allocation14 + $0x8b8] sm:$0xff]
        %v6780 = vld [vmem:[#allocation14 + $0x8c0] sm:$0xf]
        %v6781 = vld [vmem:[#allocation14 + $0x8c4] sm:$0xff]
        %v6782 = vld [vmem:[#allocation14 + $0x8cc] sm:$0xf]
        %v6783 = vld [vmem:[#allocation14 + $0x8d0] sm:$0xff]
        %v6784 = vld [vmem:[#allocation14 + $0x8d8] sm:$0xf]
        %v6785 = vld [vmem:[#allocation14 + $0x8dc] sm:$0xff]
        %v6786 = vld [vmem:[#allocation14 + $0x8e4] sm:$0xf]
        %v6787 = vld [vmem:[#allocation14 + $0x8e8] sm:$0xff]
        %v6788 = vld [vmem:[#allocation14 + $0x8f0] sm:$0xf]
        %v6789 = vld [vmem:[#allocation14 + $0x8f4] sm:$0xff]
        %v6790 = vld [vmem:[#allocation14 + $0x8fc] sm:$0xf]
        %v6791 = vld [vmem:[#allocation15] sm:$0x7]
        %v6793 = vlaneseq
        %v6794 = vshrl.u32 %v6793, 7
        %v6795 = vsub.s32 0, %v6794
        %v6796 = vrot.slane %v6791, %v6795
        %v6797 = vlaneseq
        %v6798 = vshrl.u32 %v6797, 7
        %v6799 = vsub.s32 1, %v6798
        %v6800 = vrot.slane %v6791, %v6799
        %v6801 = vlaneseq
        %v6802 = vshrl.u32 %v6801, 7
        %v6803 = vsub.s32 2, %v6802
        %v6804 = vrot.slane %v6791, %v6803
        %v7192 = vunpack.c.l.b16 %v6407
        %v7193 = vunpack.c.h.b16 %v6407
        %v7194 = vunpack.c.l.b16 %v6408
        %v7195 = vunpack.c.l.b16 %v6409
        %v7196 = vunpack.c.h.b16 %v6409
        %v7197 = vunpack.c.l.b16 %v6410
        %v7198 = vunpack.c.l.b16 %v6411
        %v7199 = vunpack.c.h.b16 %v6411
        %v7200 = vunpack.c.l.b16 %v6412
        %v7201 = vunpack.c.l.b16 %v6413
        %v7202 = vunpack.c.h.b16 %v6413
        %v7203 = vunpack.c.l.b16 %v6414
        %v7204 = vunpack.c.l.b16 %v6415
        %v7205 = vunpack.c.h.b16 %v6415
        %v7206 = vunpack.c.l.b16 %v6416
        %v7207 = vunpack.c.l.b16 %v6417
        %v7208 = vunpack.c.h.b16 %v6417
        %v7209 = vunpack.c.l.b16 %v6418
        %v7210 = vunpack.c.l.b16 %v6419
        %v7211 = vunpack.c.h.b16 %v6419
        %v7212 = vunpack.c.l.b16 %v6420
        %v7213 = vunpack.c.l.b16 %v6421
        %v7214 = vunpack.c.h.b16 %v6421
        %v7215 = vunpack.c.l.b16 %v6422
        %v7216 = vunpack.c.l.b16 %v6423
        %v7217 = vunpack.c.h.b16 %v6423
        %v7218 = vunpack.c.l.b16 %v6424
        %v7219 = vunpack.c.l.b16 %v6425
        %v7220 = vunpack.c.h.b16 %v6425
        %v7221 = vunpack.c.l.b16 %v6426
        %v7222 = vunpack.c.l.b16 %v6427
        %v7223 = vunpack.c.h.b16 %v6427
        %v7224 = vunpack.c.l.b16 %v6428
        %v7225 = vunpack.c.l.b16 %v6429
        %v7226 = vunpack.c.h.b16 %v6429
        %v7227 = vunpack.c.l.b16 %v6430
        %v7228 = vunpack.c.l.b16 %v6431
        %v7229 = vunpack.c.h.b16 %v6431
        %v7230 = vunpack.c.l.b16 %v6432
        %v7231 = vunpack.c.l.b16 %v6433
        %v7232 = vunpack.c.h.b16 %v6433
        %v7233 = vunpack.c.l.b16 %v6434
        %v7234 = vunpack.c.l.b16 %v6435
        %v7235 = vunpack.c.h.b16 %v6435
        %v7236 = vunpack.c.l.b16 %v6436
        %v7237 = vunpack.c.l.b16 %v6437
        %v7238 = vunpack.c.h.b16 %v6437
        %v7239 = vunpack.c.l.b16 %v6438
        %v7240 = vunpack.c.l.b16 %v6439
        %v7241 = vunpack.c.h.b16 %v6439
        %v7242 = vunpack.c.l.b16 %v6440
        %v7243 = vunpack.c.l.b16 %v6441
        %v7244 = vunpack.c.h.b16 %v6441
        %v7245 = vunpack.c.l.b16 %v6442
        %v7246 = vunpack.c.l.b16 %v6443
        %v7247 = vunpack.c.h.b16 %v6443
        %v7248 = vunpack.c.l.b16 %v6444
        %v7249 = vunpack.c.l.b16 %v6445
        %v7250 = vunpack.c.h.b16 %v6445
        %v7251 = vunpack.c.l.b16 %v6446
        %v7252 = vunpack.c.l.b16 %v6447
        %v7253 = vunpack.c.h.b16 %v6447
        %v7254 = vunpack.c.l.b16 %v6448
        %v7255 = vunpack.c.l.b16 %v6449
        %v7256 = vunpack.c.h.b16 %v6449
        %v7257 = vunpack.c.l.b16 %v6450
        %v7258 = vunpack.c.l.b16 %v6451
        %v7259 = vunpack.c.h.b16 %v6451
        %v7260 = vunpack.c.l.b16 %v6452
        %v7261 = vunpack.c.l.b16 %v6453
        %v7262 = vunpack.c.h.b16 %v6453
        %v7263 = vunpack.c.l.b16 %v6454
        %v7264 = vunpack.c.l.b16 %v6455
        %v7265 = vunpack.c.h.b16 %v6455
        %v7266 = vunpack.c.l.b16 %v6456
        %v7267 = vunpack.c.l.b16 %v6457
        %v7268 = vunpack.c.h.b16 %v6457
        %v7269 = vunpack.c.l.b16 %v6458
        %v7270 = vunpack.c.l.b16 %v6459
        %v7271 = vunpack.c.h.b16 %v6459
        %v7272 = vunpack.c.l.b16 %v6460
        %v7273 = vunpack.c.l.b16 %v6461
        %v7274 = vunpack.c.h.b16 %v6461
        %v7275 = vunpack.c.l.b16 %v6462
        %v7276 = vunpack.c.l.b16 %v6463
        %v7277 = vunpack.c.h.b16 %v6463
        %v7278 = vunpack.c.l.b16 %v6464
        %v7279 = vunpack.c.l.b16 %v6465
        %v7280 = vunpack.c.h.b16 %v6465
        %v7281 = vunpack.c.l.b16 %v6466
        %v7282 = vunpack.c.l.b16 %v6467
        %v7283 = vunpack.c.h.b16 %v6467
        %v7284 = vunpack.c.l.b16 %v6468
        %v7285 = vunpack.c.l.b16 %v6469
        %v7286 = vunpack.c.h.b16 %v6469
        %v7287 = vunpack.c.l.b16 %v6470
        %v7288 = vunpack.c.l.b16 %v6471
        %v7289 = vunpack.c.h.b16 %v6471
        %v7290 = vunpack.c.l.b16 %v6472
        %v7291 = vunpack.c.l.b16 %v6473
        %v7292 = vunpack.c.h.b16 %v6473
        %v7293 = vunpack.c.l.b16 %v6474
        %v7294 = vunpack.c.l.b16 %v6475
        %v7295 = vunpack.c.h.b16 %v6475
        %v7296 = vunpack.c.l.b16 %v6476
        %v7297 = vunpack.c.l.b16 %v6477
        %v7298 = vunpack.c.h.b16 %v6477
        %v7299 = vunpack.c.l.b16 %v6478
        %v7300 = vunpack.c.l.b16 %v6479
        %v7301 = vunpack.c.h.b16 %v6479
        %v7302 = vunpack.c.l.b16 %v6480
        %v7303 = vunpack.c.l.b16 %v6481
        %v7304 = vunpack.c.h.b16 %v6481
        %v7305 = vunpack.c.l.b16 %v6482
        %v7306 = vunpack.c.l.b16 %v6483
        %v7307 = vunpack.c.h.b16 %v6483
        %v7308 = vunpack.c.l.b16 %v6484
        %v7309 = vunpack.c.l.b16 %v6485
        %v7310 = vunpack.c.h.b16 %v6485
        %v7311 = vunpack.c.l.b16 %v6486
        %v7312 = vunpack.c.l.b16 %v6487
        %v7313 = vunpack.c.h.b16 %v6487
        %v7314 = vunpack.c.l.b16 %v6488
        %v7315 = vunpack.c.l.b16 %v6489
        %v7316 = vunpack.c.h.b16 %v6489
        %v7317 = vunpack.c.l.b16 %v6490
        %v7318 = vunpack.c.l.b16 %v6491
        %v7319 = vunpack.c.h.b16 %v6491
        %v7320 = vunpack.c.l.b16 %v6492
        %v7321 = vunpack.c.l.b16 %v6493
        %v7322 = vunpack.c.h.b16 %v6493
        %v7323 = vunpack.c.l.b16 %v6494
        %v7324 = vunpack.c.l.b16 %v6495
        %v7325 = vunpack.c.h.b16 %v6495
        %v7326 = vunpack.c.l.b16 %v6496
        %v7327 = vunpack.c.l.b16 %v6497
        %v7328 = vunpack.c.h.b16 %v6497
        %v7329 = vunpack.c.l.b16 %v6498
        %v7330 = vunpack.c.l.b16 %v6499
        %v7331 = vunpack.c.h.b16 %v6499
        %v7332 = vunpack.c.l.b16 %v6500
        %v7333 = vunpack.c.l.b16 %v6501
        %v7334 = vunpack.c.h.b16 %v6501
        %v7335 = vunpack.c.l.b16 %v6502
        %v7336 = vunpack.c.l.b16 %v6503
        %v7337 = vunpack.c.h.b16 %v6503
        %v7338 = vunpack.c.l.b16 %v6504
        %v7339 = vunpack.c.l.b16 %v6505
        %v7340 = vunpack.c.h.b16 %v6505
        %v7341 = vunpack.c.l.b16 %v6506
        %v7342 = vunpack.c.l.b16 %v6507
        %v7343 = vunpack.c.h.b16 %v6507
        %v7344 = vunpack.c.l.b16 %v6508
        %v7345 = vunpack.c.l.b16 %v6509
        %v7346 = vunpack.c.h.b16 %v6509
        %v7347 = vunpack.c.l.b16 %v6510
        %v7348 = vunpack.c.l.b16 %v6511
        %v7349 = vunpack.c.h.b16 %v6511
        %v7350 = vunpack.c.l.b16 %v6512
        %v7351 = vunpack.c.l.b16 %v6513
        %v7352 = vunpack.c.h.b16 %v6513
        %v7353 = vunpack.c.l.b16 %v6514
        %v7354 = vunpack.c.l.b16 %v6515
        %v7355 = vunpack.c.h.b16 %v6515
        %v7356 = vunpack.c.l.b16 %v6516
        %v7357 = vunpack.c.l.b16 %v6517
        %v7358 = vunpack.c.h.b16 %v6517
        %v7359 = vunpack.c.l.b16 %v6518
        %v7360 = vunpack.c.l.b16 %v6519
        %v7361 = vunpack.c.h.b16 %v6519
        %v7362 = vunpack.c.l.b16 %v6520
        %v7363 = vunpack.c.l.b16 %v6521
        %v7364 = vunpack.c.h.b16 %v6521
        %v7365 = vunpack.c.l.b16 %v6522
        %v7366 = vunpack.c.l.b16 %v6523
        %v7367 = vunpack.c.h.b16 %v6523
        %v7368 = vunpack.c.l.b16 %v6524
        %v7369 = vunpack.c.l.b16 %v6525
        %v7370 = vunpack.c.h.b16 %v6525
        %v7371 = vunpack.c.l.b16 %v6526
        %v7372 = vunpack.c.l.b16 %v6527
        %v7373 = vunpack.c.h.b16 %v6527
        %v7374 = vunpack.c.l.b16 %v6528
        %v7375 = vunpack.c.l.b16 %v6529
        %v7376 = vunpack.c.h.b16 %v6529
        %v7377 = vunpack.c.l.b16 %v6530
        %v7378 = vunpack.c.l.b16 %v6531
        %v7379 = vunpack.c.h.b16 %v6531
        %v7380 = vunpack.c.l.b16 %v6532
        %v7381 = vunpack.c.l.b16 %v6533
        %v7382 = vunpack.c.h.b16 %v6533
        %v7383 = vunpack.c.l.b16 %v6534
        %v7384 = vunpack.c.l.b16 %v6535
        %v7385 = vunpack.c.h.b16 %v6535
        %v7386 = vunpack.c.l.b16 %v6536
        %v7387 = vunpack.c.l.b16 %v6537
        %v7388 = vunpack.c.h.b16 %v6537
        %v7389 = vunpack.c.l.b16 %v6538
        %v7390 = vunpack.c.l.b16 %v6539
        %v7391 = vunpack.c.h.b16 %v6539
        %v7392 = vunpack.c.l.b16 %v6540
        %v7393 = vunpack.c.l.b16 %v6541
        %v7394 = vunpack.c.h.b16 %v6541
        %v7395 = vunpack.c.l.b16 %v6542
        %v7396 = vunpack.c.l.b16 %v6543
        %v7397 = vunpack.c.h.b16 %v6543
        %v7398 = vunpack.c.l.b16 %v6544
        %v7399 = vunpack.c.l.b16 %v6545
        %v7400 = vunpack.c.h.b16 %v6545
        %v7401 = vunpack.c.l.b16 %v6546
        %v7402 = vunpack.c.l.b16 %v6547
        %v7403 = vunpack.c.h.b16 %v6547
        %v7404 = vunpack.c.l.b16 %v6548
        %v7405 = vunpack.c.l.b16 %v6549
        %v7406 = vunpack.c.h.b16 %v6549
        %v7407 = vunpack.c.l.b16 %v6550
        %v7408 = vunpack.c.l.b16 %v6551
        %v7409 = vunpack.c.h.b16 %v6551
        %v7410 = vunpack.c.l.b16 %v6552
        %v7411 = vunpack.c.l.b16 %v6553
        %v7412 = vunpack.c.h.b16 %v6553
        %v7413 = vunpack.c.l.b16 %v6554
        %v7414 = vunpack.c.l.b16 %v6555
        %v7415 = vunpack.c.h.b16 %v6555
        %v7416 = vunpack.c.l.b16 %v6556
        %v7417 = vunpack.c.l.b16 %v6557
        %v7418 = vunpack.c.h.b16 %v6557
        %v7419 = vunpack.c.l.b16 %v6558
        %v7420 = vunpack.c.l.b16 %v6559
        %v7421 = vunpack.c.h.b16 %v6559
        %v7422 = vunpack.c.l.b16 %v6560
        %v7423 = vunpack.c.l.b16 %v6561
        %v7424 = vunpack.c.h.b16 %v6561
        %v7425 = vunpack.c.l.b16 %v6562
        %v7426 = vunpack.c.l.b16 %v6563
        %v7427 = vunpack.c.h.b16 %v6563
        %v7428 = vunpack.c.l.b16 %v6564
        %v7429 = vunpack.c.l.b16 %v6565
        %v7430 = vunpack.c.h.b16 %v6565
        %v7431 = vunpack.c.l.b16 %v6566
        %v7432 = vunpack.c.l.b16 %v6567
        %v7433 = vunpack.c.h.b16 %v6567
        %v7434 = vunpack.c.l.b16 %v6568
        %v7435 = vunpack.c.l.b16 %v6569
        %v7436 = vunpack.c.h.b16 %v6569
        %v7437 = vunpack.c.l.b16 %v6570
        %v7438 = vunpack.c.l.b16 %v6571
        %v7439 = vunpack.c.h.b16 %v6571
        %v7440 = vunpack.c.l.b16 %v6572
        %v7441 = vunpack.c.l.b16 %v6573
        %v7442 = vunpack.c.h.b16 %v6573
        %v7443 = vunpack.c.l.b16 %v6574
        %v7444 = vunpack.c.l.b16 %v6575
        %v7445 = vunpack.c.h.b16 %v6575
        %v7446 = vunpack.c.l.b16 %v6576
        %v7447 = vunpack.c.l.b16 %v6577
        %v7448 = vunpack.c.h.b16 %v6577
        %v7449 = vunpack.c.l.b16 %v6578
        %v7450 = vunpack.c.l.b16 %v6579
        %v7451 = vunpack.c.h.b16 %v6579
        %v7452 = vunpack.c.l.b16 %v6580
        %v7453 = vunpack.c.l.b16 %v6581
        %v7454 = vunpack.c.h.b16 %v6581
        %v7455 = vunpack.c.l.b16 %v6582
        %v7456 = vunpack.c.l.b16 %v6583
        %v7457 = vunpack.c.h.b16 %v6583
        %v7458 = vunpack.c.l.b16 %v6584
        %v7459 = vunpack.c.l.b16 %v6585
        %v7460 = vunpack.c.h.b16 %v6585
        %v7461 = vunpack.c.l.b16 %v6586
        %v7462 = vunpack.c.l.b16 %v6587
        %v7463 = vunpack.c.h.b16 %v6587
        %v7464 = vunpack.c.l.b16 %v6588
        %v7465 = vunpack.c.l.b16 %v6589
        %v7466 = vunpack.c.h.b16 %v6589
        %v7467 = vunpack.c.l.b16 %v6590
        %v7468 = vunpack.c.l.b16 %v6591
        %v7469 = vunpack.c.h.b16 %v6591
        %v7470 = vunpack.c.l.b16 %v6592
        %v7471 = vunpack.c.l.b16 %v6593
        %v7472 = vunpack.c.h.b16 %v6593
        %v7473 = vunpack.c.l.b16 %v6594
        %v7474 = vunpack.c.l.b16 %v6595
        %v7475 = vunpack.c.h.b16 %v6595
        %v7476 = vunpack.c.l.b16 %v6596
        %v7477 = vunpack.c.l.b16 %v6597
        %v7478 = vunpack.c.h.b16 %v6597
        %v7479 = vunpack.c.l.b16 %v6598
        %v7480 = vunpack.c.l.b16 %v6599
        %v7481 = vunpack.c.h.b16 %v6599
        %v7482 = vunpack.c.l.b16 %v6600
        %v7483 = vunpack.c.l.b16 %v6601
        %v7484 = vunpack.c.h.b16 %v6601
        %v7485 = vunpack.c.l.b16 %v6602
        %v7486 = vunpack.c.l.b16 %v6603
        %v7487 = vunpack.c.h.b16 %v6603
        %v7488 = vunpack.c.l.b16 %v6604
        %v7489 = vunpack.c.l.b16 %v6605
        %v7490 = vunpack.c.h.b16 %v6605
        %v7491 = vunpack.c.l.b16 %v6606
        %v7492 = vunpack.c.l.b16 %v6607
        %v7493 = vunpack.c.h.b16 %v6607
        %v7494 = vunpack.c.l.b16 %v6608
        %v7495 = vunpack.c.l.b16 %v6609
        %v7496 = vunpack.c.h.b16 %v6609
        %v7497 = vunpack.c.l.b16 %v6610
        %v7498 = vunpack.c.l.b16 %v6611
        %v7499 = vunpack.c.h.b16 %v6611
        %v7500 = vunpack.c.l.b16 %v6612
        %v7501 = vunpack.c.l.b16 %v6613
        %v7502 = vunpack.c.h.b16 %v6613
        %v7503 = vunpack.c.l.b16 %v6614
        %v7504 = vunpack.c.l.b16 %v6615
        %v7505 = vunpack.c.h.b16 %v6615
        %v7506 = vunpack.c.l.b16 %v6616
        %v7507 = vunpack.c.l.b16 %v6617
        %v7508 = vunpack.c.h.b16 %v6617
        %v7509 = vunpack.c.l.b16 %v6618
        %v7510 = vunpack.c.l.b16 %v6619
        %v7511 = vunpack.c.h.b16 %v6619
        %v7512 = vunpack.c.l.b16 %v6620
        %v7513 = vunpack.c.l.b16 %v6621
        %v7514 = vunpack.c.h.b16 %v6621
        %v7515 = vunpack.c.l.b16 %v6622
        %v7516 = vunpack.c.l.b16 %v6623
        %v7517 = vunpack.c.h.b16 %v6623
        %v7518 = vunpack.c.l.b16 %v6624
        %v7519 = vunpack.c.l.b16 %v6625
        %v7520 = vunpack.c.h.b16 %v6625
        %v7521 = vunpack.c.l.b16 %v6626
        %v7522 = vunpack.c.l.b16 %v6627
        %v7523 = vunpack.c.h.b16 %v6627
        %v7524 = vunpack.c.l.b16 %v6628
        %v7525 = vunpack.c.l.b16 %v6629
        %v7526 = vunpack.c.h.b16 %v6629
        %v7527 = vunpack.c.l.b16 %v6630
        %v7528 = vunpack.c.l.b16 %v6631
        %v7529 = vunpack.c.h.b16 %v6631
        %v7530 = vunpack.c.l.b16 %v6632
        %v7531 = vunpack.c.l.b16 %v6633
        %v7532 = vunpack.c.h.b16 %v6633
        %v7533 = vunpack.c.l.b16 %v6634
        %v7534 = vunpack.c.l.b16 %v6635
        %v7535 = vunpack.c.h.b16 %v6635
        %v7536 = vunpack.c.l.b16 %v6636
        %v7537 = vunpack.c.l.b16 %v6637
        %v7538 = vunpack.c.h.b16 %v6637
        %v7539 = vunpack.c.l.b16 %v6638
        %v7540 = vunpack.c.l.b16 %v6639
        %v7541 = vunpack.c.h.b16 %v6639
        %v7542 = vunpack.c.l.b16 %v6640
        %v7543 = vunpack.c.l.b16 %v6641
        %v7544 = vunpack.c.h.b16 %v6641
        %v7545 = vunpack.c.l.b16 %v6642
        %v7546 = vunpack.c.l.b16 %v6643
        %v7547 = vunpack.c.h.b16 %v6643
        %v7548 = vunpack.c.l.b16 %v6644
        %v7549 = vunpack.c.l.b16 %v6645
        %v7550 = vunpack.c.h.b16 %v6645
        %v7551 = vunpack.c.l.b16 %v6646
        %v7552 = vunpack.c.l.b16 %v6647
        %v7553 = vunpack.c.h.b16 %v6647
        %v7554 = vunpack.c.l.b16 %v6648
        %v7555 = vunpack.c.l.b16 %v6649
        %v7556 = vunpack.c.h.b16 %v6649
        %v7557 = vunpack.c.l.b16 %v6650
        %v7558 = vunpack.c.l.b16 %v6651
        %v7559 = vunpack.c.h.b16 %v6651
        %v7560 = vunpack.c.l.b16 %v6652
        %v7561 = vunpack.c.l.b16 %v6653
        %v7562 = vunpack.c.h.b16 %v6653
        %v7563 = vunpack.c.l.b16 %v6654
        %v7564 = vunpack.c.l.b16 %v6655
        %v7565 = vunpack.c.h.b16 %v6655
        %v7566 = vunpack.c.l.b16 %v6656
        %v7567 = vunpack.c.l.b16 %v6657
        %v7568 = vunpack.c.h.b16 %v6657
        %v7569 = vunpack.c.l.b16 %v6658
        %v7570 = vunpack.c.l.b16 %v6659
        %v7571 = vunpack.c.h.b16 %v6659
        %v7572 = vunpack.c.l.b16 %v6660
        %v7573 = vunpack.c.l.b16 %v6661
        %v7574 = vunpack.c.h.b16 %v6661
        %v7575 = vunpack.c.l.b16 %v6662
        %v7576 = vunpack.c.l.b16 %v6663
        %v7577 = vunpack.c.h.b16 %v6663
        %v7578 = vunpack.c.l.b16 %v6664
        %v7579 = vunpack.c.l.b16 %v6665
        %v7580 = vunpack.c.h.b16 %v6665
        %v7581 = vunpack.c.l.b16 %v6666
        %v7582 = vunpack.c.l.b16 %v6667
        %v7583 = vunpack.c.h.b16 %v6667
        %v7584 = vunpack.c.l.b16 %v6668
        %v7585 = vunpack.c.l.b16 %v6669
        %v7586 = vunpack.c.h.b16 %v6669
        %v7587 = vunpack.c.l.b16 %v6670
        %v7588 = vunpack.c.l.b16 %v6671
        %v7589 = vunpack.c.h.b16 %v6671
        %v7590 = vunpack.c.l.b16 %v6672
        %v7591 = vunpack.c.l.b16 %v6673
        %v7592 = vunpack.c.h.b16 %v6673
        %v7593 = vunpack.c.l.b16 %v6674
        %v7594 = vunpack.c.l.b16 %v6675
        %v7595 = vunpack.c.h.b16 %v6675
        %v7596 = vunpack.c.l.b16 %v6676
        %v7597 = vunpack.c.l.b16 %v6677
        %v7598 = vunpack.c.h.b16 %v6677
        %v7599 = vunpack.c.l.b16 %v6678
        %v7600 = vunpack.c.l.b16 %v6679
        %v7601 = vunpack.c.h.b16 %v6679
        %v7602 = vunpack.c.l.b16 %v6680
        %v7603 = vunpack.c.l.b16 %v6681
        %v7604 = vunpack.c.h.b16 %v6681
        %v7605 = vunpack.c.l.b16 %v6682
        %v7606 = vunpack.c.l.b16 %v6683
        %v7607 = vunpack.c.h.b16 %v6683
        %v7608 = vunpack.c.l.b16 %v6684
        %v7609 = vunpack.c.l.b16 %v6685
        %v7610 = vunpack.c.h.b16 %v6685
        %v7611 = vunpack.c.l.b16 %v6686
        %v7612 = vunpack.c.l.b16 %v6687
        %v7613 = vunpack.c.h.b16 %v6687
        %v7614 = vunpack.c.l.b16 %v6688
        %v7615 = vunpack.c.l.b16 %v6689
        %v7616 = vunpack.c.h.b16 %v6689
        %v7617 = vunpack.c.l.b16 %v6690
        %v7618 = vunpack.c.l.b16 %v6691
        %v7619 = vunpack.c.h.b16 %v6691
        %v7620 = vunpack.c.l.b16 %v6692
        %v7621 = vunpack.c.l.b16 %v6693
        %v7622 = vunpack.c.h.b16 %v6693
        %v7623 = vunpack.c.l.b16 %v6694
        %v7624 = vunpack.c.l.b16 %v6695
        %v7625 = vunpack.c.h.b16 %v6695
        %v7626 = vunpack.c.l.b16 %v6696
        %v7627 = vunpack.c.l.b16 %v6697
        %v7628 = vunpack.c.h.b16 %v6697
        %v7629 = vunpack.c.l.b16 %v6698
        %v7630 = vunpack.c.l.b16 %v6699
        %v7631 = vunpack.c.h.b16 %v6699
        %v7632 = vunpack.c.l.b16 %v6700
        %v7633 = vunpack.c.l.b16 %v6701
        %v7634 = vunpack.c.h.b16 %v6701
        %v7635 = vunpack.c.l.b16 %v6702
        %v7636 = vunpack.c.l.b16 %v6703
        %v7637 = vunpack.c.h.b16 %v6703
        %v7638 = vunpack.c.l.b16 %v6704
        %v7639 = vunpack.c.l.b16 %v6705
        %v7640 = vunpack.c.h.b16 %v6705
        %v7641 = vunpack.c.l.b16 %v6706
        %v7642 = vunpack.c.l.b16 %v6707
        %v7643 = vunpack.c.h.b16 %v6707
        %v7644 = vunpack.c.l.b16 %v6708
        %v7645 = vunpack.c.l.b16 %v6709
        %v7646 = vunpack.c.h.b16 %v6709
        %v7647 = vunpack.c.l.b16 %v6710
        %v7648 = vunpack.c.l.b16 %v6711
        %v7649 = vunpack.c.h.b16 %v6711
        %v7650 = vunpack.c.l.b16 %v6712
        %v7651 = vunpack.c.l.b16 %v6713
        %v7652 = vunpack.c.h.b16 %v6713
        %v7653 = vunpack.c.l.b16 %v6714
        %v7654 = vunpack.c.l.b16 %v6715
        %v7655 = vunpack.c.h.b16 %v6715
        %v7656 = vunpack.c.l.b16 %v6716
        %v7657 = vunpack.c.l.b16 %v6717
        %v7658 = vunpack.c.h.b16 %v6717
        %v7659 = vunpack.c.l.b16 %v6718
        %v7660 = vunpack.c.l.b16 %v6719
        %v7661 = vunpack.c.h.b16 %v6719
        %v7662 = vunpack.c.l.b16 %v6720
        %v7663 = vunpack.c.l.b16 %v6721
        %v7664 = vunpack.c.h.b16 %v6721
        %v7665 = vunpack.c.l.b16 %v6722
        %v7666 = vunpack.c.l.b16 %v6723
        %v7667 = vunpack.c.h.b16 %v6723
        %v7668 = vunpack.c.l.b16 %v6724
        %v7669 = vunpack.c.l.b16 %v6725
        %v7670 = vunpack.c.h.b16 %v6725
        %v7671 = vunpack.c.l.b16 %v6726
        %v7672 = vunpack.c.l.b16 %v6727
        %v7673 = vunpack.c.h.b16 %v6727
        %v7674 = vunpack.c.l.b16 %v6728
        %v7675 = vunpack.c.l.b16 %v6729
        %v7676 = vunpack.c.h.b16 %v6729
        %v7677 = vunpack.c.l.b16 %v6730
        %v7678 = vunpack.c.l.b16 %v6731
        %v7679 = vunpack.c.h.b16 %v6731
        %v7680 = vunpack.c.l.b16 %v6732
        %v7681 = vunpack.c.l.b16 %v6733
        %v7682 = vunpack.c.h.b16 %v6733
        %v7683 = vunpack.c.l.b16 %v6734
        %v7684 = vunpack.c.l.b16 %v6735
        %v7685 = vunpack.c.h.b16 %v6735
        %v7686 = vunpack.c.l.b16 %v6736
        %v7687 = vunpack.c.l.b16 %v6737
        %v7688 = vunpack.c.h.b16 %v6737
        %v7689 = vunpack.c.l.b16 %v6738
        %v7690 = vunpack.c.l.b16 %v6739
        %v7691 = vunpack.c.h.b16 %v6739
        %v7692 = vunpack.c.l.b16 %v6740
        %v7693 = vunpack.c.l.b16 %v6741
        %v7694 = vunpack.c.h.b16 %v6741
        %v7695 = vunpack.c.l.b16 %v6742
        %v7696 = vunpack.c.l.b16 %v6743
        %v7697 = vunpack.c.h.b16 %v6743
        %v7698 = vunpack.c.l.b16 %v6744
        %v7699 = vunpack.c.l.b16 %v6745
        %v7700 = vunpack.c.h.b16 %v6745
        %v7701 = vunpack.c.l.b16 %v6746
        %v7702 = vunpack.c.l.b16 %v6747
        %v7703 = vunpack.c.h.b16 %v6747
        %v7704 = vunpack.c.l.b16 %v6748
        %v7705 = vunpack.c.l.b16 %v6749
        %v7706 = vunpack.c.h.b16 %v6749
        %v7707 = vunpack.c.l.b16 %v6750
        %v7708 = vunpack.c.l.b16 %v6751
        %v7709 = vunpack.c.h.b16 %v6751
        %v7710 = vunpack.c.l.b16 %v6752
        %v7711 = vunpack.c.l.b16 %v6753
        %v7712 = vunpack.c.h.b16 %v6753
        %v7713 = vunpack.c.l.b16 %v6754
        %v7714 = vunpack.c.l.b16 %v6755
        %v7715 = vunpack.c.h.b16 %v6755
        %v7716 = vunpack.c.l.b16 %v6756
        %v7717 = vunpack.c.l.b16 %v6757
        %v7718 = vunpack.c.h.b16 %v6757
        %v7719 = vunpack.c.l.b16 %v6758
        %v7720 = vunpack.c.l.b16 %v6759
        %v7721 = vunpack.c.h.b16 %v6759
        %v7722 = vunpack.c.l.b16 %v6760
        %v7723 = vunpack.c.l.b16 %v6761
        %v7724 = vunpack.c.h.b16 %v6761
        %v7725 = vunpack.c.l.b16 %v6762
        %v7726 = vunpack.c.l.b16 %v6763
        %v7727 = vunpack.c.h.b16 %v6763
        %v7728 = vunpack.c.l.b16 %v6764
        %v7729 = vunpack.c.l.b16 %v6765
        %v7730 = vunpack.c.h.b16 %v6765
        %v7731 = vunpack.c.l.b16 %v6766
        %v7732 = vunpack.c.l.b16 %v6767
        %v7733 = vunpack.c.h.b16 %v6767
        %v7734 = vunpack.c.l.b16 %v6768
        %v7735 = vunpack.c.l.b16 %v6769
        %v7736 = vunpack.c.h.b16 %v6769
        %v7737 = vunpack.c.l.b16 %v6770
        %v7738 = vunpack.c.l.b16 %v6771
        %v7739 = vunpack.c.h.b16 %v6771
        %v7740 = vunpack.c.l.b16 %v6772
        %v7741 = vunpack.c.l.b16 %v6773
        %v7742 = vunpack.c.h.b16 %v6773
        %v7743 = vunpack.c.l.b16 %v6774
        %v7744 = vunpack.c.l.b16 %v6775
        %v7745 = vunpack.c.h.b16 %v6775
        %v7746 = vunpack.c.l.b16 %v6776
        %v7747 = vunpack.c.l.b16 %v6777
        %v7748 = vunpack.c.h.b16 %v6777
        %v7749 = vunpack.c.l.b16 %v6778
        %v7750 = vunpack.c.l.b16 %v6779
        %v7751 = vunpack.c.h.b16 %v6779
        %v7752 = vunpack.c.l.b16 %v6780
        %v7753 = vunpack.c.l.b16 %v6781
        %v7754 = vunpack.c.h.b16 %v6781
        %v7755 = vunpack.c.l.b16 %v6782
        %v7756 = vunpack.c.l.b16 %v6783
        %v7757 = vunpack.c.h.b16 %v6783
        %v7758 = vunpack.c.l.b16 %v6784
        %v7759 = vunpack.c.l.b16 %v6785
        %v7760 = vunpack.c.h.b16 %v6785
        %v7761 = vunpack.c.l.b16 %v6786
        %v7762 = vunpack.c.l.b16 %v6787
        %v7763 = vunpack.c.h.b16 %v6787
        %v7764 = vunpack.c.l.b16 %v6788
        %v7765 = vunpack.c.l.b16 %v6789
        %v7766 = vunpack.c.h.b16 %v6789
        %v7767 = vunpack.c.l.b16 %v6790
        %v7768 = vpack.c.b16 %v7195, %v7192
        %v7769 = vpack.c.b16 %v7196, %v7193
        %v7770 = vpack.c.b16 %v7197, %v7194
        %v7771 = vpack.c.b16 %v7201, %v7198
        %v7772 = vpack.c.b16 %v7202, %v7199
        %v7773 = vpack.c.b16 %v7203, %v7200
        %v7774 = vpack.c.b16 %v7207, %v7204
        %v7775 = vpack.c.b16 %v7208, %v7205
        %v7776 = vpack.c.b16 %v7209, %v7206
        %v7777 = vpack.c.b16 %v7213, %v7210
        %v7778 = vpack.c.b16 %v7214, %v7211
        %v7779 = vpack.c.b16 %v7215, %v7212
        %v7780 = vpack.c.b16 %v7219, %v7216
        %v7781 = vpack.c.b16 %v7220, %v7217
        %v7782 = vpack.c.b16 %v7221, %v7218
        %v7783 = vpack.c.b16 %v7225, %v7222
        %v7784 = vpack.c.b16 %v7226, %v7223
        %v7785 = vpack.c.b16 %v7227, %v7224
        %v7786 = vpack.c.b16 %v7231, %v7228
        %v7787 = vpack.c.b16 %v7232, %v7229
        %v7788 = vpack.c.b16 %v7233, %v7230
        %v7789 = vpack.c.b16 %v7237, %v7234
        %v7790 = vpack.c.b16 %v7238, %v7235
        %v7791 = vpack.c.b16 %v7239, %v7236
        %v7792 = vpack.c.b16 %v7243, %v7240
        %v7793 = vpack.c.b16 %v7244, %v7241
        %v7794 = vpack.c.b16 %v7245, %v7242
        %v7795 = vpack.c.b16 %v7249, %v7246
        %v7796 = vpack.c.b16 %v7250, %v7247
        %v7797 = vpack.c.b16 %v7251, %v7248
        %v7798 = vpack.c.b16 %v7255, %v7252
        %v7799 = vpack.c.b16 %v7256, %v7253
        %v7800 = vpack.c.b16 %v7257, %v7254
        %v7801 = vpack.c.b16 %v7261, %v7258
        %v7802 = vpack.c.b16 %v7262, %v7259
        %v7803 = vpack.c.b16 %v7263, %v7260
        %v7804 = vpack.c.b16 %v7267, %v7264
        %v7805 = vpack.c.b16 %v7268, %v7265
        %v7806 = vpack.c.b16 %v7269, %v7266
        %v7807 = vpack.c.b16 %v7273, %v7270
        %v7808 = vpack.c.b16 %v7274, %v7271
        %v7809 = vpack.c.b16 %v7275, %v7272
        %v7810 = vpack.c.b16 %v7279, %v7276
        %v7811 = vpack.c.b16 %v7280, %v7277
        %v7812 = vpack.c.b16 %v7281, %v7278
        %v7813 = vpack.c.b16 %v7285, %v7282
        %v7814 = vpack.c.b16 %v7286, %v7283
        %v7815 = vpack.c.b16 %v7287, %v7284
        %v7816 = vpack.c.b16 %v7291, %v7288
        %v7817 = vpack.c.b16 %v7292, %v7289
        %v7818 = vpack.c.b16 %v7293, %v7290
        %v7819 = vpack.c.b16 %v7297, %v7294
        %v7820 = vpack.c.b16 %v7298, %v7295
        %v7821 = vpack.c.b16 %v7299, %v7296
        %v7822 = vpack.c.b16 %v7303, %v7300
        %v7823 = vpack.c.b16 %v7304, %v7301
        %v7824 = vpack.c.b16 %v7305, %v7302
        %v7825 = vpack.c.b16 %v7309, %v7306
        %v7826 = vpack.c.b16 %v7310, %v7307
        %v7827 = vpack.c.b16 %v7311, %v7308
        %v7828 = vpack.c.b16 %v7315, %v7312
        %v7829 = vpack.c.b16 %v7316, %v7313
        %v7830 = vpack.c.b16 %v7317, %v7314
        %v7831 = vpack.c.b16 %v7321, %v7318
        %v7832 = vpack.c.b16 %v7322, %v7319
        %v7833 = vpack.c.b16 %v7323, %v7320
        %v7834 = vpack.c.b16 %v7327, %v7324
        %v7835 = vpack.c.b16 %v7328, %v7325
        %v7836 = vpack.c.b16 %v7329, %v7326
        %v7837 = vpack.c.b16 %v7333, %v7330
        %v7838 = vpack.c.b16 %v7334, %v7331
        %v7839 = vpack.c.b16 %v7335, %v7332
        %v7840 = vpack.c.b16 %v7339, %v7336
        %v7841 = vpack.c.b16 %v7340, %v7337
        %v7842 = vpack.c.b16 %v7341, %v7338
        %v7843 = vpack.c.b16 %v7345, %v7342
        %v7844 = vpack.c.b16 %v7346, %v7343
        %v7845 = vpack.c.b16 %v7347, %v7344
        %v7846 = vpack.c.b16 %v7351, %v7348
        %v7847 = vpack.c.b16 %v7352, %v7349
        %v7848 = vpack.c.b16 %v7353, %v7350
        %v7849 = vpack.c.b16 %v7357, %v7354
        %v7850 = vpack.c.b16 %v7358, %v7355
        %v7851 = vpack.c.b16 %v7359, %v7356
        %v7852 = vpack.c.b16 %v7363, %v7360
        %v7853 = vpack.c.b16 %v7364, %v7361
        %v7854 = vpack.c.b16 %v7365, %v7362
        %v7855 = vpack.c.b16 %v7369, %v7366
        %v7856 = vpack.c.b16 %v7370, %v7367
        %v7857 = vpack.c.b16 %v7371, %v7368
        %v7858 = vpack.c.b16 %v7375, %v7372
        %v7859 = vpack.c.b16 %v7376, %v7373
        %v7860 = vpack.c.b16 %v7377, %v7374
        %v7861 = vpack.c.b16 %v7381, %v7378
        %v7862 = vpack.c.b16 %v7382, %v7379
        %v7863 = vpack.c.b16 %v7383, %v7380
        %v7864 = vpack.c.b16 %v7387, %v7384
        %v7865 = vpack.c.b16 %v7388, %v7385
        %v7866 = vpack.c.b16 %v7389, %v7386
        %v7867 = vpack.c.b16 %v7393, %v7390
        %v7868 = vpack.c.b16 %v7394, %v7391
        %v7869 = vpack.c.b16 %v7395, %v7392
        %v7870 = vpack.c.b16 %v7399, %v7396
        %v7871 = vpack.c.b16 %v7400, %v7397
        %v7872 = vpack.c.b16 %v7401, %v7398
        %v7873 = vpack.c.b16 %v7405, %v7402
        %v7874 = vpack.c.b16 %v7406, %v7403
        %v7875 = vpack.c.b16 %v7407, %v7404
        %v7876 = vpack.c.b16 %v7411, %v7408
        %v7877 = vpack.c.b16 %v7412, %v7409
        %v7878 = vpack.c.b16 %v7413, %v7410
        %v7879 = vpack.c.b16 %v7417, %v7414
        %v7880 = vpack.c.b16 %v7418, %v7415
        %v7881 = vpack.c.b16 %v7419, %v7416
        %v7882 = vpack.c.b16 %v7423, %v7420
        %v7883 = vpack.c.b16 %v7424, %v7421
        %v7884 = vpack.c.b16 %v7425, %v7422
        %v7885 = vpack.c.b16 %v7429, %v7426
        %v7886 = vpack.c.b16 %v7430, %v7427
        %v7887 = vpack.c.b16 %v7431, %v7428
        %v7888 = vpack.c.b16 %v7435, %v7432
        %v7889 = vpack.c.b16 %v7436, %v7433
        %v7890 = vpack.c.b16 %v7437, %v7434
        %v7891 = vpack.c.b16 %v7441, %v7438
        %v7892 = vpack.c.b16 %v7442, %v7439
        %v7893 = vpack.c.b16 %v7443, %v7440
        %v7894 = vpack.c.b16 %v7447, %v7444
        %v7895 = vpack.c.b16 %v7448, %v7445
        %v7896 = vpack.c.b16 %v7449, %v7446
        %v7897 = vpack.c.b16 %v7453, %v7450
        %v7898 = vpack.c.b16 %v7454, %v7451
        %v7899 = vpack.c.b16 %v7455, %v7452
        %v7900 = vpack.c.b16 %v7459, %v7456
        %v7901 = vpack.c.b16 %v7460, %v7457
        %v7902 = vpack.c.b16 %v7461, %v7458
        %v7903 = vpack.c.b16 %v7465, %v7462
        %v7904 = vpack.c.b16 %v7466, %v7463
        %v7905 = vpack.c.b16 %v7467, %v7464
        %v7906 = vpack.c.b16 %v7471, %v7468
        %v7907 = vpack.c.b16 %v7472, %v7469
        %v7908 = vpack.c.b16 %v7473, %v7470
        %v7909 = vpack.c.b16 %v7477, %v7474
        %v7910 = vpack.c.b16 %v7478, %v7475
        %v7911 = vpack.c.b16 %v7479, %v7476
        %v7912 = vpack.c.b16 %v7483, %v7480
        %v7913 = vpack.c.b16 %v7484, %v7481
        %v7914 = vpack.c.b16 %v7485, %v7482
        %v7915 = vpack.c.b16 %v7489, %v7486
        %v7916 = vpack.c.b16 %v7490, %v7487
        %v7917 = vpack.c.b16 %v7491, %v7488
        %v7918 = vpack.c.b16 %v7495, %v7492
        %v7919 = vpack.c.b16 %v7496, %v7493
        %v7920 = vpack.c.b16 %v7497, %v7494
        %v7921 = vpack.c.b16 %v7501, %v7498
        %v7922 = vpack.c.b16 %v7502, %v7499
        %v7923 = vpack.c.b16 %v7503, %v7500
        %v7924 = vpack.c.b16 %v7507, %v7504
        %v7925 = vpack.c.b16 %v7508, %v7505
        %v7926 = vpack.c.b16 %v7509, %v7506
        %v7927 = vpack.c.b16 %v7513, %v7510
        %v7928 = vpack.c.b16 %v7514, %v7511
        %v7929 = vpack.c.b16 %v7515, %v7512
        %v7930 = vpack.c.b16 %v7519, %v7516
        %v7931 = vpack.c.b16 %v7520, %v7517
        %v7932 = vpack.c.b16 %v7521, %v7518
        %v7933 = vpack.c.b16 %v7525, %v7522
        %v7934 = vpack.c.b16 %v7526, %v7523
        %v7935 = vpack.c.b16 %v7527, %v7524
        %v7936 = vpack.c.b16 %v7531, %v7528
        %v7937 = vpack.c.b16 %v7532, %v7529
        %v7938 = vpack.c.b16 %v7533, %v7530
        %v7939 = vpack.c.b16 %v7537, %v7534
        %v7940 = vpack.c.b16 %v7538, %v7535
        %v7941 = vpack.c.b16 %v7539, %v7536
        %v7942 = vpack.c.b16 %v7543, %v7540
        %v7943 = vpack.c.b16 %v7544, %v7541
        %v7944 = vpack.c.b16 %v7545, %v7542
        %v7945 = vpack.c.b16 %v7549, %v7546
        %v7946 = vpack.c.b16 %v7550, %v7547
        %v7947 = vpack.c.b16 %v7551, %v7548
        %v7948 = vpack.c.b16 %v7555, %v7552
        %v7949 = vpack.c.b16 %v7556, %v7553
        %v7950 = vpack.c.b16 %v7557, %v7554
        %v7951 = vpack.c.b16 %v7561, %v7558
        %v7952 = vpack.c.b16 %v7562, %v7559
        %v7953 = vpack.c.b16 %v7563, %v7560
        %v7954 = vpack.c.b16 %v7567, %v7564
        %v7955 = vpack.c.b16 %v7568, %v7565
        %v7956 = vpack.c.b16 %v7569, %v7566
        %v7957 = vpack.c.b16 %v7573, %v7570
        %v7958 = vpack.c.b16 %v7574, %v7571
        %v7959 = vpack.c.b16 %v7575, %v7572
        %v7960 = vpack.c.b16 %v7579, %v7576
        %v7961 = vpack.c.b16 %v7580, %v7577
        %v7962 = vpack.c.b16 %v7581, %v7578
        %v7963 = vpack.c.b16 %v7585, %v7582
        %v7964 = vpack.c.b16 %v7586, %v7583
        %v7965 = vpack.c.b16 %v7587, %v7584
        %v7966 = vpack.c.b16 %v7591, %v7588
        %v7967 = vpack.c.b16 %v7592, %v7589
        %v7968 = vpack.c.b16 %v7593, %v7590
        %v7969 = vpack.c.b16 %v7597, %v7594
        %v7970 = vpack.c.b16 %v7598, %v7595
        %v7971 = vpack.c.b16 %v7599, %v7596
        %v7972 = vpack.c.b16 %v7603, %v7600
        %v7973 = vpack.c.b16 %v7604, %v7601
        %v7974 = vpack.c.b16 %v7605, %v7602
        %v7975 = vpack.c.b16 %v7609, %v7606
        %v7976 = vpack.c.b16 %v7610, %v7607
        %v7977 = vpack.c.b16 %v7611, %v7608
        %v7978 = vpack.c.b16 %v7615, %v7612
        %v7979 = vpack.c.b16 %v7616, %v7613
        %v7980 = vpack.c.b16 %v7617, %v7614
        %v7981 = vpack.c.b16 %v7621, %v7618
        %v7982 = vpack.c.b16 %v7622, %v7619
        %v7983 = vpack.c.b16 %v7623, %v7620
        %v7984 = vpack.c.b16 %v7627, %v7624
        %v7985 = vpack.c.b16 %v7628, %v7625
        %v7986 = vpack.c.b16 %v7629, %v7626
        %v7987 = vpack.c.b16 %v7633, %v7630
        %v7988 = vpack.c.b16 %v7634, %v7631
        %v7989 = vpack.c.b16 %v7635, %v7632
        %v7990 = vpack.c.b16 %v7639, %v7636
        %v7991 = vpack.c.b16 %v7640, %v7637
        %v7992 = vpack.c.b16 %v7641, %v7638
        %v7993 = vpack.c.b16 %v7645, %v7642
        %v7994 = vpack.c.b16 %v7646, %v7643
        %v7995 = vpack.c.b16 %v7647, %v7644
        %v7996 = vpack.c.b16 %v7651, %v7648
        %v7997 = vpack.c.b16 %v7652, %v7649
        %v7998 = vpack.c.b16 %v7653, %v7650
        %v7999 = vpack.c.b16 %v7657, %v7654
        %v8000 = vpack.c.b16 %v7658, %v7655
        %v8001 = vpack.c.b16 %v7659, %v7656
        %v8002 = vpack.c.b16 %v7663, %v7660
        %v8003 = vpack.c.b16 %v7664, %v7661
        %v8004 = vpack.c.b16 %v7665, %v7662
        %v8005 = vpack.c.b16 %v7669, %v7666
        %v8006 = vpack.c.b16 %v7670, %v7667
        %v8007 = vpack.c.b16 %v7671, %v7668
        %v8008 = vpack.c.b16 %v7675, %v7672
        %v8009 = vpack.c.b16 %v7676, %v7673
        %v8010 = vpack.c.b16 %v7677, %v7674
        %v8011 = vpack.c.b16 %v7681, %v7678
        %v8012 = vpack.c.b16 %v7682, %v7679
        %v8013 = vpack.c.b16 %v7683, %v7680
        %v8014 = vpack.c.b16 %v7687, %v7684
        %v8015 = vpack.c.b16 %v7688, %v7685
        %v8016 = vpack.c.b16 %v7689, %v7686
        %v8017 = vpack.c.b16 %v7693, %v7690
        %v8018 = vpack.c.b16 %v7694, %v7691
        %v8019 = vpack.c.b16 %v7695, %v7692
        %v8020 = vpack.c.b16 %v7699, %v7696
        %v8021 = vpack.c.b16 %v7700, %v7697
        %v8022 = vpack.c.b16 %v7701, %v7698
        %v8023 = vpack.c.b16 %v7705, %v7702
        %v8024 = vpack.c.b16 %v7706, %v7703
        %v8025 = vpack.c.b16 %v7707, %v7704
        %v8026 = vpack.c.b16 %v7711, %v7708
        %v8027 = vpack.c.b16 %v7712, %v7709
        %v8028 = vpack.c.b16 %v7713, %v7710
        %v8029 = vpack.c.b16 %v7717, %v7714
        %v8030 = vpack.c.b16 %v7718, %v7715
        %v8031 = vpack.c.b16 %v7719, %v7716
        %v8032 = vpack.c.b16 %v7723, %v7720
        %v8033 = vpack.c.b16 %v7724, %v7721
        %v8034 = vpack.c.b16 %v7725, %v7722
        %v8035 = vpack.c.b16 %v7729, %v7726
        %v8036 = vpack.c.b16 %v7730, %v7727
        %v8037 = vpack.c.b16 %v7731, %v7728
        %v8038 = vpack.c.b16 %v7735, %v7732
        %v8039 = vpack.c.b16 %v7736, %v7733
        %v8040 = vpack.c.b16 %v7737, %v7734
        %v8041 = vpack.c.b16 %v7741, %v7738
        %v8042 = vpack.c.b16 %v7742, %v7739
        %v8043 = vpack.c.b16 %v7743, %v7740
        %v8044 = vpack.c.b16 %v7747, %v7744
        %v8045 = vpack.c.b16 %v7748, %v7745
        %v8046 = vpack.c.b16 %v7749, %v7746
        %v8047 = vpack.c.b16 %v7753, %v7750
        %v8048 = vpack.c.b16 %v7754, %v7751
        %v8049 = vpack.c.b16 %v7755, %v7752
        %v8050 = vpack.c.b16 %v7759, %v7756
        %v8051 = vpack.c.b16 %v7760, %v7757
        %v8052 = vpack.c.b16 %v7761, %v7758
        %v8053 = vpack.c.b16 %v7765, %v7762
        %v8054 = vpack.c.b16 %v7766, %v7763
        %v8055 = vpack.c.b16 %v7767, %v7764
        %8344 = vmatprep.subr.bf16.mxu0 %v7790
        %8345 = vmatpush1.bf16.msra.mxu0 %v7789
        %8346 = vmatprep.subr.bf16.mxu0 %v7787
        %8347 = vmatpush1.bf16.msra.mxu0 %v7786
        %8348 = vmatprep.subr.bf16.mxu0 %v7784
        %8349 = vmatpush1.bf16.msra.mxu0 %v7783
        %8350 = vmatprep.subr.bf16.mxu0 %v7781
        %8351 = vmatpush1.bf16.msra.mxu0 %v7780
        %8352 = vmatprep.subr.bf16.mxu0 %v7778
        %8353 = vmatpush1.bf16.msra.mxu0 %v7777
        %8354 = vmatprep.subr.bf16.mxu0 %v7775
        %8355 = vmatpush1.bf16.msra.mxu0 %v7774
        %8356 = vmatprep.subr.bf16.mxu0 %v7772
        %8357 = vmatpush1.bf16.msra.mxu0 %v7771
        %8358 = vmatprep.subr.bf16.mxu0 %v7769
        %8359 = vmatpush1.bf16.msra.mxu0 %v7768
        %8360 = vmatprep.subr.bf16.mxu0 %v7814
        %8361 = vmatpush2.bf16.msra.mxu0 %v7813
        %8362 = vmatprep.subr.bf16.mxu0 %v7811
        %8363 = vmatpush2.bf16.msra.mxu0 %v7810
        %8364 = vmatprep.subr.bf16.mxu0 %v7808
        %8365 = vmatpush2.bf16.msra.mxu0 %v7807
        %8366 = vmatprep.subr.bf16.mxu0 %v7805
        %8367 = vmatpush2.bf16.msra.mxu0 %v7804
        %8368 = vmatprep.subr.bf16.mxu0 %v7802
        %8369 = vmatpush2.bf16.msra.mxu0 %v7801
        %8370 = vmatprep.subr.bf16.mxu0 %v7799
        %8371 = vmatpush2.bf16.msra.mxu0 %v7798
        %8372 = vmatprep.subr.bf16.mxu0 %v7796
        %8373 = vmatpush2.bf16.msra.mxu0 %v7795
        %8374 = vmatprep.subr.bf16.mxu0 %v7793
        %8375 = vmatpush2.bf16.msra.mxu0 %v7792
        %8376 = vmatprep.mubr.bf16.mxu0 %v6396
        %8377 = vmatmul.mubr.bf16.gmra.mxu0 %v6395
        %v8378 = vpop.f32.mrf.mxu0
        %v8379 = vadd.f32 %v6796, %v8378
        %v8380 = vpop.f32.mrf.mxu0
        %v8381 = vadd.f32 %v6800, %v8380
        %v8382 = vpop.f32.mrf.mxu0
        %v8383 = vadd.f32 %v6796, %v8382
        %v8384 = vpop.f32.mrf.mxu0
        %v8385 = vadd.f32 %v6800, %v8384
        %8386 = vdwg.mxu0
        %8387 = vmatprep.subr.bf16.mxu0 %v7838
        %8388 = vmatpush1.bf16.msra.mxu0 %v7837
        %8389 = vmatprep.subr.bf16.mxu0 %v7835
        %8390 = vmatpush1.bf16.msra.mxu0 %v7834
        %8391 = vmatprep.subr.bf16.mxu0 %v7832
        %8392 = vmatpush1.bf16.msra.mxu0 %v7831
        %8393 = vmatprep.subr.bf16.mxu0 %v7829
        %8394 = vmatpush1.bf16.msra.mxu0 %v7828
        %8395 = vmatprep.subr.bf16.mxu0 %v7826
        %8396 = vmatpush1.bf16.msra.mxu0 %v7825
        %8397 = vmatprep.subr.bf16.mxu0 %v7823
        %8398 = vmatpush1.bf16.msra.mxu0 %v7822
        %8399 = vmatprep.subr.bf16.mxu0 %v7820
        %8400 = vmatpush1.bf16.msra.mxu0 %v7819
        %8401 = vmatprep.subr.bf16.mxu0 %v7817
        %8402 = vmatpush1.bf16.msra.mxu0 %v7816
        %8403 = vmatprep.subr.bf16.mxu0 %v7862
        %8404 = vmatpush2.bf16.msra.mxu0 %v7861
        %8405 = vmatprep.subr.bf16.mxu0 %v7859
        %8406 = vmatpush2.bf16.msra.mxu0 %v7858
        %8407 = vmatprep.subr.bf16.mxu0 %v7856
        %8408 = vmatpush2.bf16.msra.mxu0 %v7855
        %8409 = vmatprep.subr.bf16.mxu0 %v7853
        %8410 = vmatpush2.bf16.msra.mxu0 %v7852
        %8411 = vmatprep.subr.bf16.mxu0 %v7850
        %8412 = vmatpush2.bf16.msra.mxu0 %v7849
        %8413 = vmatprep.subr.bf16.mxu0 %v7847
        %8414 = vmatpush2.bf16.msra.mxu0 %v7846
        %8415 = vmatprep.subr.bf16.mxu0 %v7844
        %8416 = vmatpush2.bf16.msra.mxu0 %v7843
        %8417 = vmatprep.subr.bf16.mxu0 %v7841
        %8418 = vmatpush2.bf16.msra.mxu0 %v7840
        %8419 = vmatprep.mubr.bf16.mxu0 %v6398
        %8420 = vmatmul.mubr.bf16.gmra.mxu0 %v6397
        %v8421 = vpop.f32.mrf.mxu0
        %v8422 = vadd.f32 %v8379, %v8421
        %v8423 = vpop.f32.mrf.mxu0
        %v8424 = vadd.f32 %v8381, %v8423
        %v8425 = vpop.f32.mrf.mxu0
        %v8426 = vadd.f32 %v8383, %v8425
        %v8427 = vpop.f32.mrf.mxu0
        %v8428 = vadd.f32 %v8385, %v8427
        %8429 = vdwg.mxu0
        %8430 = vmatprep.subr.bf16.mxu0 %v7886
        %8431 = vmatpush1.bf16.msra.mxu0 %v7885
        %8432 = vmatprep.subr.bf16.mxu0 %v7883
        %8433 = vmatpush1.bf16.msra.mxu0 %v7882
        %8434 = vmatprep.subr.bf16.mxu0 %v7880
        %8435 = vmatpush1.bf16.msra.mxu0 %v7879
        %8436 = vmatprep.subr.bf16.mxu0 %v7877
        %8437 = vmatpush1.bf16.msra.mxu0 %v7876
        %8438 = vmatprep.subr.bf16.mxu0 %v7874
        %8439 = vmatpush1.bf16.msra.mxu0 %v7873
        %8440 = vmatprep.subr.bf16.mxu0 %v7871
        %8441 = vmatpush1.bf16.msra.mxu0 %v7870
        %8442 = vmatprep.subr.bf16.mxu0 %v7868
        %8443 = vmatpush1.bf16.msra.mxu0 %v7867
        %8444 = vmatprep.subr.bf16.mxu0 %v7865
        %8445 = vmatpush1.bf16.msra.mxu0 %v7864
        %8446 = vmatprep.subr.bf16.mxu0 %v7910
        %8447 = vmatpush2.bf16.msra.mxu0 %v7909
        %8448 = vmatprep.subr.bf16.mxu0 %v7907
        %8449 = vmatpush2.bf16.msra.mxu0 %v7906
        %8450 = vmatprep.subr.bf16.mxu0 %v7904
        %8451 = vmatpush2.bf16.msra.mxu0 %v7903
        %8452 = vmatprep.subr.bf16.mxu0 %v7901
        %8453 = vmatpush2.bf16.msra.mxu0 %v7900
        %8454 = vmatprep.subr.bf16.mxu0 %v7898
        %8455 = vmatpush2.bf16.msra.mxu0 %v7897
        %8456 = vmatprep.subr.bf16.mxu0 %v7895
        %8457 = vmatpush2.bf16.msra.mxu0 %v7894
        %8458 = vmatprep.subr.bf16.mxu0 %v7892
        %8459 = vmatpush2.bf16.msra.mxu0 %v7891
        %8460 = vmatprep.subr.bf16.mxu0 %v7889
        %8461 = vmatpush2.bf16.msra.mxu0 %v7888
        %8462 = vmatprep.mubr.bf16.mxu0 %v6400
        %8463 = vmatmul.mubr.bf16.gmra.mxu0 %v6399
        %v8464 = vpop.f32.mrf.mxu0
        %v8465 = vadd.f32 %v8422, %v8464
        %v8466 = vpop.f32.mrf.mxu0
        %v8467 = vadd.f32 %v8424, %v8466
        %v8468 = vpop.f32.mrf.mxu0
        %v8469 = vadd.f32 %v8426, %v8468
        %v8470 = vpop.f32.mrf.mxu0
        %v8471 = vadd.f32 %v8428, %v8470
        %8472 = vdwg.mxu0
        %8473 = vmatprep.subr.bf16.mxu0 %v7934
        %8474 = vmatpush1.bf16.msra.mxu0 %v7933
        %8475 = vmatprep.subr.bf16.mxu0 %v7931
        %8476 = vmatpush1.bf16.msra.mxu0 %v7930
        %8477 = vmatprep.subr.bf16.mxu0 %v7928
        %8478 = vmatpush1.bf16.msra.mxu0 %v7927
        %8479 = vmatprep.subr.bf16.mxu0 %v7925
        %8480 = vmatpush1.bf16.msra.mxu0 %v7924
        %8481 = vmatprep.subr.bf16.mxu0 %v7922
        %8482 = vmatpush1.bf16.msra.mxu0 %v7921
        %8483 = vmatprep.subr.bf16.mxu0 %v7919
        %8484 = vmatpush1.bf16.msra.mxu0 %v7918
        %8485 = vmatprep.subr.bf16.mxu0 %v7916
        %8486 = vmatpush1.bf16.msra.mxu0 %v7915
        %8487 = vmatprep.subr.bf16.mxu0 %v7913
        %8488 = vmatpush1.bf16.msra.mxu0 %v7912
        %8489 = vmatprep.subr.bf16.mxu0 %v7958
        %8490 = vmatpush2.bf16.msra.mxu0 %v7957
        %8491 = vmatprep.subr.bf16.mxu0 %v7955
        %8492 = vmatpush2.bf16.msra.mxu0 %v7954
        %8493 = vmatprep.subr.bf16.mxu0 %v7952
        %8494 = vmatpush2.bf16.msra.mxu0 %v7951
        %8495 = vmatprep.subr.bf16.mxu0 %v7949
        %8496 = vmatpush2.bf16.msra.mxu0 %v7948
        %8497 = vmatprep.subr.bf16.mxu0 %v7946
        %8498 = vmatpush2.bf16.msra.mxu0 %v7945
        %8499 = vmatprep.subr.bf16.mxu0 %v7943
        %8500 = vmatpush2.bf16.msra.mxu0 %v7942
        %8501 = vmatprep.subr.bf16.mxu0 %v7940
        %8502 = vmatpush2.bf16.msra.mxu0 %v7939
        %8503 = vmatprep.subr.bf16.mxu0 %v7937
        %8504 = vmatpush2.bf16.msra.mxu0 %v7936
        %8505 = vmatprep.mubr.bf16.mxu0 %v6402
        %8506 = vmatmul.mubr.bf16.gmra.mxu0 %v6401
        %v8507 = vpop.f32.mrf.mxu0
        %v8508 = vadd.f32 %v8465, %v8507
        %v8509 = vpop.f32.mrf.mxu0
        %v8510 = vadd.f32 %v8467, %v8509
        %v8511 = vpop.f32.mrf.mxu0
        %v8512 = vadd.f32 %v8469, %v8511
        %v8513 = vpop.f32.mrf.mxu0
        %v8514 = vadd.f32 %v8471, %v8513
        %8515 = vdwg.mxu0
        %8516 = vmatprep.subr.bf16.mxu0 %v7982
        %8517 = vmatpush1.bf16.msra.mxu0 %v7981
        %8518 = vmatprep.subr.bf16.mxu0 %v7979
        %8519 = vmatpush1.bf16.msra.mxu0 %v7978
        %8520 = vmatprep.subr.bf16.mxu0 %v7976
        %8521 = vmatpush1.bf16.msra.mxu0 %v7975
        %8522 = vmatprep.subr.bf16.mxu0 %v7973
        %8523 = vmatpush1.bf16.msra.mxu0 %v7972
        %8524 = vmatprep.subr.bf16.mxu0 %v7970
        %8525 = vmatpush1.bf16.msra.mxu0 %v7969
        %8526 = vmatprep.subr.bf16.mxu0 %v7967
        %8527 = vmatpush1.bf16.msra.mxu0 %v7966
        %8528 = vmatprep.subr.bf16.mxu0 %v7964
        %8529 = vmatpush1.bf16.msra.mxu0 %v7963
        %8530 = vmatprep.subr.bf16.mxu0 %v7961
        %8531 = vmatpush1.bf16.msra.mxu0 %v7960
        %8532 = vmatprep.subr.bf16.mxu0 %v8006
        %8533 = vmatpush2.bf16.msra.mxu0 %v8005
        %8534 = vmatprep.subr.bf16.mxu0 %v8003
        %8535 = vmatpush2.bf16.msra.mxu0 %v8002
        %8536 = vmatprep.subr.bf16.mxu0 %v8000
        %8537 = vmatpush2.bf16.msra.mxu0 %v7999
        %8538 = vmatprep.subr.bf16.mxu0 %v7997
        %8539 = vmatpush2.bf16.msra.mxu0 %v7996
        %8540 = vmatprep.subr.bf16.mxu0 %v7994
        %8541 = vmatpush2.bf16.msra.mxu0 %v7993
        %8542 = vmatprep.subr.bf16.mxu0 %v7991
        %8543 = vmatpush2.bf16.msra.mxu0 %v7990
        %8544 = vmatprep.subr.bf16.mxu0 %v7988
        %8545 = vmatpush2.bf16.msra.mxu0 %v7987
        %8546 = vmatprep.subr.bf16.mxu0 %v7985
        %8547 = vmatpush2.bf16.msra.mxu0 %v7984
        %8548 = vmatprep.mubr.bf16.mxu0 %v6404
        %8549 = vmatmul.mubr.bf16.gmra.mxu0 %v6403
        %v8550 = vpop.f32.mrf.mxu0
        %v8551 = vadd.f32 %v8508, %v8550
        %v8552 = vpop.f32.mrf.mxu0
        %v8553 = vadd.f32 %v8510, %v8552
        %v8554 = vpop.f32.mrf.mxu0
        %v8555 = vadd.f32 %v8512, %v8554
        %v8556 = vpop.f32.mrf.mxu0
        %v8557 = vadd.f32 %v8514, %v8556
        %8558 = vdwg.mxu0
        %8559 = vmatprep.subr.bf16.mxu0 %v8030
        %8560 = vmatpush1.bf16.msra.mxu0 %v8029
        %8561 = vmatprep.subr.bf16.mxu0 %v8027
        %8562 = vmatpush1.bf16.msra.mxu0 %v8026
        %8563 = vmatprep.subr.bf16.mxu0 %v8024
        %8564 = vmatpush1.bf16.msra.mxu0 %v8023
        %8565 = vmatprep.subr.bf16.mxu0 %v8021
        %8566 = vmatpush1.bf16.msra.mxu0 %v8020
        %8567 = vmatprep.subr.bf16.mxu0 %v8018
        %8568 = vmatpush1.bf16.msra.mxu0 %v8017
        %8569 = vmatprep.subr.bf16.mxu0 %v8015
        %8570 = vmatpush1.bf16.msra.mxu0 %v8014
        %8571 = vmatprep.subr.bf16.mxu0 %v8012
        %8572 = vmatpush1.bf16.msra.mxu0 %v8011
        %8573 = vmatprep.subr.bf16.mxu0 %v8009
        %8574 = vmatpush1.bf16.msra.mxu0 %v8008
        %8575 = vmatprep.subr.bf16.mxu0 %v8054
        %8576 = vmatpush2.bf16.msra.mxu0 %v8053
        %8577 = vmatprep.subr.bf16.mxu0 %v8051
        %8578 = vmatpush2.bf16.msra.mxu0 %v8050
        %8579 = vmatprep.subr.bf16.mxu0 %v8048
        %8580 = vmatpush2.bf16.msra.mxu0 %v8047
        %8581 = vmatprep.subr.bf16.mxu0 %v8045
        %8582 = vmatpush2.bf16.msra.mxu0 %v8044
        %8583 = vmatprep.subr.bf16.mxu0 %v8042
        %8584 = vmatpush2.bf16.msra.mxu0 %v8041
        %8585 = vmatprep.subr.bf16.mxu0 %v8039
        %8586 = vmatpush2.bf16.msra.mxu0 %v8038
        %8587 = vmatprep.subr.bf16.mxu0 %v8036
        %8588 = vmatpush2.bf16.msra.mxu0 %v8035
        %8589 = vmatprep.subr.bf16.mxu0 %v8033
        %8590 = vmatpush2.bf16.msra.mxu0 %v8032
        %8591 = vmatprep.mubr.bf16.mxu0 %v6406
        %8592 = vmatmul.mubr.bf16.gmra.mxu0 %v6405
        %v8593 = vpop.f32.mrf.mxu0
        %v8594 = vadd.f32 %v8551, %v8593
        %v8595 = vpop.f32.mrf.mxu0
        %v8596 = vadd.f32 %v8553, %v8595
        %v8597 = vpop.f32.mrf.mxu0
        %v8598 = vadd.f32 %v8555, %v8597
        %v8599 = vpop.f32.mrf.mxu0
        %v8600 = vadd.f32 %v8557, %v8599
        %8601 = vdwg.mxu0
        %8602 = vmatprep.subr.bf16.mxu0 0
        %8603 = vmatpush1.bf16.msra.mxu0 %v7791
        %8604 = vmatprep.subr.bf16.mxu0 0
        %8605 = vmatpush1.bf16.msra.mxu0 %v7788
        %8606 = vmatprep.subr.bf16.mxu0 0
        %8607 = vmatpush1.bf16.msra.mxu0 %v7785
        %8608 = vmatprep.subr.bf16.mxu0 0
        %8609 = vmatpush1.bf16.msra.mxu0 %v7782
        %8610 = vmatprep.subr.bf16.mxu0 0
        %8611 = vmatpush1.bf16.msra.mxu0 %v7779
        %8612 = vmatprep.subr.bf16.mxu0 0
        %8613 = vmatpush1.bf16.msra.mxu0 %v7776
        %8614 = vmatprep.subr.bf16.mxu0 0
        %8615 = vmatpush1.bf16.msra.mxu0 %v7773
        %8616 = vmatprep.subr.bf16.mxu0 0
        %8617 = vmatpush1.bf16.msra.mxu0 %v7770
        %8618 = vmatprep.subr.bf16.mxu0 0
        %8619 = vmatpush2.bf16.msra.mxu0 %v7815
        %8620 = vmatprep.subr.bf16.mxu0 0
        %8621 = vmatpush2.bf16.msra.mxu0 %v7812
        %8622 = vmatprep.subr.bf16.mxu0 0
        %8623 = vmatpush2.bf16.msra.mxu0 %v7809
        %8624 = vmatprep.subr.bf16.mxu0 0
        %8625 = vmatpush2.bf16.msra.mxu0 %v7806
        %8626 = vmatprep.subr.bf16.mxu0 0
        %8627 = vmatpush2.bf16.msra.mxu0 %v7803
        %8628 = vmatprep.subr.bf16.mxu0 0
        %8629 = vmatpush2.bf16.msra.mxu0 %v7800
        %8630 = vmatprep.subr.bf16.mxu0 0
        %8631 = vmatpush2.bf16.msra.mxu0 %v7797
        %8632 = vmatprep.subr.bf16.mxu0 0
        %8633 = vmatpush2.bf16.msra.mxu0 %v7794
        %8634 = vmatprep.mubr.bf16.mxu0 %v6396
        %8635 = vmatmul.mubr.bf16.gmra.mxu0 %v6395
        %v8636 = vpop.f32.mrf.mxu0
        %v8637 = vadd.f32 %v6804, %v8636
        %v8638 = vpop.f32.mrf.mxu0
        %v8639 = vpop.f32.mrf.mxu0
        %v8640 = vadd.f32 %v6804, %v8639
        %v8641 = vpop.f32.mrf.mxu0
        %8642 = vdwg.mxu0
        %8643 = vmatprep.subr.bf16.mxu0 0
        %8644 = vmatpush1.bf16.msra.mxu0 %v7839
        %8645 = vmatprep.subr.bf16.mxu0 0
        %8646 = vmatpush1.bf16.msra.mxu0 %v7836
        %8647 = vmatprep.subr.bf16.mxu0 0
        %8648 = vmatpush1.bf16.msra.mxu0 %v7833
        %8649 = vmatprep.subr.bf16.mxu0 0
        %8650 = vmatpush1.bf16.msra.mxu0 %v7830
        %8651 = vmatprep.subr.bf16.mxu0 0
        %8652 = vmatpush1.bf16.msra.mxu0 %v7827
        %8653 = vmatprep.subr.bf16.mxu0 0
        %8654 = vmatpush1.bf16.msra.mxu0 %v7824
        %8655 = vmatprep.subr.bf16.mxu0 0
        %8656 = vmatpush1.bf16.msra.mxu0 %v7821
        %8657 = vmatprep.subr.bf16.mxu0 0
        %8658 = vmatpush1.bf16.msra.mxu0 %v7818
        %8659 = vmatprep.subr.bf16.mxu0 0
        %8660 = vmatpush2.bf16.msra.mxu0 %v7863
        %8661 = vmatprep.subr.bf16.mxu0 0
        %8662 = vmatpush2.bf16.msra.mxu0 %v7860
        %8663 = vmatprep.subr.bf16.mxu0 0
        %8664 = vmatpush2.bf16.msra.mxu0 %v7857
        %8665 = vmatprep.subr.bf16.mxu0 0
        %8666 = vmatpush2.bf16.msra.mxu0 %v7854
        %8667 = vmatprep.subr.bf16.mxu0 0
        %8668 = vmatpush2.bf16.msra.mxu0 %v7851
        %8669 = vmatprep.subr.bf16.mxu0 0
        %8670 = vmatpush2.bf16.msra.mxu0 %v7848
        %8671 = vmatprep.subr.bf16.mxu0 0
        %8672 = vmatpush2.bf16.msra.mxu0 %v7845
        %8673 = vmatprep.subr.bf16.mxu0 0
        %8674 = vmatpush2.bf16.msra.mxu0 %v7842
        %8675 = vmatprep.mubr.bf16.mxu0 %v6398
        %8676 = vmatmul.mubr.bf16.gmra.mxu0 %v6397
        %v8677 = vpop.f32.mrf.mxu0
        %v8678 = vadd.f32 %v8637, %v8677
        %v8679 = vpop.f32.mrf.mxu0
        %v8680 = vpop.f32.mrf.mxu0
        %v8681 = vadd.f32 %v8640, %v8680
        %v8682 = vpop.f32.mrf.mxu0
        %8683 = vdwg.mxu0
        %8684 = vmatprep.subr.bf16.mxu0 0
        %8685 = vmatpush1.bf16.msra.mxu0 %v7887
        %8686 = vmatprep.subr.bf16.mxu0 0
        %8687 = vmatpush1.bf16.msra.mxu0 %v7884
        %8688 = vmatprep.subr.bf16.mxu0 0
        %8689 = vmatpush1.bf16.msra.mxu0 %v7881
        %8690 = vmatprep.subr.bf16.mxu0 0
        %8691 = vmatpush1.bf16.msra.mxu0 %v7878
        %8692 = vmatprep.subr.bf16.mxu0 0
        %8693 = vmatpush1.bf16.msra.mxu0 %v7875
        %8694 = vmatprep.subr.bf16.mxu0 0
        %8695 = vmatpush1.bf16.msra.mxu0 %v7872
        %8696 = vmatprep.subr.bf16.mxu0 0
        %8697 = vmatpush1.bf16.msra.mxu0 %v7869
        %8698 = vmatprep.subr.bf16.mxu0 0
        %8699 = vmatpush1.bf16.msra.mxu0 %v7866
        %8700 = vmatprep.subr.bf16.mxu0 0
        %8701 = vmatpush2.bf16.msra.mxu0 %v7911
        %8702 = vmatprep.subr.bf16.mxu0 0
        %8703 = vmatpush2.bf16.msra.mxu0 %v7908
        %8704 = vmatprep.subr.bf16.mxu0 0
        %8705 = vmatpush2.bf16.msra.mxu0 %v7905
        %8706 = vmatprep.subr.bf16.mxu0 0
        %8707 = vmatpush2.bf16.msra.mxu0 %v7902
        %8708 = vmatprep.subr.bf16.mxu0 0
        %8709 = vmatpush2.bf16.msra.mxu0 %v7899
        %8710 = vmatprep.subr.bf16.mxu0 0
        %8711 = vmatpush2.bf16.msra.mxu0 %v7896
        %8712 = vmatprep.subr.bf16.mxu0 0
        %8713 = vmatpush2.bf16.msra.mxu0 %v7893
        %8714 = vmatprep.subr.bf16.mxu0 0
        %8715 = vmatpush2.bf16.msra.mxu0 %v7890
        %8716 = vmatprep.mubr.bf16.mxu0 %v6400
        %8717 = vmatmul.mubr.bf16.gmra.mxu0 %v6399
        %v8718 = vpop.f32.mrf.mxu0
        %v8719 = vadd.f32 %v8678, %v8718
        %v8720 = vpop.f32.mrf.mxu0
        %v8721 = vpop.f32.mrf.mxu0
        %v8722 = vadd.f32 %v8681, %v8721
        %v8723 = vpop.f32.mrf.mxu0
        %8724 = vdwg.mxu0
        %8725 = vmatprep.subr.bf16.mxu0 0
        %8726 = vmatpush1.bf16.msra.mxu0 %v7935
        %8727 = vmatprep.subr.bf16.mxu0 0
        %8728 = vmatpush1.bf16.msra.mxu0 %v7932
        %8729 = vmatprep.subr.bf16.mxu0 0
        %8730 = vmatpush1.bf16.msra.mxu0 %v7929
        %8731 = vmatprep.subr.bf16.mxu0 0
        %8732 = vmatpush1.bf16.msra.mxu0 %v7926
        %8733 = vmatprep.subr.bf16.mxu0 0
        %8734 = vmatpush1.bf16.msra.mxu0 %v7923
        %8735 = vmatprep.subr.bf16.mxu0 0
        %8736 = vmatpush1.bf16.msra.mxu0 %v7920
        %8737 = vmatprep.subr.bf16.mxu0 0
        %8738 = vmatpush1.bf16.msra.mxu0 %v7917
        %8739 = vmatprep.subr.bf16.mxu0 0
        %8740 = vmatpush1.bf16.msra.mxu0 %v7914
        %8741 = vmatprep.subr.bf16.mxu0 0
        %8742 = vmatpush2.bf16.msra.mxu0 %v7959
        %8743 = vmatprep.subr.bf16.mxu0 0
        %8744 = vmatpush2.bf16.msra.mxu0 %v7956
        %8745 = vmatprep.subr.bf16.mxu0 0
        %8746 = vmatpush2.bf16.msra.mxu0 %v7953
        %8747 = vmatprep.subr.bf16.mxu0 0
        %8748 = vmatpush2.bf16.msra.mxu0 %v7950
        %8749 = vmatprep.subr.bf16.mxu0 0
        %8750 = vmatpush2.bf16.msra.mxu0 %v7947
        %8751 = vmatprep.subr.bf16.mxu0 0
        %8752 = vmatpush2.bf16.msra.mxu0 %v7944
        %8753 = vmatprep.subr.bf16.mxu0 0
        %8754 = vmatpush2.bf16.msra.mxu0 %v7941
        %8755 = vmatprep.subr.bf16.mxu0 0
        %8756 = vmatpush2.bf16.msra.mxu0 %v7938
        %8757 = vmatprep.mubr.bf16.mxu0 %v6402
        %8758 = vmatmul.mubr.bf16.gmra.mxu0 %v6401
        %v8759 = vpop.f32.mrf.mxu0
        %v8760 = vadd.f32 %v8719, %v8759
        %v8761 = vpop.f32.mrf.mxu0
        %v8762 = vpop.f32.mrf.mxu0
        %v8763 = vadd.f32 %v8722, %v8762
        %v8764 = vpop.f32.mrf.mxu0
        %8765 = vdwg.mxu0
        %8766 = vmatprep.subr.bf16.mxu0 0
        %8767 = vmatpush1.bf16.msra.mxu0 %v7983
        %8768 = vmatprep.subr.bf16.mxu0 0
        %8769 = vmatpush1.bf16.msra.mxu0 %v7980
        %8770 = vmatprep.subr.bf16.mxu0 0
        %8771 = vmatpush1.bf16.msra.mxu0 %v7977
        %8772 = vmatprep.subr.bf16.mxu0 0
        %8773 = vmatpush1.bf16.msra.mxu0 %v7974
        %8774 = vmatprep.subr.bf16.mxu0 0
        %8775 = vmatpush1.bf16.msra.mxu0 %v7971
        %8776 = vmatprep.subr.bf16.mxu0 0
        %8777 = vmatpush1.bf16.msra.mxu0 %v7968
        %8778 = vmatprep.subr.bf16.mxu0 0
        %8779 = vmatpush1.bf16.msra.mxu0 %v7965
        %8780 = vmatprep.subr.bf16.mxu0 0
        %8781 = vmatpush1.bf16.msra.mxu0 %v7962
        %8782 = vmatprep.subr.bf16.mxu0 0
        %8783 = vmatpush2.bf16.msra.mxu0 %v8007
        %8784 = vmatprep.subr.bf16.mxu0 0
        %8785 = vmatpush2.bf16.msra.mxu0 %v8004
        %8786 = vmatprep.subr.bf16.mxu0 0
        %8787 = vmatpush2.bf16.msra.mxu0 %v8001
        %8788 = vmatprep.subr.bf16.mxu0 0
        %8789 = vmatpush2.bf16.msra.mxu0 %v7998
        %8790 = vmatprep.subr.bf16.mxu0 0
        %8791 = vmatpush2.bf16.msra.mxu0 %v7995
        %8792 = vmatprep.subr.bf16.mxu0 0
        %8793 = vmatpush2.bf16.msra.mxu0 %v7992
        %8794 = vmatprep.subr.bf16.mxu0 0
        %8795 = vmatpush2.bf16.msra.mxu0 %v7989
        %8796 = vmatprep.subr.bf16.mxu0 0
        %8797 = vmatpush2.bf16.msra.mxu0 %v7986
        %8798 = vmatprep.mubr.bf16.mxu0 %v6404
        %8799 = vmatmul.mubr.bf16.gmra.mxu0 %v6403
        %v8800 = vpop.f32.mrf.mxu0
        %v8801 = vadd.f32 %v8760, %v8800
        %v8802 = vpop.f32.mrf.mxu0
        %v8803 = vpop.f32.mrf.mxu0
        %v8804 = vadd.f32 %v8763, %v8803
        %v8805 = vpop.f32.mrf.mxu0
        %8806 = vdwg.mxu0
        %8807 = vmatprep.subr.bf16.mxu0 0
        %8808 = vmatpush1.bf16.msra.mxu0 %v8031
        %8809 = vmatprep.subr.bf16.mxu0 0
        %8810 = vmatpush1.bf16.msra.mxu0 %v8028
        %8811 = vmatprep.subr.bf16.mxu0 0
        %8812 = vmatpush1.bf16.msra.mxu0 %v8025
        %8813 = vmatprep.subr.bf16.mxu0 0
        %8814 = vmatpush1.bf16.msra.mxu0 %v8022
        %8815 = vmatprep.subr.bf16.mxu0 0
        %8816 = vmatpush1.bf16.msra.mxu0 %v8019
        %8817 = vmatprep.subr.bf16.mxu0 0
        %8818 = vmatpush1.bf16.msra.mxu0 %v8016
        %8819 = vmatprep.subr.bf16.mxu0 0
        %8820 = vmatpush1.bf16.msra.mxu0 %v8013
        %8821 = vmatprep.subr.bf16.mxu0 0
        %8822 = vmatpush1.bf16.msra.mxu0 %v8010
        %8823 = vmatprep.subr.bf16.mxu0 0
        %8824 = vmatpush2.bf16.msra.mxu0 %v8055
        %8825 = vmatprep.subr.bf16.mxu0 0
        %8826 = vmatpush2.bf16.msra.mxu0 %v8052
        %8827 = vmatprep.subr.bf16.mxu0 0
        %8828 = vmatpush2.bf16.msra.mxu0 %v8049
        %8829 = vmatprep.subr.bf16.mxu0 0
        %8830 = vmatpush2.bf16.msra.mxu0 %v8046
        %8831 = vmatprep.subr.bf16.mxu0 0
        %8832 = vmatpush2.bf16.msra.mxu0 %v8043
        %8833 = vmatprep.subr.bf16.mxu0 0
        %8834 = vmatpush2.bf16.msra.mxu0 %v8040
        %8835 = vmatprep.subr.bf16.mxu0 0
        %8836 = vmatpush2.bf16.msra.mxu0 %v8037
        %8837 = vmatprep.subr.bf16.mxu0 0
        %8838 = vmatpush2.bf16.msra.mxu0 %v8034
        %8839 = vmatprep.mubr.bf16.mxu0 %v6406
        %8840 = vmatmul.mubr.bf16.gmra.mxu0 %v6405
        %v8841 = vpop.f32.mrf.mxu0
        %v8842 = vadd.f32 %v8801, %v8841
        %v8843 = vpop.f32.mrf.mxu0
        %v8844 = vpop.f32.mrf.mxu0
        %v8845 = vadd.f32 %v8804, %v8844
        %v8846 = vpop.f32.mrf.mxu0
        %8847 = vdwg.mxu0
        %v8848 = vadd.f32 %v3966, %v8594
        %v8849 = vadd.f32 %v3967, %v8596
        %v8850 = vadd.f32 %v3968, %v8842
        %v8851 = vadd.f32 %v3969, %v8598
        %v8852 = vadd.f32 %v3970, %v8600
        %v8853 = vadd.f32 %v3971, %v8845
        %8854 = vst [vmem:[%s577] sm:$0xff] %v8848
        %8855 = vst [vmem:[%s577 + $0x8] sm:$0xff] %v8849
        %8856 = vst [vmem:[%s577 + $0x10] sm:$0xff] %v8850
        %8857 = vst [vmem:[%s577 + $0x18] sm:$0xff] %v8851
        %8858 = vst [vmem:[%s577 + $0x20] sm:$0xff] %v8852
        %8859 = vst [vmem:[%s577 + $0x28] sm:$0xff] %v8853
        %s8860 = sand.u32 %s300, 1
        %s8861 = scalar_lea.sflag [#allocation5], %s8860
        %s8862 = sand.u32 %s300, 1
        %s8863 = smul.addr %s8862, 48
        %s8864 = scalar_lea.vmem [#allocation23], %s8863
        // Predicated region
        $region117: #{tpu_custom_call.1} parent=67 // pred_check
          %p8865 = pneg %p310
        $region118: #{tpu_custom_call.1} parent=67 // pred_check_branch
          %8867 = sbr.rel (%p8865) target = $region120
        $region119: #{tpu_custom_call.1} parent=67 // pred_region
          %s8869 = ssub.s32 768, 768
          %8870 = vsyncadd %s8861, %s8869
          %s8871 = smul.addr %s35, 6
          %s8872 = smul.addr %s8871, 128
          %s8873 = scalar_lea.hbm %s12, %s8872
          %s8874 = sshll.u32 %s8864, 4
          %s8875 = int_to_ptr.vmem [resolvable:$true] %s8874
          %8880 = dma.vmem_to_hbm [thread:$0]  %s8875, 768, %s8873, %s8861, 384, 384, 24
        $region120: #{tpu_custom_call.1} parent=67 // pred_fallthru
          _
      $region68: #{tpu_custom_call.1} parent=5 // pred_fallthru
        _
      %p8881 = scmp.le.s32.totalorder 2, %s30
      // Predicated region
      $region121: #{tpu_custom_call.1} parent=5 // pred_check
        %p8882 = pneg %p8881
      $region122: #{tpu_custom_call.1} parent=5 // pred_check_branch
        %8884 = sbr.rel (%p8882) target = $region124
      $region123: #{tpu_custom_call.1} parent=5 // pred_region
        %s8885 = ssub.s32 %s30, 2
        // Predicated region
        $region125: #{tpu_custom_call.1} parent=123 // pred_check
          %p8886 = pneg %p316
        $region126: #{tpu_custom_call.1} parent=123 // pred_check_branch
          %8888 = sbr.rel (%p8886) target = $region128
        $region127: #{tpu_custom_call.1} parent=123 // pred_region
          %s8889 = sand.u32 %s301, 1
          %s8890 = scalar_lea.sflag [#allocation5], %s8889
          %s8891 = sand.u32 %s301, 1
          %s8892 = smul.addr %s8891, 48
          %s8893 = scalar_lea.vmem [#allocation23], %s8892
          %8894 = dma.done %s8890, 768
        $region128: #{tpu_custom_call.1} parent=123 // pred_fallthru
          _
      $region124: #{tpu_custom_call.1} parent=5 // pred_fallthru
        _
    $region6: #{tpu_custom_call.1} parent=1 // loop_footer
      %s34 = sadd.s32 1, %s30
    $region7: #{tpu_custom_call.1} parent=1 // loop_footer_branch
      %29 = sbr.rel target = $region3
    $region8: #{tpu_custom_call.1} parent=1 // loop_exit
      _
    %8895 = vsyncpa [#allocation4], 1
    %s8896 = scalar_lea.sflag [#allocation4], 1
    %8897 = vsyncpa %s8896, 1
    %8898 = vsyncpa [#allocation7], 1
    %8899 = vsyncpa [#allocation10], 1
    %8900 = vsyncpa [#allocation13], 1
    %8901 = vsyncpa [#allocation16], 1
    %8902 = vsyncpa [#allocation19], 1
    %8903 = vsyncpa [#allocation22], 1
    %8904 = vsyncpa [#allocation5], 1
    %s8905 = scalar_lea.sflag [#allocation5], 1
    %8906 = vsyncpa %s8905, 1

</llo_original>
